<compile_context>
chip_gen: v7x
topology: tpu7x:2x2x1
jax: 0.10.0
libtpu: 0.0.40
codegen_flags: <defaults>
</compile_context>

<pallas_src>
import functools
import math

import jax
import jax.numpy as jnp
from jax import lax
from jax.experimental import pallas as pl
from jax.experimental.pallas import tpu as pltpu

jax.config.update("jax_default_matmul_precision", "highest")

LN_EPS = 1e-5
LANE = 128


def _round_up(n, m):
    return ((n + m - 1) // m) * m


def _vmem_budget_bytes(frac=0.8):
    # Derive the scoped-VMEM limit from the actual chip instead of hardcoding.
    try:
        cap = pltpu.get_tpu_info().vmem_capacity_bytes
    except Exception:
        cap = 64 * 1024 * 1024          # conservative fallback (v7x per-TC VMEM)
    cap = min(int(cap), 128 * 1024 * 1024)
    return int(cap * frac)


def _layernorm_masked(x, gamma, beta, true_h, lmask):
    # x: (M, Hp) with pad lanes == 0 by construction; torch LN (biased var).
    inv_h = jnp.float32(1.0 / true_h)
    mean = jnp.sum(x, axis=-1, keepdims=True) * inv_h
    xc = x - mean
    xm = xc * lmask                       # mask (0-mean)^2 terms from pad lanes
    var = jnp.sum(xm * xm, axis=-1, keepdims=True) * inv_h
    inv = lax.rsqrt(var + jnp.float32(LN_EPS))
    return xc * inv * gamma + beta        # gamma/beta pad lanes are 0 -> y pad = 0


def _gelu_exact(x):
    # nn.GELU() default: exact erf-based GELU.
    return 0.5 * x * (1.0 + lax.erf(x * jnp.float32(1.0 / math.sqrt(2.0))))


# ----------------------------------------------------------------------------
# Fused encoder-layer kernel: one batch block per grid step.
# ----------------------------------------------------------------------------
def encoder_layer_kernel(x_ref, ln1g_ref, ln1b_ref, wqkv_ref, bqkv_ref,
                         wo_ref, bo_ref, ln2g_ref, ln2b_ref,
                         w1_ref, b1_ref, w2_ref, b2_ref, *rest,
                         num_heads, true_h, has_bias):
    if has_bias:
        bias_ref, o_ref = rest
    else:
        (o_ref,) = rest

    bblk, S, Hp = x_ref.shape
    m = bblk * S
    dk = true_h // num_heads
    scale = jnp.float32(dk ** -0.5)

    lane = lax.broadcasted_iota(jnp.int32, (1, Hp), 1)
    lmask = (lane < true_h).astype(jnp.float32)

    x = x_ref[...].reshape(m, Hp)                      # leading-dim merge (free)

    # ---- LN1 + fused QKV projection (single MXU matmul, N = 3*Hp) ----
    y = _layernorm_masked(x, ln1g_ref[...], ln1b_ref[...], true_h, lmask)
    qkv = jnp.dot(y, wqkv_ref[...],
                  preferred_element_type=jnp.float32) + bqkv_ref[...]
    wo = wo_ref[...]
    if has_bias:
        bias = bias_ref[...]                           # (bblk, nh, S, S)

    # ---- per-head attention, batched over the batch block ----
    attn = jnp.zeros((m, Hp), jnp.float32)
    for h in range(num_heads):                         # static unroll, nh small
        lo = h * dk
        qh = (qkv[:, lo:lo + dk] * scale).reshape(bblk, S, dk)
        kh = qkv[:, Hp + lo:Hp + lo + dk].reshape(bblk, S, dk)
        vh = qkv[:, 2 * Hp + lo:2 * Hp + lo + dk].reshape(bblk, S, dk)
        s = jnp.einsum('bqd,bkd->bqk', qh, kh,
                       preferred_element_type=jnp.float32)     # (bblk, S, S)
        if has_bias:
            s = s + bias[:, h]
        mx = jnp.max(s, axis=-1, keepdims=True)
        e = jnp.exp(s - mx)
        p = e * (1.0 / jnp.sum(e, axis=-1, keepdims=True))     # 1 recip per row
        oh = jnp.einsum('bqk,bkd->bqd', p, vh,
                        preferred_element_type=jnp.float32)    # (bblk, S, dk)
        # Fold head h into the output projection:
        #   concat_h(oh) @ Wo == sum_h oh @ Wo[h*dk:(h+1)*dk, :]
        attn = attn + jnp.dot(oh.reshape(m, dk), wo[lo:lo + dk, :],
                              preferred_element_type=jnp.float32)
    x1 = x + attn + bo_ref[...]                        # pad lanes stay 0

    # ---- LN2 + FFN + residual ----
    y2 = _layernorm_masked(x1, ln2g_ref[...], ln2b_ref[...], true_h, lmask)
    hmid = jnp.dot(y2, w1_ref[...],
                   preferred_element_type=jnp.float32) + b1_ref[...]
    f = jnp.dot(_gelu_exact(hmid), w2_ref[...],
                preferred_element_type=jnp.float32) + b2_ref[...]
    o_ref[...] = (x1 + f).reshape(bblk, S, Hp).astype(o_ref.dtype)


# ----------------------------------------------------------------------------
# Wrapper-side one-time parameter repack (fuse QKV, pad H/F to lane multiples).
# ----------------------------------------------------------------------------
def pack_params(p):
    H = p["wq"].shape[0]
    F = p["w1"].shape[1]
    Hp, Fp = _round_up(H, LANE), _round_up(F, LANE)
    padw = lambda w, r, c: jnp.pad(w, ((0, r - w.shape[0]), (0, c - w.shape[1])))
    padv = lambda v, n: jnp.pad(v, (0, n - v.shape[0])).reshape(1, n)
    wqkv = jnp.concatenate([padw(p["wq"], Hp, Hp), padw(p["wk"], Hp, Hp),
                            padw(p["wv"], Hp, Hp)], axis=1)          # (Hp, 3Hp)
    bqkv = jnp.concatenate([padv(p["bq"], Hp), padv(p["bk"], Hp),
                            padv(p["bv"], Hp)], axis=1)              # (1, 3Hp)
    return dict(
        num_heads=p["num_heads"], H=H, F=F, Hp=Hp, Fp=Fp,
        ln1_g=padv(p["ln1_g"], Hp), ln1_b=padv(p["ln1_b"], Hp),
        ln2_g=padv(p["ln2_g"], Hp), ln2_b=padv(p["ln2_b"], Hp),
        wqkv=wqkv, bqkv=bqkv,
        wo=padw(p["wo"], Hp, Hp), bo=padv(p["bo"], Hp),
        w1=padw(p["w1"], Hp, Fp), b1=padv(p["b1"], Fp),
        w2=padw(p["w2"], Fp, Hp), b2=padv(p["b2"], Hp))


def _choose_batch_block(B, S, Hp, Fp, nh, vmem_budget):
    # Rough per-batch-element f32 activation working set (x3 pipeline slack).
    per_b = 4 * (S * (9 * Hp + 2 * Fp) + 3 * nh * S * S) * 3
    # Weights/biases: constant blocks, double-buffered by default.
    const_b = 4 * 2 * (Hp * 3 * Hp + Hp * Hp + Hp * Fp + Fp * Hp + 8 * Hp + Fp)
    avail = max(vmem_budget - const_b, 1 << 20)
    bblk = max(1, min(B, int(avail // max(per_b, 1))))
    bblk = min(bblk, max(1, 2048 // max(S, 1)))   # keep blocks modest (v5e)
    if B >= 2:
        bblk = min(bblk, (B + 1) // 2)            # >=2 grid steps for megacore
    return max(1, bblk)


# ----------------------------------------------------------------------------
# EncoderLayer forward
# ----------------------------------------------------------------------------
def encoder_layer(x, packed, attn_bias=None):
    B, S, H = x.shape
    assert H == packed["H"]
    nh, Hp, Fp = packed["num_heads"], packed["Hp"], packed["Fp"]
    x_p = jnp.pad(x, ((0, 0), (0, 0), (0, Hp - H))) if Hp != H else x

    vmem_budget = _vmem_budget_bytes()
    bblk = _choose_batch_block(B, S, Hp, Fp, nh, vmem_budget)
    grid = (pl.cdiv(B, bblk),)
    has_bias = attn_bias is not None

    kernel = functools.partial(encoder_layer_kernel, num_heads=nh, true_h=H,
                               has_bias=has_bias)
    const = lambda shape: pl.BlockSpec(shape, lambda i: (0, 0))
    in_specs = [
        pl.BlockSpec((bblk, S, Hp), lambda i: (i, 0, 0)),     # x
        const((1, Hp)), const((1, Hp)),                       # LN1 gamma/beta
        const((Hp, 3 * Hp)), const((1, 3 * Hp)),              # fused Wqkv, bqkv
        const((Hp, Hp)), const((1, Hp)),                      # Wo, bo
        const((1, Hp)), const((1, Hp)),                       # LN2 gamma/beta
        const((Hp, Fp)), const((1, Fp)),                      # W1, b1
        const((Fp, Hp)), const((1, Hp)),                      # W2, b2
    ]
    args = [x_p, packed["ln1_g"], packed["ln1_b"], packed["wqkv"], packed["bqkv"],
            packed["wo"], packed["bo"], packed["ln2_g"], packed["ln2_b"],
            packed["w1"], packed["b1"], packed["w2"], packed["b2"]]
    if has_bias:
        in_specs.append(pl.BlockSpec((bblk, nh, S, S), lambda i: (i, 0, 0, 0)))
        args.append(attn_bias)

    out_p = pl.pallas_call(
        kernel,
        out_shape=jax.ShapeDtypeStruct((B, S, Hp), x.dtype),
        grid_spec=pltpu.PrefetchScalarGridSpec(
            num_scalar_prefetch=0, grid=grid,
            in_specs=in_specs,
            out_specs=pl.BlockSpec((bblk, S, Hp), lambda i: (i, 0, 0))),
        compiler_params=pltpu.CompilerParams(
            dimension_semantics=("parallel",),
            vmem_limit_bytes=vmem_budget),
    )(*args)
    return out_p[..., :H] if Hp != H else out_p


# ----------------------------------------------------------------------------
# Parameter init (mimics nn.Linear / nn.LayerNorm defaults; weights (in, out)).
# ----------------------------------------------------------------------------
def init_params(key, hidden_size, ffn_size, num_heads):
    ks = jax.random.split(key, 12)

    def lin(kw, kb, fan_in, fan_out):
        lim = 1.0 / math.sqrt(fan_in)
        w = jax.random.uniform(kw, (fan_in, fan_out), jnp.float32, -lim, lim)
        b = jax.random.uniform(kb, (fan_out,), jnp.float32, -lim, lim)
        return w, b

    wq, bq = lin(ks[0], ks[1], hidden_size, hidden_size)
    wk, bk = lin(ks[2], ks[3], hidden_size, hidden_size)
    wv, bv = lin(ks[4], ks[5], hidden_size, hidden_size)
    wo, bo = lin(ks[6], ks[7], hidden_size, hidden_size)
    w1, b1 = lin(ks[8], ks[9], hidden_size, ffn_size)
    w2, b2 = lin(ks[10], ks[11], ffn_size, hidden_size)
    return dict(
        num_heads=num_heads,
        ln1_g=jnp.ones((hidden_size,), jnp.float32),
        ln1_b=jnp.zeros((hidden_size,), jnp.float32),
        ln2_g=jnp.ones((hidden_size,), jnp.float32),
        ln2_b=jnp.zeros((hidden_size,), jnp.float32),
        wq=wq, bq=bq, wk=wk, bk=bk, wv=wv, bv=bv, wo=wo, bo=bo,
        w1=w1, b1=b1, w2=w2, b2=b2)


# ----------------------------------------------------------------------------
# Pure-JAX reference (same math as the torch EncoderLayer in eval mode).
# ----------------------------------------------------------------------------
def reference(x, p, attn_bias):
    def ln(z, g, b):
        m = z.mean(-1, keepdims=True)
        v = ((z - m) ** 2).mean(-1, keepdims=True)
        return (z - m) / jnp.sqrt(v + LN_EPS) * g + b

    B, S, H = x.shape
    nh = p["num_heads"]
    dk = H // nh
    y = ln(x, p["ln1_g"], p["ln1_b"])
    q = (y @ p["wq"] + p["bq"]).reshape(B, S, nh, dk).transpose(0, 2, 1, 3)
    k = (y @ p["wk"] + p["bk"]).reshape(B, S, nh, dk).transpose(0, 2, 1, 3)
    v = (y @ p["wv"] + p["bv"]).reshape(B, S, nh, dk).transpose(0, 2, 1, 3)
    s = (q * (dk ** -0.5)) @ jnp.swapaxes(k, -1, -2)
    if attn_bias is not None:
        s = s + attn_bias
    a = jax.nn.softmax(s, axis=-1)
    ctx = (a @ v).transpose(0, 2, 1, 3).reshape(B, S, H)
    x = x + (ctx @ p["wo"] + p["bo"])
    y = ln(x, p["ln2_g"], p["ln2_b"])
    h = y @ p["w1"] + p["b1"]
    g = 0.5 * h * (1.0 + lax.erf(h / jnp.sqrt(2.0)))
    return x + (g @ p["w2"] + p["b2"])


if __name__ == "__main__":
    hidden_size = 32
    ffn_size = 64
    num_heads = 4
    batch, seq = 2, 8

    key = jax.random.PRNGKey(0)
    kx, kb, kp = jax.random.split(key, 3)
    x = jax.random.normal(kx, (batch, seq, hidden_size), jnp.float32)
    attn_bias = 0.1 * jax.random.normal(
        kb, (batch, num_heads, seq, seq), jnp.float32)
    params = init_params(kp, hidden_size, ffn_size, num_heads)
    packed = pack_params(params)

    # Path 1: with attention bias.
    out_b = jax.block_until_ready(encoder_layer(x, packed, attn_bias))
    ref_b = reference(x, params, attn_bias)
    assert out_b.shape == ref_b.shape
    err_b = float(jnp.max(jnp.abs(out_b - ref_b)))
    assert jnp.allclose(out_b, ref_b, atol=1e-4, rtol=1e-4), \
        f"bias-path mismatch, max err {err_b}"

    # Path 2: bias=None specialization (no zero-bias DMA, bias input dropped).
    out_n = jax.block_until_ready(encoder_layer(x, packed, None))
    ref_n = reference(x, params, None)
    err_n = float(jnp.max(jnp.abs(out_n - ref_n)))
    assert jnp.allclose(out_n, ref_n, atol=1e-4, rtol=1e-4), \
        f"no-bias-path mismatch, max err {err_n}"

    print("KERNEL_OK")
</pallas_src>

<mosaic_0001>
module attributes {stable_mosaic.version = 11 : i64} {
  func.func @encoder_layer_kernel(%arg0: i32, %arg1: memref<1x8x128xf32, #tpu.memory_space<vmem>>, %arg2: memref<1x128xf32, #tpu.memory_space<vmem>>, %arg3: memref<1x128xf32, #tpu.memory_space<vmem>>, %arg4: memref<128x384xf32, #tpu.memory_space<vmem>>, %arg5: memref<1x384xf32, #tpu.memory_space<vmem>>, %arg6: memref<128x128xf32, #tpu.memory_space<vmem>>, %arg7: memref<1x128xf32, #tpu.memory_space<vmem>>, %arg8: memref<1x128xf32, #tpu.memory_space<vmem>>, %arg9: memref<1x128xf32, #tpu.memory_space<vmem>>, %arg10: memref<128x128xf32, #tpu.memory_space<vmem>>, %arg11: memref<1x128xf32, #tpu.memory_space<vmem>>, %arg12: memref<128x128xf32, #tpu.memory_space<vmem>>, %arg13: memref<1x128xf32, #tpu.memory_space<vmem>>, %arg14: memref<1x4x8x8xf32, #tpu.memory_space<vmem>>, %arg15: memref<1x8x128xf32, #tpu.memory_space<vmem>>) attributes {dimension_semantics = [#tpu.dimension_semantics<parallel>], iteration_bounds = array<i64: 2>, scalar_prefetch = 0 : i64, scratch_operands = 0 : i64, tpu.core_type = #tpu.core_type<tc>, window_params = [{transform_indices = @transform_0, window_bounds = array<i64: 1, 8, 128>}, {pipeline_mode = #tpu.pipeline_mode<synchronous>, transform_indices = @transform_1, window_bounds = array<i64: 1, 128>}, {pipeline_mode = #tpu.pipeline_mode<synchronous>, transform_indices = @transform_2, window_bounds = array<i64: 1, 128>}, {pipeline_mode = #tpu.pipeline_mode<synchronous>, transform_indices = @transform_3, window_bounds = array<i64: 128, 384>}, {pipeline_mode = #tpu.pipeline_mode<synchronous>, transform_indices = @transform_4, window_bounds = array<i64: 1, 384>}, {pipeline_mode = #tpu.pipeline_mode<synchronous>, transform_indices = @transform_5, window_bounds = array<i64: 128, 128>}, {pipeline_mode = #tpu.pipeline_mode<synchronous>, transform_indices = @transform_6, window_bounds = array<i64: 1, 128>}, {pipeline_mode = #tpu.pipeline_mode<synchronous>, transform_indices = @transform_7, window_bounds = array<i64: 1, 128>}, {pipeline_mode = #tpu.pipeline_mode<synchronous>, transform_indices = @transform_8, window_bounds = array<i64: 1, 128>}, {pipeline_mode = #tpu.pipeline_mode<synchronous>, transform_indices = @transform_9, window_bounds = array<i64: 128, 128>}, {pipeline_mode = #tpu.pipeline_mode<synchronous>, transform_indices = @transform_10, window_bounds = array<i64: 1, 128>}, {pipeline_mode = #tpu.pipeline_mode<synchronous>, transform_indices = @transform_11, window_bounds = array<i64: 128, 128>}, {pipeline_mode = #tpu.pipeline_mode<synchronous>, transform_indices = @transform_12, window_bounds = array<i64: 1, 128>}, {transform_indices = @transform_13, window_bounds = array<i64: 1, 4, 8, 8>}, {transform_indices = @transform_14, window_bounds = array<i64: 1, 8, 128>}]} {
    %0 = tpu.iota {dimensions = array<i32: 1>} : vector<1x128xi32>
    %c32_i32 = arith.constant 32 : i32
    %1 = vector.broadcast %c32_i32 : i32 to vector<1x128xi32>
    %2 = arith.cmpi slt, %0, %1 : vector<1x128xi32>
    %3 = arith.extui %2 : vector<1x128xi1> to vector<1x128xi32>
    %4 = arith.sitofp %3 : vector<1x128xi32> to vector<1x128xf32>
    %c0 = arith.constant 0 : index
    %c0_0 = arith.constant 0 : index
    %c0_1 = arith.constant 0 : index
    %5 = vector.load %arg1[%c0, %c0_0, %c0_1] : memref<1x8x128xf32, #tpu.memory_space<vmem>>, vector<1x8x128xf32>
    %6 = vector.shape_cast %5 : vector<1x8x128xf32> to vector<8x128xf32>
    %c0_2 = arith.constant 0 : index
    %c0_3 = arith.constant 0 : index
    %7 = vector.load %arg2[%c0_2, %c0_3] : memref<1x128xf32, #tpu.memory_space<vmem>>, vector<1x128xf32>
    %c0_4 = arith.constant 0 : index
    %c0_5 = arith.constant 0 : index
    %8 = vector.load %arg3[%c0_4, %c0_5] : memref<1x128xf32, #tpu.memory_space<vmem>>, vector<1x128xf32>
    %cst = arith.constant dense<0.000000e+00> : vector<8xf32>
    %9 = vector.multi_reduction <add>, %6, %cst [1] : vector<8x128xf32> to vector<8xf32>
    %10 = vector.shape_cast %9 : vector<8xf32> to vector<8x1xf32>
    %cst_6 = arith.constant 3.125000e-02 : f32
    %11 = vector.broadcast %cst_6 : f32 to vector<8x1xf32>
    %12 = arith.mulf %10, %11 : vector<8x1xf32>
    %13 = vector.broadcast %12 : vector<8x1xf32> to vector<8x128xf32>
    %14 = arith.subf %6, %13 : vector<8x128xf32>
    %15 = vector.broadcast %4 : vector<1x128xf32> to vector<8x128xf32>
    %16 = arith.mulf %14, %15 : vector<8x128xf32>
    %17 = arith.mulf %16, %16 : vector<8x128xf32>
    %cst_7 = arith.constant dense<0.000000e+00> : vector<8xf32>
    %18 = vector.multi_reduction <add>, %17, %cst_7 [1] : vector<8x128xf32> to vector<8xf32>
    %19 = vector.shape_cast %18 : vector<8xf32> to vector<8x1xf32>
    %cst_8 = arith.constant 3.125000e-02 : f32
    %20 = vector.broadcast %cst_8 : f32 to vector<8x1xf32>
    %21 = arith.mulf %19, %20 : vector<8x1xf32>
    %cst_9 = arith.constant 9.99999974E-6 : f32
    %22 = vector.broadcast %cst_9 : f32 to vector<8x1xf32>
    %23 = arith.addf %21, %22 : vector<8x1xf32>
    %24 = math.rsqrt %23 : vector<8x1xf32>
    %25 = vector.broadcast %24 : vector<8x1xf32> to vector<8x128xf32>
    %26 = arith.mulf %14, %25 : vector<8x128xf32>
    %27 = vector.broadcast %7 : vector<1x128xf32> to vector<8x128xf32>
    %28 = arith.mulf %26, %27 : vector<8x128xf32>
    %29 = vector.broadcast %8 : vector<1x128xf32> to vector<8x128xf32>
    %30 = arith.addf %28, %29 : vector<8x128xf32>
    %c0_10 = arith.constant 0 : index
    %c0_11 = arith.constant 0 : index
    %31 = vector.load %arg4[%c0_10, %c0_11] : memref<128x384xf32, #tpu.memory_space<vmem>>, vector<128x384xf32>
    %cst_12 = arith.constant dense<0.000000e+00> : vector<8x384xf32>
    %32 = tpu.matmul %30, %31, %cst_12 {dimension_numbers = #tpu.dot_dimension_numbers<[1], [0], [0], [1], [0, 0, 1, 1], [], []>, precision = #tpu.contract_precision<fp32>} : vector<8x128xf32>, vector<128x384xf32>, vector<8x384xf32> -> vector<8x384xf32>
    %c0_13 = arith.constant 0 : index
    %c0_14 = arith.constant 0 : index
    %33 = vector.load %arg5[%c0_13, %c0_14] : memref<1x384xf32, #tpu.memory_space<vmem>>, vector<1x384xf32>
    %34 = vector.broadcast %33 : vector<1x384xf32> to vector<8x384xf32>
    %35 = arith.addf %32, %34 : vector<8x384xf32>
    %c0_15 = arith.constant 0 : index
    %c0_16 = arith.constant 0 : index
    %36 = vector.load %arg6[%c0_15, %c0_16] : memref<128x128xf32, #tpu.memory_space<vmem>>, vector<128x128xf32>
    %c0_17 = arith.constant 0 : index
    %c0_18 = arith.constant 0 : index
    %c0_19 = arith.constant 0 : index
    %c0_20 = arith.constant 0 : index
    %37 = vector.load %arg14[%c0_17, %c0_18, %c0_19, %c0_20] : memref<1x4x8x8xf32, #tpu.memory_space<vmem>>, vector<1x4x8x8xf32>
    %cst_21 = arith.constant 0.000000e+00 : f32
    %38 = vector.broadcast %cst_21 : f32 to vector<8x128xf32>
    %39 = vector.extract_strided_slice %35 {offsets = [0, 0], sizes = [8, 8], strides = [1, 1]} : vector<8x384xf32> to vector<8x8xf32>
    %cst_22 = arith.constant 0.353553385 : f32
    %40 = vector.broadcast %cst_22 : f32 to vector<8x8xf32>
    %41 = arith.mulf %39, %40 : vector<8x8xf32>
    %42 = vector.shape_cast %41 : vector<8x8xf32> to vector<1x8x8xf32>
    %43 = vector.extract_strided_slice %35 {offsets = [0, 128], sizes = [8, 8], strides = [1, 1]} : vector<8x384xf32> to vector<8x8xf32>
    %44 = vector.shape_cast %43 : vector<8x8xf32> to vector<1x8x8xf32>
    %45 = vector.extract_strided_slice %35 {offsets = [0, 256], sizes = [8, 8], strides = [1, 1]} : vector<8x384xf32> to vector<8x8xf32>
    %46 = vector.shape_cast %45 : vector<8x8xf32> to vector<1x8x8xf32>
    "tpu.trace_start"() <{level = 10 : i32, message = "bqd,bkd->bqk"}> : () -> ()
    %cst_23 = arith.constant dense<0.000000e+00> : vector<1x8x8xf32>
    %47 = tpu.matmul %42, %44, %cst_23 {dimension_numbers = #tpu.dot_dimension_numbers<[2], [2], [1], [1], [0, 0, 0, 1, 1, 1], [0], [0]>, precision = #tpu.contract_precision<fp32>} : vector<1x8x8xf32>, vector<1x8x8xf32>, vector<1x8x8xf32> -> vector<1x8x8xf32>
    "tpu.trace_stop"() : () -> ()
    %48 = vector.extract_strided_slice %37 {offsets = [0, 0, 0, 0], sizes = [1, 1, 8, 8], strides = [1, 1, 1, 1]} : vector<1x4x8x8xf32> to vector<1x1x8x8xf32>
    %49 = vector.shape_cast %48 : vector<1x1x8x8xf32> to vector<1x8x8xf32>
    %50 = arith.addf %47, %49 : vector<1x8x8xf32>
    %cst_24 = arith.constant dense<0xFF800000> : vector<1x8xf32>
    %51 = vector.multi_reduction <maximumf>, %50, %cst_24 [2] : vector<1x8x8xf32> to vector<1x8xf32>
    %52 = vector.shape_cast %51 : vector<1x8xf32> to vector<1x8x1xf32>
    %53 = vector.broadcast %52 : vector<1x8x1xf32> to vector<1x8x8xf32>
    %54 = arith.subf %50, %53 : vector<1x8x8xf32>
    %55 = math.exp %54 : vector<1x8x8xf32>
    %cst_25 = arith.constant dense<0.000000e+00> : vector<1x8xf32>
    %56 = vector.multi_reduction <add>, %55, %cst_25 [2] : vector<1x8x8xf32> to vector<1x8xf32>
    %57 = vector.shape_cast %56 : vector<1x8xf32> to vector<1x8x1xf32>
    %cst_26 = arith.constant 1.000000e+00 : f32
    %58 = vector.broadcast %cst_26 : f32 to vector<1x8x1xf32>
    %59 = arith.divf %58, %57 : vector<1x8x1xf32>
    %60 = vector.broadcast %59 : vector<1x8x1xf32> to vector<1x8x8xf32>
    %61 = arith.mulf %55, %60 : vector<1x8x8xf32>
    "tpu.trace_start"() <{level = 10 : i32, message = "bqk,bkd->bqd"}> : () -> ()
    %cst_27 = arith.constant dense<0.000000e+00> : vector<1x8x8xf32>
    %62 = tpu.matmul %61, %46, %cst_27 {dimension_numbers = #tpu.dot_dimension_numbers<[2], [1], [1], [2], [0, 0, 0, 1, 1, 2], [0], [0]>, precision = #tpu.contract_precision<fp32>} : vector<1x8x8xf32>, vector<1x8x8xf32>, vector<1x8x8xf32> -> vector<1x8x8xf32>
    "tpu.trace_stop"() : () -> ()
    %63 = vector.shape_cast %62 : vector<1x8x8xf32> to vector<8x8xf32>
    %64 = vector.extract_strided_slice %36 {offsets = [0, 0], sizes = [8, 128], strides = [1, 1]} : vector<128x128xf32> to vector<8x128xf32>
    %cst_28 = arith.constant dense<0.000000e+00> : vector<8x128xf32>
    %65 = tpu.matmul %63, %64, %cst_28 {dimension_numbers = #tpu.dot_dimension_numbers<[1], [0], [0], [1], [0, 0, 1, 1], [], []>, precision = #tpu.contract_precision<fp32>} : vector<8x8xf32>, vector<8x128xf32>, vector<8x128xf32> -> vector<8x128xf32>
    %66 = arith.addf %38, %65 : vector<8x128xf32>
    %67 = vector.extract_strided_slice %35 {offsets = [0, 8], sizes = [8, 8], strides = [1, 1]} : vector<8x384xf32> to vector<8x8xf32>
    %cst_29 = arith.constant 0.353553385 : f32
    %68 = vector.broadcast %cst_29 : f32 to vector<8x8xf32>
    %69 = arith.mulf %67, %68 : vector<8x8xf32>
    %70 = vector.shape_cast %69 : vector<8x8xf32> to vector<1x8x8xf32>
    %71 = vector.extract_strided_slice %35 {offsets = [0, 136], sizes = [8, 8], strides = [1, 1]} : vector<8x384xf32> to vector<8x8xf32>
    %72 = vector.shape_cast %71 : vector<8x8xf32> to vector<1x8x8xf32>
    %73 = vector.extract_strided_slice %35 {offsets = [0, 264], sizes = [8, 8], strides = [1, 1]} : vector<8x384xf32> to vector<8x8xf32>
    %74 = vector.shape_cast %73 : vector<8x8xf32> to vector<1x8x8xf32>
    "tpu.trace_start"() <{level = 10 : i32, message = "bqd,bkd->bqk"}> : () -> ()
    %cst_30 = arith.constant dense<0.000000e+00> : vector<1x8x8xf32>
    %75 = tpu.matmul %70, %72, %cst_30 {dimension_numbers = #tpu.dot_dimension_numbers<[2], [2], [1], [1], [0, 0, 0, 1, 1, 1], [0], [0]>, precision = #tpu.contract_precision<fp32>} : vector<1x8x8xf32>, vector<1x8x8xf32>, vector<1x8x8xf32> -> vector<1x8x8xf32>
    "tpu.trace_stop"() : () -> ()
    %76 = vector.extract_strided_slice %37 {offsets = [0, 1, 0, 0], sizes = [1, 1, 8, 8], strides = [1, 1, 1, 1]} : vector<1x4x8x8xf32> to vector<1x1x8x8xf32>
    %77 = vector.shape_cast %76 : vector<1x1x8x8xf32> to vector<1x8x8xf32>
    %78 = arith.addf %75, %77 : vector<1x8x8xf32>
    %cst_31 = arith.constant dense<0xFF800000> : vector<1x8xf32>
    %79 = vector.multi_reduction <maximumf>, %78, %cst_31 [2] : vector<1x8x8xf32> to vector<1x8xf32>
    %80 = vector.shape_cast %79 : vector<1x8xf32> to vector<1x8x1xf32>
    %81 = vector.broadcast %80 : vector<1x8x1xf32> to vector<1x8x8xf32>
    %82 = arith.subf %78, %81 : vector<1x8x8xf32>
    %83 = math.exp %82 : vector<1x8x8xf32>
    %cst_32 = arith.constant dense<0.000000e+00> : vector<1x8xf32>
    %84 = vector.multi_reduction <add>, %83, %cst_32 [2] : vector<1x8x8xf32> to vector<1x8xf32>
    %85 = vector.shape_cast %84 : vector<1x8xf32> to vector<1x8x1xf32>
    %cst_33 = arith.constant 1.000000e+00 : f32
    %86 = vector.broadcast %cst_33 : f32 to vector<1x8x1xf32>
    %87 = arith.divf %86, %85 : vector<1x8x1xf32>
    %88 = vector.broadcast %87 : vector<1x8x1xf32> to vector<1x8x8xf32>
    %89 = arith.mulf %83, %88 : vector<1x8x8xf32>
    "tpu.trace_start"() <{level = 10 : i32, message = "bqk,bkd->bqd"}> : () -> ()
    %cst_34 = arith.constant dense<0.000000e+00> : vector<1x8x8xf32>
    %90 = tpu.matmul %89, %74, %cst_34 {dimension_numbers = #tpu.dot_dimension_numbers<[2], [1], [1], [2], [0, 0, 0, 1, 1, 2], [0], [0]>, precision = #tpu.contract_precision<fp32>} : vector<1x8x8xf32>, vector<1x8x8xf32>, vector<1x8x8xf32> -> vector<1x8x8xf32>
    "tpu.trace_stop"() : () -> ()
    %91 = vector.shape_cast %90 : vector<1x8x8xf32> to vector<8x8xf32>
    %92 = vector.extract_strided_slice %36 {offsets = [8, 0], sizes = [8, 128], strides = [1, 1]} : vector<128x128xf32> to vector<8x128xf32>
    %cst_35 = arith.constant dense<0.000000e+00> : vector<8x128xf32>
    %93 = tpu.matmul %91, %92, %cst_35 {dimension_numbers = #tpu.dot_dimension_numbers<[1], [0], [0], [1], [0, 0, 1, 1], [], []>, precision = #tpu.contract_precision<fp32>} : vector<8x8xf32>, vector<8x128xf32>, vector<8x128xf32> -> vector<8x128xf32>
    %94 = arith.addf %66, %93 : vector<8x128xf32>
    %95 = vector.extract_strided_slice %35 {offsets = [0, 16], sizes = [8, 8], strides = [1, 1]} : vector<8x384xf32> to vector<8x8xf32>
    %cst_36 = arith.constant 0.353553385 : f32
    %96 = vector.broadcast %cst_36 : f32 to vector<8x8xf32>
    %97 = arith.mulf %95, %96 : vector<8x8xf32>
    %98 = vector.shape_cast %97 : vector<8x8xf32> to vector<1x8x8xf32>
    %99 = vector.extract_strided_slice %35 {offsets = [0, 144], sizes = [8, 8], strides = [1, 1]} : vector<8x384xf32> to vector<8x8xf32>
    %100 = vector.shape_cast %99 : vector<8x8xf32> to vector<1x8x8xf32>
    %101 = vector.extract_strided_slice %35 {offsets = [0, 272], sizes = [8, 8], strides = [1, 1]} : vector<8x384xf32> to vector<8x8xf32>
    %102 = vector.shape_cast %101 : vector<8x8xf32> to vector<1x8x8xf32>
    "tpu.trace_start"() <{level = 10 : i32, message = "bqd,bkd->bqk"}> : () -> ()
    %cst_37 = arith.constant dense<0.000000e+00> : vector<1x8x8xf32>
    %103 = tpu.matmul %98, %100, %cst_37 {dimension_numbers = #tpu.dot_dimension_numbers<[2], [2], [1], [1], [0, 0, 0, 1, 1, 1], [0], [0]>, precision = #tpu.contract_precision<fp32>} : vector<1x8x8xf32>, vector<1x8x8xf32>, vector<1x8x8xf32> -> vector<1x8x8xf32>
    "tpu.trace_stop"() : () -> ()
    %104 = vector.extract_strided_slice %37 {offsets = [0, 2, 0, 0], sizes = [1, 1, 8, 8], strides = [1, 1, 1, 1]} : vector<1x4x8x8xf32> to vector<1x1x8x8xf32>
    %105 = vector.shape_cast %104 : vector<1x1x8x8xf32> to vector<1x8x8xf32>
    %106 = arith.addf %103, %105 : vector<1x8x8xf32>
    %cst_38 = arith.constant dense<0xFF800000> : vector<1x8xf32>
    %107 = vector.multi_reduction <maximumf>, %106, %cst_38 [2] : vector<1x8x8xf32> to vector<1x8xf32>
    %108 = vector.shape_cast %107 : vector<1x8xf32> to vector<1x8x1xf32>
    %109 = vector.broadcast %108 : vector<1x8x1xf32> to vector<1x8x8xf32>
    %110 = arith.subf %106, %109 : vector<1x8x8xf32>
    %111 = math.exp %110 : vector<1x8x8xf32>
    %cst_39 = arith.constant dense<0.000000e+00> : vector<1x8xf32>
    %112 = vector.multi_reduction <add>, %111, %cst_39 [2] : vector<1x8x8xf32> to vector<1x8xf32>
    %113 = vector.shape_cast %112 : vector<1x8xf32> to vector<1x8x1xf32>
    %cst_40 = arith.constant 1.000000e+00 : f32
    %114 = vector.broadcast %cst_40 : f32 to vector<1x8x1xf32>
    %115 = arith.divf %114, %113 : vector<1x8x1xf32>
    %116 = vector.broadcast %115 : vector<1x8x1xf32> to vector<1x8x8xf32>
    %117 = arith.mulf %111, %116 : vector<1x8x8xf32>
    "tpu.trace_start"() <{level = 10 : i32, message = "bqk,bkd->bqd"}> : () -> ()
    %cst_41 = arith.constant dense<0.000000e+00> : vector<1x8x8xf32>
    %118 = tpu.matmul %117, %102, %cst_41 {dimension_numbers = #tpu.dot_dimension_numbers<[2], [1], [1], [2], [0, 0, 0, 1, 1, 2], [0], [0]>, precision = #tpu.contract_precision<fp32>} : vector<1x8x8xf32>, vector<1x8x8xf32>, vector<1x8x8xf32> -> vector<1x8x8xf32>
    "tpu.trace_stop"() : () -> ()
    %119 = vector.shape_cast %118 : vector<1x8x8xf32> to vector<8x8xf32>
    %120 = vector.extract_strided_slice %36 {offsets = [16, 0], sizes = [8, 128], strides = [1, 1]} : vector<128x128xf32> to vector<8x128xf32>
    %cst_42 = arith.constant dense<0.000000e+00> : vector<8x128xf32>
    %121 = tpu.matmul %119, %120, %cst_42 {dimension_numbers = #tpu.dot_dimension_numbers<[1], [0], [0], [1], [0, 0, 1, 1], [], []>, precision = #tpu.contract_precision<fp32>} : vector<8x8xf32>, vector<8x128xf32>, vector<8x128xf32> -> vector<8x128xf32>
    %122 = arith.addf %94, %121 : vector<8x128xf32>
    %123 = vector.extract_strided_slice %35 {offsets = [0, 24], sizes = [8, 8], strides = [1, 1]} : vector<8x384xf32> to vector<8x8xf32>
    %cst_43 = arith.constant 0.353553385 : f32
    %124 = vector.broadcast %cst_43 : f32 to vector<8x8xf32>
    %125 = arith.mulf %123, %124 : vector<8x8xf32>
    %126 = vector.shape_cast %125 : vector<8x8xf32> to vector<1x8x8xf32>
    %127 = vector.extract_strided_slice %35 {offsets = [0, 152], sizes = [8, 8], strides = [1, 1]} : vector<8x384xf32> to vector<8x8xf32>
    %128 = vector.shape_cast %127 : vector<8x8xf32> to vector<1x8x8xf32>
    %129 = vector.extract_strided_slice %35 {offsets = [0, 280], sizes = [8, 8], strides = [1, 1]} : vector<8x384xf32> to vector<8x8xf32>
    %130 = vector.shape_cast %129 : vector<8x8xf32> to vector<1x8x8xf32>
    "tpu.trace_start"() <{level = 10 : i32, message = "bqd,bkd->bqk"}> : () -> ()
    %cst_44 = arith.constant dense<0.000000e+00> : vector<1x8x8xf32>
    %131 = tpu.matmul %126, %128, %cst_44 {dimension_numbers = #tpu.dot_dimension_numbers<[2], [2], [1], [1], [0, 0, 0, 1, 1, 1], [0], [0]>, precision = #tpu.contract_precision<fp32>} : vector<1x8x8xf32>, vector<1x8x8xf32>, vector<1x8x8xf32> -> vector<1x8x8xf32>
    "tpu.trace_stop"() : () -> ()
    %132 = vector.extract_strided_slice %37 {offsets = [0, 3, 0, 0], sizes = [1, 1, 8, 8], strides = [1, 1, 1, 1]} : vector<1x4x8x8xf32> to vector<1x1x8x8xf32>
    %133 = vector.shape_cast %132 : vector<1x1x8x8xf32> to vector<1x8x8xf32>
    %134 = arith.addf %131, %133 : vector<1x8x8xf32>
    %cst_45 = arith.constant dense<0xFF800000> : vector<1x8xf32>
    %135 = vector.multi_reduction <maximumf>, %134, %cst_45 [2] : vector<1x8x8xf32> to vector<1x8xf32>
    %136 = vector.shape_cast %135 : vector<1x8xf32> to vector<1x8x1xf32>
    %137 = vector.broadcast %136 : vector<1x8x1xf32> to vector<1x8x8xf32>
    %138 = arith.subf %134, %137 : vector<1x8x8xf32>
    %139 = math.exp %138 : vector<1x8x8xf32>
    %cst_46 = arith.constant dense<0.000000e+00> : vector<1x8xf32>
    %140 = vector.multi_reduction <add>, %139, %cst_46 [2] : vector<1x8x8xf32> to vector<1x8xf32>
    %141 = vector.shape_cast %140 : vector<1x8xf32> to vector<1x8x1xf32>
    %cst_47 = arith.constant 1.000000e+00 : f32
    %142 = vector.broadcast %cst_47 : f32 to vector<1x8x1xf32>
    %143 = arith.divf %142, %141 : vector<1x8x1xf32>
    %144 = vector.broadcast %143 : vector<1x8x1xf32> to vector<1x8x8xf32>
    %145 = arith.mulf %139, %144 : vector<1x8x8xf32>
    "tpu.trace_start"() <{level = 10 : i32, message = "bqk,bkd->bqd"}> : () -> ()
    %cst_48 = arith.constant dense<0.000000e+00> : vector<1x8x8xf32>
    %146 = tpu.matmul %145, %130, %cst_48 {dimension_numbers = #tpu.dot_dimension_numbers<[2], [1], [1], [2], [0, 0, 0, 1, 1, 2], [0], [0]>, precision = #tpu.contract_precision<fp32>} : vector<1x8x8xf32>, vector<1x8x8xf32>, vector<1x8x8xf32> -> vector<1x8x8xf32>
    "tpu.trace_stop"() : () -> ()
    %147 = vector.shape_cast %146 : vector<1x8x8xf32> to vector<8x8xf32>
    %148 = vector.extract_strided_slice %36 {offsets = [24, 0], sizes = [8, 128], strides = [1, 1]} : vector<128x128xf32> to vector<8x128xf32>
    %cst_49 = arith.constant dense<0.000000e+00> : vector<8x128xf32>
    %149 = tpu.matmul %147, %148, %cst_49 {dimension_numbers = #tpu.dot_dimension_numbers<[1], [0], [0], [1], [0, 0, 1, 1], [], []>, precision = #tpu.contract_precision<fp32>} : vector<8x8xf32>, vector<8x128xf32>, vector<8x128xf32> -> vector<8x128xf32>
    %150 = arith.addf %122, %149 : vector<8x128xf32>
    %151 = arith.addf %6, %150 : vector<8x128xf32>
    %c0_50 = arith.constant 0 : index
    %c0_51 = arith.constant 0 : index
    %152 = vector.load %arg7[%c0_50, %c0_51] : memref<1x128xf32, #tpu.memory_space<vmem>>, vector<1x128xf32>
    %153 = vector.broadcast %152 : vector<1x128xf32> to vector<8x128xf32>
    %154 = arith.addf %151, %153 : vector<8x128xf32>
    %c0_52 = arith.constant 0 : index
    %c0_53 = arith.constant 0 : index
    %155 = vector.load %arg8[%c0_52, %c0_53] : memref<1x128xf32, #tpu.memory_space<vmem>>, vector<1x128xf32>
    %c0_54 = arith.constant 0 : index
    %c0_55 = arith.constant 0 : index
    %156 = vector.load %arg9[%c0_54, %c0_55] : memref<1x128xf32, #tpu.memory_space<vmem>>, vector<1x128xf32>
    %cst_56 = arith.constant dense<0.000000e+00> : vector<8xf32>
    %157 = vector.multi_reduction <add>, %154, %cst_56 [1] : vector<8x128xf32> to vector<8xf32>
    %158 = vector.shape_cast %157 : vector<8xf32> to vector<8x1xf32>
    %cst_57 = arith.constant 3.125000e-02 : f32
    %159 = vector.broadcast %cst_57 : f32 to vector<8x1xf32>
    %160 = arith.mulf %158, %159 : vector<8x1xf32>
    %161 = vector.broadcast %160 : vector<8x1xf32> to vector<8x128xf32>
    %162 = arith.subf %154, %161 : vector<8x128xf32>
    %163 = vector.broadcast %4 : vector<1x128xf32> to vector<8x128xf32>
    %164 = arith.mulf %162, %163 : vector<8x128xf32>
    %165 = arith.mulf %164, %164 : vector<8x128xf32>
    %cst_58 = arith.constant dense<0.000000e+00> : vector<8xf32>
    %166 = vector.multi_reduction <add>, %165, %cst_58 [1] : vector<8x128xf32> to vector<8xf32>
    %167 = vector.shape_cast %166 : vector<8xf32> to vector<8x1xf32>
    %cst_59 = arith.constant 3.125000e-02 : f32
    %168 = vector.broadcast %cst_59 : f32 to vector<8x1xf32>
    %169 = arith.mulf %167, %168 : vector<8x1xf32>
    %cst_60 = arith.constant 9.99999974E-6 : f32
    %170 = vector.broadcast %cst_60 : f32 to vector<8x1xf32>
    %171 = arith.addf %169, %170 : vector<8x1xf32>
    %172 = math.rsqrt %171 : vector<8x1xf32>
    %173 = vector.broadcast %172 : vector<8x1xf32> to vector<8x128xf32>
    %174 = arith.mulf %162, %173 : vector<8x128xf32>
    %175 = vector.broadcast %155 : vector<1x128xf32> to vector<8x128xf32>
    %176 = arith.mulf %174, %175 : vector<8x128xf32>
    %177 = vector.broadcast %156 : vector<1x128xf32> to vector<8x128xf32>
    %178 = arith.addf %176, %177 : vector<8x128xf32>
    %c0_61 = arith.constant 0 : index
    %c0_62 = arith.constant 0 : index
    %179 = vector.load %arg10[%c0_61, %c0_62] : memref<128x128xf32, #tpu.memory_space<vmem>>, vector<128x128xf32>
    %cst_63 = arith.constant dense<0.000000e+00> : vector<8x128xf32>
    %180 = tpu.matmul %178, %179, %cst_63 {dimension_numbers = #tpu.dot_dimension_numbers<[1], [0], [0], [1], [0, 0, 1, 1], [], []>, precision = #tpu.contract_precision<fp32>} : vector<8x128xf32>, vector<128x128xf32>, vector<8x128xf32> -> vector<8x128xf32>
    %c0_64 = arith.constant 0 : index
    %c0_65 = arith.constant 0 : index
    %181 = vector.load %arg11[%c0_64, %c0_65] : memref<1x128xf32, #tpu.memory_space<vmem>>, vector<1x128xf32>
    %182 = vector.broadcast %181 : vector<1x128xf32> to vector<8x128xf32>
    %183 = arith.addf %180, %182 : vector<8x128xf32>
    %cst_66 = arith.constant 5.000000e-01 : f32
    %184 = vector.broadcast %cst_66 : f32 to vector<8x128xf32>
    %185 = arith.mulf %184, %183 : vector<8x128xf32>
    %cst_67 = arith.constant 0.707106769 : f32
    %186 = vector.broadcast %cst_67 : f32 to vector<8x128xf32>
    %187 = arith.mulf %183, %186 : vector<8x128xf32>
    %188 = math.erf %187 : vector<8x128xf32>
    %cst_68 = arith.constant 1.000000e+00 : f32
    %189 = vector.broadcast %cst_68 : f32 to vector<8x128xf32>
    %190 = arith.addf %189, %188 : vector<8x128xf32>
    %191 = arith.mulf %185, %190 : vector<8x128xf32>
    %c0_69 = arith.constant 0 : index
    %c0_70 = arith.constant 0 : index
    %192 = vector.load %arg12[%c0_69, %c0_70] : memref<128x128xf32, #tpu.memory_space<vmem>>, vector<128x128xf32>
    %cst_71 = arith.constant dense<0.000000e+00> : vector<8x128xf32>
    %193 = tpu.matmul %191, %192, %cst_71 {dimension_numbers = #tpu.dot_dimension_numbers<[1], [0], [0], [1], [0, 0, 1, 1], [], []>, precision = #tpu.contract_precision<fp32>} : vector<8x128xf32>, vector<128x128xf32>, vector<8x128xf32> -> vector<8x128xf32>
    %c0_72 = arith.constant 0 : index
    %c0_73 = arith.constant 0 : index
    %194 = vector.load %arg13[%c0_72, %c0_73] : memref<1x128xf32, #tpu.memory_space<vmem>>, vector<1x128xf32>
    %195 = vector.broadcast %194 : vector<1x128xf32> to vector<8x128xf32>
    %196 = arith.addf %193, %195 : vector<8x128xf32>
    %197 = arith.addf %154, %196 : vector<8x128xf32>
    %198 = vector.shape_cast %197 : vector<8x128xf32> to vector<1x8x128xf32>
    %c0_74 = arith.constant 0 : index
    %c0_75 = arith.constant 0 : index
    %c0_76 = arith.constant 0 : index
    %199 = vector.load %arg15[%c0_74, %c0_75, %c0_76] : memref<1x8x128xf32, #tpu.memory_space<vmem>>, vector<1x8x128xf32>
    tpu.vector_store %arg15[%c0_74, %c0_75, %c0_76], %198 {strides = array<i32>} : memref<1x8x128xf32, #tpu.memory_space<vmem>>, vector<1x8x128xf32>,
    return
  }
  func.func @transform_0(%arg0: i32) -> (i32, i32, i32) {
    %c0_i32 = arith.constant 0 : i32
    %c0_i32_0 = arith.constant 0 : i32
    %c0_i32_1 = arith.constant 0 : i32
    return %arg0, %c0_i32, %c0_i32_0 : i32, i32, i32
  }
  func.func @transform_1(%arg0: i32) -> (i32, i32) {
    %c0_i32 = arith.constant 0 : i32
    %c0_i32_0 = arith.constant 0 : i32
    %c0_i32_1 = arith.constant 0 : i32
    return %c0_i32, %c0_i32_0 : i32, i32
  }
  func.func @transform_2(%arg0: i32) -> (i32, i32) {
    %c0_i32 = arith.constant 0 : i32
    %c0_i32_0 = arith.constant 0 : i32
    %c0_i32_1 = arith.constant 0 : i32
    return %c0_i32, %c0_i32_0 : i32, i32
  }
  func.func @transform_3(%arg0: i32) -> (i32, i32) {
    %c0_i32 = arith.constant 0 : i32
    %c0_i32_0 = arith.constant 0 : i32
    %c0_i32_1 = arith.constant 0 : i32
    return %c0_i32, %c0_i32_0 : i32, i32
  }
  func.func @transform_4(%arg0: i32) -> (i32, i32) {
    %c0_i32 = arith.constant 0 : i32
    %c0_i32_0 = arith.constant 0 : i32
    %c0_i32_1 = arith.constant 0 : i32
    return %c0_i32, %c0_i32_0 : i32, i32
  }
  func.func @transform_5(%arg0: i32) -> (i32, i32) {
    %c0_i32 = arith.constant 0 : i32
    %c0_i32_0 = arith.constant 0 : i32
    %c0_i32_1 = arith.constant 0 : i32
    return %c0_i32, %c0_i32_0 : i32, i32
  }
  func.func @transform_6(%arg0: i32) -> (i32, i32) {
    %c0_i32 = arith.constant 0 : i32
    %c0_i32_0 = arith.constant 0 : i32
    %c0_i32_1 = arith.constant 0 : i32
    return %c0_i32, %c0_i32_0 : i32, i32
  }
  func.func @transform_7(%arg0: i32) -> (i32, i32) {
    %c0_i32 = arith.constant 0 : i32
    %c0_i32_0 = arith.constant 0 : i32
    %c0_i32_1 = arith.constant 0 : i32
    return %c0_i32, %c0_i32_0 : i32, i32
  }
  func.func @transform_8(%arg0: i32) -> (i32, i32) {
    %c0_i32 = arith.constant 0 : i32
    %c0_i32_0 = arith.constant 0 : i32
    %c0_i32_1 = arith.constant 0 : i32
    return %c0_i32, %c0_i32_0 : i32, i32
  }
  func.func @transform_9(%arg0: i32) -> (i32, i32) {
    %c0_i32 = arith.constant 0 : i32
    %c0_i32_0 = arith.constant 0 : i32
    %c0_i32_1 = arith.constant 0 : i32
    return %c0_i32, %c0_i32_0 : i32, i32
  }
  func.func @transform_10(%arg0: i32) -> (i32, i32) {
    %c0_i32 = arith.constant 0 : i32
    %c0_i32_0 = arith.constant 0 : i32
    %c0_i32_1 = arith.constant 0 : i32
    return %c0_i32, %c0_i32_0 : i32, i32
  }
  func.func @transform_11(%arg0: i32) -> (i32, i32) {
    %c0_i32 = arith.constant 0 : i32
    %c0_i32_0 = arith.constant 0 : i32
    %c0_i32_1 = arith.constant 0 : i32
    return %c0_i32, %c0_i32_0 : i32, i32
  }
  func.func @transform_12(%arg0: i32) -> (i32, i32) {
    %c0_i32 = arith.constant 0 : i32
    %c0_i32_0 = arith.constant 0 : i32
    %c0_i32_1 = arith.constant 0 : i32
    return %c0_i32, %c0_i32_0 : i32, i32
  }
  func.func @transform_13(%arg0: i32) -> (i32, i32, i32, i32) {
    %c0_i32 = arith.constant 0 : i32
    %c0_i32_0 = arith.constant 0 : i32
    %c0_i32_1 = arith.constant 0 : i32
    %c0_i32_2 = arith.constant 0 : i32
    return %arg0, %c0_i32, %c0_i32_0, %c0_i32_1 : i32, i32, i32, i32
  }
  func.func @transform_14(%arg0: i32) -> (i32, i32, i32) {
    %c0_i32 = arith.constant 0 : i32
    %c0_i32_0 = arith.constant 0 : i32
    %c0_i32_1 = arith.constant 0 : i32
    return %arg0, %c0_i32, %c0_i32_0 : i32, i32, i32
  }
}

</mosaic_0001>

<llo_original>
// kernel: tpu_custom_call.1
$region0: #{tpu_custom_call.1}
  #allocation0 [shape = 'u32[]', space=smem, size = 0x4, offset = 0x4, fixed_abs, tag = 'smem constant byte address 0x4 - core index']
  #allocation1 [shape = 'u32[144,128]{1,0:T(1,128)}', space=vmem, size = 0x12000, scoped, tag = 'internal scratch']
  %s0 = inlined_call_operand.hbm [shape: f32[2,8,128], index: 0, kind: input, shape index: {}]
  %s1 = inlined_call_operand.vmem [shape: f32[1,128], index: 1, kind: input, shape index: {}]
  %s2 = inlined_call_operand.vmem [shape: f32[1,128], index: 2, kind: input, shape index: {}]
  %s3 = inlined_call_operand.hbm [shape: f32[128,384], index: 3, kind: input, shape index: {}]
  %s4 = inlined_call_operand.vmem [shape: f32[1,384], index: 4, kind: input, shape index: {}]
  %s5 = inlined_call_operand.hbm [shape: f32[128,128], index: 5, kind: input, shape index: {}]
  %s6 = inlined_call_operand.vmem [shape: f32[1,128], index: 6, kind: input, shape index: {}]
  %s7 = inlined_call_operand.vmem [shape: f32[1,128], index: 7, kind: input, shape index: {}]
  %s8 = inlined_call_operand.vmem [shape: f32[1,128], index: 8, kind: input, shape index: {}]
  %s9 = inlined_call_operand.hbm [shape: f32[128,128], index: 9, kind: input, shape index: {}]
  %s10 = inlined_call_operand.vmem [shape: f32[1,128], index: 10, kind: input, shape index: {}]
  %s11 = inlined_call_operand.hbm [shape: f32[128,128], index: 11, kind: input, shape index: {}]
  %s12 = inlined_call_operand.vmem [shape: f32[1,128], index: 12, kind: input, shape index: {}]
  %s13 = inlined_call_operand.hbm [shape: f32[2,4,8,8], index: 13, kind: input, shape index: {}]
  %s14 = inlined_call_operand.hbm [shape: f32[2,8,128], index: 14, kind: output, shape index: {}]
  %s15 = sld [smem:[#allocation0]]
  $region113: #{tpu_custom_call.1} parent=0
    _
  %s17 = ssub.s32 1, %s15
  %s18 = scalar_select 0, %s17, %s15
  $region1: #{tpu_custom_call.1} parent=0
    #allocation2 [shape = 'u8[8192]{0}', space=vmem, size = 0x2000, scoped, tag = 'input window, operand 0']
    #allocation3 [shape = 's32[2]{0}', space=sflag, size = 0x8, scoped, tag = 'scoped memory for tpu_custom_call.1']
    #allocation4 [shape = 's32[2]{0}', space=sflag, size = 0x8, scoped, tag = 'scoped memory for tpu_custom_call.1']
    #allocation5 [shape = 'u8[196608]{0}', space=vmem, size = 0x30000, scoped, tag = 'input window, operand 3, single buffered']
    #allocation6 [shape = 's32[1]{0}', space=sflag, size = 0x4, scoped, tag = 'scoped memory for tpu_custom_call.1']
    #allocation7 [shape = 'u8[65536]{0}', space=vmem, size = 0x10000, scoped, tag = 'input window, operand 5, single buffered']
    #allocation8 [shape = 'u8[65536]{0}', space=vmem, size = 0x10000, scoped, tag = 'input window, operand 9, single buffered']
    #allocation9 [shape = 's32[1]{0}', space=sflag, size = 0x4, scoped, tag = 'scoped memory for tpu_custom_call.1']
    #allocation10 [shape = 'u8[65536]{0}', space=vmem, size = 0x10000, scoped, tag = 'input window, operand 11, single buffered']
    #allocation11 [shape = 'u8[32768]{0}', space=vmem, size = 0x8000, scoped, tag = 'input window, operand 13']
    #allocation12 [shape = 's32[2]{0}', space=sflag, size = 0x8, scoped, tag = 'scoped memory for tpu_custom_call.1']
    #allocation13 [shape = 'u8[8192]{0}', space=vmem, size = 0x2000, scoped, tag = 'output window, operand 0']
    %19 = vsyncpa [#allocation3], 0
    %s20 = scalar_lea.sflag [#allocation3], 1
    %21 = vsyncpa %s20, 0
    %22 = vsyncpa [#allocation6], 0
    %23 = vsyncpa [#allocation9], 0
    %24 = vsyncpa [#allocation12], 0
    %s25 = scalar_lea.sflag [#allocation12], 1
    %26 = vsyncpa %s25, 0
    %27 = vsyncpa [#allocation4], 0
    %s28 = scalar_lea.sflag [#allocation4], 1
    %29 = vsyncpa %s28, 0
    loop: start=0, step=1, limit=4
    $region2: #{tpu_custom_call.1} parent=1 // loop_pre_header
      _
    $region3: #{tpu_custom_call.1} parent=1 // loop_header
      %s31 = sphi 0, %s35
      %p32 = scmp.ge.s32.totalorder %s31, 4
      %s41 = sphi 0, %s43
      %s44 = sphi 0, %s41
      %s45 = sphi 0, %s44
      %s61 = sphi 0, %s45
      %s65 = sphi 0, %s65
      %s67 = sphi 0, %s65
      %s68 = sphi 0, %s67
      %s82 = sphi 0, %s68
      %s86 = sphi 0, %s86
      %s88 = sphi 0, %s86
      %s89 = sphi 0, %s88
      %s103 = sphi 0, %s89
      %s107 = sphi 0, %s107
      %s109 = sphi 0, %s107
      %s110 = sphi 0, %s109
      %s124 = sphi 0, %s110
      %s128 = sphi 0, %s128
      %s130 = sphi 0, %s128
      %s131 = sphi 0, %s130
      %s145 = sphi 0, %s131
      %s149 = sphi 0, %s149
      %s151 = sphi 0, %s149
      %s152 = sphi 0, %s151
      %s166 = sphi 0, %s152
      %s170 = sphi 0, %s170
      %s172 = sphi 0, %s170
      %s173 = sphi 0, %s172
      %s187 = sphi 0, %s173
      %s191 = sphi 0, %s191
      %s193 = sphi 0, %s191
      %s194 = sphi 0, %s193
      %s208 = sphi 0, %s194
      %s212 = sphi 0, %s212
      %s214 = sphi 0, %s212
      %s215 = sphi 0, %s214
      %s229 = sphi 0, %s215
      %s233 = sphi 0, %s233
      %s235 = sphi 0, %s233
      %s236 = sphi 0, %s235
      %s250 = sphi 0, %s236
      %s254 = sphi 0, %s254
      %s256 = sphi 0, %s254
      %s257 = sphi 0, %s256
      %s271 = sphi 0, %s257
      %s275 = sphi 0, %s275
      %s277 = sphi 0, %s275
      %s278 = sphi 0, %s277
      %s292 = sphi 0, %s278
      %s296 = sphi 0, %s296
      %s298 = sphi 0, %s296
      %s299 = sphi 0, %s298
      %s313 = sphi 0, %s299
      %s319 = sphi 0, %s321
      %s322 = sphi 0, %s319
      %s323 = sphi 0, %s322
      %s339 = sphi 0, %s323
      %s345 = sphi 0, %s347
      %s348 = sphi 0, %s345
      %s349 = sphi 0, %s348
      %s365 = sphi 0, %s349
    $region4: #{tpu_custom_call.1} parent=1 // loop_header_branch
      %34 = sbr.rel (%p32) target = $region8
    $region5: #{tpu_custom_call.1} parent=1 // loop_body
      %s36 = ssub.s32 %s31, 1
      %s37 = ssub.s32 %s31, 2
      %s38 = sadd.s32 %s31, 1
      %s39 = ssub.s32 %s31, %s38
      %p40 = scmp.eq.s32.totalorder %s39, 0
      %s42 = sadd.s32 %s41, 1
      %s43 = scalar_select %p40, %s41, %s42
      %p46 = pneg %p40
      %p47 = scmp.eq.s32.totalorder %s31, 1
      %p48 = por %p46, %p47
      %p49 = scmp.ne.s32.totalorder %s41, %s44
      %p50 = scmp.eq.s32.totalorder %s31, 0
      %p51 = por %p49, %p50
      %p52 = scmp.ne.s32.totalorder %s41, %s44
      %p53 = scmp.eq.s32.totalorder %s36, 1
      %p54 = por %p52, %p53
      %p55 = scmp.ne.s32.totalorder %s44, %s45
      %p56 = scmp.eq.s32.totalorder %s36, 0
      %p57 = por %p55, %p56
      %p58 = scmp.ne.s32.totalorder %s44, %s45
      %p59 = scmp.eq.s32.totalorder %s37, 1
      %p60 = por %p58, %p59
      %p62 = scmp.ne.s32.totalorder %s45, %s61
      %p63 = scmp.eq.s32.totalorder %s37, 0
      %p64 = por %p62, %p63
      %s66 = sadd.s32 %s65, 1
      %p69 = scmp.eq.s32.totalorder %s31, 1
      %p70 = scmp.ne.s32.totalorder %s65, %s67
      %p71 = scmp.eq.s32.totalorder %s31, 0
      %p72 = por %p70, %p71
      %p73 = scmp.ne.s32.totalorder %s65, %s67
      %p74 = scmp.eq.s32.totalorder %s36, 1
      %p75 = por %p73, %p74
      %p76 = scmp.ne.s32.totalorder %s67, %s68
      %p77 = scmp.eq.s32.totalorder %s36, 0
      %p78 = por %p76, %p77
      %p79 = scmp.ne.s32.totalorder %s67, %s68
      %p80 = scmp.eq.s32.totalorder %s37, 1
      %p81 = por %p79, %p80
      %p83 = scmp.ne.s32.totalorder %s68, %s82
      %p84 = scmp.eq.s32.totalorder %s37, 0
      %p85 = por %p83, %p84
      %s87 = sadd.s32 %s86, 1
      %p90 = scmp.eq.s32.totalorder %s31, 1
      %p91 = scmp.ne.s32.totalorder %s86, %s88
      %p92 = scmp.eq.s32.totalorder %s31, 0
      %p93 = por %p91, %p92
      %p94 = scmp.ne.s32.totalorder %s86, %s88
      %p95 = scmp.eq.s32.totalorder %s36, 1
      %p96 = por %p94, %p95
      %p97 = scmp.ne.s32.totalorder %s88, %s89
      %p98 = scmp.eq.s32.totalorder %s36, 0
      %p99 = por %p97, %p98
      %p100 = scmp.ne.s32.totalorder %s88, %s89
      %p101 = scmp.eq.s32.totalorder %s37, 1
      %p102 = por %p100, %p101
      %p104 = scmp.ne.s32.totalorder %s89, %s103
      %p105 = scmp.eq.s32.totalorder %s37, 0
      %p106 = por %p104, %p105
      %s108 = sadd.s32 %s107, 1
      %p111 = scmp.eq.s32.totalorder %s31, 1
      %p112 = scmp.ne.s32.totalorder %s107, %s109
      %p113 = scmp.eq.s32.totalorder %s31, 0
      %p114 = por %p112, %p113
      %p115 = scmp.ne.s32.totalorder %s107, %s109
      %p116 = scmp.eq.s32.totalorder %s36, 1
      %p117 = por %p115, %p116
      %p118 = scmp.ne.s32.totalorder %s109, %s110
      %p119 = scmp.eq.s32.totalorder %s36, 0
      %p120 = por %p118, %p119
      %p121 = scmp.ne.s32.totalorder %s109, %s110
      %p122 = scmp.eq.s32.totalorder %s37, 1
      %p123 = por %p121, %p122
      %p125 = scmp.ne.s32.totalorder %s110, %s124
      %p126 = scmp.eq.s32.totalorder %s37, 0
      %p127 = por %p125, %p126
      %s129 = sadd.s32 %s128, 1
      %p132 = scmp.eq.s32.totalorder %s31, 1
      %p133 = scmp.ne.s32.totalorder %s128, %s130
      %p134 = scmp.eq.s32.totalorder %s31, 0
      %p135 = por %p133, %p134
      %p136 = scmp.ne.s32.totalorder %s128, %s130
      %p137 = scmp.eq.s32.totalorder %s36, 1
      %p138 = por %p136, %p137
      %p139 = scmp.ne.s32.totalorder %s130, %s131
      %p140 = scmp.eq.s32.totalorder %s36, 0
      %p141 = por %p139, %p140
      %p142 = scmp.ne.s32.totalorder %s130, %s131
      %p143 = scmp.eq.s32.totalorder %s37, 1
      %p144 = por %p142, %p143
      %p146 = scmp.ne.s32.totalorder %s131, %s145
      %p147 = scmp.eq.s32.totalorder %s37, 0
      %p148 = por %p146, %p147
      %s150 = sadd.s32 %s149, 1
      %p153 = scmp.eq.s32.totalorder %s31, 1
      %p154 = scmp.ne.s32.totalorder %s149, %s151
      %p155 = scmp.eq.s32.totalorder %s31, 0
      %p156 = por %p154, %p155
      %p157 = scmp.ne.s32.totalorder %s149, %s151
      %p158 = scmp.eq.s32.totalorder %s36, 1
      %p159 = por %p157, %p158
      %p160 = scmp.ne.s32.totalorder %s151, %s152
      %p161 = scmp.eq.s32.totalorder %s36, 0
      %p162 = por %p160, %p161
      %p163 = scmp.ne.s32.totalorder %s151, %s152
      %p164 = scmp.eq.s32.totalorder %s37, 1
      %p165 = por %p163, %p164
      %p167 = scmp.ne.s32.totalorder %s152, %s166
      %p168 = scmp.eq.s32.totalorder %s37, 0
      %p169 = por %p167, %p168
      %s171 = sadd.s32 %s170, 1
      %p174 = scmp.eq.s32.totalorder %s31, 1
      %p175 = scmp.ne.s32.totalorder %s170, %s172
      %p176 = scmp.eq.s32.totalorder %s31, 0
      %p177 = por %p175, %p176
      %p178 = scmp.ne.s32.totalorder %s170, %s172
      %p179 = scmp.eq.s32.totalorder %s36, 1
      %p180 = por %p178, %p179
      %p181 = scmp.ne.s32.totalorder %s172, %s173
      %p182 = scmp.eq.s32.totalorder %s36, 0
      %p183 = por %p181, %p182
      %p184 = scmp.ne.s32.totalorder %s172, %s173
      %p185 = scmp.eq.s32.totalorder %s37, 1
      %p186 = por %p184, %p185
      %p188 = scmp.ne.s32.totalorder %s173, %s187
      %p189 = scmp.eq.s32.totalorder %s37, 0
      %p190 = por %p188, %p189
      %s192 = sadd.s32 %s191, 1
      %p195 = scmp.eq.s32.totalorder %s31, 1
      %p196 = scmp.ne.s32.totalorder %s191, %s193
      %p197 = scmp.eq.s32.totalorder %s31, 0
      %p198 = por %p196, %p197
      %p199 = scmp.ne.s32.totalorder %s191, %s193
      %p200 = scmp.eq.s32.totalorder %s36, 1
      %p201 = por %p199, %p200
      %p202 = scmp.ne.s32.totalorder %s193, %s194
      %p203 = scmp.eq.s32.totalorder %s36, 0
      %p204 = por %p202, %p203
      %p205 = scmp.ne.s32.totalorder %s193, %s194
      %p206 = scmp.eq.s32.totalorder %s37, 1
      %p207 = por %p205, %p206
      %p209 = scmp.ne.s32.totalorder %s194, %s208
      %p210 = scmp.eq.s32.totalorder %s37, 0
      %p211 = por %p209, %p210
      %s213 = sadd.s32 %s212, 1
      %p216 = scmp.eq.s32.totalorder %s31, 1
      %p217 = scmp.ne.s32.totalorder %s212, %s214
      %p218 = scmp.eq.s32.totalorder %s31, 0
      %p219 = por %p217, %p218
      %p220 = scmp.ne.s32.totalorder %s212, %s214
      %p221 = scmp.eq.s32.totalorder %s36, 1
      %p222 = por %p220, %p221
      %p223 = scmp.ne.s32.totalorder %s214, %s215
      %p224 = scmp.eq.s32.totalorder %s36, 0
      %p225 = por %p223, %p224
      %p226 = scmp.ne.s32.totalorder %s214, %s215
      %p227 = scmp.eq.s32.totalorder %s37, 1
      %p228 = por %p226, %p227
      %p230 = scmp.ne.s32.totalorder %s215, %s229
      %p231 = scmp.eq.s32.totalorder %s37, 0
      %p232 = por %p230, %p231
      %s234 = sadd.s32 %s233, 1
      %p237 = scmp.eq.s32.totalorder %s31, 1
      %p238 = scmp.ne.s32.totalorder %s233, %s235
      %p239 = scmp.eq.s32.totalorder %s31, 0
      %p240 = por %p238, %p239
      %p241 = scmp.ne.s32.totalorder %s233, %s235
      %p242 = scmp.eq.s32.totalorder %s36, 1
      %p243 = por %p241, %p242
      %p244 = scmp.ne.s32.totalorder %s235, %s236
      %p245 = scmp.eq.s32.totalorder %s36, 0
      %p246 = por %p244, %p245
      %p247 = scmp.ne.s32.totalorder %s235, %s236
      %p248 = scmp.eq.s32.totalorder %s37, 1
      %p249 = por %p247, %p248
      %p251 = scmp.ne.s32.totalorder %s236, %s250
      %p252 = scmp.eq.s32.totalorder %s37, 0
      %p253 = por %p251, %p252
      %s255 = sadd.s32 %s254, 1
      %p258 = scmp.eq.s32.totalorder %s31, 1
      %p259 = scmp.ne.s32.totalorder %s254, %s256
      %p260 = scmp.eq.s32.totalorder %s31, 0
      %p261 = por %p259, %p260
      %p262 = scmp.ne.s32.totalorder %s254, %s256
      %p263 = scmp.eq.s32.totalorder %s36, 1
      %p264 = por %p262, %p263
      %p265 = scmp.ne.s32.totalorder %s256, %s257
      %p266 = scmp.eq.s32.totalorder %s36, 0
      %p267 = por %p265, %p266
      %p268 = scmp.ne.s32.totalorder %s256, %s257
      %p269 = scmp.eq.s32.totalorder %s37, 1
      %p270 = por %p268, %p269
      %p272 = scmp.ne.s32.totalorder %s257, %s271
      %p273 = scmp.eq.s32.totalorder %s37, 0
      %p274 = por %p272, %p273
      %s276 = sadd.s32 %s275, 1
      %p279 = scmp.eq.s32.totalorder %s31, 1
      %p280 = scmp.ne.s32.totalorder %s275, %s277
      %p281 = scmp.eq.s32.totalorder %s31, 0
      %p282 = por %p280, %p281
      %p283 = scmp.ne.s32.totalorder %s275, %s277
      %p284 = scmp.eq.s32.totalorder %s36, 1
      %p285 = por %p283, %p284
      %p286 = scmp.ne.s32.totalorder %s277, %s278
      %p287 = scmp.eq.s32.totalorder %s36, 0
      %p288 = por %p286, %p287
      %p289 = scmp.ne.s32.totalorder %s277, %s278
      %p290 = scmp.eq.s32.totalorder %s37, 1
      %p291 = por %p289, %p290
      %p293 = scmp.ne.s32.totalorder %s278, %s292
      %p294 = scmp.eq.s32.totalorder %s37, 0
      %p295 = por %p293, %p294
      %s297 = sadd.s32 %s296, 1
      %p300 = scmp.eq.s32.totalorder %s31, 1
      %p301 = scmp.ne.s32.totalorder %s296, %s298
      %p302 = scmp.eq.s32.totalorder %s31, 0
      %p303 = por %p301, %p302
      %p304 = scmp.ne.s32.totalorder %s296, %s298
      %p305 = scmp.eq.s32.totalorder %s36, 1
      %p306 = por %p304, %p305
      %p307 = scmp.ne.s32.totalorder %s298, %s299
      %p308 = scmp.eq.s32.totalorder %s36, 0
      %p309 = por %p307, %p308
      %p310 = scmp.ne.s32.totalorder %s298, %s299
      %p311 = scmp.eq.s32.totalorder %s37, 1
      %p312 = por %p310, %p311
      %p314 = scmp.ne.s32.totalorder %s299, %s313
      %p315 = scmp.eq.s32.totalorder %s37, 0
      %p316 = por %p314, %p315
      %s317 = ssub.s32 %s31, %s38
      %p318 = scmp.eq.s32.totalorder %s317, 0
      %s320 = sadd.s32 %s319, 1
      %s321 = scalar_select %p318, %s319, %s320
      %p324 = pneg %p318
      %p325 = scmp.eq.s32.totalorder %s31, 1
      %p326 = por %p324, %p325
      %p327 = scmp.ne.s32.totalorder %s319, %s322
      %p328 = scmp.eq.s32.totalorder %s31, 0
      %p329 = por %p327, %p328
      %p330 = scmp.ne.s32.totalorder %s319, %s322
      %p331 = scmp.eq.s32.totalorder %s36, 1
      %p332 = por %p330, %p331
      %p333 = scmp.ne.s32.totalorder %s322, %s323
      %p334 = scmp.eq.s32.totalorder %s36, 0
      %p335 = por %p333, %p334
      %p336 = scmp.ne.s32.totalorder %s322, %s323
      %p337 = scmp.eq.s32.totalorder %s37, 1
      %p338 = por %p336, %p337
      %p340 = scmp.ne.s32.totalorder %s323, %s339
      %p341 = scmp.eq.s32.totalorder %s37, 0
      %p342 = por %p340, %p341
      %s343 = ssub.s32 %s31, %s38
      %p344 = scmp.eq.s32.totalorder %s343, 0
      %s346 = sadd.s32 %s345, 1
      %s347 = scalar_select %p344, %s345, %s346
      %p350 = pneg %p344
      %p351 = scmp.eq.s32.totalorder %s31, 1
      %p352 = por %p350, %p351
      %p353 = scmp.ne.s32.totalorder %s345, %s348
      %p354 = scmp.eq.s32.totalorder %s31, 0
      %p355 = por %p353, %p354
      %p356 = scmp.ne.s32.totalorder %s345, %s348
      %p357 = scmp.eq.s32.totalorder %s36, 1
      %p358 = por %p356, %p357
      %p359 = scmp.ne.s32.totalorder %s348, %s349
      %p360 = scmp.eq.s32.totalorder %s36, 0
      %p361 = por %p359, %p360
      %p362 = scmp.ne.s32.totalorder %s348, %s349
      %p363 = scmp.eq.s32.totalorder %s37, 1
      %p364 = por %p362, %p363
      %p366 = scmp.ne.s32.totalorder %s349, %s365
      %p367 = scmp.eq.s32.totalorder %s37, 0
      %p368 = por %p366, %p367
      %p369 = scmp.le.s32.totalorder 1, %s31
      %p370 = scmp.lt.s32.totalorder %s31, 3
      %p371 = pnand %p369, %p370
      %p372 = pneg %p371
      // Predicated region
      $region9: #{tpu_custom_call.1} parent=5 // pred_check
        _
      $region10: #{tpu_custom_call.1} parent=5 // pred_check_branch
        %374 = sbr.rel (%p371) target = $region12
      $region11: #{tpu_custom_call.1} parent=5 // pred_region
        %s375 = ssub.s32 %s31, 1
        // Predicated region
        $region13: #{tpu_custom_call.1} parent=11 // pred_check
          %p376 = pneg %p78
        $region14: #{tpu_custom_call.1} parent=11 // pred_check_branch
          %378 = sbr.rel (%p376) target = $region16
        $region15: #{tpu_custom_call.1} parent=11 // pred_region
          _
        $region16: #{tpu_custom_call.1} parent=11 // pred_fallthru
          _
        // Predicated region
        $region17: #{tpu_custom_call.1} parent=11 // pred_check
          %p379 = pneg %p99
        $region18: #{tpu_custom_call.1} parent=11 // pred_check_branch
          %381 = sbr.rel (%p379) target = $region20
        $region19: #{tpu_custom_call.1} parent=11 // pred_region
          _
        $region20: #{tpu_custom_call.1} parent=11 // pred_fallthru
          _
        // Predicated region
        $region21: #{tpu_custom_call.1} parent=11 // pred_check
          %p382 = pneg %p120
        $region22: #{tpu_custom_call.1} parent=11 // pred_check_branch
          %384 = sbr.rel (%p382) target = $region24
        $region23: #{tpu_custom_call.1} parent=11 // pred_region
          %s386 = ssub.s32 6144, 6144
          %387 = vsyncadd [#allocation6], %s386
          %s388 = sshll.u32 [#allocation5], 4
          %s389 = int_to_ptr.vmem [resolvable:$true] %s388
          %394 = dma.hbm_to_vmem [thread:$0]  %s3, 6144, %s389, [#allocation6], 384, 384, 24
        $region24: #{tpu_custom_call.1} parent=11 // pred_fallthru
          _
        // Predicated region
        $region25: #{tpu_custom_call.1} parent=11 // pred_check
          %p395 = pneg %p141
        $region26: #{tpu_custom_call.1} parent=11 // pred_check_branch
          %397 = sbr.rel (%p395) target = $region28
        $region27: #{tpu_custom_call.1} parent=11 // pred_region
          _
        $region28: #{tpu_custom_call.1} parent=11 // pred_fallthru
          _
        // Predicated region
        $region29: #{tpu_custom_call.1} parent=11 // pred_check
          %p398 = pneg %p162
        $region30: #{tpu_custom_call.1} parent=11 // pred_check_branch
          %400 = sbr.rel (%p398) target = $region32
        $region31: #{tpu_custom_call.1} parent=11 // pred_region
          %s402 = ssub.s32 2048, 2048
          %403 = vsyncadd [#allocation6], %s402
          %s404 = sshll.u32 [#allocation7], 4
          %s405 = int_to_ptr.vmem [resolvable:$true] %s404
          %410 = dma.hbm_to_vmem [thread:$0]  %s5, 2048, %s405, [#allocation6], 128, 128, 8
        $region32: #{tpu_custom_call.1} parent=11 // pred_fallthru
          _
        // Predicated region
        $region33: #{tpu_custom_call.1} parent=11 // pred_check
          %p411 = pneg %p183
        $region34: #{tpu_custom_call.1} parent=11 // pred_check_branch
          %413 = sbr.rel (%p411) target = $region36
        $region35: #{tpu_custom_call.1} parent=11 // pred_region
          _
        $region36: #{tpu_custom_call.1} parent=11 // pred_fallthru
          _
        // Predicated region
        $region37: #{tpu_custom_call.1} parent=11 // pred_check
          %p414 = pneg %p204
        $region38: #{tpu_custom_call.1} parent=11 // pred_check_branch
          %416 = sbr.rel (%p414) target = $region40
        $region39: #{tpu_custom_call.1} parent=11 // pred_region
          _
        $region40: #{tpu_custom_call.1} parent=11 // pred_fallthru
          _
        // Predicated region
        $region41: #{tpu_custom_call.1} parent=11 // pred_check
          %p417 = pneg %p225
        $region42: #{tpu_custom_call.1} parent=11 // pred_check_branch
          %419 = sbr.rel (%p417) target = $region44
        $region43: #{tpu_custom_call.1} parent=11 // pred_region
          _
        $region44: #{tpu_custom_call.1} parent=11 // pred_fallthru
          _
        // Predicated region
        $region45: #{tpu_custom_call.1} parent=11 // pred_check
          %p420 = pneg %p246
        $region46: #{tpu_custom_call.1} parent=11 // pred_check_branch
          %422 = sbr.rel (%p420) target = $region48
        $region47: #{tpu_custom_call.1} parent=11 // pred_region
          %s424 = ssub.s32 2048, 2048
          %425 = vsyncadd [#allocation9], %s424
          %s426 = sshll.u32 [#allocation8], 4
          %s427 = int_to_ptr.vmem [resolvable:$true] %s426
          %432 = dma.hbm_to_vmem [thread:$0]  %s9, 2048, %s427, [#allocation9], 128, 128, 8
        $region48: #{tpu_custom_call.1} parent=11 // pred_fallthru
          _
        // Predicated region
        $region49: #{tpu_custom_call.1} parent=11 // pred_check
          %p433 = pneg %p267
        $region50: #{tpu_custom_call.1} parent=11 // pred_check_branch
          %435 = sbr.rel (%p433) target = $region52
        $region51: #{tpu_custom_call.1} parent=11 // pred_region
          _
        $region52: #{tpu_custom_call.1} parent=11 // pred_fallthru
          _
        // Predicated region
        $region53: #{tpu_custom_call.1} parent=11 // pred_check
          %p436 = pneg %p288
        $region54: #{tpu_custom_call.1} parent=11 // pred_check_branch
          %438 = sbr.rel (%p436) target = $region56
        $region55: #{tpu_custom_call.1} parent=11 // pred_region
          %s440 = ssub.s32 2048, 2048
          %441 = vsyncadd [#allocation9], %s440
          %s442 = sshll.u32 [#allocation10], 4
          %s443 = int_to_ptr.vmem [resolvable:$true] %s442
          %448 = dma.hbm_to_vmem [thread:$0]  %s11, 2048, %s443, [#allocation9], 128, 128, 8
        $region56: #{tpu_custom_call.1} parent=11 // pred_fallthru
          _
        // Predicated region
        $region57: #{tpu_custom_call.1} parent=11 // pred_check
          %p449 = pneg %p309
        $region58: #{tpu_custom_call.1} parent=11 // pred_check_branch
          %451 = sbr.rel (%p449) target = $region60
        $region59: #{tpu_custom_call.1} parent=11 // pred_region
          _
        $region60: #{tpu_custom_call.1} parent=11 // pred_fallthru
          _
      $region12: #{tpu_custom_call.1} parent=5 // pred_fallthru
        _
      %p452 = scmp.lt.s32.totalorder %s31, 2
      // Predicated region
      $region61: #{tpu_custom_call.1} parent=5 // pred_check
        %p453 = pneg %p452
      $region62: #{tpu_custom_call.1} parent=5 // pred_check_branch
        %455 = sbr.rel (%p453) target = $region64
      $region63: #{tpu_custom_call.1} parent=5 // pred_region
        // Predicated region
        $region65: #{tpu_custom_call.1} parent=63 // pred_check
          %p456 = pneg %p51
        $region66: #{tpu_custom_call.1} parent=63 // pred_check_branch
          %458 = sbr.rel (%p456) target = $region68
        $region67: #{tpu_custom_call.1} parent=63 // pred_region
          %s459 = sand.u32 %s41, 1
          %s460 = scalar_lea.sflag [#allocation3], %s459
          %s461 = sand.u32 %s41, 1
          %s462 = smul.addr %s461, 8
          %s463 = scalar_lea.vmem [#allocation2], %s462
          %s465 = ssub.s32 128, 128
          %466 = vsyncadd %s460, %s465
          %s467 = smul.addr %s31, 128
          %s468 = scalar_lea.hbm %s0, %s467
          %s470 = sshll.u32 %s463, 4
          %s471 = int_to_ptr.vmem [resolvable:$true] %s470
          %473 = dma.hbm_to_vmem [thread:$0]  %s468, 128, %s471, %s460
        $region68: #{tpu_custom_call.1} parent=63 // pred_fallthru
          _
        // Predicated region
        $region69: #{tpu_custom_call.1} parent=63 // pred_check
          %p474 = pneg %p329
        $region70: #{tpu_custom_call.1} parent=63 // pred_check_branch
          %476 = sbr.rel (%p474) target = $region72
        $region71: #{tpu_custom_call.1} parent=63 // pred_region
          %s477 = sand.u32 %s319, 1
          %s478 = scalar_lea.sflag [#allocation12], %s477
          %s479 = sand.u32 %s319, 1
          %s480 = smul.addr %s479, 32
          %s481 = scalar_lea.vmem [#allocation11], %s480
          %s483 = ssub.s32 512, 512
          %484 = vsyncadd %s478, %s483
          %s485 = smul.addr %s31, 4
          %s486 = smul.addr %s485, 128
          %s487 = scalar_lea.hbm %s13, %s486
          %s488 = sshll.u32 %s481, 4
          %s489 = int_to_ptr.vmem [resolvable:$true] %s488
          %494 = dma.hbm_to_vmem [thread:$0]  %s487, 512, %s489, %s478, 128, 128, 8
        $region72: #{tpu_custom_call.1} parent=63 // pred_fallthru
          _
      $region64: #{tpu_custom_call.1} parent=5 // pred_fallthru
        _
      %p495 = scmp.le.s32.totalorder 1, %s31
      %p496 = scmp.lt.s32.totalorder %s31, 3
      %p497 = pnand %p495, %p496
      %p498 = pneg %p497
      // Predicated region
      $region73: #{tpu_custom_call.1} parent=5 // pred_check
        _
      $region74: #{tpu_custom_call.1} parent=5 // pred_check_branch
        %500 = sbr.rel (%p497) target = $region76
      $region75: #{tpu_custom_call.1} parent=5 // pred_region
        %s501 = ssub.s32 %s31, 1
        %s502 = sand.u32 %s44, 1
        %s503 = scalar_lea.sflag [#allocation3], %s502
        %s504 = sand.u32 %s44, 1
        %s505 = smul.addr %s504, 8
        %s506 = scalar_lea.vmem [#allocation2], %s505
        // Predicated region
        $region77: #{tpu_custom_call.1} parent=75 // pred_check
          %p507 = pneg %p57
        $region78: #{tpu_custom_call.1} parent=75 // pred_check_branch
          %509 = sbr.rel (%p507) target = $region80
        $region79: #{tpu_custom_call.1} parent=75 // pred_region
          %510 = dma.done %s503, 128
        $region80: #{tpu_custom_call.1} parent=75 // pred_fallthru
          _
        // Predicated region
        $region81: #{tpu_custom_call.1} parent=75 // pred_check
          %p511 = pneg %p120
        $region82: #{tpu_custom_call.1} parent=75 // pred_check_branch
          %513 = sbr.rel (%p511) target = $region84
        $region83: #{tpu_custom_call.1} parent=75 // pred_region
          %514 = dma.done [#allocation6], 6144
        $region84: #{tpu_custom_call.1} parent=75 // pred_fallthru
          _
        // Predicated region
        $region85: #{tpu_custom_call.1} parent=75 // pred_check
          %p515 = pneg %p162
        $region86: #{tpu_custom_call.1} parent=75 // pred_check_branch
          %517 = sbr.rel (%p515) target = $region88
        $region87: #{tpu_custom_call.1} parent=75 // pred_region
          %518 = dma.done [#allocation6], 2048
        $region88: #{tpu_custom_call.1} parent=75 // pred_fallthru
          _
        // Predicated region
        $region89: #{tpu_custom_call.1} parent=75 // pred_check
          %p519 = pneg %p246
        $region90: #{tpu_custom_call.1} parent=75 // pred_check_branch
          %521 = sbr.rel (%p519) target = $region92
        $region91: #{tpu_custom_call.1} parent=75 // pred_region
          %522 = dma.done [#allocation9], 2048
        $region92: #{tpu_custom_call.1} parent=75 // pred_fallthru
          _
        // Predicated region
        $region93: #{tpu_custom_call.1} parent=75 // pred_check
          %p523 = pneg %p288
        $region94: #{tpu_custom_call.1} parent=75 // pred_check_branch
          %525 = sbr.rel (%p523) target = $region96
        $region95: #{tpu_custom_call.1} parent=75 // pred_region
          %526 = dma.done [#allocation9], 2048
        $region96: #{tpu_custom_call.1} parent=75 // pred_fallthru
          _
        %s527 = sand.u32 %s322, 1
        %s528 = scalar_lea.sflag [#allocation12], %s527
        %s529 = sand.u32 %s322, 1
        %s530 = smul.addr %s529, 32
        %s531 = scalar_lea.vmem [#allocation11], %s530
        // Predicated region
        $region97: #{tpu_custom_call.1} parent=75 // pred_check
          %p532 = pneg %p335
        $region98: #{tpu_custom_call.1} parent=75 // pred_check_branch
          %534 = sbr.rel (%p532) target = $region100
        $region99: #{tpu_custom_call.1} parent=75 // pred_region
          %535 = dma.done %s528, 512
        $region100: #{tpu_custom_call.1} parent=75 // pred_fallthru
          _
        %s536 = sand.u32 %s44, 1
        %s537 = scalar_lea.sflag [#allocation3], %s536
        %s538 = sand.u32 %s44, 1
        %s539 = smul.addr %s538, 8
        %s540 = scalar_lea.vmem [#allocation2], %s539
        %p541 = pneg %p57
        %p542 = pneg %p54
        %p543 = pneg %p78
        %p544 = pneg %p75
        %p545 = pneg %p99
        %p546 = pneg %p96
        %p547 = pneg %p120
        %p548 = pneg %p117
        %p549 = pneg %p141
        %p550 = pneg %p138
        %p551 = pneg %p162
        %p552 = pneg %p159
        %p553 = pneg %p183
        %p554 = pneg %p180
        %p555 = pneg %p204
        %p556 = pneg %p201
        %p557 = pneg %p225
        %p558 = pneg %p222
        %p559 = pneg %p246
        %p560 = pneg %p243
        %p561 = pneg %p267
        %p562 = pneg %p264
        %p563 = pneg %p288
        %p564 = pneg %p285
        %p565 = pneg %p309
        %p566 = pneg %p306
        %s567 = sand.u32 %s322, 1
        %s568 = scalar_lea.sflag [#allocation12], %s567
        %s569 = sand.u32 %s322, 1
        %s570 = smul.addr %s569, 32
        %s571 = scalar_lea.vmem [#allocation11], %s570
        %p572 = pneg %p335
        %p573 = pneg %p332
        %p574 = pneg %p361
        %p575 = pneg %p358
        %s576 = sand.u32 %s348, 1
        %s577 = scalar_lea.sflag [#allocation4], %s576
        %s578 = sand.u32 %s348, 1
        %s579 = smul.addr %s578, 8
        %s580 = scalar_lea.vmem [#allocation13], %s579
        %v581 = vlaneseq
        %v582 = vand.u32 %v581, 127
        %vm583 = vcmp.lt.s32.totalorder %v582, 32
        %v584 = vsel %vm583, 1, 0
        %v585 = vcvt.s32.f32 %v584
        %v586 = vld [vmem:[%s506] sm:$0xff]
        %v587 = vld [vmem:[%s1] sm:$0x1]
        %v588 = vld [vmem:[%s2] sm:$0x1]
        %589 = vadd.xlane.f32.xlu0 %v586
        %v590 = vpop.xlane.xlu0 %589
        %v591 = vmul.f32 %v590, 0.03125
        %v592 = vsub.f32 %v586, %v591
        %v593 = vmul.f32 %v592, %v585
        %v594 = vmul.f32 %v593, %v593
        %595 = vadd.xlane.f32.xlu0 %v594
        %v596 = vpop.xlane.xlu0 %595
        %v597 = vmul.f32 %v596, 0.03125
        %v598 = vadd.f32 %v597, 1e-05
        %v599 = vrsqrt.pop %v598
        %v600 = vmul.f32 %v592, %v599
        %v602 = vlaneseq
        %v603 = vshrl.u32 %v602, 7
        %v604 = vsub.s32 0, %v603
        %v605 = vrot.slane %v587, %v604
        %v607 = vmul.f32 %v600, %v605
        %v609 = vlaneseq
        %v610 = vshrl.u32 %v609, 7
        %v611 = vsub.s32 0, %v610
        %v612 = vrot.slane %v588, %v611
        %v614 = vadd.f32 %v607, %v612
        %v615 = vld [vmem:[#allocation5] sm:$0xff]
        %v616 = vld [vmem:[#allocation5 + $0x8] sm:$0xff]
        %v617 = vld [vmem:[#allocation5 + $0x10] sm:$0xff]
        %v618 = vld [vmem:[#allocation5 + $0x18] sm:$0xff]
        %v619 = vld [vmem:[#allocation5 + $0x20] sm:$0xff]
        %v620 = vld [vmem:[#allocation5 + $0x28] sm:$0xff]
        %v621 = vld [vmem:[#allocation5 + $0x30] sm:$0xff]
        %v622 = vld [vmem:[#allocation5 + $0x38] sm:$0xff]
        %v623 = vld [vmem:[#allocation5 + $0x40] sm:$0xff]
        %v624 = vld [vmem:[#allocation5 + $0x48] sm:$0xff]
        %v625 = vld [vmem:[#allocation5 + $0x50] sm:$0xff]
        %v626 = vld [vmem:[#allocation5 + $0x58] sm:$0xff]
        %v627 = vld [vmem:[#allocation5 + $0x60] sm:$0xff]
        %v628 = vld [vmem:[#allocation5 + $0x68] sm:$0xff]
        %v629 = vld [vmem:[#allocation5 + $0x70] sm:$0xff]
        %v630 = vld [vmem:[#allocation5 + $0x78] sm:$0xff]
        %v631 = vld [vmem:[#allocation5 + $0x80] sm:$0xff]
        %v632 = vld [vmem:[#allocation5 + $0x88] sm:$0xff]
        %v633 = vld [vmem:[#allocation5 + $0x90] sm:$0xff]
        %v634 = vld [vmem:[#allocation5 + $0x98] sm:$0xff]
        %v635 = vld [vmem:[#allocation5 + $0xa0] sm:$0xff]
        %v636 = vld [vmem:[#allocation5 + $0xa8] sm:$0xff]
        %v637 = vld [vmem:[#allocation5 + $0xb0] sm:$0xff]
        %v638 = vld [vmem:[#allocation5 + $0xb8] sm:$0xff]
        %v639 = vld [vmem:[#allocation5 + $0xc0] sm:$0xff]
        %v640 = vld [vmem:[#allocation5 + $0xc8] sm:$0xff]
        %v641 = vld [vmem:[#allocation5 + $0xd0] sm:$0xff]
        %v642 = vld [vmem:[#allocation5 + $0xd8] sm:$0xff]
        %v643 = vld [vmem:[#allocation5 + $0xe0] sm:$0xff]
        %v644 = vld [vmem:[#allocation5 + $0xe8] sm:$0xff]
        %v645 = vld [vmem:[#allocation5 + $0xf0] sm:$0xff]
        %v646 = vld [vmem:[#allocation5 + $0xf8] sm:$0xff]
        %v647 = vld [vmem:[#allocation5 + $0x100] sm:$0xff]
        %v648 = vld [vmem:[#allocation5 + $0x108] sm:$0xff]
        %v649 = vld [vmem:[#allocation5 + $0x110] sm:$0xff]
        %v650 = vld [vmem:[#allocation5 + $0x118] sm:$0xff]
        %v651 = vld [vmem:[#allocation5 + $0x120] sm:$0xff]
        %v652 = vld [vmem:[#allocation5 + $0x128] sm:$0xff]
        %v653 = vld [vmem:[#allocation5 + $0x130] sm:$0xff]
        %v654 = vld [vmem:[#allocation5 + $0x138] sm:$0xff]
        %v655 = vld [vmem:[#allocation5 + $0x140] sm:$0xff]
        %v656 = vld [vmem:[#allocation5 + $0x148] sm:$0xff]
        %v657 = vld [vmem:[#allocation5 + $0x150] sm:$0xff]
        %v658 = vld [vmem:[#allocation5 + $0x158] sm:$0xff]
        %v659 = vld [vmem:[#allocation5 + $0x160] sm:$0xff]
        %v660 = vld [vmem:[#allocation5 + $0x168] sm:$0xff]
        %v661 = vld [vmem:[#allocation5 + $0x170] sm:$0xff]
        %v662 = vld [vmem:[#allocation5 + $0x178] sm:$0xff]
        %v663 = vld [vmem:[%s4] sm:$0x7]
        %v665 = vlaneseq
        %v666 = vshrl.u32 %v665, 7
        %v667 = vsub.s32 0, %v666
        %v668 = vrot.slane %v663, %v667
        %v669 = vlaneseq
        %v670 = vshrl.u32 %v669, 7
        %v671 = vsub.s32 1, %v670
        %v672 = vrot.slane %v663, %v671
        %v673 = vlaneseq
        %v674 = vshrl.u32 %v673, 7
        %v675 = vsub.s32 2, %v674
        %v676 = vrot.slane %v663, %v675
        %v680 = vand.u32 %v616, 4294901760
        %681 = vmatprep.subr.mxu0 %v680
        %v682 = vand.u32 %v615, 4294901760
        %683 = vmatpush1.msra.mxu0 %v682
        %v684 = vand.u32 %v619, 4294901760
        %685 = vmatprep.subr.mxu0 %v684
        %v686 = vand.u32 %v618, 4294901760
        %687 = vmatpush1.msra.mxu0 %v686
        %v688 = vand.u32 %v622, 4294901760
        %689 = vmatprep.subr.mxu0 %v688
        %v690 = vand.u32 %v621, 4294901760
        %691 = vmatpush1.msra.mxu0 %v690
        %v692 = vand.u32 %v625, 4294901760
        %693 = vmatprep.subr.mxu0 %v692
        %v694 = vand.u32 %v624, 4294901760
        %695 = vmatpush1.msra.mxu0 %v694
        %v696 = vand.u32 %v628, 4294901760
        %697 = vmatprep.subr.mxu0 %v696
        %v698 = vand.u32 %v627, 4294901760
        %699 = vmatpush1.msra.mxu0 %v698
        %v700 = vand.u32 %v631, 4294901760
        %701 = vmatprep.subr.mxu0 %v700
        %v702 = vand.u32 %v630, 4294901760
        %703 = vmatpush1.msra.mxu0 %v702
        %v704 = vand.u32 %v634, 4294901760
        %705 = vmatprep.subr.mxu0 %v704
        %v706 = vand.u32 %v633, 4294901760
        %707 = vmatpush1.msra.mxu0 %v706
        %v708 = vand.u32 %v637, 4294901760
        %709 = vmatprep.subr.mxu0 %v708
        %v710 = vand.u32 %v636, 4294901760
        %711 = vmatpush1.msra.mxu0 %v710
        %v712 = vand.u32 %v640, 4294901760
        %713 = vmatprep.subr.mxu0 %v712
        %v714 = vand.u32 %v639, 4294901760
        %715 = vmatpush1.msra.mxu0 %v714
        %v716 = vand.u32 %v643, 4294901760
        %717 = vmatprep.subr.mxu0 %v716
        %v718 = vand.u32 %v642, 4294901760
        %719 = vmatpush1.msra.mxu0 %v718
        %v720 = vand.u32 %v646, 4294901760
        %721 = vmatprep.subr.mxu0 %v720
        %v722 = vand.u32 %v645, 4294901760
        %723 = vmatpush1.msra.mxu0 %v722
        %v724 = vand.u32 %v649, 4294901760
        %725 = vmatprep.subr.mxu0 %v724
        %v726 = vand.u32 %v648, 4294901760
        %727 = vmatpush1.msra.mxu0 %v726
        %v728 = vand.u32 %v652, 4294901760
        %729 = vmatprep.subr.mxu0 %v728
        %v730 = vand.u32 %v651, 4294901760
        %731 = vmatpush1.msra.mxu0 %v730
        %v732 = vand.u32 %v655, 4294901760
        %733 = vmatprep.subr.mxu0 %v732
        %v734 = vand.u32 %v654, 4294901760
        %735 = vmatpush1.msra.mxu0 %v734
        %v736 = vand.u32 %v658, 4294901760
        %737 = vmatprep.subr.mxu0 %v736
        %v738 = vand.u32 %v657, 4294901760
        %739 = vmatpush1.msra.mxu0 %v738
        %v740 = vand.u32 %v661, 4294901760
        %741 = vmatprep.subr.mxu0 %v740
        %v742 = vand.u32 %v660, 4294901760
        %743 = vmatpush1.msra.mxu0 %v742
        %744 = vmatprep.subr.mxu0 0.0
        %745 = vmatpush1.msra.mxu0 0.0
        %746 = vmatprep.subr.mxu0 0.0
        %747 = vmatpush1.msra.mxu0 0.0
        %748 = vmatprep.subr.mxu0 0.0
        %749 = vmatpush1.msra.mxu0 0.0
        %750 = vmatprep.subr.mxu0 0.0
        %751 = vmatpush1.msra.mxu0 0.0
        %752 = vmatprep.subr.mxu0 0.0
        %753 = vmatpush1.msra.mxu0 0.0
        %754 = vmatprep.subr.mxu0 0.0
        %755 = vmatpush1.msra.mxu0 0.0
        %756 = vmatprep.subr.mxu0 0.0
        %757 = vmatpush1.msra.mxu0 0.0
        %758 = vmatprep.subr.mxu0 0.0
        %759 = vmatpush1.msra.mxu0 0.0
        %760 = vmatprep.subr.mxu0 0.0
        %761 = vmatpush1.msra.mxu0 0.0
        %762 = vmatprep.subr.mxu0 0.0
        %763 = vmatpush1.msra.mxu0 0.0
        %764 = vmatprep.subr.mxu0 0.0
        %765 = vmatpush1.msra.mxu0 0.0
        %766 = vmatprep.subr.mxu0 0.0
        %767 = vmatpush1.msra.mxu0 0.0
        %768 = vmatprep.subr.mxu0 0.0
        %769 = vmatpush1.msra.mxu0 0.0
        %770 = vmatprep.subr.mxu0 0.0
        %771 = vmatpush1.msra.mxu0 0.0
        %772 = vmatprep.subr.mxu0 0.0
        %773 = vmatpush1.msra.mxu0 0.0
        %774 = vmatprep.subr.mxu0 0.0
        %775 = vmatpush1.msra.mxu0 0.0
        %776 = vmatprep.mubr.f32.mxu0 0.0
        %v777 = vand.u32 %v614, 4294901760
        %v778 = vsub.f32 %v614, %v777
        %v779 = vand.u32 %v778, 4294901760
        %v780 = vsub.f32 %v778, %v779
        %v781 = vand.u32 %v780, 4294901760
        %782 = vmatmul.mubr.f32.gmra.mrb[0].mxu0 %v781
        %v783 = vpop.f32.mrb[0].mxu0
        %v784 = vadd.f32 %v668, %v783
        %v785 = vpop.f32.mrb[0].mxu0
        %v786 = vadd.f32 %v672, %v785
        %787 = vdwg.mxu0
        %v788 = vand.u32 %v616, 4294901760
        %v789 = vsub.f32 %v616, %v788
        %v790 = vand.u32 %v789, 4294901760
        %v791 = vsub.f32 %v789, %v790
        %v792 = vand.u32 %v791, 4294901760
        %793 = vmatprep.subr.mxu0 %v792
        %v794 = vand.u32 %v615, 4294901760
        %v795 = vsub.f32 %v615, %v794
        %v796 = vand.u32 %v795, 4294901760
        %v797 = vsub.f32 %v795, %v796
        %v798 = vand.u32 %v797, 4294901760
        %799 = vmatpush1.msra.mxu0 %v798
        %v800 = vand.u32 %v619, 4294901760
        %v801 = vsub.f32 %v619, %v800
        %v802 = vand.u32 %v801, 4294901760
        %v803 = vsub.f32 %v801, %v802
        %v804 = vand.u32 %v803, 4294901760
        %805 = vmatprep.subr.mxu0 %v804
        %v806 = vand.u32 %v618, 4294901760
        %v807 = vsub.f32 %v618, %v806
        %v808 = vand.u32 %v807, 4294901760
        %v809 = vsub.f32 %v807, %v808
        %v810 = vand.u32 %v809, 4294901760
        %811 = vmatpush1.msra.mxu0 %v810
        %v812 = vand.u32 %v622, 4294901760
        %v813 = vsub.f32 %v622, %v812
        %v814 = vand.u32 %v813, 4294901760
        %v815 = vsub.f32 %v813, %v814
        %v816 = vand.u32 %v815, 4294901760
        %817 = vmatprep.subr.mxu0 %v816
        %v818 = vand.u32 %v621, 4294901760
        %v819 = vsub.f32 %v621, %v818
        %v820 = vand.u32 %v819, 4294901760
        %v821 = vsub.f32 %v819, %v820
        %v822 = vand.u32 %v821, 4294901760
        %823 = vmatpush1.msra.mxu0 %v822
        %v824 = vand.u32 %v625, 4294901760
        %v825 = vsub.f32 %v625, %v824
        %v826 = vand.u32 %v825, 4294901760
        %v827 = vsub.f32 %v825, %v826
        %v828 = vand.u32 %v827, 4294901760
        %829 = vmatprep.subr.mxu0 %v828
        %v830 = vand.u32 %v624, 4294901760
        %v831 = vsub.f32 %v624, %v830
        %v832 = vand.u32 %v831, 4294901760
        %v833 = vsub.f32 %v831, %v832
        %v834 = vand.u32 %v833, 4294901760
        %835 = vmatpush1.msra.mxu0 %v834
        %v836 = vand.u32 %v628, 4294901760
        %v837 = vsub.f32 %v628, %v836
        %v838 = vand.u32 %v837, 4294901760
        %v839 = vsub.f32 %v837, %v838
        %v840 = vand.u32 %v839, 4294901760
        %841 = vmatprep.subr.mxu0 %v840
        %v842 = vand.u32 %v627, 4294901760
        %v843 = vsub.f32 %v627, %v842
        %v844 = vand.u32 %v843, 4294901760
        %v845 = vsub.f32 %v843, %v844
        %v846 = vand.u32 %v845, 4294901760
        %847 = vmatpush1.msra.mxu0 %v846
        %v848 = vand.u32 %v631, 4294901760
        %v849 = vsub.f32 %v631, %v848
        %v850 = vand.u32 %v849, 4294901760
        %v851 = vsub.f32 %v849, %v850
        %v852 = vand.u32 %v851, 4294901760
        %853 = vmatprep.subr.mxu0 %v852
        %v854 = vand.u32 %v630, 4294901760
        %v855 = vsub.f32 %v630, %v854
        %v856 = vand.u32 %v855, 4294901760
        %v857 = vsub.f32 %v855, %v856
        %v858 = vand.u32 %v857, 4294901760
        %859 = vmatpush1.msra.mxu0 %v858
        %v860 = vand.u32 %v634, 4294901760
        %v861 = vsub.f32 %v634, %v860
        %v862 = vand.u32 %v861, 4294901760
        %v863 = vsub.f32 %v861, %v862
        %v864 = vand.u32 %v863, 4294901760
        %865 = vmatprep.subr.mxu0 %v864
        %v866 = vand.u32 %v633, 4294901760
        %v867 = vsub.f32 %v633, %v866
        %v868 = vand.u32 %v867, 4294901760
        %v869 = vsub.f32 %v867, %v868
        %v870 = vand.u32 %v869, 4294901760
        %871 = vmatpush1.msra.mxu0 %v870
        %v872 = vand.u32 %v637, 4294901760
        %v873 = vsub.f32 %v637, %v872
        %v874 = vand.u32 %v873, 4294901760
        %v875 = vsub.f32 %v873, %v874
        %v876 = vand.u32 %v875, 4294901760
        %877 = vmatprep.subr.mxu0 %v876
        %v878 = vand.u32 %v636, 4294901760
        %v879 = vsub.f32 %v636, %v878
        %v880 = vand.u32 %v879, 4294901760
        %v881 = vsub.f32 %v879, %v880
        %v882 = vand.u32 %v881, 4294901760
        %883 = vmatpush1.msra.mxu0 %v882
        %v884 = vand.u32 %v640, 4294901760
        %v885 = vsub.f32 %v640, %v884
        %v886 = vand.u32 %v885, 4294901760
        %v887 = vsub.f32 %v885, %v886
        %v888 = vand.u32 %v887, 4294901760
        %889 = vmatprep.subr.mxu0 %v888
        %v890 = vand.u32 %v639, 4294901760
        %v891 = vsub.f32 %v639, %v890
        %v892 = vand.u32 %v891, 4294901760
        %v893 = vsub.f32 %v891, %v892
        %v894 = vand.u32 %v893, 4294901760
        %895 = vmatpush1.msra.mxu0 %v894
        %v896 = vand.u32 %v643, 4294901760
        %v897 = vsub.f32 %v643, %v896
        %v898 = vand.u32 %v897, 4294901760
        %v899 = vsub.f32 %v897, %v898
        %v900 = vand.u32 %v899, 4294901760
        %901 = vmatprep.subr.mxu0 %v900
        %v902 = vand.u32 %v642, 4294901760
        %v903 = vsub.f32 %v642, %v902
        %v904 = vand.u32 %v903, 4294901760
        %v905 = vsub.f32 %v903, %v904
        %v906 = vand.u32 %v905, 4294901760
        %907 = vmatpush1.msra.mxu0 %v906
        %v908 = vand.u32 %v646, 4294901760
        %v909 = vsub.f32 %v646, %v908
        %v910 = vand.u32 %v909, 4294901760
        %v911 = vsub.f32 %v909, %v910
        %v912 = vand.u32 %v911, 4294901760
        %913 = vmatprep.subr.mxu0 %v912
        %v914 = vand.u32 %v645, 4294901760
        %v915 = vsub.f32 %v645, %v914
        %v916 = vand.u32 %v915, 4294901760
        %v917 = vsub.f32 %v915, %v916
        %v918 = vand.u32 %v917, 4294901760
        %919 = vmatpush1.msra.mxu0 %v918
        %v920 = vand.u32 %v649, 4294901760
        %v921 = vsub.f32 %v649, %v920
        %v922 = vand.u32 %v921, 4294901760
        %v923 = vsub.f32 %v921, %v922
        %v924 = vand.u32 %v923, 4294901760
        %925 = vmatprep.subr.mxu0 %v924
        %v926 = vand.u32 %v648, 4294901760
        %v927 = vsub.f32 %v648, %v926
        %v928 = vand.u32 %v927, 4294901760
        %v929 = vsub.f32 %v927, %v928
        %v930 = vand.u32 %v929, 4294901760
        %931 = vmatpush1.msra.mxu0 %v930
        %v932 = vand.u32 %v652, 4294901760
        %v933 = vsub.f32 %v652, %v932
        %v934 = vand.u32 %v933, 4294901760
        %v935 = vsub.f32 %v933, %v934
        %v936 = vand.u32 %v935, 4294901760
        %937 = vmatprep.subr.mxu0 %v936
        %v938 = vand.u32 %v651, 4294901760
        %v939 = vsub.f32 %v651, %v938
        %v940 = vand.u32 %v939, 4294901760
        %v941 = vsub.f32 %v939, %v940
        %v942 = vand.u32 %v941, 4294901760
        %943 = vmatpush1.msra.mxu0 %v942
        %v944 = vand.u32 %v655, 4294901760
        %v945 = vsub.f32 %v655, %v944
        %v946 = vand.u32 %v945, 4294901760
        %v947 = vsub.f32 %v945, %v946
        %v948 = vand.u32 %v947, 4294901760
        %949 = vmatprep.subr.mxu0 %v948
        %v950 = vand.u32 %v654, 4294901760
        %v951 = vsub.f32 %v654, %v950
        %v952 = vand.u32 %v951, 4294901760
        %v953 = vsub.f32 %v951, %v952
        %v954 = vand.u32 %v953, 4294901760
        %955 = vmatpush1.msra.mxu0 %v954
        %v956 = vand.u32 %v658, 4294901760
        %v957 = vsub.f32 %v658, %v956
        %v958 = vand.u32 %v957, 4294901760
        %v959 = vsub.f32 %v957, %v958
        %v960 = vand.u32 %v959, 4294901760
        %961 = vmatprep.subr.mxu0 %v960
        %v962 = vand.u32 %v657, 4294901760
        %v963 = vsub.f32 %v657, %v962
        %v964 = vand.u32 %v963, 4294901760
        %v965 = vsub.f32 %v963, %v964
        %v966 = vand.u32 %v965, 4294901760
        %967 = vmatpush1.msra.mxu0 %v966
        %v968 = vand.u32 %v661, 4294901760
        %v969 = vsub.f32 %v661, %v968
        %v970 = vand.u32 %v969, 4294901760
        %v971 = vsub.f32 %v969, %v970
        %v972 = vand.u32 %v971, 4294901760
        %973 = vmatprep.subr.mxu0 %v972
        %v974 = vand.u32 %v660, 4294901760
        %v975 = vsub.f32 %v660, %v974
        %v976 = vand.u32 %v975, 4294901760
        %v977 = vsub.f32 %v975, %v976
        %v978 = vand.u32 %v977, 4294901760
        %979 = vmatpush1.msra.mxu0 %v978
        %980 = vmatprep.subr.mxu0 0.0
        %981 = vmatpush1.msra.mxu0 0.0
        %982 = vmatprep.subr.mxu0 0.0
        %983 = vmatpush1.msra.mxu0 0.0
        %984 = vmatprep.subr.mxu0 0.0
        %985 = vmatpush1.msra.mxu0 0.0
        %986 = vmatprep.subr.mxu0 0.0
        %987 = vmatpush1.msra.mxu0 0.0
        %988 = vmatprep.subr.mxu0 0.0
        %989 = vmatpush1.msra.mxu0 0.0
        %990 = vmatprep.subr.mxu0 0.0
        %991 = vmatpush1.msra.mxu0 0.0
        %992 = vmatprep.subr.mxu0 0.0
        %993 = vmatpush1.msra.mxu0 0.0
        %994 = vmatprep.subr.mxu0 0.0
        %995 = vmatpush1.msra.mxu0 0.0
        %996 = vmatprep.subr.mxu0 0.0
        %997 = vmatpush1.msra.mxu0 0.0
        %998 = vmatprep.subr.mxu0 0.0
        %999 = vmatpush1.msra.mxu0 0.0
        %1000 = vmatprep.subr.mxu0 0.0
        %1001 = vmatpush1.msra.mxu0 0.0
        %1002 = vmatprep.subr.mxu0 0.0
        %1003 = vmatpush1.msra.mxu0 0.0
        %1004 = vmatprep.subr.mxu0 0.0
        %1005 = vmatpush1.msra.mxu0 0.0
        %1006 = vmatprep.subr.mxu0 0.0
        %1007 = vmatpush1.msra.mxu0 0.0
        %1008 = vmatprep.subr.mxu0 0.0
        %1009 = vmatpush1.msra.mxu0 0.0
        %1010 = vmatprep.subr.mxu0 0.0
        %1011 = vmatpush1.msra.mxu0 0.0
        %1012 = vmatprep.mubr.f32.mxu0 0.0
        %v1013 = vand.u32 %v614, 4294901760
        %1014 = vmatmul.mubr.f32.gmra.mrb[0].mxu0 %v1013
        %v1015 = vpop.f32.mrb[0].mxu0
        %v1016 = vadd.f32 %v784, %v1015
        %v1017 = vpop.f32.mrb[0].mxu0
        %v1018 = vadd.f32 %v786, %v1017
        %1019 = vdwg.mxu0
        %v1020 = vand.u32 %v616, 4294901760
        %v1021 = vsub.f32 %v616, %v1020
        %1022 = vmatprep.subr.mxu0 %v1021
        %v1023 = vand.u32 %v615, 4294901760
        %v1024 = vsub.f32 %v615, %v1023
        %1025 = vmatpush1.msra.mxu0 %v1024
        %v1026 = vand.u32 %v619, 4294901760
        %v1027 = vsub.f32 %v619, %v1026
        %1028 = vmatprep.subr.mxu0 %v1027
        %v1029 = vand.u32 %v618, 4294901760
        %v1030 = vsub.f32 %v618, %v1029
        %1031 = vmatpush1.msra.mxu0 %v1030
        %v1032 = vand.u32 %v622, 4294901760
        %v1033 = vsub.f32 %v622, %v1032
        %1034 = vmatprep.subr.mxu0 %v1033
        %v1035 = vand.u32 %v621, 4294901760
        %v1036 = vsub.f32 %v621, %v1035
        %1037 = vmatpush1.msra.mxu0 %v1036
        %v1038 = vand.u32 %v625, 4294901760
        %v1039 = vsub.f32 %v625, %v1038
        %1040 = vmatprep.subr.mxu0 %v1039
        %v1041 = vand.u32 %v624, 4294901760
        %v1042 = vsub.f32 %v624, %v1041
        %1043 = vmatpush1.msra.mxu0 %v1042
        %v1044 = vand.u32 %v628, 4294901760
        %v1045 = vsub.f32 %v628, %v1044
        %1046 = vmatprep.subr.mxu0 %v1045
        %v1047 = vand.u32 %v627, 4294901760
        %v1048 = vsub.f32 %v627, %v1047
        %1049 = vmatpush1.msra.mxu0 %v1048
        %v1050 = vand.u32 %v631, 4294901760
        %v1051 = vsub.f32 %v631, %v1050
        %1052 = vmatprep.subr.mxu0 %v1051
        %v1053 = vand.u32 %v630, 4294901760
        %v1054 = vsub.f32 %v630, %v1053
        %1055 = vmatpush1.msra.mxu0 %v1054
        %v1056 = vand.u32 %v634, 4294901760
        %v1057 = vsub.f32 %v634, %v1056
        %1058 = vmatprep.subr.mxu0 %v1057
        %v1059 = vand.u32 %v633, 4294901760
        %v1060 = vsub.f32 %v633, %v1059
        %1061 = vmatpush1.msra.mxu0 %v1060
        %v1062 = vand.u32 %v637, 4294901760
        %v1063 = vsub.f32 %v637, %v1062
        %1064 = vmatprep.subr.mxu0 %v1063
        %v1065 = vand.u32 %v636, 4294901760
        %v1066 = vsub.f32 %v636, %v1065
        %1067 = vmatpush1.msra.mxu0 %v1066
        %v1068 = vand.u32 %v640, 4294901760
        %v1069 = vsub.f32 %v640, %v1068
        %1070 = vmatprep.subr.mxu0 %v1069
        %v1071 = vand.u32 %v639, 4294901760
        %v1072 = vsub.f32 %v639, %v1071
        %1073 = vmatpush1.msra.mxu0 %v1072
        %v1074 = vand.u32 %v643, 4294901760
        %v1075 = vsub.f32 %v643, %v1074
        %1076 = vmatprep.subr.mxu0 %v1075
        %v1077 = vand.u32 %v642, 4294901760
        %v1078 = vsub.f32 %v642, %v1077
        %1079 = vmatpush1.msra.mxu0 %v1078
        %v1080 = vand.u32 %v646, 4294901760
        %v1081 = vsub.f32 %v646, %v1080
        %1082 = vmatprep.subr.mxu0 %v1081
        %v1083 = vand.u32 %v645, 4294901760
        %v1084 = vsub.f32 %v645, %v1083
        %1085 = vmatpush1.msra.mxu0 %v1084
        %v1086 = vand.u32 %v649, 4294901760
        %v1087 = vsub.f32 %v649, %v1086
        %1088 = vmatprep.subr.mxu0 %v1087
        %v1089 = vand.u32 %v648, 4294901760
        %v1090 = vsub.f32 %v648, %v1089
        %1091 = vmatpush1.msra.mxu0 %v1090
        %v1092 = vand.u32 %v652, 4294901760
        %v1093 = vsub.f32 %v652, %v1092
        %1094 = vmatprep.subr.mxu0 %v1093
        %v1095 = vand.u32 %v651, 4294901760
        %v1096 = vsub.f32 %v651, %v1095
        %1097 = vmatpush1.msra.mxu0 %v1096
        %v1098 = vand.u32 %v655, 4294901760
        %v1099 = vsub.f32 %v655, %v1098
        %1100 = vmatprep.subr.mxu0 %v1099
        %v1101 = vand.u32 %v654, 4294901760
        %v1102 = vsub.f32 %v654, %v1101
        %1103 = vmatpush1.msra.mxu0 %v1102
        %v1104 = vand.u32 %v658, 4294901760
        %v1105 = vsub.f32 %v658, %v1104
        %1106 = vmatprep.subr.mxu0 %v1105
        %v1107 = vand.u32 %v657, 4294901760
        %v1108 = vsub.f32 %v657, %v1107
        %1109 = vmatpush1.msra.mxu0 %v1108
        %v1110 = vand.u32 %v661, 4294901760
        %v1111 = vsub.f32 %v661, %v1110
        %1112 = vmatprep.subr.mxu0 %v1111
        %v1113 = vand.u32 %v660, 4294901760
        %v1114 = vsub.f32 %v660, %v1113
        %1115 = vmatpush1.msra.mxu0 %v1114
        %1116 = vmatprep.subr.mxu0 0.0
        %1117 = vmatpush1.msra.mxu0 0.0
        %1118 = vmatprep.subr.mxu0 0.0
        %1119 = vmatpush1.msra.mxu0 0.0
        %1120 = vmatprep.subr.mxu0 0.0
        %1121 = vmatpush1.msra.mxu0 0.0
        %1122 = vmatprep.subr.mxu0 0.0
        %1123 = vmatpush1.msra.mxu0 0.0
        %1124 = vmatprep.subr.mxu0 0.0
        %1125 = vmatpush1.msra.mxu0 0.0
        %1126 = vmatprep.subr.mxu0 0.0
        %1127 = vmatpush1.msra.mxu0 0.0
        %1128 = vmatprep.subr.mxu0 0.0
        %1129 = vmatpush1.msra.mxu0 0.0
        %1130 = vmatprep.subr.mxu0 0.0
        %1131 = vmatpush1.msra.mxu0 0.0
        %1132 = vmatprep.subr.mxu0 0.0
        %1133 = vmatpush1.msra.mxu0 0.0
        %1134 = vmatprep.subr.mxu0 0.0
        %1135 = vmatpush1.msra.mxu0 0.0
        %1136 = vmatprep.subr.mxu0 0.0
        %1137 = vmatpush1.msra.mxu0 0.0
        %1138 = vmatprep.subr.mxu0 0.0
        %1139 = vmatpush1.msra.mxu0 0.0
        %1140 = vmatprep.subr.mxu0 0.0
        %1141 = vmatpush1.msra.mxu0 0.0
        %1142 = vmatprep.subr.mxu0 0.0
        %1143 = vmatpush1.msra.mxu0 0.0
        %1144 = vmatprep.subr.mxu0 0.0
        %1145 = vmatpush1.msra.mxu0 0.0
        %1146 = vmatprep.subr.mxu0 0.0
        %1147 = vmatpush1.msra.mxu0 0.0
        %1148 = vmatprep.mubr.f32.mxu0 0.0
        %v1149 = vand.u32 %v614, 4294901760
        %v1150 = vsub.f32 %v614, %v1149
        %1151 = vmatmul.mubr.f32.gmra.mrb[0].mxu0 %v1150
        %v1152 = vpop.f32.mrb[0].mxu0
        %v1153 = vadd.f32 %v1016, %v1152
        %v1154 = vpop.f32.mrb[0].mxu0
        %v1155 = vadd.f32 %v1018, %v1154
        %1156 = vdwg.mxu0
        %v1157 = vand.u32 %v616, 4294901760
        %1158 = vmatprep.subr.mxu0 %v1157
        %v1159 = vand.u32 %v615, 4294901760
        %1160 = vmatpush1.msra.mxu0 %v1159
        %v1161 = vand.u32 %v619, 4294901760
        %1162 = vmatprep.subr.mxu0 %v1161
        %v1163 = vand.u32 %v618, 4294901760
        %1164 = vmatpush1.msra.mxu0 %v1163
        %v1165 = vand.u32 %v622, 4294901760
        %1166 = vmatprep.subr.mxu0 %v1165
        %v1167 = vand.u32 %v621, 4294901760
        %1168 = vmatpush1.msra.mxu0 %v1167
        %v1169 = vand.u32 %v625, 4294901760
        %1170 = vmatprep.subr.mxu0 %v1169
        %v1171 = vand.u32 %v624, 4294901760
        %1172 = vmatpush1.msra.mxu0 %v1171
        %v1173 = vand.u32 %v628, 4294901760
        %1174 = vmatprep.subr.mxu0 %v1173
        %v1175 = vand.u32 %v627, 4294901760
        %1176 = vmatpush1.msra.mxu0 %v1175
        %v1177 = vand.u32 %v631, 4294901760
        %1178 = vmatprep.subr.mxu0 %v1177
        %v1179 = vand.u32 %v630, 4294901760
        %1180 = vmatpush1.msra.mxu0 %v1179
        %v1181 = vand.u32 %v634, 4294901760
        %1182 = vmatprep.subr.mxu0 %v1181
        %v1183 = vand.u32 %v633, 4294901760
        %1184 = vmatpush1.msra.mxu0 %v1183
        %v1185 = vand.u32 %v637, 4294901760
        %1186 = vmatprep.subr.mxu0 %v1185
        %v1187 = vand.u32 %v636, 4294901760
        %1188 = vmatpush1.msra.mxu0 %v1187
        %v1189 = vand.u32 %v640, 4294901760
        %1190 = vmatprep.subr.mxu0 %v1189
        %v1191 = vand.u32 %v639, 4294901760
        %1192 = vmatpush1.msra.mxu0 %v1191
        %v1193 = vand.u32 %v643, 4294901760
        %1194 = vmatprep.subr.mxu0 %v1193
        %v1195 = vand.u32 %v642, 4294901760
        %1196 = vmatpush1.msra.mxu0 %v1195
        %v1197 = vand.u32 %v646, 4294901760
        %1198 = vmatprep.subr.mxu0 %v1197
        %v1199 = vand.u32 %v645, 4294901760
        %1200 = vmatpush1.msra.mxu0 %v1199
        %v1201 = vand.u32 %v649, 4294901760
        %1202 = vmatprep.subr.mxu0 %v1201
        %v1203 = vand.u32 %v648, 4294901760
        %1204 = vmatpush1.msra.mxu0 %v1203
        %v1205 = vand.u32 %v652, 4294901760
        %1206 = vmatprep.subr.mxu0 %v1205
        %v1207 = vand.u32 %v651, 4294901760
        %1208 = vmatpush1.msra.mxu0 %v1207
        %v1209 = vand.u32 %v655, 4294901760
        %1210 = vmatprep.subr.mxu0 %v1209
        %v1211 = vand.u32 %v654, 4294901760
        %1212 = vmatpush1.msra.mxu0 %v1211
        %v1213 = vand.u32 %v658, 4294901760
        %1214 = vmatprep.subr.mxu0 %v1213
        %v1215 = vand.u32 %v657, 4294901760
        %1216 = vmatpush1.msra.mxu0 %v1215
        %v1217 = vand.u32 %v661, 4294901760
        %1218 = vmatprep.subr.mxu0 %v1217
        %v1219 = vand.u32 %v660, 4294901760
        %1220 = vmatpush1.msra.mxu0 %v1219
        %1221 = vmatprep.subr.mxu0 0.0
        %1222 = vmatpush1.msra.mxu0 0.0
        %1223 = vmatprep.subr.mxu0 0.0
        %1224 = vmatpush1.msra.mxu0 0.0
        %1225 = vmatprep.subr.mxu0 0.0
        %1226 = vmatpush1.msra.mxu0 0.0
        %1227 = vmatprep.subr.mxu0 0.0
        %1228 = vmatpush1.msra.mxu0 0.0
        %1229 = vmatprep.subr.mxu0 0.0
        %1230 = vmatpush1.msra.mxu0 0.0
        %1231 = vmatprep.subr.mxu0 0.0
        %1232 = vmatpush1.msra.mxu0 0.0
        %1233 = vmatprep.subr.mxu0 0.0
        %1234 = vmatpush1.msra.mxu0 0.0
        %1235 = vmatprep.subr.mxu0 0.0
        %1236 = vmatpush1.msra.mxu0 0.0
        %1237 = vmatprep.subr.mxu0 0.0
        %1238 = vmatpush1.msra.mxu0 0.0
        %1239 = vmatprep.subr.mxu0 0.0
        %1240 = vmatpush1.msra.mxu0 0.0
        %1241 = vmatprep.subr.mxu0 0.0
        %1242 = vmatpush1.msra.mxu0 0.0
        %1243 = vmatprep.subr.mxu0 0.0
        %1244 = vmatpush1.msra.mxu0 0.0
        %1245 = vmatprep.subr.mxu0 0.0
        %1246 = vmatpush1.msra.mxu0 0.0
        %1247 = vmatprep.subr.mxu0 0.0
        %1248 = vmatpush1.msra.mxu0 0.0
        %1249 = vmatprep.subr.mxu0 0.0
        %1250 = vmatpush1.msra.mxu0 0.0
        %1251 = vmatprep.subr.mxu0 0.0
        %1252 = vmatpush1.msra.mxu0 0.0
        %1253 = vmatprep.mubr.f32.mxu0 0.0
        %v1254 = vand.u32 %v614, 4294901760
        %v1255 = vsub.f32 %v614, %v1254
        %v1256 = vand.u32 %v1255, 4294901760
        %1257 = vmatmul.mubr.f32.gmra.mrb[0].mxu0 %v1256
        %v1258 = vpop.f32.mrb[0].mxu0
        %v1259 = vadd.f32 %v1153, %v1258
        %v1260 = vpop.f32.mrb[0].mxu0
        %v1261 = vadd.f32 %v1155, %v1260
        %1262 = vdwg.mxu0
        %v1263 = vand.u32 %v616, 4294901760
        %v1264 = vsub.f32 %v616, %v1263
        %v1265 = vand.u32 %v1264, 4294901760
        %1266 = vmatprep.subr.mxu0 %v1265
        %v1267 = vand.u32 %v615, 4294901760
        %v1268 = vsub.f32 %v615, %v1267
        %v1269 = vand.u32 %v1268, 4294901760
        %1270 = vmatpush1.msra.mxu0 %v1269
        %v1271 = vand.u32 %v619, 4294901760
        %v1272 = vsub.f32 %v619, %v1271
        %v1273 = vand.u32 %v1272, 4294901760
        %1274 = vmatprep.subr.mxu0 %v1273
        %v1275 = vand.u32 %v618, 4294901760
        %v1276 = vsub.f32 %v618, %v1275
        %v1277 = vand.u32 %v1276, 4294901760
        %1278 = vmatpush1.msra.mxu0 %v1277
        %v1279 = vand.u32 %v622, 4294901760
        %v1280 = vsub.f32 %v622, %v1279
        %v1281 = vand.u32 %v1280, 4294901760
        %1282 = vmatprep.subr.mxu0 %v1281
        %v1283 = vand.u32 %v621, 4294901760
        %v1284 = vsub.f32 %v621, %v1283
        %v1285 = vand.u32 %v1284, 4294901760
        %1286 = vmatpush1.msra.mxu0 %v1285
        %v1287 = vand.u32 %v625, 4294901760
        %v1288 = vsub.f32 %v625, %v1287
        %v1289 = vand.u32 %v1288, 4294901760
        %1290 = vmatprep.subr.mxu0 %v1289
        %v1291 = vand.u32 %v624, 4294901760
        %v1292 = vsub.f32 %v624, %v1291
        %v1293 = vand.u32 %v1292, 4294901760
        %1294 = vmatpush1.msra.mxu0 %v1293
        %v1295 = vand.u32 %v628, 4294901760
        %v1296 = vsub.f32 %v628, %v1295
        %v1297 = vand.u32 %v1296, 4294901760
        %1298 = vmatprep.subr.mxu0 %v1297
        %v1299 = vand.u32 %v627, 4294901760
        %v1300 = vsub.f32 %v627, %v1299
        %v1301 = vand.u32 %v1300, 4294901760
        %1302 = vmatpush1.msra.mxu0 %v1301
        %v1303 = vand.u32 %v631, 4294901760
        %v1304 = vsub.f32 %v631, %v1303
        %v1305 = vand.u32 %v1304, 4294901760
        %1306 = vmatprep.subr.mxu0 %v1305
        %v1307 = vand.u32 %v630, 4294901760
        %v1308 = vsub.f32 %v630, %v1307
        %v1309 = vand.u32 %v1308, 4294901760
        %1310 = vmatpush1.msra.mxu0 %v1309
        %v1311 = vand.u32 %v634, 4294901760
        %v1312 = vsub.f32 %v634, %v1311
        %v1313 = vand.u32 %v1312, 4294901760
        %1314 = vmatprep.subr.mxu0 %v1313
        %v1315 = vand.u32 %v633, 4294901760
        %v1316 = vsub.f32 %v633, %v1315
        %v1317 = vand.u32 %v1316, 4294901760
        %1318 = vmatpush1.msra.mxu0 %v1317
        %v1319 = vand.u32 %v637, 4294901760
        %v1320 = vsub.f32 %v637, %v1319
        %v1321 = vand.u32 %v1320, 4294901760
        %1322 = vmatprep.subr.mxu0 %v1321
        %v1323 = vand.u32 %v636, 4294901760
        %v1324 = vsub.f32 %v636, %v1323
        %v1325 = vand.u32 %v1324, 4294901760
        %1326 = vmatpush1.msra.mxu0 %v1325
        %v1327 = vand.u32 %v640, 4294901760
        %v1328 = vsub.f32 %v640, %v1327
        %v1329 = vand.u32 %v1328, 4294901760
        %1330 = vmatprep.subr.mxu0 %v1329
        %v1331 = vand.u32 %v639, 4294901760
        %v1332 = vsub.f32 %v639, %v1331
        %v1333 = vand.u32 %v1332, 4294901760
        %1334 = vmatpush1.msra.mxu0 %v1333
        %v1335 = vand.u32 %v643, 4294901760
        %v1336 = vsub.f32 %v643, %v1335
        %v1337 = vand.u32 %v1336, 4294901760
        %1338 = vmatprep.subr.mxu0 %v1337
        %v1339 = vand.u32 %v642, 4294901760
        %v1340 = vsub.f32 %v642, %v1339
        %v1341 = vand.u32 %v1340, 4294901760
        %1342 = vmatpush1.msra.mxu0 %v1341
        %v1343 = vand.u32 %v646, 4294901760
        %v1344 = vsub.f32 %v646, %v1343
        %v1345 = vand.u32 %v1344, 4294901760
        %1346 = vmatprep.subr.mxu0 %v1345
        %v1347 = vand.u32 %v645, 4294901760
        %v1348 = vsub.f32 %v645, %v1347
        %v1349 = vand.u32 %v1348, 4294901760
        %1350 = vmatpush1.msra.mxu0 %v1349
        %v1351 = vand.u32 %v649, 4294901760
        %v1352 = vsub.f32 %v649, %v1351
        %v1353 = vand.u32 %v1352, 4294901760
        %1354 = vmatprep.subr.mxu0 %v1353
        %v1355 = vand.u32 %v648, 4294901760
        %v1356 = vsub.f32 %v648, %v1355
        %v1357 = vand.u32 %v1356, 4294901760
        %1358 = vmatpush1.msra.mxu0 %v1357
        %v1359 = vand.u32 %v652, 4294901760
        %v1360 = vsub.f32 %v652, %v1359
        %v1361 = vand.u32 %v1360, 4294901760
        %1362 = vmatprep.subr.mxu0 %v1361
        %v1363 = vand.u32 %v651, 4294901760
        %v1364 = vsub.f32 %v651, %v1363
        %v1365 = vand.u32 %v1364, 4294901760
        %1366 = vmatpush1.msra.mxu0 %v1365
        %v1367 = vand.u32 %v655, 4294901760
        %v1368 = vsub.f32 %v655, %v1367
        %v1369 = vand.u32 %v1368, 4294901760
        %1370 = vmatprep.subr.mxu0 %v1369
        %v1371 = vand.u32 %v654, 4294901760
        %v1372 = vsub.f32 %v654, %v1371
        %v1373 = vand.u32 %v1372, 4294901760
        %1374 = vmatpush1.msra.mxu0 %v1373
        %v1375 = vand.u32 %v658, 4294901760
        %v1376 = vsub.f32 %v658, %v1375
        %v1377 = vand.u32 %v1376, 4294901760
        %1378 = vmatprep.subr.mxu0 %v1377
        %v1379 = vand.u32 %v657, 4294901760
        %v1380 = vsub.f32 %v657, %v1379
        %v1381 = vand.u32 %v1380, 4294901760
        %1382 = vmatpush1.msra.mxu0 %v1381
        %v1383 = vand.u32 %v661, 4294901760
        %v1384 = vsub.f32 %v661, %v1383
        %v1385 = vand.u32 %v1384, 4294901760
        %1386 = vmatprep.subr.mxu0 %v1385
        %v1387 = vand.u32 %v660, 4294901760
        %v1388 = vsub.f32 %v660, %v1387
        %v1389 = vand.u32 %v1388, 4294901760
        %1390 = vmatpush1.msra.mxu0 %v1389
        %1391 = vmatprep.subr.mxu0 0.0
        %1392 = vmatpush1.msra.mxu0 0.0
        %1393 = vmatprep.subr.mxu0 0.0
        %1394 = vmatpush1.msra.mxu0 0.0
        %1395 = vmatprep.subr.mxu0 0.0
        %1396 = vmatpush1.msra.mxu0 0.0
        %1397 = vmatprep.subr.mxu0 0.0
        %1398 = vmatpush1.msra.mxu0 0.0
        %1399 = vmatprep.subr.mxu0 0.0
        %1400 = vmatpush1.msra.mxu0 0.0
        %1401 = vmatprep.subr.mxu0 0.0
        %1402 = vmatpush1.msra.mxu0 0.0
        %1403 = vmatprep.subr.mxu0 0.0
        %1404 = vmatpush1.msra.mxu0 0.0
        %1405 = vmatprep.subr.mxu0 0.0
        %1406 = vmatpush1.msra.mxu0 0.0
        %1407 = vmatprep.subr.mxu0 0.0
        %1408 = vmatpush1.msra.mxu0 0.0
        %1409 = vmatprep.subr.mxu0 0.0
        %1410 = vmatpush1.msra.mxu0 0.0
        %1411 = vmatprep.subr.mxu0 0.0
        %1412 = vmatpush1.msra.mxu0 0.0
        %1413 = vmatprep.subr.mxu0 0.0
        %1414 = vmatpush1.msra.mxu0 0.0
        %1415 = vmatprep.subr.mxu0 0.0
        %1416 = vmatpush1.msra.mxu0 0.0
        %1417 = vmatprep.subr.mxu0 0.0
        %1418 = vmatpush1.msra.mxu0 0.0
        %1419 = vmatprep.subr.mxu0 0.0
        %1420 = vmatpush1.msra.mxu0 0.0
        %1421 = vmatprep.subr.mxu0 0.0
        %1422 = vmatpush1.msra.mxu0 0.0
        %1423 = vmatprep.mubr.f32.mxu0 0.0
        %v1424 = vand.u32 %v614, 4294901760
        %1425 = vmatmul.mubr.f32.gmra.mrb[0].mxu0 %v1424
        %v1426 = vpop.f32.mrb[0].mxu0
        %v1427 = vadd.f32 %v1259, %v1426
        %v1428 = vpop.f32.mrb[0].mxu0
        %v1429 = vadd.f32 %v1261, %v1428
        %1430 = vdwg.mxu0
        %v1431 = vand.u32 %v616, 4294901760
        %1432 = vmatprep.subr.mxu0 %v1431
        %v1433 = vand.u32 %v615, 4294901760
        %1434 = vmatpush1.msra.mxu0 %v1433
        %v1435 = vand.u32 %v619, 4294901760
        %1436 = vmatprep.subr.mxu0 %v1435
        %v1437 = vand.u32 %v618, 4294901760
        %1438 = vmatpush1.msra.mxu0 %v1437
        %v1439 = vand.u32 %v622, 4294901760
        %1440 = vmatprep.subr.mxu0 %v1439
        %v1441 = vand.u32 %v621, 4294901760
        %1442 = vmatpush1.msra.mxu0 %v1441
        %v1443 = vand.u32 %v625, 4294901760
        %1444 = vmatprep.subr.mxu0 %v1443
        %v1445 = vand.u32 %v624, 4294901760
        %1446 = vmatpush1.msra.mxu0 %v1445
        %v1447 = vand.u32 %v628, 4294901760
        %1448 = vmatprep.subr.mxu0 %v1447
        %v1449 = vand.u32 %v627, 4294901760
        %1450 = vmatpush1.msra.mxu0 %v1449
        %v1451 = vand.u32 %v631, 4294901760
        %1452 = vmatprep.subr.mxu0 %v1451
        %v1453 = vand.u32 %v630, 4294901760
        %1454 = vmatpush1.msra.mxu0 %v1453
        %v1455 = vand.u32 %v634, 4294901760
        %1456 = vmatprep.subr.mxu0 %v1455
        %v1457 = vand.u32 %v633, 4294901760
        %1458 = vmatpush1.msra.mxu0 %v1457
        %v1459 = vand.u32 %v637, 4294901760
        %1460 = vmatprep.subr.mxu0 %v1459
        %v1461 = vand.u32 %v636, 4294901760
        %1462 = vmatpush1.msra.mxu0 %v1461
        %v1463 = vand.u32 %v640, 4294901760
        %1464 = vmatprep.subr.mxu0 %v1463
        %v1465 = vand.u32 %v639, 4294901760
        %1466 = vmatpush1.msra.mxu0 %v1465
        %v1467 = vand.u32 %v643, 4294901760
        %1468 = vmatprep.subr.mxu0 %v1467
        %v1469 = vand.u32 %v642, 4294901760
        %1470 = vmatpush1.msra.mxu0 %v1469
        %v1471 = vand.u32 %v646, 4294901760
        %1472 = vmatprep.subr.mxu0 %v1471
        %v1473 = vand.u32 %v645, 4294901760
        %1474 = vmatpush1.msra.mxu0 %v1473
        %v1475 = vand.u32 %v649, 4294901760
        %1476 = vmatprep.subr.mxu0 %v1475
        %v1477 = vand.u32 %v648, 4294901760
        %1478 = vmatpush1.msra.mxu0 %v1477
        %v1479 = vand.u32 %v652, 4294901760
        %1480 = vmatprep.subr.mxu0 %v1479
        %v1481 = vand.u32 %v651, 4294901760
        %1482 = vmatpush1.msra.mxu0 %v1481
        %v1483 = vand.u32 %v655, 4294901760
        %1484 = vmatprep.subr.mxu0 %v1483
        %v1485 = vand.u32 %v654, 4294901760
        %1486 = vmatpush1.msra.mxu0 %v1485
        %v1487 = vand.u32 %v658, 4294901760
        %1488 = vmatprep.subr.mxu0 %v1487
        %v1489 = vand.u32 %v657, 4294901760
        %1490 = vmatpush1.msra.mxu0 %v1489
        %v1491 = vand.u32 %v661, 4294901760
        %1492 = vmatprep.subr.mxu0 %v1491
        %v1493 = vand.u32 %v660, 4294901760
        %1494 = vmatpush1.msra.mxu0 %v1493
        %1495 = vmatprep.subr.mxu0 0.0
        %1496 = vmatpush1.msra.mxu0 0.0
        %1497 = vmatprep.subr.mxu0 0.0
        %1498 = vmatpush1.msra.mxu0 0.0
        %1499 = vmatprep.subr.mxu0 0.0
        %1500 = vmatpush1.msra.mxu0 0.0
        %1501 = vmatprep.subr.mxu0 0.0
        %1502 = vmatpush1.msra.mxu0 0.0
        %1503 = vmatprep.subr.mxu0 0.0
        %1504 = vmatpush1.msra.mxu0 0.0
        %1505 = vmatprep.subr.mxu0 0.0
        %1506 = vmatpush1.msra.mxu0 0.0
        %1507 = vmatprep.subr.mxu0 0.0
        %1508 = vmatpush1.msra.mxu0 0.0
        %1509 = vmatprep.subr.mxu0 0.0
        %1510 = vmatpush1.msra.mxu0 0.0
        %1511 = vmatprep.subr.mxu0 0.0
        %1512 = vmatpush1.msra.mxu0 0.0
        %1513 = vmatprep.subr.mxu0 0.0
        %1514 = vmatpush1.msra.mxu0 0.0
        %1515 = vmatprep.subr.mxu0 0.0
        %1516 = vmatpush1.msra.mxu0 0.0
        %1517 = vmatprep.subr.mxu0 0.0
        %1518 = vmatpush1.msra.mxu0 0.0
        %1519 = vmatprep.subr.mxu0 0.0
        %1520 = vmatpush1.msra.mxu0 0.0
        %1521 = vmatprep.subr.mxu0 0.0
        %1522 = vmatpush1.msra.mxu0 0.0
        %1523 = vmatprep.subr.mxu0 0.0
        %1524 = vmatpush1.msra.mxu0 0.0
        %1525 = vmatprep.subr.mxu0 0.0
        %1526 = vmatpush1.msra.mxu0 0.0
        %1527 = vmatprep.mubr.f32.mxu0 0.0
        %v1528 = vand.u32 %v614, 4294901760
        %1529 = vmatmul.mubr.f32.gmra.mrb[0].mxu0 %v1528
        %v1530 = vpop.f32.mrb[0].mxu0
        %v1531 = vadd.f32 %v1427, %v1530
        %v1532 = vpop.f32.mrb[0].mxu0
        %v1533 = vadd.f32 %v1429, %v1532
        %1534 = vdwg.mxu0
        %1535 = vmatprep.subr.mxu0 0.0
        %v1536 = vand.u32 %v617, 4294901760
        %1537 = vmatpush1.msra.mxu0 %v1536
        %1538 = vmatprep.subr.mxu0 0.0
        %v1539 = vand.u32 %v620, 4294901760
        %1540 = vmatpush1.msra.mxu0 %v1539
        %1541 = vmatprep.subr.mxu0 0.0
        %v1542 = vand.u32 %v623, 4294901760
        %1543 = vmatpush1.msra.mxu0 %v1542
        %1544 = vmatprep.subr.mxu0 0.0
        %v1545 = vand.u32 %v626, 4294901760
        %1546 = vmatpush1.msra.mxu0 %v1545
        %1547 = vmatprep.subr.mxu0 0.0
        %v1548 = vand.u32 %v629, 4294901760
        %1549 = vmatpush1.msra.mxu0 %v1548
        %1550 = vmatprep.subr.mxu0 0.0
        %v1551 = vand.u32 %v632, 4294901760
        %1552 = vmatpush1.msra.mxu0 %v1551
        %1553 = vmatprep.subr.mxu0 0.0
        %v1554 = vand.u32 %v635, 4294901760
        %1555 = vmatpush1.msra.mxu0 %v1554
        %1556 = vmatprep.subr.mxu0 0.0
        %v1557 = vand.u32 %v638, 4294901760
        %1558 = vmatpush1.msra.mxu0 %v1557
        %1559 = vmatprep.subr.mxu0 0.0
        %v1560 = vand.u32 %v641, 4294901760
        %1561 = vmatpush1.msra.mxu0 %v1560
        %1562 = vmatprep.subr.mxu0 0.0
        %v1563 = vand.u32 %v644, 4294901760
        %1564 = vmatpush1.msra.mxu0 %v1563
        %1565 = vmatprep.subr.mxu0 0.0
        %v1566 = vand.u32 %v647, 4294901760
        %1567 = vmatpush1.msra.mxu0 %v1566
        %1568 = vmatprep.subr.mxu0 0.0
        %v1569 = vand.u32 %v650, 4294901760
        %1570 = vmatpush1.msra.mxu0 %v1569
        %1571 = vmatprep.subr.mxu0 0.0
        %v1572 = vand.u32 %v653, 4294901760
        %1573 = vmatpush1.msra.mxu0 %v1572
        %1574 = vmatprep.subr.mxu0 0.0
        %v1575 = vand.u32 %v656, 4294901760
        %1576 = vmatpush1.msra.mxu0 %v1575
        %1577 = vmatprep.subr.mxu0 0.0
        %v1578 = vand.u32 %v659, 4294901760
        %1579 = vmatpush1.msra.mxu0 %v1578
        %1580 = vmatprep.subr.mxu0 0.0
        %v1581 = vand.u32 %v662, 4294901760
        %1582 = vmatpush1.msra.mxu0 %v1581
        %1583 = vmatprep.subr.mxu0 0.0
        %1584 = vmatpush1.msra.mxu0 0.0
        %1585 = vmatprep.subr.mxu0 0.0
        %1586 = vmatpush1.msra.mxu0 0.0
        %1587 = vmatprep.subr.mxu0 0.0
        %1588 = vmatpush1.msra.mxu0 0.0
        %1589 = vmatprep.subr.mxu0 0.0
        %1590 = vmatpush1.msra.mxu0 0.0
        %1591 = vmatprep.subr.mxu0 0.0
        %1592 = vmatpush1.msra.mxu0 0.0
        %1593 = vmatprep.subr.mxu0 0.0
        %1594 = vmatpush1.msra.mxu0 0.0
        %1595 = vmatprep.subr.mxu0 0.0
        %1596 = vmatpush1.msra.mxu0 0.0
        %1597 = vmatprep.subr.mxu0 0.0
        %1598 = vmatpush1.msra.mxu0 0.0
        %1599 = vmatprep.subr.mxu0 0.0
        %1600 = vmatpush1.msra.mxu0 0.0
        %1601 = vmatprep.subr.mxu0 0.0
        %1602 = vmatpush1.msra.mxu0 0.0
        %1603 = vmatprep.subr.mxu0 0.0
        %1604 = vmatpush1.msra.mxu0 0.0
        %1605 = vmatprep.subr.mxu0 0.0
        %1606 = vmatpush1.msra.mxu0 0.0
        %1607 = vmatprep.subr.mxu0 0.0
        %1608 = vmatpush1.msra.mxu0 0.0
        %1609 = vmatprep.subr.mxu0 0.0
        %1610 = vmatpush1.msra.mxu0 0.0
        %1611 = vmatprep.subr.mxu0 0.0
        %1612 = vmatpush1.msra.mxu0 0.0
        %1613 = vmatprep.subr.mxu0 0.0
        %1614 = vmatpush1.msra.mxu0 0.0
        %1615 = vmatprep.mubr.f32.mxu0 0.0
        %v1616 = vand.u32 %v614, 4294901760
        %v1617 = vsub.f32 %v614, %v1616
        %v1618 = vand.u32 %v1617, 4294901760
        %v1619 = vsub.f32 %v1617, %v1618
        %v1620 = vand.u32 %v1619, 4294901760
        %1621 = vmatmul.mubr.f32.gmra.mrb[0].mxu0 %v1620
        %v1622 = vpop.f32.mrb[0].mxu0
        %v1623 = vadd.f32 %v676, %v1622
        %v1624 = vpop.f32.mrb[0].mxu0
        %1625 = vdwg.mxu0
        %1626 = vmatprep.subr.mxu0 0.0
        %v1627 = vand.u32 %v617, 4294901760
        %v1628 = vsub.f32 %v617, %v1627
        %v1629 = vand.u32 %v1628, 4294901760
        %v1630 = vsub.f32 %v1628, %v1629
        %v1631 = vand.u32 %v1630, 4294901760
        %1632 = vmatpush1.msra.mxu0 %v1631
        %1633 = vmatprep.subr.mxu0 0.0
        %v1634 = vand.u32 %v620, 4294901760
        %v1635 = vsub.f32 %v620, %v1634
        %v1636 = vand.u32 %v1635, 4294901760
        %v1637 = vsub.f32 %v1635, %v1636
        %v1638 = vand.u32 %v1637, 4294901760
        %1639 = vmatpush1.msra.mxu0 %v1638
        %1640 = vmatprep.subr.mxu0 0.0
        %v1641 = vand.u32 %v623, 4294901760
        %v1642 = vsub.f32 %v623, %v1641
        %v1643 = vand.u32 %v1642, 4294901760
        %v1644 = vsub.f32 %v1642, %v1643
        %v1645 = vand.u32 %v1644, 4294901760
        %1646 = vmatpush1.msra.mxu0 %v1645
        %1647 = vmatprep.subr.mxu0 0.0
        %v1648 = vand.u32 %v626, 4294901760
        %v1649 = vsub.f32 %v626, %v1648
        %v1650 = vand.u32 %v1649, 4294901760
        %v1651 = vsub.f32 %v1649, %v1650
        %v1652 = vand.u32 %v1651, 4294901760
        %1653 = vmatpush1.msra.mxu0 %v1652
        %1654 = vmatprep.subr.mxu0 0.0
        %v1655 = vand.u32 %v629, 4294901760
        %v1656 = vsub.f32 %v629, %v1655
        %v1657 = vand.u32 %v1656, 4294901760
        %v1658 = vsub.f32 %v1656, %v1657
        %v1659 = vand.u32 %v1658, 4294901760
        %1660 = vmatpush1.msra.mxu0 %v1659
        %1661 = vmatprep.subr.mxu0 0.0
        %v1662 = vand.u32 %v632, 4294901760
        %v1663 = vsub.f32 %v632, %v1662
        %v1664 = vand.u32 %v1663, 4294901760
        %v1665 = vsub.f32 %v1663, %v1664
        %v1666 = vand.u32 %v1665, 4294901760
        %1667 = vmatpush1.msra.mxu0 %v1666
        %1668 = vmatprep.subr.mxu0 0.0
        %v1669 = vand.u32 %v635, 4294901760
        %v1670 = vsub.f32 %v635, %v1669
        %v1671 = vand.u32 %v1670, 4294901760
        %v1672 = vsub.f32 %v1670, %v1671
        %v1673 = vand.u32 %v1672, 4294901760
        %1674 = vmatpush1.msra.mxu0 %v1673
        %1675 = vmatprep.subr.mxu0 0.0
        %v1676 = vand.u32 %v638, 4294901760
        %v1677 = vsub.f32 %v638, %v1676
        %v1678 = vand.u32 %v1677, 4294901760
        %v1679 = vsub.f32 %v1677, %v1678
        %v1680 = vand.u32 %v1679, 4294901760
        %1681 = vmatpush1.msra.mxu0 %v1680
        %1682 = vmatprep.subr.mxu0 0.0
        %v1683 = vand.u32 %v641, 4294901760
        %v1684 = vsub.f32 %v641, %v1683
        %v1685 = vand.u32 %v1684, 4294901760
        %v1686 = vsub.f32 %v1684, %v1685
        %v1687 = vand.u32 %v1686, 4294901760
        %1688 = vmatpush1.msra.mxu0 %v1687
        %1689 = vmatprep.subr.mxu0 0.0
        %v1690 = vand.u32 %v644, 4294901760
        %v1691 = vsub.f32 %v644, %v1690
        %v1692 = vand.u32 %v1691, 4294901760
        %v1693 = vsub.f32 %v1691, %v1692
        %v1694 = vand.u32 %v1693, 4294901760
        %1695 = vmatpush1.msra.mxu0 %v1694
        %1696 = vmatprep.subr.mxu0 0.0
        %v1697 = vand.u32 %v647, 4294901760
        %v1698 = vsub.f32 %v647, %v1697
        %v1699 = vand.u32 %v1698, 4294901760
        %v1700 = vsub.f32 %v1698, %v1699
        %v1701 = vand.u32 %v1700, 4294901760
        %1702 = vmatpush1.msra.mxu0 %v1701
        %1703 = vmatprep.subr.mxu0 0.0
        %v1704 = vand.u32 %v650, 4294901760
        %v1705 = vsub.f32 %v650, %v1704
        %v1706 = vand.u32 %v1705, 4294901760
        %v1707 = vsub.f32 %v1705, %v1706
        %v1708 = vand.u32 %v1707, 4294901760
        %1709 = vmatpush1.msra.mxu0 %v1708
        %1710 = vmatprep.subr.mxu0 0.0
        %v1711 = vand.u32 %v653, 4294901760
        %v1712 = vsub.f32 %v653, %v1711
        %v1713 = vand.u32 %v1712, 4294901760
        %v1714 = vsub.f32 %v1712, %v1713
        %v1715 = vand.u32 %v1714, 4294901760
        %1716 = vmatpush1.msra.mxu0 %v1715
        %1717 = vmatprep.subr.mxu0 0.0
        %v1718 = vand.u32 %v656, 4294901760
        %v1719 = vsub.f32 %v656, %v1718
        %v1720 = vand.u32 %v1719, 4294901760
        %v1721 = vsub.f32 %v1719, %v1720
        %v1722 = vand.u32 %v1721, 4294901760
        %1723 = vmatpush1.msra.mxu0 %v1722
        %1724 = vmatprep.subr.mxu0 0.0
        %v1725 = vand.u32 %v659, 4294901760
        %v1726 = vsub.f32 %v659, %v1725
        %v1727 = vand.u32 %v1726, 4294901760
        %v1728 = vsub.f32 %v1726, %v1727
        %v1729 = vand.u32 %v1728, 4294901760
        %1730 = vmatpush1.msra.mxu0 %v1729
        %1731 = vmatprep.subr.mxu0 0.0
        %v1732 = vand.u32 %v662, 4294901760
        %v1733 = vsub.f32 %v662, %v1732
        %v1734 = vand.u32 %v1733, 4294901760
        %v1735 = vsub.f32 %v1733, %v1734
        %v1736 = vand.u32 %v1735, 4294901760
        %1737 = vmatpush1.msra.mxu0 %v1736
        %1738 = vmatprep.subr.mxu0 0.0
        %1739 = vmatpush1.msra.mxu0 0.0
        %1740 = vmatprep.subr.mxu0 0.0
        %1741 = vmatpush1.msra.mxu0 0.0
        %1742 = vmatprep.subr.mxu0 0.0
        %1743 = vmatpush1.msra.mxu0 0.0
        %1744 = vmatprep.subr.mxu0 0.0
        %1745 = vmatpush1.msra.mxu0 0.0
        %1746 = vmatprep.subr.mxu0 0.0
        %1747 = vmatpush1.msra.mxu0 0.0
        %1748 = vmatprep.subr.mxu0 0.0
        %1749 = vmatpush1.msra.mxu0 0.0
        %1750 = vmatprep.subr.mxu0 0.0
        %1751 = vmatpush1.msra.mxu0 0.0
        %1752 = vmatprep.subr.mxu0 0.0
        %1753 = vmatpush1.msra.mxu0 0.0
        %1754 = vmatprep.subr.mxu0 0.0
        %1755 = vmatpush1.msra.mxu0 0.0
        %1756 = vmatprep.subr.mxu0 0.0
        %1757 = vmatpush1.msra.mxu0 0.0
        %1758 = vmatprep.subr.mxu0 0.0
        %1759 = vmatpush1.msra.mxu0 0.0
        %1760 = vmatprep.subr.mxu0 0.0
        %1761 = vmatpush1.msra.mxu0 0.0
        %1762 = vmatprep.subr.mxu0 0.0
        %1763 = vmatpush1.msra.mxu0 0.0
        %1764 = vmatprep.subr.mxu0 0.0
        %1765 = vmatpush1.msra.mxu0 0.0
        %1766 = vmatprep.subr.mxu0 0.0
        %1767 = vmatpush1.msra.mxu0 0.0
        %1768 = vmatprep.subr.mxu0 0.0
        %1769 = vmatpush1.msra.mxu0 0.0
        %1770 = vmatprep.mubr.f32.mxu0 0.0
        %v1771 = vand.u32 %v614, 4294901760
        %1772 = vmatmul.mubr.f32.gmra.mrb[0].mxu0 %v1771
        %v1773 = vpop.f32.mrb[0].mxu0
        %v1774 = vadd.f32 %v1623, %v1773
        %v1775 = vpop.f32.mrb[0].mxu0
        %1776 = vdwg.mxu0
        %1777 = vmatprep.subr.mxu0 0.0
        %v1778 = vand.u32 %v617, 4294901760
        %v1779 = vsub.f32 %v617, %v1778
        %1780 = vmatpush1.msra.mxu0 %v1779
        %1781 = vmatprep.subr.mxu0 0.0
        %v1782 = vand.u32 %v620, 4294901760
        %v1783 = vsub.f32 %v620, %v1782
        %1784 = vmatpush1.msra.mxu0 %v1783
        %1785 = vmatprep.subr.mxu0 0.0
        %v1786 = vand.u32 %v623, 4294901760
        %v1787 = vsub.f32 %v623, %v1786
        %1788 = vmatpush1.msra.mxu0 %v1787
        %1789 = vmatprep.subr.mxu0 0.0
        %v1790 = vand.u32 %v626, 4294901760
        %v1791 = vsub.f32 %v626, %v1790
        %1792 = vmatpush1.msra.mxu0 %v1791
        %1793 = vmatprep.subr.mxu0 0.0
        %v1794 = vand.u32 %v629, 4294901760
        %v1795 = vsub.f32 %v629, %v1794
        %1796 = vmatpush1.msra.mxu0 %v1795
        %1797 = vmatprep.subr.mxu0 0.0
        %v1798 = vand.u32 %v632, 4294901760
        %v1799 = vsub.f32 %v632, %v1798
        %1800 = vmatpush1.msra.mxu0 %v1799
        %1801 = vmatprep.subr.mxu0 0.0
        %v1802 = vand.u32 %v635, 4294901760
        %v1803 = vsub.f32 %v635, %v1802
        %1804 = vmatpush1.msra.mxu0 %v1803
        %1805 = vmatprep.subr.mxu0 0.0
        %v1806 = vand.u32 %v638, 4294901760
        %v1807 = vsub.f32 %v638, %v1806
        %1808 = vmatpush1.msra.mxu0 %v1807
        %1809 = vmatprep.subr.mxu0 0.0
        %v1810 = vand.u32 %v641, 4294901760
        %v1811 = vsub.f32 %v641, %v1810
        %1812 = vmatpush1.msra.mxu0 %v1811
        %1813 = vmatprep.subr.mxu0 0.0
        %v1814 = vand.u32 %v644, 4294901760
        %v1815 = vsub.f32 %v644, %v1814
        %1816 = vmatpush1.msra.mxu0 %v1815
        %1817 = vmatprep.subr.mxu0 0.0
        %v1818 = vand.u32 %v647, 4294901760
        %v1819 = vsub.f32 %v647, %v1818
        %1820 = vmatpush1.msra.mxu0 %v1819
        %1821 = vmatprep.subr.mxu0 0.0
        %v1822 = vand.u32 %v650, 4294901760
        %v1823 = vsub.f32 %v650, %v1822
        %1824 = vmatpush1.msra.mxu0 %v1823
        %1825 = vmatprep.subr.mxu0 0.0
        %v1826 = vand.u32 %v653, 4294901760
        %v1827 = vsub.f32 %v653, %v1826
        %1828 = vmatpush1.msra.mxu0 %v1827
        %1829 = vmatprep.subr.mxu0 0.0
        %v1830 = vand.u32 %v656, 4294901760
        %v1831 = vsub.f32 %v656, %v1830
        %1832 = vmatpush1.msra.mxu0 %v1831
        %1833 = vmatprep.subr.mxu0 0.0
        %v1834 = vand.u32 %v659, 4294901760
        %v1835 = vsub.f32 %v659, %v1834
        %1836 = vmatpush1.msra.mxu0 %v1835
        %1837 = vmatprep.subr.mxu0 0.0
        %v1838 = vand.u32 %v662, 4294901760
        %v1839 = vsub.f32 %v662, %v1838
        %1840 = vmatpush1.msra.mxu0 %v1839
        %1841 = vmatprep.subr.mxu0 0.0
        %1842 = vmatpush1.msra.mxu0 0.0
        %1843 = vmatprep.subr.mxu0 0.0
        %1844 = vmatpush1.msra.mxu0 0.0
        %1845 = vmatprep.subr.mxu0 0.0
        %1846 = vmatpush1.msra.mxu0 0.0
        %1847 = vmatprep.subr.mxu0 0.0
        %1848 = vmatpush1.msra.mxu0 0.0
        %1849 = vmatprep.subr.mxu0 0.0
        %1850 = vmatpush1.msra.mxu0 0.0
        %1851 = vmatprep.subr.mxu0 0.0
        %1852 = vmatpush1.msra.mxu0 0.0
        %1853 = vmatprep.subr.mxu0 0.0
        %1854 = vmatpush1.msra.mxu0 0.0
        %1855 = vmatprep.subr.mxu0 0.0
        %1856 = vmatpush1.msra.mxu0 0.0
        %1857 = vmatprep.subr.mxu0 0.0
        %1858 = vmatpush1.msra.mxu0 0.0
        %1859 = vmatprep.subr.mxu0 0.0
        %1860 = vmatpush1.msra.mxu0 0.0
        %1861 = vmatprep.subr.mxu0 0.0
        %1862 = vmatpush1.msra.mxu0 0.0
        %1863 = vmatprep.subr.mxu0 0.0
        %1864 = vmatpush1.msra.mxu0 0.0
        %1865 = vmatprep.subr.mxu0 0.0
        %1866 = vmatpush1.msra.mxu0 0.0
        %1867 = vmatprep.subr.mxu0 0.0
        %1868 = vmatpush1.msra.mxu0 0.0
        %1869 = vmatprep.subr.mxu0 0.0
        %1870 = vmatpush1.msra.mxu0 0.0
        %1871 = vmatprep.subr.mxu0 0.0
        %1872 = vmatpush1.msra.mxu0 0.0
        %1873 = vmatprep.mubr.f32.mxu0 0.0
        %v1874 = vand.u32 %v614, 4294901760
        %v1875 = vsub.f32 %v614, %v1874
        %1876 = vmatmul.mubr.f32.gmra.mrb[0].mxu0 %v1875
        %v1877 = vpop.f32.mrb[0].mxu0
        %v1878 = vadd.f32 %v1774, %v1877
        %v1879 = vpop.f32.mrb[0].mxu0
        %1880 = vdwg.mxu0
        %1881 = vmatprep.subr.mxu0 0.0
        %v1882 = vand.u32 %v617, 4294901760
        %1883 = vmatpush1.msra.mxu0 %v1882
        %1884 = vmatprep.subr.mxu0 0.0
        %v1885 = vand.u32 %v620, 4294901760
        %1886 = vmatpush1.msra.mxu0 %v1885
        %1887 = vmatprep.subr.mxu0 0.0
        %v1888 = vand.u32 %v623, 4294901760
        %1889 = vmatpush1.msra.mxu0 %v1888
        %1890 = vmatprep.subr.mxu0 0.0
        %v1891 = vand.u32 %v626, 4294901760
        %1892 = vmatpush1.msra.mxu0 %v1891
        %1893 = vmatprep.subr.mxu0 0.0
        %v1894 = vand.u32 %v629, 4294901760
        %1895 = vmatpush1.msra.mxu0 %v1894
        %1896 = vmatprep.subr.mxu0 0.0
        %v1897 = vand.u32 %v632, 4294901760
        %1898 = vmatpush1.msra.mxu0 %v1897
        %1899 = vmatprep.subr.mxu0 0.0
        %v1900 = vand.u32 %v635, 4294901760
        %1901 = vmatpush1.msra.mxu0 %v1900
        %1902 = vmatprep.subr.mxu0 0.0
        %v1903 = vand.u32 %v638, 4294901760
        %1904 = vmatpush1.msra.mxu0 %v1903
        %1905 = vmatprep.subr.mxu0 0.0
        %v1906 = vand.u32 %v641, 4294901760
        %1907 = vmatpush1.msra.mxu0 %v1906
        %1908 = vmatprep.subr.mxu0 0.0
        %v1909 = vand.u32 %v644, 4294901760
        %1910 = vmatpush1.msra.mxu0 %v1909
        %1911 = vmatprep.subr.mxu0 0.0
        %v1912 = vand.u32 %v647, 4294901760
        %1913 = vmatpush1.msra.mxu0 %v1912
        %1914 = vmatprep.subr.mxu0 0.0
        %v1915 = vand.u32 %v650, 4294901760
        %1916 = vmatpush1.msra.mxu0 %v1915
        %1917 = vmatprep.subr.mxu0 0.0
        %v1918 = vand.u32 %v653, 4294901760
        %1919 = vmatpush1.msra.mxu0 %v1918
        %1920 = vmatprep.subr.mxu0 0.0
        %v1921 = vand.u32 %v656, 4294901760
        %1922 = vmatpush1.msra.mxu0 %v1921
        %1923 = vmatprep.subr.mxu0 0.0
        %v1924 = vand.u32 %v659, 4294901760
        %1925 = vmatpush1.msra.mxu0 %v1924
        %1926 = vmatprep.subr.mxu0 0.0
        %v1927 = vand.u32 %v662, 4294901760
        %1928 = vmatpush1.msra.mxu0 %v1927
        %1929 = vmatprep.subr.mxu0 0.0
        %1930 = vmatpush1.msra.mxu0 0.0
        %1931 = vmatprep.subr.mxu0 0.0
        %1932 = vmatpush1.msra.mxu0 0.0
        %1933 = vmatprep.subr.mxu0 0.0
        %1934 = vmatpush1.msra.mxu0 0.0
        %1935 = vmatprep.subr.mxu0 0.0
        %1936 = vmatpush1.msra.mxu0 0.0
        %1937 = vmatprep.subr.mxu0 0.0
        %1938 = vmatpush1.msra.mxu0 0.0
        %1939 = vmatprep.subr.mxu0 0.0
        %1940 = vmatpush1.msra.mxu0 0.0
        %1941 = vmatprep.subr.mxu0 0.0
        %1942 = vmatpush1.msra.mxu0 0.0
        %1943 = vmatprep.subr.mxu0 0.0
        %1944 = vmatpush1.msra.mxu0 0.0
        %1945 = vmatprep.subr.mxu0 0.0
        %1946 = vmatpush1.msra.mxu0 0.0
        %1947 = vmatprep.subr.mxu0 0.0
        %1948 = vmatpush1.msra.mxu0 0.0
        %1949 = vmatprep.subr.mxu0 0.0
        %1950 = vmatpush1.msra.mxu0 0.0
        %1951 = vmatprep.subr.mxu0 0.0
        %1952 = vmatpush1.msra.mxu0 0.0
        %1953 = vmatprep.subr.mxu0 0.0
        %1954 = vmatpush1.msra.mxu0 0.0
        %1955 = vmatprep.subr.mxu0 0.0
        %1956 = vmatpush1.msra.mxu0 0.0
        %1957 = vmatprep.subr.mxu0 0.0
        %1958 = vmatpush1.msra.mxu0 0.0
        %1959 = vmatprep.subr.mxu0 0.0
        %1960 = vmatpush1.msra.mxu0 0.0
        %1961 = vmatprep.mubr.f32.mxu0 0.0
        %v1962 = vand.u32 %v614, 4294901760
        %v1963 = vsub.f32 %v614, %v1962
        %v1964 = vand.u32 %v1963, 4294901760
        %1965 = vmatmul.mubr.f32.gmra.mrb[0].mxu0 %v1964
        %v1966 = vpop.f32.mrb[0].mxu0
        %v1967 = vadd.f32 %v1878, %v1966
        %v1968 = vpop.f32.mrb[0].mxu0
        %1969 = vdwg.mxu0
        %1970 = vmatprep.subr.mxu0 0.0
        %v1971 = vand.u32 %v617, 4294901760
        %v1972 = vsub.f32 %v617, %v1971
        %v1973 = vand.u32 %v1972, 4294901760
        %1974 = vmatpush1.msra.mxu0 %v1973
        %1975 = vmatprep.subr.mxu0 0.0
        %v1976 = vand.u32 %v620, 4294901760
        %v1977 = vsub.f32 %v620, %v1976
        %v1978 = vand.u32 %v1977, 4294901760
        %1979 = vmatpush1.msra.mxu0 %v1978
        %1980 = vmatprep.subr.mxu0 0.0
        %v1981 = vand.u32 %v623, 4294901760
        %v1982 = vsub.f32 %v623, %v1981
        %v1983 = vand.u32 %v1982, 4294901760
        %1984 = vmatpush1.msra.mxu0 %v1983
        %1985 = vmatprep.subr.mxu0 0.0
        %v1986 = vand.u32 %v626, 4294901760
        %v1987 = vsub.f32 %v626, %v1986
        %v1988 = vand.u32 %v1987, 4294901760
        %1989 = vmatpush1.msra.mxu0 %v1988
        %1990 = vmatprep.subr.mxu0 0.0
        %v1991 = vand.u32 %v629, 4294901760
        %v1992 = vsub.f32 %v629, %v1991
        %v1993 = vand.u32 %v1992, 4294901760
        %1994 = vmatpush1.msra.mxu0 %v1993
        %1995 = vmatprep.subr.mxu0 0.0
        %v1996 = vand.u32 %v632, 4294901760
        %v1997 = vsub.f32 %v632, %v1996
        %v1998 = vand.u32 %v1997, 4294901760
        %1999 = vmatpush1.msra.mxu0 %v1998
        %2000 = vmatprep.subr.mxu0 0.0
        %v2001 = vand.u32 %v635, 4294901760
        %v2002 = vsub.f32 %v635, %v2001
        %v2003 = vand.u32 %v2002, 4294901760
        %2004 = vmatpush1.msra.mxu0 %v2003
        %2005 = vmatprep.subr.mxu0 0.0
        %v2006 = vand.u32 %v638, 4294901760
        %v2007 = vsub.f32 %v638, %v2006
        %v2008 = vand.u32 %v2007, 4294901760
        %2009 = vmatpush1.msra.mxu0 %v2008
        %2010 = vmatprep.subr.mxu0 0.0
        %v2011 = vand.u32 %v641, 4294901760
        %v2012 = vsub.f32 %v641, %v2011
        %v2013 = vand.u32 %v2012, 4294901760
        %2014 = vmatpush1.msra.mxu0 %v2013
        %2015 = vmatprep.subr.mxu0 0.0
        %v2016 = vand.u32 %v644, 4294901760
        %v2017 = vsub.f32 %v644, %v2016
        %v2018 = vand.u32 %v2017, 4294901760
        %2019 = vmatpush1.msra.mxu0 %v2018
        %2020 = vmatprep.subr.mxu0 0.0
        %v2021 = vand.u32 %v647, 4294901760
        %v2022 = vsub.f32 %v647, %v2021
        %v2023 = vand.u32 %v2022, 4294901760
        %2024 = vmatpush1.msra.mxu0 %v2023
        %2025 = vmatprep.subr.mxu0 0.0
        %v2026 = vand.u32 %v650, 4294901760
        %v2027 = vsub.f32 %v650, %v2026
        %v2028 = vand.u32 %v2027, 4294901760
        %2029 = vmatpush1.msra.mxu0 %v2028
        %2030 = vmatprep.subr.mxu0 0.0
        %v2031 = vand.u32 %v653, 4294901760
        %v2032 = vsub.f32 %v653, %v2031
        %v2033 = vand.u32 %v2032, 4294901760
        %2034 = vmatpush1.msra.mxu0 %v2033
        %2035 = vmatprep.subr.mxu0 0.0
        %v2036 = vand.u32 %v656, 4294901760
        %v2037 = vsub.f32 %v656, %v2036
        %v2038 = vand.u32 %v2037, 4294901760
        %2039 = vmatpush1.msra.mxu0 %v2038
        %2040 = vmatprep.subr.mxu0 0.0
        %v2041 = vand.u32 %v659, 4294901760
        %v2042 = vsub.f32 %v659, %v2041
        %v2043 = vand.u32 %v2042, 4294901760
        %2044 = vmatpush1.msra.mxu0 %v2043
        %2045 = vmatprep.subr.mxu0 0.0
        %v2046 = vand.u32 %v662, 4294901760
        %v2047 = vsub.f32 %v662, %v2046
        %v2048 = vand.u32 %v2047, 4294901760
        %2049 = vmatpush1.msra.mxu0 %v2048
        %2050 = vmatprep.subr.mxu0 0.0
        %2051 = vmatpush1.msra.mxu0 0.0
        %2052 = vmatprep.subr.mxu0 0.0
        %2053 = vmatpush1.msra.mxu0 0.0
        %2054 = vmatprep.subr.mxu0 0.0
        %2055 = vmatpush1.msra.mxu0 0.0
        %2056 = vmatprep.subr.mxu0 0.0
        %2057 = vmatpush1.msra.mxu0 0.0
        %2058 = vmatprep.subr.mxu0 0.0
        %2059 = vmatpush1.msra.mxu0 0.0
        %2060 = vmatprep.subr.mxu0 0.0
        %2061 = vmatpush1.msra.mxu0 0.0
        %2062 = vmatprep.subr.mxu0 0.0
        %2063 = vmatpush1.msra.mxu0 0.0
        %2064 = vmatprep.subr.mxu0 0.0
        %2065 = vmatpush1.msra.mxu0 0.0
        %2066 = vmatprep.subr.mxu0 0.0
        %2067 = vmatpush1.msra.mxu0 0.0
        %2068 = vmatprep.subr.mxu0 0.0
        %2069 = vmatpush1.msra.mxu0 0.0
        %2070 = vmatprep.subr.mxu0 0.0
        %2071 = vmatpush1.msra.mxu0 0.0
        %2072 = vmatprep.subr.mxu0 0.0
        %2073 = vmatpush1.msra.mxu0 0.0
        %2074 = vmatprep.subr.mxu0 0.0
        %2075 = vmatpush1.msra.mxu0 0.0
        %2076 = vmatprep.subr.mxu0 0.0
        %2077 = vmatpush1.msra.mxu0 0.0
        %2078 = vmatprep.subr.mxu0 0.0
        %2079 = vmatpush1.msra.mxu0 0.0
        %2080 = vmatprep.subr.mxu0 0.0
        %2081 = vmatpush1.msra.mxu0 0.0
        %2082 = vmatprep.mubr.f32.mxu0 0.0
        %v2083 = vand.u32 %v614, 4294901760
        %2084 = vmatmul.mubr.f32.gmra.mrb[0].mxu0 %v2083
        %v2085 = vpop.f32.mrb[0].mxu0
        %v2086 = vadd.f32 %v1967, %v2085
        %v2087 = vpop.f32.mrb[0].mxu0
        %2088 = vdwg.mxu0
        %2089 = vmatprep.subr.mxu0 0.0
        %v2090 = vand.u32 %v617, 4294901760
        %2091 = vmatpush1.msra.mxu0 %v2090
        %2092 = vmatprep.subr.mxu0 0.0
        %v2093 = vand.u32 %v620, 4294901760
        %2094 = vmatpush1.msra.mxu0 %v2093
        %2095 = vmatprep.subr.mxu0 0.0
        %v2096 = vand.u32 %v623, 4294901760
        %2097 = vmatpush1.msra.mxu0 %v2096
        %2098 = vmatprep.subr.mxu0 0.0
        %v2099 = vand.u32 %v626, 4294901760
        %2100 = vmatpush1.msra.mxu0 %v2099
        %2101 = vmatprep.subr.mxu0 0.0
        %v2102 = vand.u32 %v629, 4294901760
        %2103 = vmatpush1.msra.mxu0 %v2102
        %2104 = vmatprep.subr.mxu0 0.0
        %v2105 = vand.u32 %v632, 4294901760
        %2106 = vmatpush1.msra.mxu0 %v2105
        %2107 = vmatprep.subr.mxu0 0.0
        %v2108 = vand.u32 %v635, 4294901760
        %2109 = vmatpush1.msra.mxu0 %v2108
        %2110 = vmatprep.subr.mxu0 0.0
        %v2111 = vand.u32 %v638, 4294901760
        %2112 = vmatpush1.msra.mxu0 %v2111
        %2113 = vmatprep.subr.mxu0 0.0
        %v2114 = vand.u32 %v641, 4294901760
        %2115 = vmatpush1.msra.mxu0 %v2114
        %2116 = vmatprep.subr.mxu0 0.0
        %v2117 = vand.u32 %v644, 4294901760
        %2118 = vmatpush1.msra.mxu0 %v2117
        %2119 = vmatprep.subr.mxu0 0.0
        %v2120 = vand.u32 %v647, 4294901760
        %2121 = vmatpush1.msra.mxu0 %v2120
        %2122 = vmatprep.subr.mxu0 0.0
        %v2123 = vand.u32 %v650, 4294901760
        %2124 = vmatpush1.msra.mxu0 %v2123
        %2125 = vmatprep.subr.mxu0 0.0
        %v2126 = vand.u32 %v653, 4294901760
        %2127 = vmatpush1.msra.mxu0 %v2126
        %2128 = vmatprep.subr.mxu0 0.0
        %v2129 = vand.u32 %v656, 4294901760
        %2130 = vmatpush1.msra.mxu0 %v2129
        %2131 = vmatprep.subr.mxu0 0.0
        %v2132 = vand.u32 %v659, 4294901760
        %2133 = vmatpush1.msra.mxu0 %v2132
        %2134 = vmatprep.subr.mxu0 0.0
        %v2135 = vand.u32 %v662, 4294901760
        %2136 = vmatpush1.msra.mxu0 %v2135
        %2137 = vmatprep.subr.mxu0 0.0
        %2138 = vmatpush1.msra.mxu0 0.0
        %2139 = vmatprep.subr.mxu0 0.0
        %2140 = vmatpush1.msra.mxu0 0.0
        %2141 = vmatprep.subr.mxu0 0.0
        %2142 = vmatpush1.msra.mxu0 0.0
        %2143 = vmatprep.subr.mxu0 0.0
        %2144 = vmatpush1.msra.mxu0 0.0
        %2145 = vmatprep.subr.mxu0 0.0
        %2146 = vmatpush1.msra.mxu0 0.0
        %2147 = vmatprep.subr.mxu0 0.0
        %2148 = vmatpush1.msra.mxu0 0.0
        %2149 = vmatprep.subr.mxu0 0.0
        %2150 = vmatpush1.msra.mxu0 0.0
        %2151 = vmatprep.subr.mxu0 0.0
        %2152 = vmatpush1.msra.mxu0 0.0
        %2153 = vmatprep.subr.mxu0 0.0
        %2154 = vmatpush1.msra.mxu0 0.0
        %2155 = vmatprep.subr.mxu0 0.0
        %2156 = vmatpush1.msra.mxu0 0.0
        %2157 = vmatprep.subr.mxu0 0.0
        %2158 = vmatpush1.msra.mxu0 0.0
        %2159 = vmatprep.subr.mxu0 0.0
        %2160 = vmatpush1.msra.mxu0 0.0
        %2161 = vmatprep.subr.mxu0 0.0
        %2162 = vmatpush1.msra.mxu0 0.0
        %2163 = vmatprep.subr.mxu0 0.0
        %2164 = vmatpush1.msra.mxu0 0.0
        %2165 = vmatprep.subr.mxu0 0.0
        %2166 = vmatpush1.msra.mxu0 0.0
        %2167 = vmatprep.subr.mxu0 0.0
        %2168 = vmatpush1.msra.mxu0 0.0
        %2169 = vmatprep.mubr.f32.mxu0 0.0
        %v2170 = vand.u32 %v614, 4294901760
        %2171 = vmatmul.mubr.f32.gmra.mrb[0].mxu0 %v2170
        %v2172 = vpop.f32.mrb[0].mxu0
        %v2173 = vadd.f32 %v2086, %v2172
        %v2174 = vpop.f32.mrb[0].mxu0
        %2175 = vdwg.mxu0
        %v2176 = vld [vmem:[#allocation7] sm:$0xff]
        %v2177 = vld [vmem:[#allocation7 + $0x8] sm:$0xff]
        %v2178 = vld [vmem:[#allocation7 + $0x10] sm:$0xff]
        %v2179 = vld [vmem:[#allocation7 + $0x18] sm:$0xff]
        %v2180 = vld [vmem:[%s531] sm:$0xff]
        %v2181 = vld [vmem:[%s531 + $0x8] sm:$0xff]
        %v2182 = vld [vmem:[%s531 + $0x10] sm:$0xff]
        %v2183 = vld [vmem:[%s531 + $0x18] sm:$0xff]
        %v2184 = vmul.f32 %v1531, 0.35355338
        %vm2185 = vcmask 64512
        %v2187 = vsel %vm2185, %v2184, 0
        %v2190 = vsel %vm2185, %v1533, 0
        %2192 = vmatprep.subr.mxu0 0.0
        %v2193 = vand.u32 %v2190, 4294901760
        %2194 = vmatpush1.xpose.msra.mxu0 %v2193
        %2195 = vmatprep.subr.mxu0 0.0
        %2196 = vmatpush1.xpose.msra.mxu0 0.0
        %2197 = vmatprep.subr.mxu0 0.0
        %2198 = vmatpush1.xpose.msra.mxu0 0.0
        %2199 = vmatprep.subr.mxu0 0.0
        %2200 = vmatpush1.xpose.msra.mxu0 0.0
        %2201 = vmatprep.subr.mxu0 0.0
        %2202 = vmatpush1.xpose.msra.mxu0 0.0
        %2203 = vmatprep.subr.mxu0 0.0
        %2204 = vmatpush1.xpose.msra.mxu0 0.0
        %2205 = vmatprep.subr.mxu0 0.0
        %2206 = vmatpush1.xpose.msra.mxu0 0.0
        %2207 = vmatprep.subr.mxu0 0.0
        %2208 = vmatpush1.xpose.msra.mxu0 0.0
        %2209 = vmatprep.subr.mxu0 0.0
        %2210 = vmatpush1.xpose.msra.mxu0 0.0
        %2211 = vmatprep.subr.mxu0 0.0
        %2212 = vmatpush1.xpose.msra.mxu0 0.0
        %2213 = vmatprep.subr.mxu0 0.0
        %2214 = vmatpush1.xpose.msra.mxu0 0.0
        %2215 = vmatprep.subr.mxu0 0.0
        %2216 = vmatpush1.xpose.msra.mxu0 0.0
        %2217 = vmatprep.subr.mxu0 0.0
        %2218 = vmatpush1.xpose.msra.mxu0 0.0
        %2219 = vmatprep.subr.mxu0 0.0
        %2220 = vmatpush1.xpose.msra.mxu0 0.0
        %2221 = vmatprep.subr.mxu0 0.0
        %2222 = vmatpush1.xpose.msra.mxu0 0.0
        %2223 = vmatprep.subr.mxu0 0.0
        %2224 = vmatpush1.xpose.msra.mxu0 0.0
        %2225 = vmatprep.subr.mxu0 0.0
        %2226 = vmatpush1.xpose.msra.mxu0 0.0
        %2227 = vmatprep.subr.mxu0 0.0
        %2228 = vmatpush1.xpose.msra.mxu0 0.0
        %2229 = vmatprep.subr.mxu0 0.0
        %2230 = vmatpush1.xpose.msra.mxu0 0.0
        %2231 = vmatprep.subr.mxu0 0.0
        %2232 = vmatpush1.xpose.msra.mxu0 0.0
        %2233 = vmatprep.subr.mxu0 0.0
        %2234 = vmatpush1.xpose.msra.mxu0 0.0
        %2235 = vmatprep.subr.mxu0 0.0
        %2236 = vmatpush1.xpose.msra.mxu0 0.0
        %2237 = vmatprep.subr.mxu0 0.0
        %2238 = vmatpush1.xpose.msra.mxu0 0.0
        %2239 = vmatprep.subr.mxu0 0.0
        %2240 = vmatpush1.xpose.msra.mxu0 0.0
        %2241 = vmatprep.subr.mxu0 0.0
        %2242 = vmatpush1.xpose.msra.mxu0 0.0
        %2243 = vmatprep.subr.mxu0 0.0
        %2244 = vmatpush1.xpose.msra.mxu0 0.0
        %2245 = vmatprep.subr.mxu0 0.0
        %2246 = vmatpush1.xpose.msra.mxu0 0.0
        %2247 = vmatprep.subr.mxu0 0.0
        %2248 = vmatpush1.xpose.msra.mxu0 0.0
        %2249 = vmatprep.subr.mxu0 0.0
        %2250 = vmatpush1.xpose.msra.mxu0 0.0
        %2251 = vmatprep.subr.mxu0 0.0
        %2252 = vmatpush1.xpose.msra.mxu0 0.0
        %2253 = vmatprep.subr.mxu0 0.0
        %2254 = vmatpush1.xpose.msra.mxu0 0.0
        %2255 = vmatprep.subr.mxu0 0.0
        %2256 = vmatpush1.xpose.msra.mxu0 0.0
        %2257 = vmatprep.mubr.f32.mxu0 0.0
        %v2258 = vand.u32 %v2187, 4294901760
        %v2259 = vsub.f32 %v2187, %v2258
        %v2260 = vand.u32 %v2259, 4294901760
        %v2261 = vsub.f32 %v2259, %v2260
        %v2262 = vand.u32 %v2261, 4294901760
        %2263 = vmatmul.mubr.f32.gmra.mrb[0].mxu0 %v2262
        %v2264 = vpop.f32.mrb[0].mxu0
        %v2265 = vadd.f32 %v2180, %v2264
        %v2266 = vpop.f32.mrb[0].mxu0
        %2267 = vdwg.mxu0
        %2268 = vmatprep.subr.mxu0 0.0
        %v2269 = vand.u32 %v2190, 4294901760
        %v2270 = vsub.f32 %v2190, %v2269
        %v2271 = vand.u32 %v2270, 4294901760
        %v2272 = vsub.f32 %v2270, %v2271
        %v2273 = vand.u32 %v2272, 4294901760
        %2274 = vmatpush1.xpose.msra.mxu0 %v2273
        %2275 = vmatprep.subr.mxu0 0.0
        %2276 = vmatpush1.xpose.msra.mxu0 0.0
        %2277 = vmatprep.subr.mxu0 0.0
        %2278 = vmatpush1.xpose.msra.mxu0 0.0
        %2279 = vmatprep.subr.mxu0 0.0
        %2280 = vmatpush1.xpose.msra.mxu0 0.0
        %2281 = vmatprep.subr.mxu0 0.0
        %2282 = vmatpush1.xpose.msra.mxu0 0.0
        %2283 = vmatprep.subr.mxu0 0.0
        %2284 = vmatpush1.xpose.msra.mxu0 0.0
        %2285 = vmatprep.subr.mxu0 0.0
        %2286 = vmatpush1.xpose.msra.mxu0 0.0
        %2287 = vmatprep.subr.mxu0 0.0
        %2288 = vmatpush1.xpose.msra.mxu0 0.0
        %2289 = vmatprep.subr.mxu0 0.0
        %2290 = vmatpush1.xpose.msra.mxu0 0.0
        %2291 = vmatprep.subr.mxu0 0.0
        %2292 = vmatpush1.xpose.msra.mxu0 0.0
        %2293 = vmatprep.subr.mxu0 0.0
        %2294 = vmatpush1.xpose.msra.mxu0 0.0
        %2295 = vmatprep.subr.mxu0 0.0
        %2296 = vmatpush1.xpose.msra.mxu0 0.0
        %2297 = vmatprep.subr.mxu0 0.0
        %2298 = vmatpush1.xpose.msra.mxu0 0.0
        %2299 = vmatprep.subr.mxu0 0.0
        %2300 = vmatpush1.xpose.msra.mxu0 0.0
        %2301 = vmatprep.subr.mxu0 0.0
        %2302 = vmatpush1.xpose.msra.mxu0 0.0
        %2303 = vmatprep.subr.mxu0 0.0
        %2304 = vmatpush1.xpose.msra.mxu0 0.0
        %2305 = vmatprep.subr.mxu0 0.0
        %2306 = vmatpush1.xpose.msra.mxu0 0.0
        %2307 = vmatprep.subr.mxu0 0.0
        %2308 = vmatpush1.xpose.msra.mxu0 0.0
        %2309 = vmatprep.subr.mxu0 0.0
        %2310 = vmatpush1.xpose.msra.mxu0 0.0
        %2311 = vmatprep.subr.mxu0 0.0
        %2312 = vmatpush1.xpose.msra.mxu0 0.0
        %2313 = vmatprep.subr.mxu0 0.0
        %2314 = vmatpush1.xpose.msra.mxu0 0.0
        %2315 = vmatprep.subr.mxu0 0.0
        %2316 = vmatpush1.xpose.msra.mxu0 0.0
        %2317 = vmatprep.subr.mxu0 0.0
        %2318 = vmatpush1.xpose.msra.mxu0 0.0
        %2319 = vmatprep.subr.mxu0 0.0
        %2320 = vmatpush1.xpose.msra.mxu0 0.0
        %2321 = vmatprep.subr.mxu0 0.0
        %2322 = vmatpush1.xpose.msra.mxu0 0.0
        %2323 = vmatprep.subr.mxu0 0.0
        %2324 = vmatpush1.xpose.msra.mxu0 0.0
        %2325 = vmatprep.subr.mxu0 0.0
        %2326 = vmatpush1.xpose.msra.mxu0 0.0
        %2327 = vmatprep.subr.mxu0 0.0
        %2328 = vmatpush1.xpose.msra.mxu0 0.0
        %2329 = vmatprep.subr.mxu0 0.0
        %2330 = vmatpush1.xpose.msra.mxu0 0.0
        %2331 = vmatprep.subr.mxu0 0.0
        %2332 = vmatpush1.xpose.msra.mxu0 0.0
        %2333 = vmatprep.subr.mxu0 0.0
        %2334 = vmatpush1.xpose.msra.mxu0 0.0
        %2335 = vmatprep.subr.mxu0 0.0
        %2336 = vmatpush1.xpose.msra.mxu0 0.0
        %2337 = vmatprep.mubr.f32.mxu0 0.0
        %v2338 = vand.u32 %v2187, 4294901760
        %2339 = vmatmul.mubr.f32.gmra.mrb[0].mxu0 %v2338
        %v2340 = vpop.f32.mrb[0].mxu0
        %v2341 = vadd.f32 %v2265, %v2340
        %v2342 = vpop.f32.mrb[0].mxu0
        %2343 = vdwg.mxu0
        %2344 = vmatprep.subr.mxu0 0.0
        %v2345 = vand.u32 %v2190, 4294901760
        %v2346 = vsub.f32 %v2190, %v2345
        %2347 = vmatpush1.xpose.msra.mxu0 %v2346
        %2348 = vmatprep.subr.mxu0 0.0
        %2349 = vmatpush1.xpose.msra.mxu0 0.0
        %2350 = vmatprep.subr.mxu0 0.0
        %2351 = vmatpush1.xpose.msra.mxu0 0.0
        %2352 = vmatprep.subr.mxu0 0.0
        %2353 = vmatpush1.xpose.msra.mxu0 0.0
        %2354 = vmatprep.subr.mxu0 0.0
        %2355 = vmatpush1.xpose.msra.mxu0 0.0
        %2356 = vmatprep.subr.mxu0 0.0
        %2357 = vmatpush1.xpose.msra.mxu0 0.0
        %2358 = vmatprep.subr.mxu0 0.0
        %2359 = vmatpush1.xpose.msra.mxu0 0.0
        %2360 = vmatprep.subr.mxu0 0.0
        %2361 = vmatpush1.xpose.msra.mxu0 0.0
        %2362 = vmatprep.subr.mxu0 0.0
        %2363 = vmatpush1.xpose.msra.mxu0 0.0
        %2364 = vmatprep.subr.mxu0 0.0
        %2365 = vmatpush1.xpose.msra.mxu0 0.0
        %2366 = vmatprep.subr.mxu0 0.0
        %2367 = vmatpush1.xpose.msra.mxu0 0.0
        %2368 = vmatprep.subr.mxu0 0.0
        %2369 = vmatpush1.xpose.msra.mxu0 0.0
        %2370 = vmatprep.subr.mxu0 0.0
        %2371 = vmatpush1.xpose.msra.mxu0 0.0
        %2372 = vmatprep.subr.mxu0 0.0
        %2373 = vmatpush1.xpose.msra.mxu0 0.0
        %2374 = vmatprep.subr.mxu0 0.0
        %2375 = vmatpush1.xpose.msra.mxu0 0.0
        %2376 = vmatprep.subr.mxu0 0.0
        %2377 = vmatpush1.xpose.msra.mxu0 0.0
        %2378 = vmatprep.subr.mxu0 0.0
        %2379 = vmatpush1.xpose.msra.mxu0 0.0
        %2380 = vmatprep.subr.mxu0 0.0
        %2381 = vmatpush1.xpose.msra.mxu0 0.0
        %2382 = vmatprep.subr.mxu0 0.0
        %2383 = vmatpush1.xpose.msra.mxu0 0.0
        %2384 = vmatprep.subr.mxu0 0.0
        %2385 = vmatpush1.xpose.msra.mxu0 0.0
        %2386 = vmatprep.subr.mxu0 0.0
        %2387 = vmatpush1.xpose.msra.mxu0 0.0
        %2388 = vmatprep.subr.mxu0 0.0
        %2389 = vmatpush1.xpose.msra.mxu0 0.0
        %2390 = vmatprep.subr.mxu0 0.0
        %2391 = vmatpush1.xpose.msra.mxu0 0.0
        %2392 = vmatprep.subr.mxu0 0.0
        %2393 = vmatpush1.xpose.msra.mxu0 0.0
        %2394 = vmatprep.subr.mxu0 0.0
        %2395 = vmatpush1.xpose.msra.mxu0 0.0
        %2396 = vmatprep.subr.mxu0 0.0
        %2397 = vmatpush1.xpose.msra.mxu0 0.0
        %2398 = vmatprep.subr.mxu0 0.0
        %2399 = vmatpush1.xpose.msra.mxu0 0.0
        %2400 = vmatprep.subr.mxu0 0.0
        %2401 = vmatpush1.xpose.msra.mxu0 0.0
        %2402 = vmatprep.subr.mxu0 0.0
        %2403 = vmatpush1.xpose.msra.mxu0 0.0
        %2404 = vmatprep.subr.mxu0 0.0
        %2405 = vmatpush1.xpose.msra.mxu0 0.0
        %2406 = vmatprep.subr.mxu0 0.0
        %2407 = vmatpush1.xpose.msra.mxu0 0.0
        %2408 = vmatprep.subr.mxu0 0.0
        %2409 = vmatpush1.xpose.msra.mxu0 0.0
        %2410 = vmatprep.mubr.f32.mxu0 0.0
        %v2411 = vand.u32 %v2187, 4294901760
        %v2412 = vsub.f32 %v2187, %v2411
        %2413 = vmatmul.mubr.f32.gmra.mrb[0].mxu0 %v2412
        %v2414 = vpop.f32.mrb[0].mxu0
        %v2415 = vadd.f32 %v2341, %v2414
        %v2416 = vpop.f32.mrb[0].mxu0
        %2417 = vdwg.mxu0
        %2418 = vmatprep.subr.mxu0 0.0
        %v2419 = vand.u32 %v2190, 4294901760
        %2420 = vmatpush1.xpose.msra.mxu0 %v2419
        %2421 = vmatprep.subr.mxu0 0.0
        %2422 = vmatpush1.xpose.msra.mxu0 0.0
        %2423 = vmatprep.subr.mxu0 0.0
        %2424 = vmatpush1.xpose.msra.mxu0 0.0
        %2425 = vmatprep.subr.mxu0 0.0
        %2426 = vmatpush1.xpose.msra.mxu0 0.0
        %2427 = vmatprep.subr.mxu0 0.0
        %2428 = vmatpush1.xpose.msra.mxu0 0.0
        %2429 = vmatprep.subr.mxu0 0.0
        %2430 = vmatpush1.xpose.msra.mxu0 0.0
        %2431 = vmatprep.subr.mxu0 0.0
        %2432 = vmatpush1.xpose.msra.mxu0 0.0
        %2433 = vmatprep.subr.mxu0 0.0
        %2434 = vmatpush1.xpose.msra.mxu0 0.0
        %2435 = vmatprep.subr.mxu0 0.0
        %2436 = vmatpush1.xpose.msra.mxu0 0.0
        %2437 = vmatprep.subr.mxu0 0.0
        %2438 = vmatpush1.xpose.msra.mxu0 0.0
        %2439 = vmatprep.subr.mxu0 0.0
        %2440 = vmatpush1.xpose.msra.mxu0 0.0
        %2441 = vmatprep.subr.mxu0 0.0
        %2442 = vmatpush1.xpose.msra.mxu0 0.0
        %2443 = vmatprep.subr.mxu0 0.0
        %2444 = vmatpush1.xpose.msra.mxu0 0.0
        %2445 = vmatprep.subr.mxu0 0.0
        %2446 = vmatpush1.xpose.msra.mxu0 0.0
        %2447 = vmatprep.subr.mxu0 0.0
        %2448 = vmatpush1.xpose.msra.mxu0 0.0
        %2449 = vmatprep.subr.mxu0 0.0
        %2450 = vmatpush1.xpose.msra.mxu0 0.0
        %2451 = vmatprep.subr.mxu0 0.0
        %2452 = vmatpush1.xpose.msra.mxu0 0.0
        %2453 = vmatprep.subr.mxu0 0.0
        %2454 = vmatpush1.xpose.msra.mxu0 0.0
        %2455 = vmatprep.subr.mxu0 0.0
        %2456 = vmatpush1.xpose.msra.mxu0 0.0
        %2457 = vmatprep.subr.mxu0 0.0
        %2458 = vmatpush1.xpose.msra.mxu0 0.0
        %2459 = vmatprep.subr.mxu0 0.0
        %2460 = vmatpush1.xpose.msra.mxu0 0.0
        %2461 = vmatprep.subr.mxu0 0.0
        %2462 = vmatpush1.xpose.msra.mxu0 0.0
        %2463 = vmatprep.subr.mxu0 0.0
        %2464 = vmatpush1.xpose.msra.mxu0 0.0
        %2465 = vmatprep.subr.mxu0 0.0
        %2466 = vmatpush1.xpose.msra.mxu0 0.0
        %2467 = vmatprep.subr.mxu0 0.0
        %2468 = vmatpush1.xpose.msra.mxu0 0.0
        %2469 = vmatprep.subr.mxu0 0.0
        %2470 = vmatpush1.xpose.msra.mxu0 0.0
        %2471 = vmatprep.subr.mxu0 0.0
        %2472 = vmatpush1.xpose.msra.mxu0 0.0
        %2473 = vmatprep.subr.mxu0 0.0
        %2474 = vmatpush1.xpose.msra.mxu0 0.0
        %2475 = vmatprep.subr.mxu0 0.0
        %2476 = vmatpush1.xpose.msra.mxu0 0.0
        %2477 = vmatprep.subr.mxu0 0.0
        %2478 = vmatpush1.xpose.msra.mxu0 0.0
        %2479 = vmatprep.subr.mxu0 0.0
        %2480 = vmatpush1.xpose.msra.mxu0 0.0
        %2481 = vmatprep.subr.mxu0 0.0
        %2482 = vmatpush1.xpose.msra.mxu0 0.0
        %2483 = vmatprep.mubr.f32.mxu0 0.0
        %v2484 = vand.u32 %v2187, 4294901760
        %v2485 = vsub.f32 %v2187, %v2484
        %v2486 = vand.u32 %v2485, 4294901760
        %2487 = vmatmul.mubr.f32.gmra.mrb[0].mxu0 %v2486
        %v2488 = vpop.f32.mrb[0].mxu0
        %v2489 = vadd.f32 %v2415, %v2488
        %v2490 = vpop.f32.mrb[0].mxu0
        %2491 = vdwg.mxu0
        %2492 = vmatprep.subr.mxu0 0.0
        %v2493 = vand.u32 %v2190, 4294901760
        %v2494 = vsub.f32 %v2190, %v2493
        %v2495 = vand.u32 %v2494, 4294901760
        %2496 = vmatpush1.xpose.msra.mxu0 %v2495
        %2497 = vmatprep.subr.mxu0 0.0
        %2498 = vmatpush1.xpose.msra.mxu0 0.0
        %2499 = vmatprep.subr.mxu0 0.0
        %2500 = vmatpush1.xpose.msra.mxu0 0.0
        %2501 = vmatprep.subr.mxu0 0.0
        %2502 = vmatpush1.xpose.msra.mxu0 0.0
        %2503 = vmatprep.subr.mxu0 0.0
        %2504 = vmatpush1.xpose.msra.mxu0 0.0
        %2505 = vmatprep.subr.mxu0 0.0
        %2506 = vmatpush1.xpose.msra.mxu0 0.0
        %2507 = vmatprep.subr.mxu0 0.0
        %2508 = vmatpush1.xpose.msra.mxu0 0.0
        %2509 = vmatprep.subr.mxu0 0.0
        %2510 = vmatpush1.xpose.msra.mxu0 0.0
        %2511 = vmatprep.subr.mxu0 0.0
        %2512 = vmatpush1.xpose.msra.mxu0 0.0
        %2513 = vmatprep.subr.mxu0 0.0
        %2514 = vmatpush1.xpose.msra.mxu0 0.0
        %2515 = vmatprep.subr.mxu0 0.0
        %2516 = vmatpush1.xpose.msra.mxu0 0.0
        %2517 = vmatprep.subr.mxu0 0.0
        %2518 = vmatpush1.xpose.msra.mxu0 0.0
        %2519 = vmatprep.subr.mxu0 0.0
        %2520 = vmatpush1.xpose.msra.mxu0 0.0
        %2521 = vmatprep.subr.mxu0 0.0
        %2522 = vmatpush1.xpose.msra.mxu0 0.0
        %2523 = vmatprep.subr.mxu0 0.0
        %2524 = vmatpush1.xpose.msra.mxu0 0.0
        %2525 = vmatprep.subr.mxu0 0.0
        %2526 = vmatpush1.xpose.msra.mxu0 0.0
        %2527 = vmatprep.subr.mxu0 0.0
        %2528 = vmatpush1.xpose.msra.mxu0 0.0
        %2529 = vmatprep.subr.mxu0 0.0
        %2530 = vmatpush1.xpose.msra.mxu0 0.0
        %2531 = vmatprep.subr.mxu0 0.0
        %2532 = vmatpush1.xpose.msra.mxu0 0.0
        %2533 = vmatprep.subr.mxu0 0.0
        %2534 = vmatpush1.xpose.msra.mxu0 0.0
        %2535 = vmatprep.subr.mxu0 0.0
        %2536 = vmatpush1.xpose.msra.mxu0 0.0
        %2537 = vmatprep.subr.mxu0 0.0
        %2538 = vmatpush1.xpose.msra.mxu0 0.0
        %2539 = vmatprep.subr.mxu0 0.0
        %2540 = vmatpush1.xpose.msra.mxu0 0.0
        %2541 = vmatprep.subr.mxu0 0.0
        %2542 = vmatpush1.xpose.msra.mxu0 0.0
        %2543 = vmatprep.subr.mxu0 0.0
        %2544 = vmatpush1.xpose.msra.mxu0 0.0
        %2545 = vmatprep.subr.mxu0 0.0
        %2546 = vmatpush1.xpose.msra.mxu0 0.0
        %2547 = vmatprep.subr.mxu0 0.0
        %2548 = vmatpush1.xpose.msra.mxu0 0.0
        %2549 = vmatprep.subr.mxu0 0.0
        %2550 = vmatpush1.xpose.msra.mxu0 0.0
        %2551 = vmatprep.subr.mxu0 0.0
        %2552 = vmatpush1.xpose.msra.mxu0 0.0
        %2553 = vmatprep.subr.mxu0 0.0
        %2554 = vmatpush1.xpose.msra.mxu0 0.0
        %2555 = vmatprep.subr.mxu0 0.0
        %2556 = vmatpush1.xpose.msra.mxu0 0.0
        %2557 = vmatprep.subr.mxu0 0.0
        %2558 = vmatpush1.xpose.msra.mxu0 0.0
        %2559 = vmatprep.mubr.f32.mxu0 0.0
        %v2560 = vand.u32 %v2187, 4294901760
        %2561 = vmatmul.mubr.f32.gmra.mrb[0].mxu0 %v2560
        %v2562 = vpop.f32.mrb[0].mxu0
        %v2563 = vadd.f32 %v2489, %v2562
        %v2564 = vpop.f32.mrb[0].mxu0
        %2565 = vdwg.mxu0
        %2566 = vmatprep.subr.mxu0 0.0
        %v2567 = vand.u32 %v2190, 4294901760
        %2568 = vmatpush1.xpose.msra.mxu0 %v2567
        %2569 = vmatprep.subr.mxu0 0.0
        %2570 = vmatpush1.xpose.msra.mxu0 0.0
        %2571 = vmatprep.subr.mxu0 0.0
        %2572 = vmatpush1.xpose.msra.mxu0 0.0
        %2573 = vmatprep.subr.mxu0 0.0
        %2574 = vmatpush1.xpose.msra.mxu0 0.0
        %2575 = vmatprep.subr.mxu0 0.0
        %2576 = vmatpush1.xpose.msra.mxu0 0.0
        %2577 = vmatprep.subr.mxu0 0.0
        %2578 = vmatpush1.xpose.msra.mxu0 0.0
        %2579 = vmatprep.subr.mxu0 0.0
        %2580 = vmatpush1.xpose.msra.mxu0 0.0
        %2581 = vmatprep.subr.mxu0 0.0
        %2582 = vmatpush1.xpose.msra.mxu0 0.0
        %2583 = vmatprep.subr.mxu0 0.0
        %2584 = vmatpush1.xpose.msra.mxu0 0.0
        %2585 = vmatprep.subr.mxu0 0.0
        %2586 = vmatpush1.xpose.msra.mxu0 0.0
        %2587 = vmatprep.subr.mxu0 0.0
        %2588 = vmatpush1.xpose.msra.mxu0 0.0
        %2589 = vmatprep.subr.mxu0 0.0
        %2590 = vmatpush1.xpose.msra.mxu0 0.0
        %2591 = vmatprep.subr.mxu0 0.0
        %2592 = vmatpush1.xpose.msra.mxu0 0.0
        %2593 = vmatprep.subr.mxu0 0.0
        %2594 = vmatpush1.xpose.msra.mxu0 0.0
        %2595 = vmatprep.subr.mxu0 0.0
        %2596 = vmatpush1.xpose.msra.mxu0 0.0
        %2597 = vmatprep.subr.mxu0 0.0
        %2598 = vmatpush1.xpose.msra.mxu0 0.0
        %2599 = vmatprep.subr.mxu0 0.0
        %2600 = vmatpush1.xpose.msra.mxu0 0.0
        %2601 = vmatprep.subr.mxu0 0.0
        %2602 = vmatpush1.xpose.msra.mxu0 0.0
        %2603 = vmatprep.subr.mxu0 0.0
        %2604 = vmatpush1.xpose.msra.mxu0 0.0
        %2605 = vmatprep.subr.mxu0 0.0
        %2606 = vmatpush1.xpose.msra.mxu0 0.0
        %2607 = vmatprep.subr.mxu0 0.0
        %2608 = vmatpush1.xpose.msra.mxu0 0.0
        %2609 = vmatprep.subr.mxu0 0.0
        %2610 = vmatpush1.xpose.msra.mxu0 0.0
        %2611 = vmatprep.subr.mxu0 0.0
        %2612 = vmatpush1.xpose.msra.mxu0 0.0
        %2613 = vmatprep.subr.mxu0 0.0
        %2614 = vmatpush1.xpose.msra.mxu0 0.0
        %2615 = vmatprep.subr.mxu0 0.0
        %2616 = vmatpush1.xpose.msra.mxu0 0.0
        %2617 = vmatprep.subr.mxu0 0.0
        %2618 = vmatpush1.xpose.msra.mxu0 0.0
        %2619 = vmatprep.subr.mxu0 0.0
        %2620 = vmatpush1.xpose.msra.mxu0 0.0
        %2621 = vmatprep.subr.mxu0 0.0
        %2622 = vmatpush1.xpose.msra.mxu0 0.0
        %2623 = vmatprep.subr.mxu0 0.0
        %2624 = vmatpush1.xpose.msra.mxu0 0.0
        %2625 = vmatprep.subr.mxu0 0.0
        %2626 = vmatpush1.xpose.msra.mxu0 0.0
        %2627 = vmatprep.subr.mxu0 0.0
        %2628 = vmatpush1.xpose.msra.mxu0 0.0
        %2629 = vmatprep.subr.mxu0 0.0
        %2630 = vmatpush1.xpose.msra.mxu0 0.0
        %2631 = vmatprep.mubr.f32.mxu0 0.0
        %v2632 = vand.u32 %v2187, 4294901760
        %2633 = vmatmul.mubr.f32.gmra.mrb[0].mxu0 %v2632
        %v2634 = vpop.f32.mrb[0].mxu0
        %v2635 = vadd.f32 %v2563, %v2634
        %v2636 = vpop.f32.mrb[0].mxu0
        %2637 = vdwg.mxu0
        %v2638 = vsel %vm2185, %v2635, -inf
        %2639 = vmax.xlane.f32.xlu0 %v2638
        %v2640 = vpop.xlane.xlu0 %2639
        %v2641 = vsub.f32 %v2635, %v2640
        %v2642 = vmul.f32 %v2641, 1.442695
        %v2643 = vpow.pop %v2642
        %v2644 = vsel %vm2185, %v2643, 0.0
        %2645 = vadd.xlane.f32.xlu0 %v2644
        %v2646 = vpop.xlane.xlu0 %2645
        %v2647 = vrcp.pop %v2646
        %v2648 = vmul.f32 1.0, %v2647
        %v2649 = vmul.f32 %v2643, %v2648
        %v2651 = vsel %vm2185, %v2649, 0
        %2653 = vmatprep.subr.mxu0 0.0
        %v2654 = vand.u32 %v2173, 4294901760
        %2655 = vmatpush1.msra.mxu0 %v2654
        %2656 = vmatprep.subr.mxu0 0.0
        %2657 = vmatpush1.msra.mxu0 0.0
        %2658 = vmatprep.subr.mxu0 0.0
        %2659 = vmatpush1.msra.mxu0 0.0
        %2660 = vmatprep.subr.mxu0 0.0
        %2661 = vmatpush1.msra.mxu0 0.0
        %2662 = vmatprep.subr.mxu0 0.0
        %2663 = vmatpush1.msra.mxu0 0.0
        %2664 = vmatprep.subr.mxu0 0.0
        %2665 = vmatpush1.msra.mxu0 0.0
        %2666 = vmatprep.subr.mxu0 0.0
        %2667 = vmatpush1.msra.mxu0 0.0
        %2668 = vmatprep.subr.mxu0 0.0
        %2669 = vmatpush1.msra.mxu0 0.0
        %2670 = vmatprep.subr.mxu0 0.0
        %2671 = vmatpush1.msra.mxu0 0.0
        %2672 = vmatprep.subr.mxu0 0.0
        %2673 = vmatpush1.msra.mxu0 0.0
        %2674 = vmatprep.subr.mxu0 0.0
        %2675 = vmatpush1.msra.mxu0 0.0
        %2676 = vmatprep.subr.mxu0 0.0
        %2677 = vmatpush1.msra.mxu0 0.0
        %2678 = vmatprep.subr.mxu0 0.0
        %2679 = vmatpush1.msra.mxu0 0.0
        %2680 = vmatprep.subr.mxu0 0.0
        %2681 = vmatpush1.msra.mxu0 0.0
        %2682 = vmatprep.subr.mxu0 0.0
        %2683 = vmatpush1.msra.mxu0 0.0
        %2684 = vmatprep.subr.mxu0 0.0
        %2685 = vmatpush1.msra.mxu0 0.0
        %2686 = vmatprep.subr.mxu0 0.0
        %2687 = vmatpush1.msra.mxu0 0.0
        %2688 = vmatprep.subr.mxu0 0.0
        %2689 = vmatpush1.msra.mxu0 0.0
        %2690 = vmatprep.subr.mxu0 0.0
        %2691 = vmatpush1.msra.mxu0 0.0
        %2692 = vmatprep.subr.mxu0 0.0
        %2693 = vmatpush1.msra.mxu0 0.0
        %2694 = vmatprep.subr.mxu0 0.0
        %2695 = vmatpush1.msra.mxu0 0.0
        %2696 = vmatprep.subr.mxu0 0.0
        %2697 = vmatpush1.msra.mxu0 0.0
        %2698 = vmatprep.subr.mxu0 0.0
        %2699 = vmatpush1.msra.mxu0 0.0
        %2700 = vmatprep.subr.mxu0 0.0
        %2701 = vmatpush1.msra.mxu0 0.0
        %2702 = vmatprep.subr.mxu0 0.0
        %2703 = vmatpush1.msra.mxu0 0.0
        %2704 = vmatprep.subr.mxu0 0.0
        %2705 = vmatpush1.msra.mxu0 0.0
        %2706 = vmatprep.subr.mxu0 0.0
        %2707 = vmatpush1.msra.mxu0 0.0
        %2708 = vmatprep.subr.mxu0 0.0
        %2709 = vmatpush1.msra.mxu0 0.0
        %2710 = vmatprep.subr.mxu0 0.0
        %2711 = vmatpush1.msra.mxu0 0.0
        %2712 = vmatprep.subr.mxu0 0.0
        %2713 = vmatpush1.msra.mxu0 0.0
        %2714 = vmatprep.subr.mxu0 0.0
        %2715 = vmatpush1.msra.mxu0 0.0
        %2716 = vmatprep.subr.mxu0 0.0
        %2717 = vmatpush1.msra.mxu0 0.0
        %2718 = vmatprep.mubr.f32.mxu0 0.0
        %v2719 = vand.u32 %v2651, 4294901760
        %v2720 = vsub.f32 %v2651, %v2719
        %v2721 = vand.u32 %v2720, 4294901760
        %v2722 = vsub.f32 %v2720, %v2721
        %v2723 = vand.u32 %v2722, 4294901760
        %2724 = vmatmul.mubr.f32.gmra.mrb[0].mxu0 %v2723
        %v2725 = vpop.f32.mrb[0].mxu0
        %v2726 = vadd.f32 0.0, %v2725
        %v2727 = vpop.f32.mrb[0].mxu0
        %2728 = vdwg.mxu0
        %2729 = vmatprep.subr.mxu0 0.0
        %v2730 = vand.u32 %v2173, 4294901760
        %v2731 = vsub.f32 %v2173, %v2730
        %v2732 = vand.u32 %v2731, 4294901760
        %v2733 = vsub.f32 %v2731, %v2732
        %v2734 = vand.u32 %v2733, 4294901760
        %2735 = vmatpush1.msra.mxu0 %v2734
        %2736 = vmatprep.subr.mxu0 0.0
        %2737 = vmatpush1.msra.mxu0 0.0
        %2738 = vmatprep.subr.mxu0 0.0
        %2739 = vmatpush1.msra.mxu0 0.0
        %2740 = vmatprep.subr.mxu0 0.0
        %2741 = vmatpush1.msra.mxu0 0.0
        %2742 = vmatprep.subr.mxu0 0.0
        %2743 = vmatpush1.msra.mxu0 0.0
        %2744 = vmatprep.subr.mxu0 0.0
        %2745 = vmatpush1.msra.mxu0 0.0
        %2746 = vmatprep.subr.mxu0 0.0
        %2747 = vmatpush1.msra.mxu0 0.0
        %2748 = vmatprep.subr.mxu0 0.0
        %2749 = vmatpush1.msra.mxu0 0.0
        %2750 = vmatprep.subr.mxu0 0.0
        %2751 = vmatpush1.msra.mxu0 0.0
        %2752 = vmatprep.subr.mxu0 0.0
        %2753 = vmatpush1.msra.mxu0 0.0
        %2754 = vmatprep.subr.mxu0 0.0
        %2755 = vmatpush1.msra.mxu0 0.0
        %2756 = vmatprep.subr.mxu0 0.0
        %2757 = vmatpush1.msra.mxu0 0.0
        %2758 = vmatprep.subr.mxu0 0.0
        %2759 = vmatpush1.msra.mxu0 0.0
        %2760 = vmatprep.subr.mxu0 0.0
        %2761 = vmatpush1.msra.mxu0 0.0
        %2762 = vmatprep.subr.mxu0 0.0
        %2763 = vmatpush1.msra.mxu0 0.0
        %2764 = vmatprep.subr.mxu0 0.0
        %2765 = vmatpush1.msra.mxu0 0.0
        %2766 = vmatprep.subr.mxu0 0.0
        %2767 = vmatpush1.msra.mxu0 0.0
        %2768 = vmatprep.subr.mxu0 0.0
        %2769 = vmatpush1.msra.mxu0 0.0
        %2770 = vmatprep.subr.mxu0 0.0
        %2771 = vmatpush1.msra.mxu0 0.0
        %2772 = vmatprep.subr.mxu0 0.0
        %2773 = vmatpush1.msra.mxu0 0.0
        %2774 = vmatprep.subr.mxu0 0.0
        %2775 = vmatpush1.msra.mxu0 0.0
        %2776 = vmatprep.subr.mxu0 0.0
        %2777 = vmatpush1.msra.mxu0 0.0
        %2778 = vmatprep.subr.mxu0 0.0
        %2779 = vmatpush1.msra.mxu0 0.0
        %2780 = vmatprep.subr.mxu0 0.0
        %2781 = vmatpush1.msra.mxu0 0.0
        %2782 = vmatprep.subr.mxu0 0.0
        %2783 = vmatpush1.msra.mxu0 0.0
        %2784 = vmatprep.subr.mxu0 0.0
        %2785 = vmatpush1.msra.mxu0 0.0
        %2786 = vmatprep.subr.mxu0 0.0
        %2787 = vmatpush1.msra.mxu0 0.0
        %2788 = vmatprep.subr.mxu0 0.0
        %2789 = vmatpush1.msra.mxu0 0.0
        %2790 = vmatprep.subr.mxu0 0.0
        %2791 = vmatpush1.msra.mxu0 0.0
        %2792 = vmatprep.subr.mxu0 0.0
        %2793 = vmatpush1.msra.mxu0 0.0
        %2794 = vmatprep.subr.mxu0 0.0
        %2795 = vmatpush1.msra.mxu0 0.0
        %2796 = vmatprep.subr.mxu0 0.0
        %2797 = vmatpush1.msra.mxu0 0.0
        %2798 = vmatprep.mubr.f32.mxu0 0.0
        %v2799 = vand.u32 %v2651, 4294901760
        %2800 = vmatmul.mubr.f32.gmra.mrb[0].mxu0 %v2799
        %v2801 = vpop.f32.mrb[0].mxu0
        %v2802 = vadd.f32 %v2726, %v2801
        %v2803 = vpop.f32.mrb[0].mxu0
        %2804 = vdwg.mxu0
        %2805 = vmatprep.subr.mxu0 0.0
        %v2806 = vand.u32 %v2173, 4294901760
        %v2807 = vsub.f32 %v2173, %v2806
        %2808 = vmatpush1.msra.mxu0 %v2807
        %2809 = vmatprep.subr.mxu0 0.0
        %2810 = vmatpush1.msra.mxu0 0.0
        %2811 = vmatprep.subr.mxu0 0.0
        %2812 = vmatpush1.msra.mxu0 0.0
        %2813 = vmatprep.subr.mxu0 0.0
        %2814 = vmatpush1.msra.mxu0 0.0
        %2815 = vmatprep.subr.mxu0 0.0
        %2816 = vmatpush1.msra.mxu0 0.0
        %2817 = vmatprep.subr.mxu0 0.0
        %2818 = vmatpush1.msra.mxu0 0.0
        %2819 = vmatprep.subr.mxu0 0.0
        %2820 = vmatpush1.msra.mxu0 0.0
        %2821 = vmatprep.subr.mxu0 0.0
        %2822 = vmatpush1.msra.mxu0 0.0
        %2823 = vmatprep.subr.mxu0 0.0
        %2824 = vmatpush1.msra.mxu0 0.0
        %2825 = vmatprep.subr.mxu0 0.0
        %2826 = vmatpush1.msra.mxu0 0.0
        %2827 = vmatprep.subr.mxu0 0.0
        %2828 = vmatpush1.msra.mxu0 0.0
        %2829 = vmatprep.subr.mxu0 0.0
        %2830 = vmatpush1.msra.mxu0 0.0
        %2831 = vmatprep.subr.mxu0 0.0
        %2832 = vmatpush1.msra.mxu0 0.0
        %2833 = vmatprep.subr.mxu0 0.0
        %2834 = vmatpush1.msra.mxu0 0.0
        %2835 = vmatprep.subr.mxu0 0.0
        %2836 = vmatpush1.msra.mxu0 0.0
        %2837 = vmatprep.subr.mxu0 0.0
        %2838 = vmatpush1.msra.mxu0 0.0
        %2839 = vmatprep.subr.mxu0 0.0
        %2840 = vmatpush1.msra.mxu0 0.0
        %2841 = vmatprep.subr.mxu0 0.0
        %2842 = vmatpush1.msra.mxu0 0.0
        %2843 = vmatprep.subr.mxu0 0.0
        %2844 = vmatpush1.msra.mxu0 0.0
        %2845 = vmatprep.subr.mxu0 0.0
        %2846 = vmatpush1.msra.mxu0 0.0
        %2847 = vmatprep.subr.mxu0 0.0
        %2848 = vmatpush1.msra.mxu0 0.0
        %2849 = vmatprep.subr.mxu0 0.0
        %2850 = vmatpush1.msra.mxu0 0.0
        %2851 = vmatprep.subr.mxu0 0.0
        %2852 = vmatpush1.msra.mxu0 0.0
        %2853 = vmatprep.subr.mxu0 0.0
        %2854 = vmatpush1.msra.mxu0 0.0
        %2855 = vmatprep.subr.mxu0 0.0
        %2856 = vmatpush1.msra.mxu0 0.0
        %2857 = vmatprep.subr.mxu0 0.0
        %2858 = vmatpush1.msra.mxu0 0.0
        %2859 = vmatprep.subr.mxu0 0.0
        %2860 = vmatpush1.msra.mxu0 0.0
        %2861 = vmatprep.subr.mxu0 0.0
        %2862 = vmatpush1.msra.mxu0 0.0
        %2863 = vmatprep.subr.mxu0 0.0
        %2864 = vmatpush1.msra.mxu0 0.0
        %2865 = vmatprep.subr.mxu0 0.0
        %2866 = vmatpush1.msra.mxu0 0.0
        %2867 = vmatprep.subr.mxu0 0.0
        %2868 = vmatpush1.msra.mxu0 0.0
        %2869 = vmatprep.subr.mxu0 0.0
        %2870 = vmatpush1.msra.mxu0 0.0
        %2871 = vmatprep.mubr.f32.mxu0 0.0
        %v2872 = vand.u32 %v2651, 4294901760
        %v2873 = vsub.f32 %v2651, %v2872
        %2874 = vmatmul.mubr.f32.gmra.mrb[0].mxu0 %v2873
        %v2875 = vpop.f32.mrb[0].mxu0
        %v2876 = vadd.f32 %v2802, %v2875
        %v2877 = vpop.f32.mrb[0].mxu0
        %2878 = vdwg.mxu0
        %2879 = vmatprep.subr.mxu0 0.0
        %v2880 = vand.u32 %v2173, 4294901760
        %2881 = vmatpush1.msra.mxu0 %v2880
        %2882 = vmatprep.subr.mxu0 0.0
        %2883 = vmatpush1.msra.mxu0 0.0
        %2884 = vmatprep.subr.mxu0 0.0
        %2885 = vmatpush1.msra.mxu0 0.0
        %2886 = vmatprep.subr.mxu0 0.0
        %2887 = vmatpush1.msra.mxu0 0.0
        %2888 = vmatprep.subr.mxu0 0.0
        %2889 = vmatpush1.msra.mxu0 0.0
        %2890 = vmatprep.subr.mxu0 0.0
        %2891 = vmatpush1.msra.mxu0 0.0
        %2892 = vmatprep.subr.mxu0 0.0
        %2893 = vmatpush1.msra.mxu0 0.0
        %2894 = vmatprep.subr.mxu0 0.0
        %2895 = vmatpush1.msra.mxu0 0.0
        %2896 = vmatprep.subr.mxu0 0.0
        %2897 = vmatpush1.msra.mxu0 0.0
        %2898 = vmatprep.subr.mxu0 0.0
        %2899 = vmatpush1.msra.mxu0 0.0
        %2900 = vmatprep.subr.mxu0 0.0
        %2901 = vmatpush1.msra.mxu0 0.0
        %2902 = vmatprep.subr.mxu0 0.0
        %2903 = vmatpush1.msra.mxu0 0.0
        %2904 = vmatprep.subr.mxu0 0.0
        %2905 = vmatpush1.msra.mxu0 0.0
        %2906 = vmatprep.subr.mxu0 0.0
        %2907 = vmatpush1.msra.mxu0 0.0
        %2908 = vmatprep.subr.mxu0 0.0
        %2909 = vmatpush1.msra.mxu0 0.0
        %2910 = vmatprep.subr.mxu0 0.0
        %2911 = vmatpush1.msra.mxu0 0.0
        %2912 = vmatprep.subr.mxu0 0.0
        %2913 = vmatpush1.msra.mxu0 0.0
        %2914 = vmatprep.subr.mxu0 0.0
        %2915 = vmatpush1.msra.mxu0 0.0
        %2916 = vmatprep.subr.mxu0 0.0
        %2917 = vmatpush1.msra.mxu0 0.0
        %2918 = vmatprep.subr.mxu0 0.0
        %2919 = vmatpush1.msra.mxu0 0.0
        %2920 = vmatprep.subr.mxu0 0.0
        %2921 = vmatpush1.msra.mxu0 0.0
        %2922 = vmatprep.subr.mxu0 0.0
        %2923 = vmatpush1.msra.mxu0 0.0
        %2924 = vmatprep.subr.mxu0 0.0
        %2925 = vmatpush1.msra.mxu0 0.0
        %2926 = vmatprep.subr.mxu0 0.0
        %2927 = vmatpush1.msra.mxu0 0.0
        %2928 = vmatprep.subr.mxu0 0.0
        %2929 = vmatpush1.msra.mxu0 0.0
        %2930 = vmatprep.subr.mxu0 0.0
        %2931 = vmatpush1.msra.mxu0 0.0
        %2932 = vmatprep.subr.mxu0 0.0
        %2933 = vmatpush1.msra.mxu0 0.0
        %2934 = vmatprep.subr.mxu0 0.0
        %2935 = vmatpush1.msra.mxu0 0.0
        %2936 = vmatprep.subr.mxu0 0.0
        %2937 = vmatpush1.msra.mxu0 0.0
        %2938 = vmatprep.subr.mxu0 0.0
        %2939 = vmatpush1.msra.mxu0 0.0
        %2940 = vmatprep.subr.mxu0 0.0
        %2941 = vmatpush1.msra.mxu0 0.0
        %2942 = vmatprep.subr.mxu0 0.0
        %2943 = vmatpush1.msra.mxu0 0.0
        %2944 = vmatprep.mubr.f32.mxu0 0.0
        %v2945 = vand.u32 %v2651, 4294901760
        %v2946 = vsub.f32 %v2651, %v2945
        %v2947 = vand.u32 %v2946, 4294901760
        %2948 = vmatmul.mubr.f32.gmra.mrb[0].mxu0 %v2947
        %v2949 = vpop.f32.mrb[0].mxu0
        %v2950 = vadd.f32 %v2876, %v2949
        %v2951 = vpop.f32.mrb[0].mxu0
        %2952 = vdwg.mxu0
        %2953 = vmatprep.subr.mxu0 0.0
        %v2954 = vand.u32 %v2173, 4294901760
        %v2955 = vsub.f32 %v2173, %v2954
        %v2956 = vand.u32 %v2955, 4294901760
        %2957 = vmatpush1.msra.mxu0 %v2956
        %2958 = vmatprep.subr.mxu0 0.0
        %2959 = vmatpush1.msra.mxu0 0.0
        %2960 = vmatprep.subr.mxu0 0.0
        %2961 = vmatpush1.msra.mxu0 0.0
        %2962 = vmatprep.subr.mxu0 0.0
        %2963 = vmatpush1.msra.mxu0 0.0
        %2964 = vmatprep.subr.mxu0 0.0
        %2965 = vmatpush1.msra.mxu0 0.0
        %2966 = vmatprep.subr.mxu0 0.0
        %2967 = vmatpush1.msra.mxu0 0.0
        %2968 = vmatprep.subr.mxu0 0.0
        %2969 = vmatpush1.msra.mxu0 0.0
        %2970 = vmatprep.subr.mxu0 0.0
        %2971 = vmatpush1.msra.mxu0 0.0
        %2972 = vmatprep.subr.mxu0 0.0
        %2973 = vmatpush1.msra.mxu0 0.0
        %2974 = vmatprep.subr.mxu0 0.0
        %2975 = vmatpush1.msra.mxu0 0.0
        %2976 = vmatprep.subr.mxu0 0.0
        %2977 = vmatpush1.msra.mxu0 0.0
        %2978 = vmatprep.subr.mxu0 0.0
        %2979 = vmatpush1.msra.mxu0 0.0
        %2980 = vmatprep.subr.mxu0 0.0
        %2981 = vmatpush1.msra.mxu0 0.0
        %2982 = vmatprep.subr.mxu0 0.0
        %2983 = vmatpush1.msra.mxu0 0.0
        %2984 = vmatprep.subr.mxu0 0.0
        %2985 = vmatpush1.msra.mxu0 0.0
        %2986 = vmatprep.subr.mxu0 0.0
        %2987 = vmatpush1.msra.mxu0 0.0
        %2988 = vmatprep.subr.mxu0 0.0
        %2989 = vmatpush1.msra.mxu0 0.0
        %2990 = vmatprep.subr.mxu0 0.0
        %2991 = vmatpush1.msra.mxu0 0.0
        %2992 = vmatprep.subr.mxu0 0.0
        %2993 = vmatpush1.msra.mxu0 0.0
        %2994 = vmatprep.subr.mxu0 0.0
        %2995 = vmatpush1.msra.mxu0 0.0
        %2996 = vmatprep.subr.mxu0 0.0
        %2997 = vmatpush1.msra.mxu0 0.0
        %2998 = vmatprep.subr.mxu0 0.0
        %2999 = vmatpush1.msra.mxu0 0.0
        %3000 = vmatprep.subr.mxu0 0.0
        %3001 = vmatpush1.msra.mxu0 0.0
        %3002 = vmatprep.subr.mxu0 0.0
        %3003 = vmatpush1.msra.mxu0 0.0
        %3004 = vmatprep.subr.mxu0 0.0
        %3005 = vmatpush1.msra.mxu0 0.0
        %3006 = vmatprep.subr.mxu0 0.0
        %3007 = vmatpush1.msra.mxu0 0.0
        %3008 = vmatprep.subr.mxu0 0.0
        %3009 = vmatpush1.msra.mxu0 0.0
        %3010 = vmatprep.subr.mxu0 0.0
        %3011 = vmatpush1.msra.mxu0 0.0
        %3012 = vmatprep.subr.mxu0 0.0
        %3013 = vmatpush1.msra.mxu0 0.0
        %3014 = vmatprep.subr.mxu0 0.0
        %3015 = vmatpush1.msra.mxu0 0.0
        %3016 = vmatprep.subr.mxu0 0.0
        %3017 = vmatpush1.msra.mxu0 0.0
        %3018 = vmatprep.subr.mxu0 0.0
        %3019 = vmatpush1.msra.mxu0 0.0
        %3020 = vmatprep.mubr.f32.mxu0 0.0
        %v3021 = vand.u32 %v2651, 4294901760
        %3022 = vmatmul.mubr.f32.gmra.mrb[0].mxu0 %v3021
        %v3023 = vpop.f32.mrb[0].mxu0
        %v3024 = vadd.f32 %v2950, %v3023
        %v3025 = vpop.f32.mrb[0].mxu0
        %3026 = vdwg.mxu0
        %3027 = vmatprep.subr.mxu0 0.0
        %v3028 = vand.u32 %v2173, 4294901760
        %3029 = vmatpush1.msra.mxu0 %v3028
        %3030 = vmatprep.subr.mxu0 0.0
        %3031 = vmatpush1.msra.mxu0 0.0
        %3032 = vmatprep.subr.mxu0 0.0
        %3033 = vmatpush1.msra.mxu0 0.0
        %3034 = vmatprep.subr.mxu0 0.0
        %3035 = vmatpush1.msra.mxu0 0.0
        %3036 = vmatprep.subr.mxu0 0.0
        %3037 = vmatpush1.msra.mxu0 0.0
        %3038 = vmatprep.subr.mxu0 0.0
        %3039 = vmatpush1.msra.mxu0 0.0
        %3040 = vmatprep.subr.mxu0 0.0
        %3041 = vmatpush1.msra.mxu0 0.0
        %3042 = vmatprep.subr.mxu0 0.0
        %3043 = vmatpush1.msra.mxu0 0.0
        %3044 = vmatprep.subr.mxu0 0.0
        %3045 = vmatpush1.msra.mxu0 0.0
        %3046 = vmatprep.subr.mxu0 0.0
        %3047 = vmatpush1.msra.mxu0 0.0
        %3048 = vmatprep.subr.mxu0 0.0
        %3049 = vmatpush1.msra.mxu0 0.0
        %3050 = vmatprep.subr.mxu0 0.0
        %3051 = vmatpush1.msra.mxu0 0.0
        %3052 = vmatprep.subr.mxu0 0.0
        %3053 = vmatpush1.msra.mxu0 0.0
        %3054 = vmatprep.subr.mxu0 0.0
        %3055 = vmatpush1.msra.mxu0 0.0
        %3056 = vmatprep.subr.mxu0 0.0
        %3057 = vmatpush1.msra.mxu0 0.0
        %3058 = vmatprep.subr.mxu0 0.0
        %3059 = vmatpush1.msra.mxu0 0.0
        %3060 = vmatprep.subr.mxu0 0.0
        %3061 = vmatpush1.msra.mxu0 0.0
        %3062 = vmatprep.subr.mxu0 0.0
        %3063 = vmatpush1.msra.mxu0 0.0
        %3064 = vmatprep.subr.mxu0 0.0
        %3065 = vmatpush1.msra.mxu0 0.0
        %3066 = vmatprep.subr.mxu0 0.0
        %3067 = vmatpush1.msra.mxu0 0.0
        %3068 = vmatprep.subr.mxu0 0.0
        %3069 = vmatpush1.msra.mxu0 0.0
        %3070 = vmatprep.subr.mxu0 0.0
        %3071 = vmatpush1.msra.mxu0 0.0
        %3072 = vmatprep.subr.mxu0 0.0
        %3073 = vmatpush1.msra.mxu0 0.0
        %3074 = vmatprep.subr.mxu0 0.0
        %3075 = vmatpush1.msra.mxu0 0.0
        %3076 = vmatprep.subr.mxu0 0.0
        %3077 = vmatpush1.msra.mxu0 0.0
        %3078 = vmatprep.subr.mxu0 0.0
        %3079 = vmatpush1.msra.mxu0 0.0
        %3080 = vmatprep.subr.mxu0 0.0
        %3081 = vmatpush1.msra.mxu0 0.0
        %3082 = vmatprep.subr.mxu0 0.0
        %3083 = vmatpush1.msra.mxu0 0.0
        %3084 = vmatprep.subr.mxu0 0.0
        %3085 = vmatpush1.msra.mxu0 0.0
        %3086 = vmatprep.subr.mxu0 0.0
        %3087 = vmatpush1.msra.mxu0 0.0
        %3088 = vmatprep.subr.mxu0 0.0
        %3089 = vmatpush1.msra.mxu0 0.0
        %3090 = vmatprep.subr.mxu0 0.0
        %3091 = vmatpush1.msra.mxu0 0.0
        %3092 = vmatprep.mubr.f32.mxu0 0.0
        %v3093 = vand.u32 %v2651, 4294901760
        %3094 = vmatmul.mubr.f32.gmra.mrb[0].mxu0 %v3093
        %v3095 = vpop.f32.mrb[0].mxu0
        %v3096 = vadd.f32 %v3024, %v3095
        %v3097 = vpop.f32.mrb[0].mxu0
        %3098 = vdwg.mxu0
        %3099 = vrot.lane.b32.xlu0 %v2184, 120
        %v3100 = vpop.permute.xlu0 %3099
        %3101 = vrot.lane.b32.xlu0 %v1533, 120
        %v3102 = vpop.permute.xlu0 %3101
        %v3103 = vsel %vm2185, %v3100, 0
        %v3105 = vsel %vm2185, %v3102, 0
        %3107 = vmatprep.subr.mxu0 0.0
        %v3108 = vand.u32 %v3105, 4294901760
        %3109 = vmatpush1.xpose.msra.mxu0 %v3108
        %3110 = vmatprep.subr.mxu0 0.0
        %3111 = vmatpush1.xpose.msra.mxu0 0.0
        %3112 = vmatprep.subr.mxu0 0.0
        %3113 = vmatpush1.xpose.msra.mxu0 0.0
        %3114 = vmatprep.subr.mxu0 0.0
        %3115 = vmatpush1.xpose.msra.mxu0 0.0
        %3116 = vmatprep.subr.mxu0 0.0
        %3117 = vmatpush1.xpose.msra.mxu0 0.0
        %3118 = vmatprep.subr.mxu0 0.0
        %3119 = vmatpush1.xpose.msra.mxu0 0.0
        %3120 = vmatprep.subr.mxu0 0.0
        %3121 = vmatpush1.xpose.msra.mxu0 0.0
        %3122 = vmatprep.subr.mxu0 0.0
        %3123 = vmatpush1.xpose.msra.mxu0 0.0
        %3124 = vmatprep.subr.mxu0 0.0
        %3125 = vmatpush1.xpose.msra.mxu0 0.0
        %3126 = vmatprep.subr.mxu0 0.0
        %3127 = vmatpush1.xpose.msra.mxu0 0.0
        %3128 = vmatprep.subr.mxu0 0.0
        %3129 = vmatpush1.xpose.msra.mxu0 0.0
        %3130 = vmatprep.subr.mxu0 0.0
        %3131 = vmatpush1.xpose.msra.mxu0 0.0
        %3132 = vmatprep.subr.mxu0 0.0
        %3133 = vmatpush1.xpose.msra.mxu0 0.0
        %3134 = vmatprep.subr.mxu0 0.0
        %3135 = vmatpush1.xpose.msra.mxu0 0.0
        %3136 = vmatprep.subr.mxu0 0.0
        %3137 = vmatpush1.xpose.msra.mxu0 0.0
        %3138 = vmatprep.subr.mxu0 0.0
        %3139 = vmatpush1.xpose.msra.mxu0 0.0
        %3140 = vmatprep.subr.mxu0 0.0
        %3141 = vmatpush1.xpose.msra.mxu0 0.0
        %3142 = vmatprep.subr.mxu0 0.0
        %3143 = vmatpush1.xpose.msra.mxu0 0.0
        %3144 = vmatprep.subr.mxu0 0.0
        %3145 = vmatpush1.xpose.msra.mxu0 0.0
        %3146 = vmatprep.subr.mxu0 0.0
        %3147 = vmatpush1.xpose.msra.mxu0 0.0
        %3148 = vmatprep.subr.mxu0 0.0
        %3149 = vmatpush1.xpose.msra.mxu0 0.0
        %3150 = vmatprep.subr.mxu0 0.0
        %3151 = vmatpush1.xpose.msra.mxu0 0.0
        %3152 = vmatprep.subr.mxu0 0.0
        %3153 = vmatpush1.xpose.msra.mxu0 0.0
        %3154 = vmatprep.subr.mxu0 0.0
        %3155 = vmatpush1.xpose.msra.mxu0 0.0
        %3156 = vmatprep.subr.mxu0 0.0
        %3157 = vmatpush1.xpose.msra.mxu0 0.0
        %3158 = vmatprep.subr.mxu0 0.0
        %3159 = vmatpush1.xpose.msra.mxu0 0.0
        %3160 = vmatprep.subr.mxu0 0.0
        %3161 = vmatpush1.xpose.msra.mxu0 0.0
        %3162 = vmatprep.subr.mxu0 0.0
        %3163 = vmatpush1.xpose.msra.mxu0 0.0
        %3164 = vmatprep.subr.mxu0 0.0
        %3165 = vmatpush1.xpose.msra.mxu0 0.0
        %3166 = vmatprep.subr.mxu0 0.0
        %3167 = vmatpush1.xpose.msra.mxu0 0.0
        %3168 = vmatprep.subr.mxu0 0.0
        %3169 = vmatpush1.xpose.msra.mxu0 0.0
        %3170 = vmatprep.subr.mxu0 0.0
        %3171 = vmatpush1.xpose.msra.mxu0 0.0
        %3172 = vmatprep.mubr.f32.mxu0 0.0
        %v3173 = vand.u32 %v3103, 4294901760
        %v3174 = vsub.f32 %v3103, %v3173
        %v3175 = vand.u32 %v3174, 4294901760
        %v3176 = vsub.f32 %v3174, %v3175
        %v3177 = vand.u32 %v3176, 4294901760
        %3178 = vmatmul.mubr.f32.gmra.mrb[0].mxu0 %v3177
        %v3179 = vpop.f32.mrb[0].mxu0
        %v3180 = vadd.f32 %v2181, %v3179
        %v3181 = vpop.f32.mrb[0].mxu0
        %3182 = vdwg.mxu0
        %3183 = vmatprep.subr.mxu0 0.0
        %v3184 = vand.u32 %v3105, 4294901760
        %v3185 = vsub.f32 %v3105, %v3184
        %v3186 = vand.u32 %v3185, 4294901760
        %v3187 = vsub.f32 %v3185, %v3186
        %v3188 = vand.u32 %v3187, 4294901760
        %3189 = vmatpush1.xpose.msra.mxu0 %v3188
        %3190 = vmatprep.subr.mxu0 0.0
        %3191 = vmatpush1.xpose.msra.mxu0 0.0
        %3192 = vmatprep.subr.mxu0 0.0
        %3193 = vmatpush1.xpose.msra.mxu0 0.0
        %3194 = vmatprep.subr.mxu0 0.0
        %3195 = vmatpush1.xpose.msra.mxu0 0.0
        %3196 = vmatprep.subr.mxu0 0.0
        %3197 = vmatpush1.xpose.msra.mxu0 0.0
        %3198 = vmatprep.subr.mxu0 0.0
        %3199 = vmatpush1.xpose.msra.mxu0 0.0
        %3200 = vmatprep.subr.mxu0 0.0
        %3201 = vmatpush1.xpose.msra.mxu0 0.0
        %3202 = vmatprep.subr.mxu0 0.0
        %3203 = vmatpush1.xpose.msra.mxu0 0.0
        %3204 = vmatprep.subr.mxu0 0.0
        %3205 = vmatpush1.xpose.msra.mxu0 0.0
        %3206 = vmatprep.subr.mxu0 0.0
        %3207 = vmatpush1.xpose.msra.mxu0 0.0
        %3208 = vmatprep.subr.mxu0 0.0
        %3209 = vmatpush1.xpose.msra.mxu0 0.0
        %3210 = vmatprep.subr.mxu0 0.0
        %3211 = vmatpush1.xpose.msra.mxu0 0.0
        %3212 = vmatprep.subr.mxu0 0.0
        %3213 = vmatpush1.xpose.msra.mxu0 0.0
        %3214 = vmatprep.subr.mxu0 0.0
        %3215 = vmatpush1.xpose.msra.mxu0 0.0
        %3216 = vmatprep.subr.mxu0 0.0
        %3217 = vmatpush1.xpose.msra.mxu0 0.0
        %3218 = vmatprep.subr.mxu0 0.0
        %3219 = vmatpush1.xpose.msra.mxu0 0.0
        %3220 = vmatprep.subr.mxu0 0.0
        %3221 = vmatpush1.xpose.msra.mxu0 0.0
        %3222 = vmatprep.subr.mxu0 0.0
        %3223 = vmatpush1.xpose.msra.mxu0 0.0
        %3224 = vmatprep.subr.mxu0 0.0
        %3225 = vmatpush1.xpose.msra.mxu0 0.0
        %3226 = vmatprep.subr.mxu0 0.0
        %3227 = vmatpush1.xpose.msra.mxu0 0.0
        %3228 = vmatprep.subr.mxu0 0.0
        %3229 = vmatpush1.xpose.msra.mxu0 0.0
        %3230 = vmatprep.subr.mxu0 0.0
        %3231 = vmatpush1.xpose.msra.mxu0 0.0
        %3232 = vmatprep.subr.mxu0 0.0
        %3233 = vmatpush1.xpose.msra.mxu0 0.0
        %3234 = vmatprep.subr.mxu0 0.0
        %3235 = vmatpush1.xpose.msra.mxu0 0.0
        %3236 = vmatprep.subr.mxu0 0.0
        %3237 = vmatpush1.xpose.msra.mxu0 0.0
        %3238 = vmatprep.subr.mxu0 0.0
        %3239 = vmatpush1.xpose.msra.mxu0 0.0
        %3240 = vmatprep.subr.mxu0 0.0
        %3241 = vmatpush1.xpose.msra.mxu0 0.0
        %3242 = vmatprep.subr.mxu0 0.0
        %3243 = vmatpush1.xpose.msra.mxu0 0.0
        %3244 = vmatprep.subr.mxu0 0.0
        %3245 = vmatpush1.xpose.msra.mxu0 0.0
        %3246 = vmatprep.subr.mxu0 0.0
        %3247 = vmatpush1.xpose.msra.mxu0 0.0
        %3248 = vmatprep.subr.mxu0 0.0
        %3249 = vmatpush1.xpose.msra.mxu0 0.0
        %3250 = vmatprep.subr.mxu0 0.0
        %3251 = vmatpush1.xpose.msra.mxu0 0.0
        %3252 = vmatprep.mubr.f32.mxu0 0.0
        %v3253 = vand.u32 %v3103, 4294901760
        %3254 = vmatmul.mubr.f32.gmra.mrb[0].mxu0 %v3253
        %v3255 = vpop.f32.mrb[0].mxu0
        %v3256 = vadd.f32 %v3180, %v3255
        %v3257 = vpop.f32.mrb[0].mxu0
        %3258 = vdwg.mxu0
        %3259 = vmatprep.subr.mxu0 0.0
        %v3260 = vand.u32 %v3105, 4294901760
        %v3261 = vsub.f32 %v3105, %v3260
        %3262 = vmatpush1.xpose.msra.mxu0 %v3261
        %3263 = vmatprep.subr.mxu0 0.0
        %3264 = vmatpush1.xpose.msra.mxu0 0.0
        %3265 = vmatprep.subr.mxu0 0.0
        %3266 = vmatpush1.xpose.msra.mxu0 0.0
        %3267 = vmatprep.subr.mxu0 0.0
        %3268 = vmatpush1.xpose.msra.mxu0 0.0
        %3269 = vmatprep.subr.mxu0 0.0
        %3270 = vmatpush1.xpose.msra.mxu0 0.0
        %3271 = vmatprep.subr.mxu0 0.0
        %3272 = vmatpush1.xpose.msra.mxu0 0.0
        %3273 = vmatprep.subr.mxu0 0.0
        %3274 = vmatpush1.xpose.msra.mxu0 0.0
        %3275 = vmatprep.subr.mxu0 0.0
        %3276 = vmatpush1.xpose.msra.mxu0 0.0
        %3277 = vmatprep.subr.mxu0 0.0
        %3278 = vmatpush1.xpose.msra.mxu0 0.0
        %3279 = vmatprep.subr.mxu0 0.0
        %3280 = vmatpush1.xpose.msra.mxu0 0.0
        %3281 = vmatprep.subr.mxu0 0.0
        %3282 = vmatpush1.xpose.msra.mxu0 0.0
        %3283 = vmatprep.subr.mxu0 0.0
        %3284 = vmatpush1.xpose.msra.mxu0 0.0
        %3285 = vmatprep.subr.mxu0 0.0
        %3286 = vmatpush1.xpose.msra.mxu0 0.0
        %3287 = vmatprep.subr.mxu0 0.0
        %3288 = vmatpush1.xpose.msra.mxu0 0.0
        %3289 = vmatprep.subr.mxu0 0.0
        %3290 = vmatpush1.xpose.msra.mxu0 0.0
        %3291 = vmatprep.subr.mxu0 0.0
        %3292 = vmatpush1.xpose.msra.mxu0 0.0
        %3293 = vmatprep.subr.mxu0 0.0
        %3294 = vmatpush1.xpose.msra.mxu0 0.0
        %3295 = vmatprep.subr.mxu0 0.0
        %3296 = vmatpush1.xpose.msra.mxu0 0.0
        %3297 = vmatprep.subr.mxu0 0.0
        %3298 = vmatpush1.xpose.msra.mxu0 0.0
        %3299 = vmatprep.subr.mxu0 0.0
        %3300 = vmatpush1.xpose.msra.mxu0 0.0
        %3301 = vmatprep.subr.mxu0 0.0
        %3302 = vmatpush1.xpose.msra.mxu0 0.0
        %3303 = vmatprep.subr.mxu0 0.0
        %3304 = vmatpush1.xpose.msra.mxu0 0.0
        %3305 = vmatprep.subr.mxu0 0.0
        %3306 = vmatpush1.xpose.msra.mxu0 0.0
        %3307 = vmatprep.subr.mxu0 0.0
        %3308 = vmatpush1.xpose.msra.mxu0 0.0
        %3309 = vmatprep.subr.mxu0 0.0
        %3310 = vmatpush1.xpose.msra.mxu0 0.0
        %3311 = vmatprep.subr.mxu0 0.0
        %3312 = vmatpush1.xpose.msra.mxu0 0.0
        %3313 = vmatprep.subr.mxu0 0.0
        %3314 = vmatpush1.xpose.msra.mxu0 0.0
        %3315 = vmatprep.subr.mxu0 0.0
        %3316 = vmatpush1.xpose.msra.mxu0 0.0
        %3317 = vmatprep.subr.mxu0 0.0
        %3318 = vmatpush1.xpose.msra.mxu0 0.0
        %3319 = vmatprep.subr.mxu0 0.0
        %3320 = vmatpush1.xpose.msra.mxu0 0.0
        %3321 = vmatprep.subr.mxu0 0.0
        %3322 = vmatpush1.xpose.msra.mxu0 0.0
        %3323 = vmatprep.subr.mxu0 0.0
        %3324 = vmatpush1.xpose.msra.mxu0 0.0
        %3325 = vmatprep.mubr.f32.mxu0 0.0
        %v3326 = vand.u32 %v3103, 4294901760
        %v3327 = vsub.f32 %v3103, %v3326
        %3328 = vmatmul.mubr.f32.gmra.mrb[0].mxu0 %v3327
        %v3329 = vpop.f32.mrb[0].mxu0
        %v3330 = vadd.f32 %v3256, %v3329
        %v3331 = vpop.f32.mrb[0].mxu0
        %3332 = vdwg.mxu0
        %3333 = vmatprep.subr.mxu0 0.0
        %v3334 = vand.u32 %v3105, 4294901760
        %3335 = vmatpush1.xpose.msra.mxu0 %v3334
        %3336 = vmatprep.subr.mxu0 0.0
        %3337 = vmatpush1.xpose.msra.mxu0 0.0
        %3338 = vmatprep.subr.mxu0 0.0
        %3339 = vmatpush1.xpose.msra.mxu0 0.0
        %3340 = vmatprep.subr.mxu0 0.0
        %3341 = vmatpush1.xpose.msra.mxu0 0.0
        %3342 = vmatprep.subr.mxu0 0.0
        %3343 = vmatpush1.xpose.msra.mxu0 0.0
        %3344 = vmatprep.subr.mxu0 0.0
        %3345 = vmatpush1.xpose.msra.mxu0 0.0
        %3346 = vmatprep.subr.mxu0 0.0
        %3347 = vmatpush1.xpose.msra.mxu0 0.0
        %3348 = vmatprep.subr.mxu0 0.0
        %3349 = vmatpush1.xpose.msra.mxu0 0.0
        %3350 = vmatprep.subr.mxu0 0.0
        %3351 = vmatpush1.xpose.msra.mxu0 0.0
        %3352 = vmatprep.subr.mxu0 0.0
        %3353 = vmatpush1.xpose.msra.mxu0 0.0
        %3354 = vmatprep.subr.mxu0 0.0
        %3355 = vmatpush1.xpose.msra.mxu0 0.0
        %3356 = vmatprep.subr.mxu0 0.0
        %3357 = vmatpush1.xpose.msra.mxu0 0.0
        %3358 = vmatprep.subr.mxu0 0.0
        %3359 = vmatpush1.xpose.msra.mxu0 0.0
        %3360 = vmatprep.subr.mxu0 0.0
        %3361 = vmatpush1.xpose.msra.mxu0 0.0
        %3362 = vmatprep.subr.mxu0 0.0
        %3363 = vmatpush1.xpose.msra.mxu0 0.0
        %3364 = vmatprep.subr.mxu0 0.0
        %3365 = vmatpush1.xpose.msra.mxu0 0.0
        %3366 = vmatprep.subr.mxu0 0.0
        %3367 = vmatpush1.xpose.msra.mxu0 0.0
        %3368 = vmatprep.subr.mxu0 0.0
        %3369 = vmatpush1.xpose.msra.mxu0 0.0
        %3370 = vmatprep.subr.mxu0 0.0
        %3371 = vmatpush1.xpose.msra.mxu0 0.0
        %3372 = vmatprep.subr.mxu0 0.0
        %3373 = vmatpush1.xpose.msra.mxu0 0.0
        %3374 = vmatprep.subr.mxu0 0.0
        %3375 = vmatpush1.xpose.msra.mxu0 0.0
        %3376 = vmatprep.subr.mxu0 0.0
        %3377 = vmatpush1.xpose.msra.mxu0 0.0
        %3378 = vmatprep.subr.mxu0 0.0
        %3379 = vmatpush1.xpose.msra.mxu0 0.0
        %3380 = vmatprep.subr.mxu0 0.0
        %3381 = vmatpush1.xpose.msra.mxu0 0.0
        %3382 = vmatprep.subr.mxu0 0.0
        %3383 = vmatpush1.xpose.msra.mxu0 0.0
        %3384 = vmatprep.subr.mxu0 0.0
        %3385 = vmatpush1.xpose.msra.mxu0 0.0
        %3386 = vmatprep.subr.mxu0 0.0
        %3387 = vmatpush1.xpose.msra.mxu0 0.0
        %3388 = vmatprep.subr.mxu0 0.0
        %3389 = vmatpush1.xpose.msra.mxu0 0.0
        %3390 = vmatprep.subr.mxu0 0.0
        %3391 = vmatpush1.xpose.msra.mxu0 0.0
        %3392 = vmatprep.subr.mxu0 0.0
        %3393 = vmatpush1.xpose.msra.mxu0 0.0
        %3394 = vmatprep.subr.mxu0 0.0
        %3395 = vmatpush1.xpose.msra.mxu0 0.0
        %3396 = vmatprep.subr.mxu0 0.0
        %3397 = vmatpush1.xpose.msra.mxu0 0.0
        %3398 = vmatprep.mubr.f32.mxu0 0.0
        %v3399 = vand.u32 %v3103, 4294901760
        %v3400 = vsub.f32 %v3103, %v3399
        %v3401 = vand.u32 %v3400, 4294901760
        %3402 = vmatmul.mubr.f32.gmra.mrb[0].mxu0 %v3401
        %v3403 = vpop.f32.mrb[0].mxu0
        %v3404 = vadd.f32 %v3330, %v3403
        %v3405 = vpop.f32.mrb[0].mxu0
        %3406 = vdwg.mxu0
        %3407 = vmatprep.subr.mxu0 0.0
        %v3408 = vand.u32 %v3105, 4294901760
        %v3409 = vsub.f32 %v3105, %v3408
        %v3410 = vand.u32 %v3409, 4294901760
        %3411 = vmatpush1.xpose.msra.mxu0 %v3410
        %3412 = vmatprep.subr.mxu0 0.0
        %3413 = vmatpush1.xpose.msra.mxu0 0.0
        %3414 = vmatprep.subr.mxu0 0.0
        %3415 = vmatpush1.xpose.msra.mxu0 0.0
        %3416 = vmatprep.subr.mxu0 0.0
        %3417 = vmatpush1.xpose.msra.mxu0 0.0
        %3418 = vmatprep.subr.mxu0 0.0
        %3419 = vmatpush1.xpose.msra.mxu0 0.0
        %3420 = vmatprep.subr.mxu0 0.0
        %3421 = vmatpush1.xpose.msra.mxu0 0.0
        %3422 = vmatprep.subr.mxu0 0.0
        %3423 = vmatpush1.xpose.msra.mxu0 0.0
        %3424 = vmatprep.subr.mxu0 0.0
        %3425 = vmatpush1.xpose.msra.mxu0 0.0
        %3426 = vmatprep.subr.mxu0 0.0
        %3427 = vmatpush1.xpose.msra.mxu0 0.0
        %3428 = vmatprep.subr.mxu0 0.0
        %3429 = vmatpush1.xpose.msra.mxu0 0.0
        %3430 = vmatprep.subr.mxu0 0.0
        %3431 = vmatpush1.xpose.msra.mxu0 0.0
        %3432 = vmatprep.subr.mxu0 0.0
        %3433 = vmatpush1.xpose.msra.mxu0 0.0
        %3434 = vmatprep.subr.mxu0 0.0
        %3435 = vmatpush1.xpose.msra.mxu0 0.0
        %3436 = vmatprep.subr.mxu0 0.0
        %3437 = vmatpush1.xpose.msra.mxu0 0.0
        %3438 = vmatprep.subr.mxu0 0.0
        %3439 = vmatpush1.xpose.msra.mxu0 0.0
        %3440 = vmatprep.subr.mxu0 0.0
        %3441 = vmatpush1.xpose.msra.mxu0 0.0
        %3442 = vmatprep.subr.mxu0 0.0
        %3443 = vmatpush1.xpose.msra.mxu0 0.0
        %3444 = vmatprep.subr.mxu0 0.0
        %3445 = vmatpush1.xpose.msra.mxu0 0.0
        %3446 = vmatprep.subr.mxu0 0.0
        %3447 = vmatpush1.xpose.msra.mxu0 0.0
        %3448 = vmatprep.subr.mxu0 0.0
        %3449 = vmatpush1.xpose.msra.mxu0 0.0
        %3450 = vmatprep.subr.mxu0 0.0
        %3451 = vmatpush1.xpose.msra.mxu0 0.0
        %3452 = vmatprep.subr.mxu0 0.0
        %3453 = vmatpush1.xpose.msra.mxu0 0.0
        %3454 = vmatprep.subr.mxu0 0.0
        %3455 = vmatpush1.xpose.msra.mxu0 0.0
        %3456 = vmatprep.subr.mxu0 0.0
        %3457 = vmatpush1.xpose.msra.mxu0 0.0
        %3458 = vmatprep.subr.mxu0 0.0
        %3459 = vmatpush1.xpose.msra.mxu0 0.0
        %3460 = vmatprep.subr.mxu0 0.0
        %3461 = vmatpush1.xpose.msra.mxu0 0.0
        %3462 = vmatprep.subr.mxu0 0.0
        %3463 = vmatpush1.xpose.msra.mxu0 0.0
        %3464 = vmatprep.subr.mxu0 0.0
        %3465 = vmatpush1.xpose.msra.mxu0 0.0
        %3466 = vmatprep.subr.mxu0 0.0
        %3467 = vmatpush1.xpose.msra.mxu0 0.0
        %3468 = vmatprep.subr.mxu0 0.0
        %3469 = vmatpush1.xpose.msra.mxu0 0.0
        %3470 = vmatprep.subr.mxu0 0.0
        %3471 = vmatpush1.xpose.msra.mxu0 0.0
        %3472 = vmatprep.subr.mxu0 0.0
        %3473 = vmatpush1.xpose.msra.mxu0 0.0
        %3474 = vmatprep.mubr.f32.mxu0 0.0
        %v3475 = vand.u32 %v3103, 4294901760
        %3476 = vmatmul.mubr.f32.gmra.mrb[0].mxu0 %v3475
        %v3477 = vpop.f32.mrb[0].mxu0
        %v3478 = vadd.f32 %v3404, %v3477
        %v3479 = vpop.f32.mrb[0].mxu0
        %3480 = vdwg.mxu0
        %3481 = vmatprep.subr.mxu0 0.0
        %v3482 = vand.u32 %v3105, 4294901760
        %3483 = vmatpush1.xpose.msra.mxu0 %v3482
        %3484 = vmatprep.subr.mxu0 0.0
        %3485 = vmatpush1.xpose.msra.mxu0 0.0
        %3486 = vmatprep.subr.mxu0 0.0
        %3487 = vmatpush1.xpose.msra.mxu0 0.0
        %3488 = vmatprep.subr.mxu0 0.0
        %3489 = vmatpush1.xpose.msra.mxu0 0.0
        %3490 = vmatprep.subr.mxu0 0.0
        %3491 = vmatpush1.xpose.msra.mxu0 0.0
        %3492 = vmatprep.subr.mxu0 0.0
        %3493 = vmatpush1.xpose.msra.mxu0 0.0
        %3494 = vmatprep.subr.mxu0 0.0
        %3495 = vmatpush1.xpose.msra.mxu0 0.0
        %3496 = vmatprep.subr.mxu0 0.0
        %3497 = vmatpush1.xpose.msra.mxu0 0.0
        %3498 = vmatprep.subr.mxu0 0.0
        %3499 = vmatpush1.xpose.msra.mxu0 0.0
        %3500 = vmatprep.subr.mxu0 0.0
        %3501 = vmatpush1.xpose.msra.mxu0 0.0
        %3502 = vmatprep.subr.mxu0 0.0
        %3503 = vmatpush1.xpose.msra.mxu0 0.0
        %3504 = vmatprep.subr.mxu0 0.0
        %3505 = vmatpush1.xpose.msra.mxu0 0.0
        %3506 = vmatprep.subr.mxu0 0.0
        %3507 = vmatpush1.xpose.msra.mxu0 0.0
        %3508 = vmatprep.subr.mxu0 0.0
        %3509 = vmatpush1.xpose.msra.mxu0 0.0
        %3510 = vmatprep.subr.mxu0 0.0
        %3511 = vmatpush1.xpose.msra.mxu0 0.0
        %3512 = vmatprep.subr.mxu0 0.0
        %3513 = vmatpush1.xpose.msra.mxu0 0.0
        %3514 = vmatprep.subr.mxu0 0.0
        %3515 = vmatpush1.xpose.msra.mxu0 0.0
        %3516 = vmatprep.subr.mxu0 0.0
        %3517 = vmatpush1.xpose.msra.mxu0 0.0
        %3518 = vmatprep.subr.mxu0 0.0
        %3519 = vmatpush1.xpose.msra.mxu0 0.0
        %3520 = vmatprep.subr.mxu0 0.0
        %3521 = vmatpush1.xpose.msra.mxu0 0.0
        %3522 = vmatprep.subr.mxu0 0.0
        %3523 = vmatpush1.xpose.msra.mxu0 0.0
        %3524 = vmatprep.subr.mxu0 0.0
        %3525 = vmatpush1.xpose.msra.mxu0 0.0
        %3526 = vmatprep.subr.mxu0 0.0
        %3527 = vmatpush1.xpose.msra.mxu0 0.0
        %3528 = vmatprep.subr.mxu0 0.0
        %3529 = vmatpush1.xpose.msra.mxu0 0.0
        %3530 = vmatprep.subr.mxu0 0.0
        %3531 = vmatpush1.xpose.msra.mxu0 0.0
        %3532 = vmatprep.subr.mxu0 0.0
        %3533 = vmatpush1.xpose.msra.mxu0 0.0
        %3534 = vmatprep.subr.mxu0 0.0
        %3535 = vmatpush1.xpose.msra.mxu0 0.0
        %3536 = vmatprep.subr.mxu0 0.0
        %3537 = vmatpush1.xpose.msra.mxu0 0.0
        %3538 = vmatprep.subr.mxu0 0.0
        %3539 = vmatpush1.xpose.msra.mxu0 0.0
        %3540 = vmatprep.subr.mxu0 0.0
        %3541 = vmatpush1.xpose.msra.mxu0 0.0
        %3542 = vmatprep.subr.mxu0 0.0
        %3543 = vmatpush1.xpose.msra.mxu0 0.0
        %3544 = vmatprep.subr.mxu0 0.0
        %3545 = vmatpush1.xpose.msra.mxu0 0.0
        %3546 = vmatprep.mubr.f32.mxu0 0.0
        %v3547 = vand.u32 %v3103, 4294901760
        %3548 = vmatmul.mubr.f32.gmra.mrb[0].mxu0 %v3547
        %v3549 = vpop.f32.mrb[0].mxu0
        %v3550 = vadd.f32 %v3478, %v3549
        %v3551 = vpop.f32.mrb[0].mxu0
        %3552 = vdwg.mxu0
        %v3553 = vsel %vm2185, %v3550, -inf
        %3554 = vmax.xlane.f32.xlu0 %v3553
        %v3555 = vpop.xlane.xlu0 %3554
        %v3556 = vsub.f32 %v3550, %v3555
        %v3557 = vmul.f32 %v3556, 1.442695
        %v3558 = vpow.pop %v3557
        %v3559 = vsel %vm2185, %v3558, 0.0
        %3560 = vadd.xlane.f32.xlu0 %v3559
        %v3561 = vpop.xlane.xlu0 %3560
        %v3562 = vrcp.pop %v3561
        %v3563 = vmul.f32 1.0, %v3562
        %v3564 = vmul.f32 %v3558, %v3563
        %3566 = vrot.lane.b32.xlu0 %v2173, 120
        %v3567 = vpop.permute.xlu0 %3566
        %v3570 = vsel %vm2185, %v3564, 0
        %3572 = vmatprep.subr.mxu0 0.0
        %v3573 = vand.u32 %v3567, 4294901760
        %3574 = vmatpush1.msra.mxu0 %v3573
        %3575 = vmatprep.subr.mxu0 0.0
        %3576 = vmatpush1.msra.mxu0 0.0
        %3577 = vmatprep.subr.mxu0 0.0
        %3578 = vmatpush1.msra.mxu0 0.0
        %3579 = vmatprep.subr.mxu0 0.0
        %3580 = vmatpush1.msra.mxu0 0.0
        %3581 = vmatprep.subr.mxu0 0.0
        %3582 = vmatpush1.msra.mxu0 0.0
        %3583 = vmatprep.subr.mxu0 0.0
        %3584 = vmatpush1.msra.mxu0 0.0
        %3585 = vmatprep.subr.mxu0 0.0
        %3586 = vmatpush1.msra.mxu0 0.0
        %3587 = vmatprep.subr.mxu0 0.0
        %3588 = vmatpush1.msra.mxu0 0.0
        %3589 = vmatprep.subr.mxu0 0.0
        %3590 = vmatpush1.msra.mxu0 0.0
        %3591 = vmatprep.subr.mxu0 0.0
        %3592 = vmatpush1.msra.mxu0 0.0
        %3593 = vmatprep.subr.mxu0 0.0
        %3594 = vmatpush1.msra.mxu0 0.0
        %3595 = vmatprep.subr.mxu0 0.0
        %3596 = vmatpush1.msra.mxu0 0.0
        %3597 = vmatprep.subr.mxu0 0.0
        %3598 = vmatpush1.msra.mxu0 0.0
        %3599 = vmatprep.subr.mxu0 0.0
        %3600 = vmatpush1.msra.mxu0 0.0
        %3601 = vmatprep.subr.mxu0 0.0
        %3602 = vmatpush1.msra.mxu0 0.0
        %3603 = vmatprep.subr.mxu0 0.0
        %3604 = vmatpush1.msra.mxu0 0.0
        %3605 = vmatprep.subr.mxu0 0.0
        %3606 = vmatpush1.msra.mxu0 0.0
        %3607 = vmatprep.subr.mxu0 0.0
        %3608 = vmatpush1.msra.mxu0 0.0
        %3609 = vmatprep.subr.mxu0 0.0
        %3610 = vmatpush1.msra.mxu0 0.0
        %3611 = vmatprep.subr.mxu0 0.0
        %3612 = vmatpush1.msra.mxu0 0.0
        %3613 = vmatprep.subr.mxu0 0.0
        %3614 = vmatpush1.msra.mxu0 0.0
        %3615 = vmatprep.subr.mxu0 0.0
        %3616 = vmatpush1.msra.mxu0 0.0
        %3617 = vmatprep.subr.mxu0 0.0
        %3618 = vmatpush1.msra.mxu0 0.0
        %3619 = vmatprep.subr.mxu0 0.0
        %3620 = vmatpush1.msra.mxu0 0.0
        %3621 = vmatprep.subr.mxu0 0.0
        %3622 = vmatpush1.msra.mxu0 0.0
        %3623 = vmatprep.subr.mxu0 0.0
        %3624 = vmatpush1.msra.mxu0 0.0
        %3625 = vmatprep.subr.mxu0 0.0
        %3626 = vmatpush1.msra.mxu0 0.0
        %3627 = vmatprep.subr.mxu0 0.0
        %3628 = vmatpush1.msra.mxu0 0.0
        %3629 = vmatprep.subr.mxu0 0.0
        %3630 = vmatpush1.msra.mxu0 0.0
        %3631 = vmatprep.subr.mxu0 0.0
        %3632 = vmatpush1.msra.mxu0 0.0
        %3633 = vmatprep.subr.mxu0 0.0
        %3634 = vmatpush1.msra.mxu0 0.0
        %3635 = vmatprep.subr.mxu0 0.0
        %3636 = vmatpush1.msra.mxu0 0.0
        %3637 = vmatprep.mubr.f32.mxu0 0.0
        %v3638 = vand.u32 %v3570, 4294901760
        %v3639 = vsub.f32 %v3570, %v3638
        %v3640 = vand.u32 %v3639, 4294901760
        %v3641 = vsub.f32 %v3639, %v3640
        %v3642 = vand.u32 %v3641, 4294901760
        %3643 = vmatmul.mubr.f32.gmra.mrb[0].mxu0 %v3642
        %v3644 = vpop.f32.mrb[0].mxu0
        %v3645 = vadd.f32 0.0, %v3644
        %v3646 = vpop.f32.mrb[0].mxu0
        %3647 = vdwg.mxu0
        %3648 = vmatprep.subr.mxu0 0.0
        %v3649 = vand.u32 %v3567, 4294901760
        %v3650 = vsub.f32 %v3567, %v3649
        %v3651 = vand.u32 %v3650, 4294901760
        %v3652 = vsub.f32 %v3650, %v3651
        %v3653 = vand.u32 %v3652, 4294901760
        %3654 = vmatpush1.msra.mxu0 %v3653
        %3655 = vmatprep.subr.mxu0 0.0
        %3656 = vmatpush1.msra.mxu0 0.0
        %3657 = vmatprep.subr.mxu0 0.0
        %3658 = vmatpush1.msra.mxu0 0.0
        %3659 = vmatprep.subr.mxu0 0.0
        %3660 = vmatpush1.msra.mxu0 0.0
        %3661 = vmatprep.subr.mxu0 0.0
        %3662 = vmatpush1.msra.mxu0 0.0
        %3663 = vmatprep.subr.mxu0 0.0
        %3664 = vmatpush1.msra.mxu0 0.0
        %3665 = vmatprep.subr.mxu0 0.0
        %3666 = vmatpush1.msra.mxu0 0.0
        %3667 = vmatprep.subr.mxu0 0.0
        %3668 = vmatpush1.msra.mxu0 0.0
        %3669 = vmatprep.subr.mxu0 0.0
        %3670 = vmatpush1.msra.mxu0 0.0
        %3671 = vmatprep.subr.mxu0 0.0
        %3672 = vmatpush1.msra.mxu0 0.0
        %3673 = vmatprep.subr.mxu0 0.0
        %3674 = vmatpush1.msra.mxu0 0.0
        %3675 = vmatprep.subr.mxu0 0.0
        %3676 = vmatpush1.msra.mxu0 0.0
        %3677 = vmatprep.subr.mxu0 0.0
        %3678 = vmatpush1.msra.mxu0 0.0
        %3679 = vmatprep.subr.mxu0 0.0
        %3680 = vmatpush1.msra.mxu0 0.0
        %3681 = vmatprep.subr.mxu0 0.0
        %3682 = vmatpush1.msra.mxu0 0.0
        %3683 = vmatprep.subr.mxu0 0.0
        %3684 = vmatpush1.msra.mxu0 0.0
        %3685 = vmatprep.subr.mxu0 0.0
        %3686 = vmatpush1.msra.mxu0 0.0
        %3687 = vmatprep.subr.mxu0 0.0
        %3688 = vmatpush1.msra.mxu0 0.0
        %3689 = vmatprep.subr.mxu0 0.0
        %3690 = vmatpush1.msra.mxu0 0.0
        %3691 = vmatprep.subr.mxu0 0.0
        %3692 = vmatpush1.msra.mxu0 0.0
        %3693 = vmatprep.subr.mxu0 0.0
        %3694 = vmatpush1.msra.mxu0 0.0
        %3695 = vmatprep.subr.mxu0 0.0
        %3696 = vmatpush1.msra.mxu0 0.0
        %3697 = vmatprep.subr.mxu0 0.0
        %3698 = vmatpush1.msra.mxu0 0.0
        %3699 = vmatprep.subr.mxu0 0.0
        %3700 = vmatpush1.msra.mxu0 0.0
        %3701 = vmatprep.subr.mxu0 0.0
        %3702 = vmatpush1.msra.mxu0 0.0
        %3703 = vmatprep.subr.mxu0 0.0
        %3704 = vmatpush1.msra.mxu0 0.0
        %3705 = vmatprep.subr.mxu0 0.0
        %3706 = vmatpush1.msra.mxu0 0.0
        %3707 = vmatprep.subr.mxu0 0.0
        %3708 = vmatpush1.msra.mxu0 0.0
        %3709 = vmatprep.subr.mxu0 0.0
        %3710 = vmatpush1.msra.mxu0 0.0
        %3711 = vmatprep.subr.mxu0 0.0
        %3712 = vmatpush1.msra.mxu0 0.0
        %3713 = vmatprep.subr.mxu0 0.0
        %3714 = vmatpush1.msra.mxu0 0.0
        %3715 = vmatprep.subr.mxu0 0.0
        %3716 = vmatpush1.msra.mxu0 0.0
        %3717 = vmatprep.mubr.f32.mxu0 0.0
        %v3718 = vand.u32 %v3570, 4294901760
        %3719 = vmatmul.mubr.f32.gmra.mrb[0].mxu0 %v3718
        %v3720 = vpop.f32.mrb[0].mxu0
        %v3721 = vadd.f32 %v3645, %v3720
        %v3722 = vpop.f32.mrb[0].mxu0
        %3723 = vdwg.mxu0
        %3724 = vmatprep.subr.mxu0 0.0
        %v3725 = vand.u32 %v3567, 4294901760
        %v3726 = vsub.f32 %v3567, %v3725
        %3727 = vmatpush1.msra.mxu0 %v3726
        %3728 = vmatprep.subr.mxu0 0.0
        %3729 = vmatpush1.msra.mxu0 0.0
        %3730 = vmatprep.subr.mxu0 0.0
        %3731 = vmatpush1.msra.mxu0 0.0
        %3732 = vmatprep.subr.mxu0 0.0
        %3733 = vmatpush1.msra.mxu0 0.0
        %3734 = vmatprep.subr.mxu0 0.0
        %3735 = vmatpush1.msra.mxu0 0.0
        %3736 = vmatprep.subr.mxu0 0.0
        %3737 = vmatpush1.msra.mxu0 0.0
        %3738 = vmatprep.subr.mxu0 0.0
        %3739 = vmatpush1.msra.mxu0 0.0
        %3740 = vmatprep.subr.mxu0 0.0
        %3741 = vmatpush1.msra.mxu0 0.0
        %3742 = vmatprep.subr.mxu0 0.0
        %3743 = vmatpush1.msra.mxu0 0.0
        %3744 = vmatprep.subr.mxu0 0.0
        %3745 = vmatpush1.msra.mxu0 0.0
        %3746 = vmatprep.subr.mxu0 0.0
        %3747 = vmatpush1.msra.mxu0 0.0
        %3748 = vmatprep.subr.mxu0 0.0
        %3749 = vmatpush1.msra.mxu0 0.0
        %3750 = vmatprep.subr.mxu0 0.0
        %3751 = vmatpush1.msra.mxu0 0.0
        %3752 = vmatprep.subr.mxu0 0.0
        %3753 = vmatpush1.msra.mxu0 0.0
        %3754 = vmatprep.subr.mxu0 0.0
        %3755 = vmatpush1.msra.mxu0 0.0
        %3756 = vmatprep.subr.mxu0 0.0
        %3757 = vmatpush1.msra.mxu0 0.0
        %3758 = vmatprep.subr.mxu0 0.0
        %3759 = vmatpush1.msra.mxu0 0.0
        %3760 = vmatprep.subr.mxu0 0.0
        %3761 = vmatpush1.msra.mxu0 0.0
        %3762 = vmatprep.subr.mxu0 0.0
        %3763 = vmatpush1.msra.mxu0 0.0
        %3764 = vmatprep.subr.mxu0 0.0
        %3765 = vmatpush1.msra.mxu0 0.0
        %3766 = vmatprep.subr.mxu0 0.0
        %3767 = vmatpush1.msra.mxu0 0.0
        %3768 = vmatprep.subr.mxu0 0.0
        %3769 = vmatpush1.msra.mxu0 0.0
        %3770 = vmatprep.subr.mxu0 0.0
        %3771 = vmatpush1.msra.mxu0 0.0
        %3772 = vmatprep.subr.mxu0 0.0
        %3773 = vmatpush1.msra.mxu0 0.0
        %3774 = vmatprep.subr.mxu0 0.0
        %3775 = vmatpush1.msra.mxu0 0.0
        %3776 = vmatprep.subr.mxu0 0.0
        %3777 = vmatpush1.msra.mxu0 0.0
        %3778 = vmatprep.subr.mxu0 0.0
        %3779 = vmatpush1.msra.mxu0 0.0
        %3780 = vmatprep.subr.mxu0 0.0
        %3781 = vmatpush1.msra.mxu0 0.0
        %3782 = vmatprep.subr.mxu0 0.0
        %3783 = vmatpush1.msra.mxu0 0.0
        %3784 = vmatprep.subr.mxu0 0.0
        %3785 = vmatpush1.msra.mxu0 0.0
        %3786 = vmatprep.subr.mxu0 0.0
        %3787 = vmatpush1.msra.mxu0 0.0
        %3788 = vmatprep.subr.mxu0 0.0
        %3789 = vmatpush1.msra.mxu0 0.0
        %3790 = vmatprep.mubr.f32.mxu0 0.0
        %v3791 = vand.u32 %v3570, 4294901760
        %v3792 = vsub.f32 %v3570, %v3791
        %3793 = vmatmul.mubr.f32.gmra.mrb[0].mxu0 %v3792
        %v3794 = vpop.f32.mrb[0].mxu0
        %v3795 = vadd.f32 %v3721, %v3794
        %v3796 = vpop.f32.mrb[0].mxu0
        %3797 = vdwg.mxu0
        %3798 = vmatprep.subr.mxu0 0.0
        %v3799 = vand.u32 %v3567, 4294901760
        %3800 = vmatpush1.msra.mxu0 %v3799
        %3801 = vmatprep.subr.mxu0 0.0
        %3802 = vmatpush1.msra.mxu0 0.0
        %3803 = vmatprep.subr.mxu0 0.0
        %3804 = vmatpush1.msra.mxu0 0.0
        %3805 = vmatprep.subr.mxu0 0.0
        %3806 = vmatpush1.msra.mxu0 0.0
        %3807 = vmatprep.subr.mxu0 0.0
        %3808 = vmatpush1.msra.mxu0 0.0
        %3809 = vmatprep.subr.mxu0 0.0
        %3810 = vmatpush1.msra.mxu0 0.0
        %3811 = vmatprep.subr.mxu0 0.0
        %3812 = vmatpush1.msra.mxu0 0.0
        %3813 = vmatprep.subr.mxu0 0.0
        %3814 = vmatpush1.msra.mxu0 0.0
        %3815 = vmatprep.subr.mxu0 0.0
        %3816 = vmatpush1.msra.mxu0 0.0
        %3817 = vmatprep.subr.mxu0 0.0
        %3818 = vmatpush1.msra.mxu0 0.0
        %3819 = vmatprep.subr.mxu0 0.0
        %3820 = vmatpush1.msra.mxu0 0.0
        %3821 = vmatprep.subr.mxu0 0.0
        %3822 = vmatpush1.msra.mxu0 0.0
        %3823 = vmatprep.subr.mxu0 0.0
        %3824 = vmatpush1.msra.mxu0 0.0
        %3825 = vmatprep.subr.mxu0 0.0
        %3826 = vmatpush1.msra.mxu0 0.0
        %3827 = vmatprep.subr.mxu0 0.0
        %3828 = vmatpush1.msra.mxu0 0.0
        %3829 = vmatprep.subr.mxu0 0.0
        %3830 = vmatpush1.msra.mxu0 0.0
        %3831 = vmatprep.subr.mxu0 0.0
        %3832 = vmatpush1.msra.mxu0 0.0
        %3833 = vmatprep.subr.mxu0 0.0
        %3834 = vmatpush1.msra.mxu0 0.0
        %3835 = vmatprep.subr.mxu0 0.0
        %3836 = vmatpush1.msra.mxu0 0.0
        %3837 = vmatprep.subr.mxu0 0.0
        %3838 = vmatpush1.msra.mxu0 0.0
        %3839 = vmatprep.subr.mxu0 0.0
        %3840 = vmatpush1.msra.mxu0 0.0
        %3841 = vmatprep.subr.mxu0 0.0
        %3842 = vmatpush1.msra.mxu0 0.0
        %3843 = vmatprep.subr.mxu0 0.0
        %3844 = vmatpush1.msra.mxu0 0.0
        %3845 = vmatprep.subr.mxu0 0.0
        %3846 = vmatpush1.msra.mxu0 0.0
        %3847 = vmatprep.subr.mxu0 0.0
        %3848 = vmatpush1.msra.mxu0 0.0
        %3849 = vmatprep.subr.mxu0 0.0
        %3850 = vmatpush1.msra.mxu0 0.0
        %3851 = vmatprep.subr.mxu0 0.0
        %3852 = vmatpush1.msra.mxu0 0.0
        %3853 = vmatprep.subr.mxu0 0.0
        %3854 = vmatpush1.msra.mxu0 0.0
        %3855 = vmatprep.subr.mxu0 0.0
        %3856 = vmatpush1.msra.mxu0 0.0
        %3857 = vmatprep.subr.mxu0 0.0
        %3858 = vmatpush1.msra.mxu0 0.0
        %3859 = vmatprep.subr.mxu0 0.0
        %3860 = vmatpush1.msra.mxu0 0.0
        %3861 = vmatprep.subr.mxu0 0.0
        %3862 = vmatpush1.msra.mxu0 0.0
        %3863 = vmatprep.mubr.f32.mxu0 0.0
        %v3864 = vand.u32 %v3570, 4294901760
        %v3865 = vsub.f32 %v3570, %v3864
        %v3866 = vand.u32 %v3865, 4294901760
        %3867 = vmatmul.mubr.f32.gmra.mrb[0].mxu0 %v3866
        %v3868 = vpop.f32.mrb[0].mxu0
        %v3869 = vadd.f32 %v3795, %v3868
        %v3870 = vpop.f32.mrb[0].mxu0
        %3871 = vdwg.mxu0
        %3872 = vmatprep.subr.mxu0 0.0
        %v3873 = vand.u32 %v3567, 4294901760
        %v3874 = vsub.f32 %v3567, %v3873
        %v3875 = vand.u32 %v3874, 4294901760
        %3876 = vmatpush1.msra.mxu0 %v3875
        %3877 = vmatprep.subr.mxu0 0.0
        %3878 = vmatpush1.msra.mxu0 0.0
        %3879 = vmatprep.subr.mxu0 0.0
        %3880 = vmatpush1.msra.mxu0 0.0
        %3881 = vmatprep.subr.mxu0 0.0
        %3882 = vmatpush1.msra.mxu0 0.0
        %3883 = vmatprep.subr.mxu0 0.0
        %3884 = vmatpush1.msra.mxu0 0.0
        %3885 = vmatprep.subr.mxu0 0.0
        %3886 = vmatpush1.msra.mxu0 0.0
        %3887 = vmatprep.subr.mxu0 0.0
        %3888 = vmatpush1.msra.mxu0 0.0
        %3889 = vmatprep.subr.mxu0 0.0
        %3890 = vmatpush1.msra.mxu0 0.0
        %3891 = vmatprep.subr.mxu0 0.0
        %3892 = vmatpush1.msra.mxu0 0.0
        %3893 = vmatprep.subr.mxu0 0.0
        %3894 = vmatpush1.msra.mxu0 0.0
        %3895 = vmatprep.subr.mxu0 0.0
        %3896 = vmatpush1.msra.mxu0 0.0
        %3897 = vmatprep.subr.mxu0 0.0
        %3898 = vmatpush1.msra.mxu0 0.0
        %3899 = vmatprep.subr.mxu0 0.0
        %3900 = vmatpush1.msra.mxu0 0.0
        %3901 = vmatprep.subr.mxu0 0.0
        %3902 = vmatpush1.msra.mxu0 0.0
        %3903 = vmatprep.subr.mxu0 0.0
        %3904 = vmatpush1.msra.mxu0 0.0
        %3905 = vmatprep.subr.mxu0 0.0
        %3906 = vmatpush1.msra.mxu0 0.0
        %3907 = vmatprep.subr.mxu0 0.0
        %3908 = vmatpush1.msra.mxu0 0.0
        %3909 = vmatprep.subr.mxu0 0.0
        %3910 = vmatpush1.msra.mxu0 0.0
        %3911 = vmatprep.subr.mxu0 0.0
        %3912 = vmatpush1.msra.mxu0 0.0
        %3913 = vmatprep.subr.mxu0 0.0
        %3914 = vmatpush1.msra.mxu0 0.0
        %3915 = vmatprep.subr.mxu0 0.0
        %3916 = vmatpush1.msra.mxu0 0.0
        %3917 = vmatprep.subr.mxu0 0.0
        %3918 = vmatpush1.msra.mxu0 0.0
        %3919 = vmatprep.subr.mxu0 0.0
        %3920 = vmatpush1.msra.mxu0 0.0
        %3921 = vmatprep.subr.mxu0 0.0
        %3922 = vmatpush1.msra.mxu0 0.0
        %3923 = vmatprep.subr.mxu0 0.0
        %3924 = vmatpush1.msra.mxu0 0.0
        %3925 = vmatprep.subr.mxu0 0.0
        %3926 = vmatpush1.msra.mxu0 0.0
        %3927 = vmatprep.subr.mxu0 0.0
        %3928 = vmatpush1.msra.mxu0 0.0
        %3929 = vmatprep.subr.mxu0 0.0
        %3930 = vmatpush1.msra.mxu0 0.0
        %3931 = vmatprep.subr.mxu0 0.0
        %3932 = vmatpush1.msra.mxu0 0.0
        %3933 = vmatprep.subr.mxu0 0.0
        %3934 = vmatpush1.msra.mxu0 0.0
        %3935 = vmatprep.subr.mxu0 0.0
        %3936 = vmatpush1.msra.mxu0 0.0
        %3937 = vmatprep.subr.mxu0 0.0
        %3938 = vmatpush1.msra.mxu0 0.0
        %3939 = vmatprep.mubr.f32.mxu0 0.0
        %v3940 = vand.u32 %v3570, 4294901760
        %3941 = vmatmul.mubr.f32.gmra.mrb[0].mxu0 %v3940
        %v3942 = vpop.f32.mrb[0].mxu0
        %v3943 = vadd.f32 %v3869, %v3942
        %v3944 = vpop.f32.mrb[0].mxu0
        %3945 = vdwg.mxu0
        %3946 = vmatprep.subr.mxu0 0.0
        %v3947 = vand.u32 %v3567, 4294901760
        %3948 = vmatpush1.msra.mxu0 %v3947
        %3949 = vmatprep.subr.mxu0 0.0
        %3950 = vmatpush1.msra.mxu0 0.0
        %3951 = vmatprep.subr.mxu0 0.0
        %3952 = vmatpush1.msra.mxu0 0.0
        %3953 = vmatprep.subr.mxu0 0.0
        %3954 = vmatpush1.msra.mxu0 0.0
        %3955 = vmatprep.subr.mxu0 0.0
        %3956 = vmatpush1.msra.mxu0 0.0
        %3957 = vmatprep.subr.mxu0 0.0
        %3958 = vmatpush1.msra.mxu0 0.0
        %3959 = vmatprep.subr.mxu0 0.0
        %3960 = vmatpush1.msra.mxu0 0.0
        %3961 = vmatprep.subr.mxu0 0.0
        %3962 = vmatpush1.msra.mxu0 0.0
        %3963 = vmatprep.subr.mxu0 0.0
        %3964 = vmatpush1.msra.mxu0 0.0
        %3965 = vmatprep.subr.mxu0 0.0
        %3966 = vmatpush1.msra.mxu0 0.0
        %3967 = vmatprep.subr.mxu0 0.0
        %3968 = vmatpush1.msra.mxu0 0.0
        %3969 = vmatprep.subr.mxu0 0.0
        %3970 = vmatpush1.msra.mxu0 0.0
        %3971 = vmatprep.subr.mxu0 0.0
        %3972 = vmatpush1.msra.mxu0 0.0
        %3973 = vmatprep.subr.mxu0 0.0
        %3974 = vmatpush1.msra.mxu0 0.0
        %3975 = vmatprep.subr.mxu0 0.0
        %3976 = vmatpush1.msra.mxu0 0.0
        %3977 = vmatprep.subr.mxu0 0.0
        %3978 = vmatpush1.msra.mxu0 0.0
        %3979 = vmatprep.subr.mxu0 0.0
        %3980 = vmatpush1.msra.mxu0 0.0
        %3981 = vmatprep.subr.mxu0 0.0
        %3982 = vmatpush1.msra.mxu0 0.0
        %3983 = vmatprep.subr.mxu0 0.0
        %3984 = vmatpush1.msra.mxu0 0.0
        %3985 = vmatprep.subr.mxu0 0.0
        %3986 = vmatpush1.msra.mxu0 0.0
        %3987 = vmatprep.subr.mxu0 0.0
        %3988 = vmatpush1.msra.mxu0 0.0
        %3989 = vmatprep.subr.mxu0 0.0
        %3990 = vmatpush1.msra.mxu0 0.0
        %3991 = vmatprep.subr.mxu0 0.0
        %3992 = vmatpush1.msra.mxu0 0.0
        %3993 = vmatprep.subr.mxu0 0.0
        %3994 = vmatpush1.msra.mxu0 0.0
        %3995 = vmatprep.subr.mxu0 0.0
        %3996 = vmatpush1.msra.mxu0 0.0
        %3997 = vmatprep.subr.mxu0 0.0
        %3998 = vmatpush1.msra.mxu0 0.0
        %3999 = vmatprep.subr.mxu0 0.0
        %4000 = vmatpush1.msra.mxu0 0.0
        %4001 = vmatprep.subr.mxu0 0.0
        %4002 = vmatpush1.msra.mxu0 0.0
        %4003 = vmatprep.subr.mxu0 0.0
        %4004 = vmatpush1.msra.mxu0 0.0
        %4005 = vmatprep.subr.mxu0 0.0
        %4006 = vmatpush1.msra.mxu0 0.0
        %4007 = vmatprep.subr.mxu0 0.0
        %4008 = vmatpush1.msra.mxu0 0.0
        %4009 = vmatprep.subr.mxu0 0.0
        %4010 = vmatpush1.msra.mxu0 0.0
        %4011 = vmatprep.mubr.f32.mxu0 0.0
        %v4012 = vand.u32 %v3570, 4294901760
        %4013 = vmatmul.mubr.f32.gmra.mrb[0].mxu0 %v4012
        %v4014 = vpop.f32.mrb[0].mxu0
        %v4015 = vadd.f32 %v3943, %v4014
        %v4016 = vpop.f32.mrb[0].mxu0
        %4017 = vdwg.mxu0
        %v4019 = vsel %vm2185, %v4015, 0
        %4021 = vmatprep.subr.mxu0 0.0
        %v4022 = vand.u32 %v2177, 4294901760
        %4023 = vmatpush1.msra.mxu0 %v4022
        %4024 = vmatprep.subr.mxu0 0.0
        %4025 = vmatpush1.msra.mxu0 0.0
        %4026 = vmatprep.subr.mxu0 0.0
        %4027 = vmatpush1.msra.mxu0 0.0
        %4028 = vmatprep.subr.mxu0 0.0
        %4029 = vmatpush1.msra.mxu0 0.0
        %4030 = vmatprep.subr.mxu0 0.0
        %4031 = vmatpush1.msra.mxu0 0.0
        %4032 = vmatprep.subr.mxu0 0.0
        %4033 = vmatpush1.msra.mxu0 0.0
        %4034 = vmatprep.subr.mxu0 0.0
        %4035 = vmatpush1.msra.mxu0 0.0
        %4036 = vmatprep.subr.mxu0 0.0
        %4037 = vmatpush1.msra.mxu0 0.0
        %4038 = vmatprep.subr.mxu0 0.0
        %4039 = vmatpush1.msra.mxu0 0.0
        %4040 = vmatprep.subr.mxu0 0.0
        %4041 = vmatpush1.msra.mxu0 0.0
        %4042 = vmatprep.subr.mxu0 0.0
        %4043 = vmatpush1.msra.mxu0 0.0
        %4044 = vmatprep.subr.mxu0 0.0
        %4045 = vmatpush1.msra.mxu0 0.0
        %4046 = vmatprep.subr.mxu0 0.0
        %4047 = vmatpush1.msra.mxu0 0.0
        %4048 = vmatprep.subr.mxu0 0.0
        %4049 = vmatpush1.msra.mxu0 0.0
        %4050 = vmatprep.subr.mxu0 0.0
        %4051 = vmatpush1.msra.mxu0 0.0
        %4052 = vmatprep.subr.mxu0 0.0
        %4053 = vmatpush1.msra.mxu0 0.0
        %4054 = vmatprep.subr.mxu0 0.0
        %4055 = vmatpush1.msra.mxu0 0.0
        %4056 = vmatprep.subr.mxu0 0.0
        %4057 = vmatpush1.msra.mxu0 0.0
        %4058 = vmatprep.subr.mxu0 0.0
        %4059 = vmatpush1.msra.mxu0 0.0
        %4060 = vmatprep.subr.mxu0 0.0
        %4061 = vmatpush1.msra.mxu0 0.0
        %4062 = vmatprep.subr.mxu0 0.0
        %4063 = vmatpush1.msra.mxu0 0.0
        %4064 = vmatprep.subr.mxu0 0.0
        %4065 = vmatpush1.msra.mxu0 0.0
        %4066 = vmatprep.subr.mxu0 0.0
        %4067 = vmatpush1.msra.mxu0 0.0
        %4068 = vmatprep.subr.mxu0 0.0
        %4069 = vmatpush1.msra.mxu0 0.0
        %4070 = vmatprep.subr.mxu0 0.0
        %4071 = vmatpush1.msra.mxu0 0.0
        %4072 = vmatprep.subr.mxu0 0.0
        %4073 = vmatpush1.msra.mxu0 0.0
        %4074 = vmatprep.subr.mxu0 0.0
        %4075 = vmatpush1.msra.mxu0 0.0
        %4076 = vmatprep.subr.mxu0 0.0
        %4077 = vmatpush1.msra.mxu0 0.0
        %4078 = vmatprep.subr.mxu0 0.0
        %4079 = vmatpush1.msra.mxu0 0.0
        %4080 = vmatprep.subr.mxu0 0.0
        %4081 = vmatpush1.msra.mxu0 0.0
        %4082 = vmatprep.subr.mxu0 0.0
        %4083 = vmatpush1.msra.mxu0 0.0
        %4084 = vmatprep.subr.mxu0 0.0
        %4085 = vmatpush1.msra.mxu0 0.0
        %4086 = vmatprep.mubr.f32.mxu0 0.0
        %v4087 = vand.u32 %v4019, 4294901760
        %v4088 = vsub.f32 %v4019, %v4087
        %v4089 = vand.u32 %v4088, 4294901760
        %v4090 = vsub.f32 %v4088, %v4089
        %v4091 = vand.u32 %v4090, 4294901760
        %4092 = vmatmul.mubr.f32.gmra.mrb[0].mxu0 %v4091
        %v4093 = vpop.f32.mrb[0].mxu0
        %v4094 = vadd.f32 0.0, %v4093
        %v4095 = vpop.f32.mrb[0].mxu0
        %4096 = vdwg.mxu0
        %4097 = vmatprep.subr.mxu0 0.0
        %v4098 = vand.u32 %v2177, 4294901760
        %v4099 = vsub.f32 %v2177, %v4098
        %v4100 = vand.u32 %v4099, 4294901760
        %v4101 = vsub.f32 %v4099, %v4100
        %v4102 = vand.u32 %v4101, 4294901760
        %4103 = vmatpush1.msra.mxu0 %v4102
        %4104 = vmatprep.subr.mxu0 0.0
        %4105 = vmatpush1.msra.mxu0 0.0
        %4106 = vmatprep.subr.mxu0 0.0
        %4107 = vmatpush1.msra.mxu0 0.0
        %4108 = vmatprep.subr.mxu0 0.0
        %4109 = vmatpush1.msra.mxu0 0.0
        %4110 = vmatprep.subr.mxu0 0.0
        %4111 = vmatpush1.msra.mxu0 0.0
        %4112 = vmatprep.subr.mxu0 0.0
        %4113 = vmatpush1.msra.mxu0 0.0
        %4114 = vmatprep.subr.mxu0 0.0
        %4115 = vmatpush1.msra.mxu0 0.0
        %4116 = vmatprep.subr.mxu0 0.0
        %4117 = vmatpush1.msra.mxu0 0.0
        %4118 = vmatprep.subr.mxu0 0.0
        %4119 = vmatpush1.msra.mxu0 0.0
        %4120 = vmatprep.subr.mxu0 0.0
        %4121 = vmatpush1.msra.mxu0 0.0
        %4122 = vmatprep.subr.mxu0 0.0
        %4123 = vmatpush1.msra.mxu0 0.0
        %4124 = vmatprep.subr.mxu0 0.0
        %4125 = vmatpush1.msra.mxu0 0.0
        %4126 = vmatprep.subr.mxu0 0.0
        %4127 = vmatpush1.msra.mxu0 0.0
        %4128 = vmatprep.subr.mxu0 0.0
        %4129 = vmatpush1.msra.mxu0 0.0
        %4130 = vmatprep.subr.mxu0 0.0
        %4131 = vmatpush1.msra.mxu0 0.0
        %4132 = vmatprep.subr.mxu0 0.0
        %4133 = vmatpush1.msra.mxu0 0.0
        %4134 = vmatprep.subr.mxu0 0.0
        %4135 = vmatpush1.msra.mxu0 0.0
        %4136 = vmatprep.subr.mxu0 0.0
        %4137 = vmatpush1.msra.mxu0 0.0
        %4138 = vmatprep.subr.mxu0 0.0
        %4139 = vmatpush1.msra.mxu0 0.0
        %4140 = vmatprep.subr.mxu0 0.0
        %4141 = vmatpush1.msra.mxu0 0.0
        %4142 = vmatprep.subr.mxu0 0.0
        %4143 = vmatpush1.msra.mxu0 0.0
        %4144 = vmatprep.subr.mxu0 0.0
        %4145 = vmatpush1.msra.mxu0 0.0
        %4146 = vmatprep.subr.mxu0 0.0
        %4147 = vmatpush1.msra.mxu0 0.0
        %4148 = vmatprep.subr.mxu0 0.0
        %4149 = vmatpush1.msra.mxu0 0.0
        %4150 = vmatprep.subr.mxu0 0.0
        %4151 = vmatpush1.msra.mxu0 0.0
        %4152 = vmatprep.subr.mxu0 0.0
        %4153 = vmatpush1.msra.mxu0 0.0
        %4154 = vmatprep.subr.mxu0 0.0
        %4155 = vmatpush1.msra.mxu0 0.0
        %4156 = vmatprep.subr.mxu0 0.0
        %4157 = vmatpush1.msra.mxu0 0.0
        %4158 = vmatprep.subr.mxu0 0.0
        %4159 = vmatpush1.msra.mxu0 0.0
        %4160 = vmatprep.subr.mxu0 0.0
        %4161 = vmatpush1.msra.mxu0 0.0
        %4162 = vmatprep.subr.mxu0 0.0
        %4163 = vmatpush1.msra.mxu0 0.0
        %4164 = vmatprep.subr.mxu0 0.0
        %4165 = vmatpush1.msra.mxu0 0.0
        %4166 = vmatprep.mubr.f32.mxu0 0.0
        %v4167 = vand.u32 %v4019, 4294901760
        %4168 = vmatmul.mubr.f32.gmra.mrb[0].mxu0 %v4167
        %v4169 = vpop.f32.mrb[0].mxu0
        %v4170 = vadd.f32 %v4094, %v4169
        %v4171 = vpop.f32.mrb[0].mxu0
        %4172 = vdwg.mxu0
        %4173 = vmatprep.subr.mxu0 0.0
        %v4174 = vand.u32 %v2177, 4294901760
        %v4175 = vsub.f32 %v2177, %v4174
        %4176 = vmatpush1.msra.mxu0 %v4175
        %4177 = vmatprep.subr.mxu0 0.0
        %4178 = vmatpush1.msra.mxu0 0.0
        %4179 = vmatprep.subr.mxu0 0.0
        %4180 = vmatpush1.msra.mxu0 0.0
        %4181 = vmatprep.subr.mxu0 0.0
        %4182 = vmatpush1.msra.mxu0 0.0
        %4183 = vmatprep.subr.mxu0 0.0
        %4184 = vmatpush1.msra.mxu0 0.0
        %4185 = vmatprep.subr.mxu0 0.0
        %4186 = vmatpush1.msra.mxu0 0.0
        %4187 = vmatprep.subr.mxu0 0.0
        %4188 = vmatpush1.msra.mxu0 0.0
        %4189 = vmatprep.subr.mxu0 0.0
        %4190 = vmatpush1.msra.mxu0 0.0
        %4191 = vmatprep.subr.mxu0 0.0
        %4192 = vmatpush1.msra.mxu0 0.0
        %4193 = vmatprep.subr.mxu0 0.0
        %4194 = vmatpush1.msra.mxu0 0.0
        %4195 = vmatprep.subr.mxu0 0.0
        %4196 = vmatpush1.msra.mxu0 0.0
        %4197 = vmatprep.subr.mxu0 0.0
        %4198 = vmatpush1.msra.mxu0 0.0
        %4199 = vmatprep.subr.mxu0 0.0
        %4200 = vmatpush1.msra.mxu0 0.0
        %4201 = vmatprep.subr.mxu0 0.0
        %4202 = vmatpush1.msra.mxu0 0.0
        %4203 = vmatprep.subr.mxu0 0.0
        %4204 = vmatpush1.msra.mxu0 0.0
        %4205 = vmatprep.subr.mxu0 0.0
        %4206 = vmatpush1.msra.mxu0 0.0
        %4207 = vmatprep.subr.mxu0 0.0
        %4208 = vmatpush1.msra.mxu0 0.0
        %4209 = vmatprep.subr.mxu0 0.0
        %4210 = vmatpush1.msra.mxu0 0.0
        %4211 = vmatprep.subr.mxu0 0.0
        %4212 = vmatpush1.msra.mxu0 0.0
        %4213 = vmatprep.subr.mxu0 0.0
        %4214 = vmatpush1.msra.mxu0 0.0
        %4215 = vmatprep.subr.mxu0 0.0
        %4216 = vmatpush1.msra.mxu0 0.0
        %4217 = vmatprep.subr.mxu0 0.0
        %4218 = vmatpush1.msra.mxu0 0.0
        %4219 = vmatprep.subr.mxu0 0.0
        %4220 = vmatpush1.msra.mxu0 0.0
        %4221 = vmatprep.subr.mxu0 0.0
        %4222 = vmatpush1.msra.mxu0 0.0
        %4223 = vmatprep.subr.mxu0 0.0
        %4224 = vmatpush1.msra.mxu0 0.0
        %4225 = vmatprep.subr.mxu0 0.0
        %4226 = vmatpush1.msra.mxu0 0.0
        %4227 = vmatprep.subr.mxu0 0.0
        %4228 = vmatpush1.msra.mxu0 0.0
        %4229 = vmatprep.subr.mxu0 0.0
        %4230 = vmatpush1.msra.mxu0 0.0
        %4231 = vmatprep.subr.mxu0 0.0
        %4232 = vmatpush1.msra.mxu0 0.0
        %4233 = vmatprep.subr.mxu0 0.0
        %4234 = vmatpush1.msra.mxu0 0.0
        %4235 = vmatprep.subr.mxu0 0.0
        %4236 = vmatpush1.msra.mxu0 0.0
        %4237 = vmatprep.subr.mxu0 0.0
        %4238 = vmatpush1.msra.mxu0 0.0
        %4239 = vmatprep.mubr.f32.mxu0 0.0
        %v4240 = vand.u32 %v4019, 4294901760
        %v4241 = vsub.f32 %v4019, %v4240
        %4242 = vmatmul.mubr.f32.gmra.mrb[0].mxu0 %v4241
        %v4243 = vpop.f32.mrb[0].mxu0
        %v4244 = vadd.f32 %v4170, %v4243
        %v4245 = vpop.f32.mrb[0].mxu0
        %4246 = vdwg.mxu0
        %4247 = vmatprep.subr.mxu0 0.0
        %v4248 = vand.u32 %v2177, 4294901760
        %4249 = vmatpush1.msra.mxu0 %v4248
        %4250 = vmatprep.subr.mxu0 0.0
        %4251 = vmatpush1.msra.mxu0 0.0
        %4252 = vmatprep.subr.mxu0 0.0
        %4253 = vmatpush1.msra.mxu0 0.0
        %4254 = vmatprep.subr.mxu0 0.0
        %4255 = vmatpush1.msra.mxu0 0.0
        %4256 = vmatprep.subr.mxu0 0.0
        %4257 = vmatpush1.msra.mxu0 0.0
        %4258 = vmatprep.subr.mxu0 0.0
        %4259 = vmatpush1.msra.mxu0 0.0
        %4260 = vmatprep.subr.mxu0 0.0
        %4261 = vmatpush1.msra.mxu0 0.0
        %4262 = vmatprep.subr.mxu0 0.0
        %4263 = vmatpush1.msra.mxu0 0.0
        %4264 = vmatprep.subr.mxu0 0.0
        %4265 = vmatpush1.msra.mxu0 0.0
        %4266 = vmatprep.subr.mxu0 0.0
        %4267 = vmatpush1.msra.mxu0 0.0
        %4268 = vmatprep.subr.mxu0 0.0
        %4269 = vmatpush1.msra.mxu0 0.0
        %4270 = vmatprep.subr.mxu0 0.0
        %4271 = vmatpush1.msra.mxu0 0.0
        %4272 = vmatprep.subr.mxu0 0.0
        %4273 = vmatpush1.msra.mxu0 0.0
        %4274 = vmatprep.subr.mxu0 0.0
        %4275 = vmatpush1.msra.mxu0 0.0
        %4276 = vmatprep.subr.mxu0 0.0
        %4277 = vmatpush1.msra.mxu0 0.0
        %4278 = vmatprep.subr.mxu0 0.0
        %4279 = vmatpush1.msra.mxu0 0.0
        %4280 = vmatprep.subr.mxu0 0.0
        %4281 = vmatpush1.msra.mxu0 0.0
        %4282 = vmatprep.subr.mxu0 0.0
        %4283 = vmatpush1.msra.mxu0 0.0
        %4284 = vmatprep.subr.mxu0 0.0
        %4285 = vmatpush1.msra.mxu0 0.0
        %4286 = vmatprep.subr.mxu0 0.0
        %4287 = vmatpush1.msra.mxu0 0.0
        %4288 = vmatprep.subr.mxu0 0.0
        %4289 = vmatpush1.msra.mxu0 0.0
        %4290 = vmatprep.subr.mxu0 0.0
        %4291 = vmatpush1.msra.mxu0 0.0
        %4292 = vmatprep.subr.mxu0 0.0
        %4293 = vmatpush1.msra.mxu0 0.0
        %4294 = vmatprep.subr.mxu0 0.0
        %4295 = vmatpush1.msra.mxu0 0.0
        %4296 = vmatprep.subr.mxu0 0.0
        %4297 = vmatpush1.msra.mxu0 0.0
        %4298 = vmatprep.subr.mxu0 0.0
        %4299 = vmatpush1.msra.mxu0 0.0
        %4300 = vmatprep.subr.mxu0 0.0
        %4301 = vmatpush1.msra.mxu0 0.0
        %4302 = vmatprep.subr.mxu0 0.0
        %4303 = vmatpush1.msra.mxu0 0.0
        %4304 = vmatprep.subr.mxu0 0.0
        %4305 = vmatpush1.msra.mxu0 0.0
        %4306 = vmatprep.subr.mxu0 0.0
        %4307 = vmatpush1.msra.mxu0 0.0
        %4308 = vmatprep.subr.mxu0 0.0
        %4309 = vmatpush1.msra.mxu0 0.0
        %4310 = vmatprep.subr.mxu0 0.0
        %4311 = vmatpush1.msra.mxu0 0.0
        %4312 = vmatprep.mubr.f32.mxu0 0.0
        %v4313 = vand.u32 %v4019, 4294901760
        %v4314 = vsub.f32 %v4019, %v4313
        %v4315 = vand.u32 %v4314, 4294901760
        %4316 = vmatmul.mubr.f32.gmra.mrb[0].mxu0 %v4315
        %v4317 = vpop.f32.mrb[0].mxu0
        %v4318 = vadd.f32 %v4244, %v4317
        %v4319 = vpop.f32.mrb[0].mxu0
        %4320 = vdwg.mxu0
        %4321 = vmatprep.subr.mxu0 0.0
        %v4322 = vand.u32 %v2177, 4294901760
        %v4323 = vsub.f32 %v2177, %v4322
        %v4324 = vand.u32 %v4323, 4294901760
        %4325 = vmatpush1.msra.mxu0 %v4324
        %4326 = vmatprep.subr.mxu0 0.0
        %4327 = vmatpush1.msra.mxu0 0.0
        %4328 = vmatprep.subr.mxu0 0.0
        %4329 = vmatpush1.msra.mxu0 0.0
        %4330 = vmatprep.subr.mxu0 0.0
        %4331 = vmatpush1.msra.mxu0 0.0
        %4332 = vmatprep.subr.mxu0 0.0
        %4333 = vmatpush1.msra.mxu0 0.0
        %4334 = vmatprep.subr.mxu0 0.0
        %4335 = vmatpush1.msra.mxu0 0.0
        %4336 = vmatprep.subr.mxu0 0.0
        %4337 = vmatpush1.msra.mxu0 0.0
        %4338 = vmatprep.subr.mxu0 0.0
        %4339 = vmatpush1.msra.mxu0 0.0
        %4340 = vmatprep.subr.mxu0 0.0
        %4341 = vmatpush1.msra.mxu0 0.0
        %4342 = vmatprep.subr.mxu0 0.0
        %4343 = vmatpush1.msra.mxu0 0.0
        %4344 = vmatprep.subr.mxu0 0.0
        %4345 = vmatpush1.msra.mxu0 0.0
        %4346 = vmatprep.subr.mxu0 0.0
        %4347 = vmatpush1.msra.mxu0 0.0
        %4348 = vmatprep.subr.mxu0 0.0
        %4349 = vmatpush1.msra.mxu0 0.0
        %4350 = vmatprep.subr.mxu0 0.0
        %4351 = vmatpush1.msra.mxu0 0.0
        %4352 = vmatprep.subr.mxu0 0.0
        %4353 = vmatpush1.msra.mxu0 0.0
        %4354 = vmatprep.subr.mxu0 0.0
        %4355 = vmatpush1.msra.mxu0 0.0
        %4356 = vmatprep.subr.mxu0 0.0
        %4357 = vmatpush1.msra.mxu0 0.0
        %4358 = vmatprep.subr.mxu0 0.0
        %4359 = vmatpush1.msra.mxu0 0.0
        %4360 = vmatprep.subr.mxu0 0.0
        %4361 = vmatpush1.msra.mxu0 0.0
        %4362 = vmatprep.subr.mxu0 0.0
        %4363 = vmatpush1.msra.mxu0 0.0
        %4364 = vmatprep.subr.mxu0 0.0
        %4365 = vmatpush1.msra.mxu0 0.0
        %4366 = vmatprep.subr.mxu0 0.0
        %4367 = vmatpush1.msra.mxu0 0.0
        %4368 = vmatprep.subr.mxu0 0.0
        %4369 = vmatpush1.msra.mxu0 0.0
        %4370 = vmatprep.subr.mxu0 0.0
        %4371 = vmatpush1.msra.mxu0 0.0
        %4372 = vmatprep.subr.mxu0 0.0
        %4373 = vmatpush1.msra.mxu0 0.0
        %4374 = vmatprep.subr.mxu0 0.0
        %4375 = vmatpush1.msra.mxu0 0.0
        %4376 = vmatprep.subr.mxu0 0.0
        %4377 = vmatpush1.msra.mxu0 0.0
        %4378 = vmatprep.subr.mxu0 0.0
        %4379 = vmatpush1.msra.mxu0 0.0
        %4380 = vmatprep.subr.mxu0 0.0
        %4381 = vmatpush1.msra.mxu0 0.0
        %4382 = vmatprep.subr.mxu0 0.0
        %4383 = vmatpush1.msra.mxu0 0.0
        %4384 = vmatprep.subr.mxu0 0.0
        %4385 = vmatpush1.msra.mxu0 0.0
        %4386 = vmatprep.subr.mxu0 0.0
        %4387 = vmatpush1.msra.mxu0 0.0
        %4388 = vmatprep.mubr.f32.mxu0 0.0
        %v4389 = vand.u32 %v4019, 4294901760
        %4390 = vmatmul.mubr.f32.gmra.mrb[0].mxu0 %v4389
        %v4391 = vpop.f32.mrb[0].mxu0
        %v4392 = vadd.f32 %v4318, %v4391
        %v4393 = vpop.f32.mrb[0].mxu0
        %4394 = vdwg.mxu0
        %4395 = vmatprep.subr.mxu0 0.0
        %v4396 = vand.u32 %v2177, 4294901760
        %4397 = vmatpush1.msra.mxu0 %v4396
        %4398 = vmatprep.subr.mxu0 0.0
        %4399 = vmatpush1.msra.mxu0 0.0
        %4400 = vmatprep.subr.mxu0 0.0
        %4401 = vmatpush1.msra.mxu0 0.0
        %4402 = vmatprep.subr.mxu0 0.0
        %4403 = vmatpush1.msra.mxu0 0.0
        %4404 = vmatprep.subr.mxu0 0.0
        %4405 = vmatpush1.msra.mxu0 0.0
        %4406 = vmatprep.subr.mxu0 0.0
        %4407 = vmatpush1.msra.mxu0 0.0
        %4408 = vmatprep.subr.mxu0 0.0
        %4409 = vmatpush1.msra.mxu0 0.0
        %4410 = vmatprep.subr.mxu0 0.0
        %4411 = vmatpush1.msra.mxu0 0.0
        %4412 = vmatprep.subr.mxu0 0.0
        %4413 = vmatpush1.msra.mxu0 0.0
        %4414 = vmatprep.subr.mxu0 0.0
        %4415 = vmatpush1.msra.mxu0 0.0
        %4416 = vmatprep.subr.mxu0 0.0
        %4417 = vmatpush1.msra.mxu0 0.0
        %4418 = vmatprep.subr.mxu0 0.0
        %4419 = vmatpush1.msra.mxu0 0.0
        %4420 = vmatprep.subr.mxu0 0.0
        %4421 = vmatpush1.msra.mxu0 0.0
        %4422 = vmatprep.subr.mxu0 0.0
        %4423 = vmatpush1.msra.mxu0 0.0
        %4424 = vmatprep.subr.mxu0 0.0
        %4425 = vmatpush1.msra.mxu0 0.0
        %4426 = vmatprep.subr.mxu0 0.0
        %4427 = vmatpush1.msra.mxu0 0.0
        %4428 = vmatprep.subr.mxu0 0.0
        %4429 = vmatpush1.msra.mxu0 0.0
        %4430 = vmatprep.subr.mxu0 0.0
        %4431 = vmatpush1.msra.mxu0 0.0
        %4432 = vmatprep.subr.mxu0 0.0
        %4433 = vmatpush1.msra.mxu0 0.0
        %4434 = vmatprep.subr.mxu0 0.0
        %4435 = vmatpush1.msra.mxu0 0.0
        %4436 = vmatprep.subr.mxu0 0.0
        %4437 = vmatpush1.msra.mxu0 0.0
        %4438 = vmatprep.subr.mxu0 0.0
        %4439 = vmatpush1.msra.mxu0 0.0
        %4440 = vmatprep.subr.mxu0 0.0
        %4441 = vmatpush1.msra.mxu0 0.0
        %4442 = vmatprep.subr.mxu0 0.0
        %4443 = vmatpush1.msra.mxu0 0.0
        %4444 = vmatprep.subr.mxu0 0.0
        %4445 = vmatpush1.msra.mxu0 0.0
        %4446 = vmatprep.subr.mxu0 0.0
        %4447 = vmatpush1.msra.mxu0 0.0
        %4448 = vmatprep.subr.mxu0 0.0
        %4449 = vmatpush1.msra.mxu0 0.0
        %4450 = vmatprep.subr.mxu0 0.0
        %4451 = vmatpush1.msra.mxu0 0.0
        %4452 = vmatprep.subr.mxu0 0.0
        %4453 = vmatpush1.msra.mxu0 0.0
        %4454 = vmatprep.subr.mxu0 0.0
        %4455 = vmatpush1.msra.mxu0 0.0
        %4456 = vmatprep.subr.mxu0 0.0
        %4457 = vmatpush1.msra.mxu0 0.0
        %4458 = vmatprep.subr.mxu0 0.0
        %4459 = vmatpush1.msra.mxu0 0.0
        %4460 = vmatprep.mubr.f32.mxu0 0.0
        %v4461 = vand.u32 %v4019, 4294901760
        %4462 = vmatmul.mubr.f32.gmra.mrb[0].mxu0 %v4461
        %v4463 = vpop.f32.mrb[0].mxu0
        %v4464 = vadd.f32 %v4392, %v4463
        %v4465 = vpop.f32.mrb[0].mxu0
        %4466 = vdwg.mxu0
        %v4468 = vsel %vm2185, %v3096, 0
        %4470 = vmatprep.subr.mxu0 0.0
        %v4471 = vand.u32 %v2176, 4294901760
        %4472 = vmatpush1.msra.mxu0 %v4471
        %4473 = vmatprep.subr.mxu0 0.0
        %4474 = vmatpush1.msra.mxu0 0.0
        %4475 = vmatprep.subr.mxu0 0.0
        %4476 = vmatpush1.msra.mxu0 0.0
        %4477 = vmatprep.subr.mxu0 0.0
        %4478 = vmatpush1.msra.mxu0 0.0
        %4479 = vmatprep.subr.mxu0 0.0
        %4480 = vmatpush1.msra.mxu0 0.0
        %4481 = vmatprep.subr.mxu0 0.0
        %4482 = vmatpush1.msra.mxu0 0.0
        %4483 = vmatprep.subr.mxu0 0.0
        %4484 = vmatpush1.msra.mxu0 0.0
        %4485 = vmatprep.subr.mxu0 0.0
        %4486 = vmatpush1.msra.mxu0 0.0
        %4487 = vmatprep.subr.mxu0 0.0
        %4488 = vmatpush1.msra.mxu0 0.0
        %4489 = vmatprep.subr.mxu0 0.0
        %4490 = vmatpush1.msra.mxu0 0.0
        %4491 = vmatprep.subr.mxu0 0.0
        %4492 = vmatpush1.msra.mxu0 0.0
        %4493 = vmatprep.subr.mxu0 0.0
        %4494 = vmatpush1.msra.mxu0 0.0
        %4495 = vmatprep.subr.mxu0 0.0
        %4496 = vmatpush1.msra.mxu0 0.0
        %4497 = vmatprep.subr.mxu0 0.0
        %4498 = vmatpush1.msra.mxu0 0.0
        %4499 = vmatprep.subr.mxu0 0.0
        %4500 = vmatpush1.msra.mxu0 0.0
        %4501 = vmatprep.subr.mxu0 0.0
        %4502 = vmatpush1.msra.mxu0 0.0
        %4503 = vmatprep.subr.mxu0 0.0
        %4504 = vmatpush1.msra.mxu0 0.0
        %4505 = vmatprep.subr.mxu0 0.0
        %4506 = vmatpush1.msra.mxu0 0.0
        %4507 = vmatprep.subr.mxu0 0.0
        %4508 = vmatpush1.msra.mxu0 0.0
        %4509 = vmatprep.subr.mxu0 0.0
        %4510 = vmatpush1.msra.mxu0 0.0
        %4511 = vmatprep.subr.mxu0 0.0
        %4512 = vmatpush1.msra.mxu0 0.0
        %4513 = vmatprep.subr.mxu0 0.0
        %4514 = vmatpush1.msra.mxu0 0.0
        %4515 = vmatprep.subr.mxu0 0.0
        %4516 = vmatpush1.msra.mxu0 0.0
        %4517 = vmatprep.subr.mxu0 0.0
        %4518 = vmatpush1.msra.mxu0 0.0
        %4519 = vmatprep.subr.mxu0 0.0
        %4520 = vmatpush1.msra.mxu0 0.0
        %4521 = vmatprep.subr.mxu0 0.0
        %4522 = vmatpush1.msra.mxu0 0.0
        %4523 = vmatprep.subr.mxu0 0.0
        %4524 = vmatpush1.msra.mxu0 0.0
        %4525 = vmatprep.subr.mxu0 0.0
        %4526 = vmatpush1.msra.mxu0 0.0
        %4527 = vmatprep.subr.mxu0 0.0
        %4528 = vmatpush1.msra.mxu0 0.0
        %4529 = vmatprep.subr.mxu0 0.0
        %4530 = vmatpush1.msra.mxu0 0.0
        %4531 = vmatprep.subr.mxu0 0.0
        %4532 = vmatpush1.msra.mxu0 0.0
        %4533 = vmatprep.subr.mxu0 0.0
        %4534 = vmatpush1.msra.mxu0 0.0
        %4535 = vmatprep.mubr.f32.mxu0 0.0
        %v4536 = vand.u32 %v4468, 4294901760
        %v4537 = vsub.f32 %v4468, %v4536
        %v4538 = vand.u32 %v4537, 4294901760
        %v4539 = vsub.f32 %v4537, %v4538
        %v4540 = vand.u32 %v4539, 4294901760
        %4541 = vmatmul.mubr.f32.gmra.mrb[0].mxu0 %v4540
        %v4542 = vpop.f32.mrb[0].mxu0
        %v4543 = vadd.f32 %v4464, %v4542
        %v4544 = vpop.f32.mrb[0].mxu0
        %4545 = vdwg.mxu0
        %4546 = vmatprep.subr.mxu0 0.0
        %v4547 = vand.u32 %v2176, 4294901760
        %v4548 = vsub.f32 %v2176, %v4547
        %v4549 = vand.u32 %v4548, 4294901760
        %v4550 = vsub.f32 %v4548, %v4549
        %v4551 = vand.u32 %v4550, 4294901760
        %4552 = vmatpush1.msra.mxu0 %v4551
        %4553 = vmatprep.subr.mxu0 0.0
        %4554 = vmatpush1.msra.mxu0 0.0
        %4555 = vmatprep.subr.mxu0 0.0
        %4556 = vmatpush1.msra.mxu0 0.0
        %4557 = vmatprep.subr.mxu0 0.0
        %4558 = vmatpush1.msra.mxu0 0.0
        %4559 = vmatprep.subr.mxu0 0.0
        %4560 = vmatpush1.msra.mxu0 0.0
        %4561 = vmatprep.subr.mxu0 0.0
        %4562 = vmatpush1.msra.mxu0 0.0
        %4563 = vmatprep.subr.mxu0 0.0
        %4564 = vmatpush1.msra.mxu0 0.0
        %4565 = vmatprep.subr.mxu0 0.0
        %4566 = vmatpush1.msra.mxu0 0.0
        %4567 = vmatprep.subr.mxu0 0.0
        %4568 = vmatpush1.msra.mxu0 0.0
        %4569 = vmatprep.subr.mxu0 0.0
        %4570 = vmatpush1.msra.mxu0 0.0
        %4571 = vmatprep.subr.mxu0 0.0
        %4572 = vmatpush1.msra.mxu0 0.0
        %4573 = vmatprep.subr.mxu0 0.0
        %4574 = vmatpush1.msra.mxu0 0.0
        %4575 = vmatprep.subr.mxu0 0.0
        %4576 = vmatpush1.msra.mxu0 0.0
        %4577 = vmatprep.subr.mxu0 0.0
        %4578 = vmatpush1.msra.mxu0 0.0
        %4579 = vmatprep.subr.mxu0 0.0
        %4580 = vmatpush1.msra.mxu0 0.0
        %4581 = vmatprep.subr.mxu0 0.0
        %4582 = vmatpush1.msra.mxu0 0.0
        %4583 = vmatprep.subr.mxu0 0.0
        %4584 = vmatpush1.msra.mxu0 0.0
        %4585 = vmatprep.subr.mxu0 0.0
        %4586 = vmatpush1.msra.mxu0 0.0
        %4587 = vmatprep.subr.mxu0 0.0
        %4588 = vmatpush1.msra.mxu0 0.0
        %4589 = vmatprep.subr.mxu0 0.0
        %4590 = vmatpush1.msra.mxu0 0.0
        %4591 = vmatprep.subr.mxu0 0.0
        %4592 = vmatpush1.msra.mxu0 0.0
        %4593 = vmatprep.subr.mxu0 0.0
        %4594 = vmatpush1.msra.mxu0 0.0
        %4595 = vmatprep.subr.mxu0 0.0
        %4596 = vmatpush1.msra.mxu0 0.0
        %4597 = vmatprep.subr.mxu0 0.0
        %4598 = vmatpush1.msra.mxu0 0.0
        %4599 = vmatprep.subr.mxu0 0.0
        %4600 = vmatpush1.msra.mxu0 0.0
        %4601 = vmatprep.subr.mxu0 0.0
        %4602 = vmatpush1.msra.mxu0 0.0
        %4603 = vmatprep.subr.mxu0 0.0
        %4604 = vmatpush1.msra.mxu0 0.0
        %4605 = vmatprep.subr.mxu0 0.0
        %4606 = vmatpush1.msra.mxu0 0.0
        %4607 = vmatprep.subr.mxu0 0.0
        %4608 = vmatpush1.msra.mxu0 0.0
        %4609 = vmatprep.subr.mxu0 0.0
        %4610 = vmatpush1.msra.mxu0 0.0
        %4611 = vmatprep.subr.mxu0 0.0
        %4612 = vmatpush1.msra.mxu0 0.0
        %4613 = vmatprep.subr.mxu0 0.0
        %4614 = vmatpush1.msra.mxu0 0.0
        %4615 = vmatprep.mubr.f32.mxu0 0.0
        %v4616 = vand.u32 %v4468, 4294901760
        %4617 = vmatmul.mubr.f32.gmra.mrb[0].mxu0 %v4616
        %v4618 = vpop.f32.mrb[0].mxu0
        %v4619 = vadd.f32 %v4543, %v4618
        %v4620 = vpop.f32.mrb[0].mxu0
        %4621 = vdwg.mxu0
        %4622 = vmatprep.subr.mxu0 0.0
        %v4623 = vand.u32 %v2176, 4294901760
        %v4624 = vsub.f32 %v2176, %v4623
        %4625 = vmatpush1.msra.mxu0 %v4624
        %4626 = vmatprep.subr.mxu0 0.0
        %4627 = vmatpush1.msra.mxu0 0.0
        %4628 = vmatprep.subr.mxu0 0.0
        %4629 = vmatpush1.msra.mxu0 0.0
        %4630 = vmatprep.subr.mxu0 0.0
        %4631 = vmatpush1.msra.mxu0 0.0
        %4632 = vmatprep.subr.mxu0 0.0
        %4633 = vmatpush1.msra.mxu0 0.0
        %4634 = vmatprep.subr.mxu0 0.0
        %4635 = vmatpush1.msra.mxu0 0.0
        %4636 = vmatprep.subr.mxu0 0.0
        %4637 = vmatpush1.msra.mxu0 0.0
        %4638 = vmatprep.subr.mxu0 0.0
        %4639 = vmatpush1.msra.mxu0 0.0
        %4640 = vmatprep.subr.mxu0 0.0
        %4641 = vmatpush1.msra.mxu0 0.0
        %4642 = vmatprep.subr.mxu0 0.0
        %4643 = vmatpush1.msra.mxu0 0.0
        %4644 = vmatprep.subr.mxu0 0.0
        %4645 = vmatpush1.msra.mxu0 0.0
        %4646 = vmatprep.subr.mxu0 0.0
        %4647 = vmatpush1.msra.mxu0 0.0
        %4648 = vmatprep.subr.mxu0 0.0
        %4649 = vmatpush1.msra.mxu0 0.0
        %4650 = vmatprep.subr.mxu0 0.0
        %4651 = vmatpush1.msra.mxu0 0.0
        %4652 = vmatprep.subr.mxu0 0.0
        %4653 = vmatpush1.msra.mxu0 0.0
        %4654 = vmatprep.subr.mxu0 0.0
        %4655 = vmatpush1.msra.mxu0 0.0
        %4656 = vmatprep.subr.mxu0 0.0
        %4657 = vmatpush1.msra.mxu0 0.0
        %4658 = vmatprep.subr.mxu0 0.0
        %4659 = vmatpush1.msra.mxu0 0.0
        %4660 = vmatprep.subr.mxu0 0.0
        %4661 = vmatpush1.msra.mxu0 0.0
        %4662 = vmatprep.subr.mxu0 0.0
        %4663 = vmatpush1.msra.mxu0 0.0
        %4664 = vmatprep.subr.mxu0 0.0
        %4665 = vmatpush1.msra.mxu0 0.0
        %4666 = vmatprep.subr.mxu0 0.0
        %4667 = vmatpush1.msra.mxu0 0.0
        %4668 = vmatprep.subr.mxu0 0.0
        %4669 = vmatpush1.msra.mxu0 0.0
        %4670 = vmatprep.subr.mxu0 0.0
        %4671 = vmatpush1.msra.mxu0 0.0
        %4672 = vmatprep.subr.mxu0 0.0
        %4673 = vmatpush1.msra.mxu0 0.0
        %4674 = vmatprep.subr.mxu0 0.0
        %4675 = vmatpush1.msra.mxu0 0.0
        %4676 = vmatprep.subr.mxu0 0.0
        %4677 = vmatpush1.msra.mxu0 0.0
        %4678 = vmatprep.subr.mxu0 0.0
        %4679 = vmatpush1.msra.mxu0 0.0
        %4680 = vmatprep.subr.mxu0 0.0
        %4681 = vmatpush1.msra.mxu0 0.0
        %4682 = vmatprep.subr.mxu0 0.0
        %4683 = vmatpush1.msra.mxu0 0.0
        %4684 = vmatprep.subr.mxu0 0.0
        %4685 = vmatpush1.msra.mxu0 0.0
        %4686 = vmatprep.subr.mxu0 0.0
        %4687 = vmatpush1.msra.mxu0 0.0
        %4688 = vmatprep.mubr.f32.mxu0 0.0
        %v4689 = vand.u32 %v4468, 4294901760
        %v4690 = vsub.f32 %v4468, %v4689
        %4691 = vmatmul.mubr.f32.gmra.mrb[0].mxu0 %v4690
        %v4692 = vpop.f32.mrb[0].mxu0
        %v4693 = vadd.f32 %v4619, %v4692
        %v4694 = vpop.f32.mrb[0].mxu0
        %4695 = vdwg.mxu0
        %4696 = vmatprep.subr.mxu0 0.0
        %v4697 = vand.u32 %v2176, 4294901760
        %4698 = vmatpush1.msra.mxu0 %v4697
        %4699 = vmatprep.subr.mxu0 0.0
        %4700 = vmatpush1.msra.mxu0 0.0
        %4701 = vmatprep.subr.mxu0 0.0
        %4702 = vmatpush1.msra.mxu0 0.0
        %4703 = vmatprep.subr.mxu0 0.0
        %4704 = vmatpush1.msra.mxu0 0.0
        %4705 = vmatprep.subr.mxu0 0.0
        %4706 = vmatpush1.msra.mxu0 0.0
        %4707 = vmatprep.subr.mxu0 0.0
        %4708 = vmatpush1.msra.mxu0 0.0
        %4709 = vmatprep.subr.mxu0 0.0
        %4710 = vmatpush1.msra.mxu0 0.0
        %4711 = vmatprep.subr.mxu0 0.0
        %4712 = vmatpush1.msra.mxu0 0.0
        %4713 = vmatprep.subr.mxu0 0.0
        %4714 = vmatpush1.msra.mxu0 0.0
        %4715 = vmatprep.subr.mxu0 0.0
        %4716 = vmatpush1.msra.mxu0 0.0
        %4717 = vmatprep.subr.mxu0 0.0
        %4718 = vmatpush1.msra.mxu0 0.0
        %4719 = vmatprep.subr.mxu0 0.0
        %4720 = vmatpush1.msra.mxu0 0.0
        %4721 = vmatprep.subr.mxu0 0.0
        %4722 = vmatpush1.msra.mxu0 0.0
        %4723 = vmatprep.subr.mxu0 0.0
        %4724 = vmatpush1.msra.mxu0 0.0
        %4725 = vmatprep.subr.mxu0 0.0
        %4726 = vmatpush1.msra.mxu0 0.0
        %4727 = vmatprep.subr.mxu0 0.0
        %4728 = vmatpush1.msra.mxu0 0.0
        %4729 = vmatprep.subr.mxu0 0.0
        %4730 = vmatpush1.msra.mxu0 0.0
        %4731 = vmatprep.subr.mxu0 0.0
        %4732 = vmatpush1.msra.mxu0 0.0
        %4733 = vmatprep.subr.mxu0 0.0
        %4734 = vmatpush1.msra.mxu0 0.0
        %4735 = vmatprep.subr.mxu0 0.0
        %4736 = vmatpush1.msra.mxu0 0.0
        %4737 = vmatprep.subr.mxu0 0.0
        %4738 = vmatpush1.msra.mxu0 0.0
        %4739 = vmatprep.subr.mxu0 0.0
        %4740 = vmatpush1.msra.mxu0 0.0
        %4741 = vmatprep.subr.mxu0 0.0
        %4742 = vmatpush1.msra.mxu0 0.0
        %4743 = vmatprep.subr.mxu0 0.0
        %4744 = vmatpush1.msra.mxu0 0.0
        %4745 = vmatprep.subr.mxu0 0.0
        %4746 = vmatpush1.msra.mxu0 0.0
        %4747 = vmatprep.subr.mxu0 0.0
        %4748 = vmatpush1.msra.mxu0 0.0
        %4749 = vmatprep.subr.mxu0 0.0
        %4750 = vmatpush1.msra.mxu0 0.0
        %4751 = vmatprep.subr.mxu0 0.0
        %4752 = vmatpush1.msra.mxu0 0.0
        %4753 = vmatprep.subr.mxu0 0.0
        %4754 = vmatpush1.msra.mxu0 0.0
        %4755 = vmatprep.subr.mxu0 0.0
        %4756 = vmatpush1.msra.mxu0 0.0
        %4757 = vmatprep.subr.mxu0 0.0
        %4758 = vmatpush1.msra.mxu0 0.0
        %4759 = vmatprep.subr.mxu0 0.0
        %4760 = vmatpush1.msra.mxu0 0.0
        %4761 = vmatprep.mubr.f32.mxu0 0.0
        %v4762 = vand.u32 %v4468, 4294901760
        %v4763 = vsub.f32 %v4468, %v4762
        %v4764 = vand.u32 %v4763, 4294901760
        %4765 = vmatmul.mubr.f32.gmra.mrb[0].mxu0 %v4764
        %v4766 = vpop.f32.mrb[0].mxu0
        %v4767 = vadd.f32 %v4693, %v4766
        %v4768 = vpop.f32.mrb[0].mxu0
        %4769 = vdwg.mxu0
        %4770 = vmatprep.subr.mxu0 0.0
        %v4771 = vand.u32 %v2176, 4294901760
        %v4772 = vsub.f32 %v2176, %v4771
        %v4773 = vand.u32 %v4772, 4294901760
        %4774 = vmatpush1.msra.mxu0 %v4773
        %4775 = vmatprep.subr.mxu0 0.0
        %4776 = vmatpush1.msra.mxu0 0.0
        %4777 = vmatprep.subr.mxu0 0.0
        %4778 = vmatpush1.msra.mxu0 0.0
        %4779 = vmatprep.subr.mxu0 0.0
        %4780 = vmatpush1.msra.mxu0 0.0
        %4781 = vmatprep.subr.mxu0 0.0
        %4782 = vmatpush1.msra.mxu0 0.0
        %4783 = vmatprep.subr.mxu0 0.0
        %4784 = vmatpush1.msra.mxu0 0.0
        %4785 = vmatprep.subr.mxu0 0.0
        %4786 = vmatpush1.msra.mxu0 0.0
        %4787 = vmatprep.subr.mxu0 0.0
        %4788 = vmatpush1.msra.mxu0 0.0
        %4789 = vmatprep.subr.mxu0 0.0
        %4790 = vmatpush1.msra.mxu0 0.0
        %4791 = vmatprep.subr.mxu0 0.0
        %4792 = vmatpush1.msra.mxu0 0.0
        %4793 = vmatprep.subr.mxu0 0.0
        %4794 = vmatpush1.msra.mxu0 0.0
        %4795 = vmatprep.subr.mxu0 0.0
        %4796 = vmatpush1.msra.mxu0 0.0
        %4797 = vmatprep.subr.mxu0 0.0
        %4798 = vmatpush1.msra.mxu0 0.0
        %4799 = vmatprep.subr.mxu0 0.0
        %4800 = vmatpush1.msra.mxu0 0.0
        %4801 = vmatprep.subr.mxu0 0.0
        %4802 = vmatpush1.msra.mxu0 0.0
        %4803 = vmatprep.subr.mxu0 0.0
        %4804 = vmatpush1.msra.mxu0 0.0
        %4805 = vmatprep.subr.mxu0 0.0
        %4806 = vmatpush1.msra.mxu0 0.0
        %4807 = vmatprep.subr.mxu0 0.0
        %4808 = vmatpush1.msra.mxu0 0.0
        %4809 = vmatprep.subr.mxu0 0.0
        %4810 = vmatpush1.msra.mxu0 0.0
        %4811 = vmatprep.subr.mxu0 0.0
        %4812 = vmatpush1.msra.mxu0 0.0
        %4813 = vmatprep.subr.mxu0 0.0
        %4814 = vmatpush1.msra.mxu0 0.0
        %4815 = vmatprep.subr.mxu0 0.0
        %4816 = vmatpush1.msra.mxu0 0.0
        %4817 = vmatprep.subr.mxu0 0.0
        %4818 = vmatpush1.msra.mxu0 0.0
        %4819 = vmatprep.subr.mxu0 0.0
        %4820 = vmatpush1.msra.mxu0 0.0
        %4821 = vmatprep.subr.mxu0 0.0
        %4822 = vmatpush1.msra.mxu0 0.0
        %4823 = vmatprep.subr.mxu0 0.0
        %4824 = vmatpush1.msra.mxu0 0.0
        %4825 = vmatprep.subr.mxu0 0.0
        %4826 = vmatpush1.msra.mxu0 0.0
        %4827 = vmatprep.subr.mxu0 0.0
        %4828 = vmatpush1.msra.mxu0 0.0
        %4829 = vmatprep.subr.mxu0 0.0
        %4830 = vmatpush1.msra.mxu0 0.0
        %4831 = vmatprep.subr.mxu0 0.0
        %4832 = vmatpush1.msra.mxu0 0.0
        %4833 = vmatprep.subr.mxu0 0.0
        %4834 = vmatpush1.msra.mxu0 0.0
        %4835 = vmatprep.subr.mxu0 0.0
        %4836 = vmatpush1.msra.mxu0 0.0
        %4837 = vmatprep.mubr.f32.mxu0 0.0
        %v4838 = vand.u32 %v4468, 4294901760
        %4839 = vmatmul.mubr.f32.gmra.mrb[0].mxu0 %v4838
        %v4840 = vpop.f32.mrb[0].mxu0
        %v4841 = vadd.f32 %v4767, %v4840
        %v4842 = vpop.f32.mrb[0].mxu0
        %4843 = vdwg.mxu0
        %4844 = vmatprep.subr.mxu0 0.0
        %v4845 = vand.u32 %v2176, 4294901760
        %4846 = vmatpush1.msra.mxu0 %v4845
        %4847 = vmatprep.subr.mxu0 0.0
        %4848 = vmatpush1.msra.mxu0 0.0
        %4849 = vmatprep.subr.mxu0 0.0
        %4850 = vmatpush1.msra.mxu0 0.0
        %4851 = vmatprep.subr.mxu0 0.0
        %4852 = vmatpush1.msra.mxu0 0.0
        %4853 = vmatprep.subr.mxu0 0.0
        %4854 = vmatpush1.msra.mxu0 0.0
        %4855 = vmatprep.subr.mxu0 0.0
        %4856 = vmatpush1.msra.mxu0 0.0
        %4857 = vmatprep.subr.mxu0 0.0
        %4858 = vmatpush1.msra.mxu0 0.0
        %4859 = vmatprep.subr.mxu0 0.0
        %4860 = vmatpush1.msra.mxu0 0.0
        %4861 = vmatprep.subr.mxu0 0.0
        %4862 = vmatpush1.msra.mxu0 0.0
        %4863 = vmatprep.subr.mxu0 0.0
        %4864 = vmatpush1.msra.mxu0 0.0
        %4865 = vmatprep.subr.mxu0 0.0
        %4866 = vmatpush1.msra.mxu0 0.0
        %4867 = vmatprep.subr.mxu0 0.0
        %4868 = vmatpush1.msra.mxu0 0.0
        %4869 = vmatprep.subr.mxu0 0.0
        %4870 = vmatpush1.msra.mxu0 0.0
        %4871 = vmatprep.subr.mxu0 0.0
        %4872 = vmatpush1.msra.mxu0 0.0
        %4873 = vmatprep.subr.mxu0 0.0
        %4874 = vmatpush1.msra.mxu0 0.0
        %4875 = vmatprep.subr.mxu0 0.0
        %4876 = vmatpush1.msra.mxu0 0.0
        %4877 = vmatprep.subr.mxu0 0.0
        %4878 = vmatpush1.msra.mxu0 0.0
        %4879 = vmatprep.subr.mxu0 0.0
        %4880 = vmatpush1.msra.mxu0 0.0
        %4881 = vmatprep.subr.mxu0 0.0
        %4882 = vmatpush1.msra.mxu0 0.0
        %4883 = vmatprep.subr.mxu0 0.0
        %4884 = vmatpush1.msra.mxu0 0.0
        %4885 = vmatprep.subr.mxu0 0.0
        %4886 = vmatpush1.msra.mxu0 0.0
        %4887 = vmatprep.subr.mxu0 0.0
        %4888 = vmatpush1.msra.mxu0 0.0
        %4889 = vmatprep.subr.mxu0 0.0
        %4890 = vmatpush1.msra.mxu0 0.0
        %4891 = vmatprep.subr.mxu0 0.0
        %4892 = vmatpush1.msra.mxu0 0.0
        %4893 = vmatprep.subr.mxu0 0.0
        %4894 = vmatpush1.msra.mxu0 0.0
        %4895 = vmatprep.subr.mxu0 0.0
        %4896 = vmatpush1.msra.mxu0 0.0
        %4897 = vmatprep.subr.mxu0 0.0
        %4898 = vmatpush1.msra.mxu0 0.0
        %4899 = vmatprep.subr.mxu0 0.0
        %4900 = vmatpush1.msra.mxu0 0.0
        %4901 = vmatprep.subr.mxu0 0.0
        %4902 = vmatpush1.msra.mxu0 0.0
        %4903 = vmatprep.subr.mxu0 0.0
        %4904 = vmatpush1.msra.mxu0 0.0
        %4905 = vmatprep.subr.mxu0 0.0
        %4906 = vmatpush1.msra.mxu0 0.0
        %4907 = vmatprep.subr.mxu0 0.0
        %4908 = vmatpush1.msra.mxu0 0.0
        %4909 = vmatprep.mubr.f32.mxu0 0.0
        %v4910 = vand.u32 %v4468, 4294901760
        %4911 = vmatmul.mubr.f32.gmra.mrb[0].mxu0 %v4910
        %v4912 = vpop.f32.mrb[0].mxu0
        %v4913 = vadd.f32 %v4841, %v4912
        %v4914 = vpop.f32.mrb[0].mxu0
        %4915 = vdwg.mxu0
        %4916 = vrot.lane.b32.xlu0 %v2184, 112
        %v4917 = vpop.permute.xlu0 %4916
        %4918 = vrot.lane.b32.xlu0 %v1533, 112
        %v4919 = vpop.permute.xlu0 %4918
        %v4920 = vsel %vm2185, %v4917, 0
        %v4922 = vsel %vm2185, %v4919, 0
        %4924 = vmatprep.subr.mxu0 0.0
        %v4925 = vand.u32 %v4922, 4294901760
        %4926 = vmatpush1.xpose.msra.mxu0 %v4925
        %4927 = vmatprep.subr.mxu0 0.0
        %4928 = vmatpush1.xpose.msra.mxu0 0.0
        %4929 = vmatprep.subr.mxu0 0.0
        %4930 = vmatpush1.xpose.msra.mxu0 0.0
        %4931 = vmatprep.subr.mxu0 0.0
        %4932 = vmatpush1.xpose.msra.mxu0 0.0
        %4933 = vmatprep.subr.mxu0 0.0
        %4934 = vmatpush1.xpose.msra.mxu0 0.0
        %4935 = vmatprep.subr.mxu0 0.0
        %4936 = vmatpush1.xpose.msra.mxu0 0.0
        %4937 = vmatprep.subr.mxu0 0.0
        %4938 = vmatpush1.xpose.msra.mxu0 0.0
        %4939 = vmatprep.subr.mxu0 0.0
        %4940 = vmatpush1.xpose.msra.mxu0 0.0
        %4941 = vmatprep.subr.mxu0 0.0
        %4942 = vmatpush1.xpose.msra.mxu0 0.0
        %4943 = vmatprep.subr.mxu0 0.0
        %4944 = vmatpush1.xpose.msra.mxu0 0.0
        %4945 = vmatprep.subr.mxu0 0.0
        %4946 = vmatpush1.xpose.msra.mxu0 0.0
        %4947 = vmatprep.subr.mxu0 0.0
        %4948 = vmatpush1.xpose.msra.mxu0 0.0
        %4949 = vmatprep.subr.mxu0 0.0
        %4950 = vmatpush1.xpose.msra.mxu0 0.0
        %4951 = vmatprep.subr.mxu0 0.0
        %4952 = vmatpush1.xpose.msra.mxu0 0.0
        %4953 = vmatprep.subr.mxu0 0.0
        %4954 = vmatpush1.xpose.msra.mxu0 0.0
        %4955 = vmatprep.subr.mxu0 0.0
        %4956 = vmatpush1.xpose.msra.mxu0 0.0
        %4957 = vmatprep.subr.mxu0 0.0
        %4958 = vmatpush1.xpose.msra.mxu0 0.0
        %4959 = vmatprep.subr.mxu0 0.0
        %4960 = vmatpush1.xpose.msra.mxu0 0.0
        %4961 = vmatprep.subr.mxu0 0.0
        %4962 = vmatpush1.xpose.msra.mxu0 0.0
        %4963 = vmatprep.subr.mxu0 0.0
        %4964 = vmatpush1.xpose.msra.mxu0 0.0
        %4965 = vmatprep.subr.mxu0 0.0
        %4966 = vmatpush1.xpose.msra.mxu0 0.0
        %4967 = vmatprep.subr.mxu0 0.0
        %4968 = vmatpush1.xpose.msra.mxu0 0.0
        %4969 = vmatprep.subr.mxu0 0.0
        %4970 = vmatpush1.xpose.msra.mxu0 0.0
        %4971 = vmatprep.subr.mxu0 0.0
        %4972 = vmatpush1.xpose.msra.mxu0 0.0
        %4973 = vmatprep.subr.mxu0 0.0
        %4974 = vmatpush1.xpose.msra.mxu0 0.0
        %4975 = vmatprep.subr.mxu0 0.0
        %4976 = vmatpush1.xpose.msra.mxu0 0.0
        %4977 = vmatprep.subr.mxu0 0.0
        %4978 = vmatpush1.xpose.msra.mxu0 0.0
        %4979 = vmatprep.subr.mxu0 0.0
        %4980 = vmatpush1.xpose.msra.mxu0 0.0
        %4981 = vmatprep.subr.mxu0 0.0
        %4982 = vmatpush1.xpose.msra.mxu0 0.0
        %4983 = vmatprep.subr.mxu0 0.0
        %4984 = vmatpush1.xpose.msra.mxu0 0.0
        %4985 = vmatprep.subr.mxu0 0.0
        %4986 = vmatpush1.xpose.msra.mxu0 0.0
        %4987 = vmatprep.subr.mxu0 0.0
        %4988 = vmatpush1.xpose.msra.mxu0 0.0
        %4989 = vmatprep.mubr.f32.mxu0 0.0
        %v4990 = vand.u32 %v4920, 4294901760
        %v4991 = vsub.f32 %v4920, %v4990
        %v4992 = vand.u32 %v4991, 4294901760
        %v4993 = vsub.f32 %v4991, %v4992
        %v4994 = vand.u32 %v4993, 4294901760
        %4995 = vmatmul.mubr.f32.gmra.mrb[0].mxu0 %v4994
        %v4996 = vpop.f32.mrb[0].mxu0
        %v4997 = vadd.f32 %v2182, %v4996
        %v4998 = vpop.f32.mrb[0].mxu0
        %4999 = vdwg.mxu0
        %5000 = vmatprep.subr.mxu0 0.0
        %v5001 = vand.u32 %v4922, 4294901760
        %v5002 = vsub.f32 %v4922, %v5001
        %v5003 = vand.u32 %v5002, 4294901760
        %v5004 = vsub.f32 %v5002, %v5003
        %v5005 = vand.u32 %v5004, 4294901760
        %5006 = vmatpush1.xpose.msra.mxu0 %v5005
        %5007 = vmatprep.subr.mxu0 0.0
        %5008 = vmatpush1.xpose.msra.mxu0 0.0
        %5009 = vmatprep.subr.mxu0 0.0
        %5010 = vmatpush1.xpose.msra.mxu0 0.0
        %5011 = vmatprep.subr.mxu0 0.0
        %5012 = vmatpush1.xpose.msra.mxu0 0.0
        %5013 = vmatprep.subr.mxu0 0.0
        %5014 = vmatpush1.xpose.msra.mxu0 0.0
        %5015 = vmatprep.subr.mxu0 0.0
        %5016 = vmatpush1.xpose.msra.mxu0 0.0
        %5017 = vmatprep.subr.mxu0 0.0
        %5018 = vmatpush1.xpose.msra.mxu0 0.0
        %5019 = vmatprep.subr.mxu0 0.0
        %5020 = vmatpush1.xpose.msra.mxu0 0.0
        %5021 = vmatprep.subr.mxu0 0.0
        %5022 = vmatpush1.xpose.msra.mxu0 0.0
        %5023 = vmatprep.subr.mxu0 0.0
        %5024 = vmatpush1.xpose.msra.mxu0 0.0
        %5025 = vmatprep.subr.mxu0 0.0
        %5026 = vmatpush1.xpose.msra.mxu0 0.0
        %5027 = vmatprep.subr.mxu0 0.0
        %5028 = vmatpush1.xpose.msra.mxu0 0.0
        %5029 = vmatprep.subr.mxu0 0.0
        %5030 = vmatpush1.xpose.msra.mxu0 0.0
        %5031 = vmatprep.subr.mxu0 0.0
        %5032 = vmatpush1.xpose.msra.mxu0 0.0
        %5033 = vmatprep.subr.mxu0 0.0
        %5034 = vmatpush1.xpose.msra.mxu0 0.0
        %5035 = vmatprep.subr.mxu0 0.0
        %5036 = vmatpush1.xpose.msra.mxu0 0.0
        %5037 = vmatprep.subr.mxu0 0.0
        %5038 = vmatpush1.xpose.msra.mxu0 0.0
        %5039 = vmatprep.subr.mxu0 0.0
        %5040 = vmatpush1.xpose.msra.mxu0 0.0
        %5041 = vmatprep.subr.mxu0 0.0
        %5042 = vmatpush1.xpose.msra.mxu0 0.0
        %5043 = vmatprep.subr.mxu0 0.0
        %5044 = vmatpush1.xpose.msra.mxu0 0.0
        %5045 = vmatprep.subr.mxu0 0.0
        %5046 = vmatpush1.xpose.msra.mxu0 0.0
        %5047 = vmatprep.subr.mxu0 0.0
        %5048 = vmatpush1.xpose.msra.mxu0 0.0
        %5049 = vmatprep.subr.mxu0 0.0
        %5050 = vmatpush1.xpose.msra.mxu0 0.0
        %5051 = vmatprep.subr.mxu0 0.0
        %5052 = vmatpush1.xpose.msra.mxu0 0.0
        %5053 = vmatprep.subr.mxu0 0.0
        %5054 = vmatpush1.xpose.msra.mxu0 0.0
        %5055 = vmatprep.subr.mxu0 0.0
        %5056 = vmatpush1.xpose.msra.mxu0 0.0
        %5057 = vmatprep.subr.mxu0 0.0
        %5058 = vmatpush1.xpose.msra.mxu0 0.0
        %5059 = vmatprep.subr.mxu0 0.0
        %5060 = vmatpush1.xpose.msra.mxu0 0.0
        %5061 = vmatprep.subr.mxu0 0.0
        %5062 = vmatpush1.xpose.msra.mxu0 0.0
        %5063 = vmatprep.subr.mxu0 0.0
        %5064 = vmatpush1.xpose.msra.mxu0 0.0
        %5065 = vmatprep.subr.mxu0 0.0
        %5066 = vmatpush1.xpose.msra.mxu0 0.0
        %5067 = vmatprep.subr.mxu0 0.0
        %5068 = vmatpush1.xpose.msra.mxu0 0.0
        %5069 = vmatprep.mubr.f32.mxu0 0.0
        %v5070 = vand.u32 %v4920, 4294901760
        %5071 = vmatmul.mubr.f32.gmra.mrb[0].mxu0 %v5070
        %v5072 = vpop.f32.mrb[0].mxu0
        %v5073 = vadd.f32 %v4997, %v5072
        %v5074 = vpop.f32.mrb[0].mxu0
        %5075 = vdwg.mxu0
        %5076 = vmatprep.subr.mxu0 0.0
        %v5077 = vand.u32 %v4922, 4294901760
        %v5078 = vsub.f32 %v4922, %v5077
        %5079 = vmatpush1.xpose.msra.mxu0 %v5078
        %5080 = vmatprep.subr.mxu0 0.0
        %5081 = vmatpush1.xpose.msra.mxu0 0.0
        %5082 = vmatprep.subr.mxu0 0.0
        %5083 = vmatpush1.xpose.msra.mxu0 0.0
        %5084 = vmatprep.subr.mxu0 0.0
        %5085 = vmatpush1.xpose.msra.mxu0 0.0
        %5086 = vmatprep.subr.mxu0 0.0
        %5087 = vmatpush1.xpose.msra.mxu0 0.0
        %5088 = vmatprep.subr.mxu0 0.0
        %5089 = vmatpush1.xpose.msra.mxu0 0.0
        %5090 = vmatprep.subr.mxu0 0.0
        %5091 = vmatpush1.xpose.msra.mxu0 0.0
        %5092 = vmatprep.subr.mxu0 0.0
        %5093 = vmatpush1.xpose.msra.mxu0 0.0
        %5094 = vmatprep.subr.mxu0 0.0
        %5095 = vmatpush1.xpose.msra.mxu0 0.0
        %5096 = vmatprep.subr.mxu0 0.0
        %5097 = vmatpush1.xpose.msra.mxu0 0.0
        %5098 = vmatprep.subr.mxu0 0.0
        %5099 = vmatpush1.xpose.msra.mxu0 0.0
        %5100 = vmatprep.subr.mxu0 0.0
        %5101 = vmatpush1.xpose.msra.mxu0 0.0
        %5102 = vmatprep.subr.mxu0 0.0
        %5103 = vmatpush1.xpose.msra.mxu0 0.0
        %5104 = vmatprep.subr.mxu0 0.0
        %5105 = vmatpush1.xpose.msra.mxu0 0.0
        %5106 = vmatprep.subr.mxu0 0.0
        %5107 = vmatpush1.xpose.msra.mxu0 0.0
        %5108 = vmatprep.subr.mxu0 0.0
        %5109 = vmatpush1.xpose.msra.mxu0 0.0
        %5110 = vmatprep.subr.mxu0 0.0
        %5111 = vmatpush1.xpose.msra.mxu0 0.0
        %5112 = vmatprep.subr.mxu0 0.0
        %5113 = vmatpush1.xpose.msra.mxu0 0.0
        %5114 = vmatprep.subr.mxu0 0.0
        %5115 = vmatpush1.xpose.msra.mxu0 0.0
        %5116 = vmatprep.subr.mxu0 0.0
        %5117 = vmatpush1.xpose.msra.mxu0 0.0
        %5118 = vmatprep.subr.mxu0 0.0
        %5119 = vmatpush1.xpose.msra.mxu0 0.0
        %5120 = vmatprep.subr.mxu0 0.0
        %5121 = vmatpush1.xpose.msra.mxu0 0.0
        %5122 = vmatprep.subr.mxu0 0.0
        %5123 = vmatpush1.xpose.msra.mxu0 0.0
        %5124 = vmatprep.subr.mxu0 0.0
        %5125 = vmatpush1.xpose.msra.mxu0 0.0
        %5126 = vmatprep.subr.mxu0 0.0
        %5127 = vmatpush1.xpose.msra.mxu0 0.0
        %5128 = vmatprep.subr.mxu0 0.0
        %5129 = vmatpush1.xpose.msra.mxu0 0.0
        %5130 = vmatprep.subr.mxu0 0.0
        %5131 = vmatpush1.xpose.msra.mxu0 0.0
        %5132 = vmatprep.subr.mxu0 0.0
        %5133 = vmatpush1.xpose.msra.mxu0 0.0
        %5134 = vmatprep.subr.mxu0 0.0
        %5135 = vmatpush1.xpose.msra.mxu0 0.0
        %5136 = vmatprep.subr.mxu0 0.0
        %5137 = vmatpush1.xpose.msra.mxu0 0.0
        %5138 = vmatprep.subr.mxu0 0.0
        %5139 = vmatpush1.xpose.msra.mxu0 0.0
        %5140 = vmatprep.subr.mxu0 0.0
        %5141 = vmatpush1.xpose.msra.mxu0 0.0
        %5142 = vmatprep.mubr.f32.mxu0 0.0
        %v5143 = vand.u32 %v4920, 4294901760
        %v5144 = vsub.f32 %v4920, %v5143
        %5145 = vmatmul.mubr.f32.gmra.mrb[0].mxu0 %v5144
        %v5146 = vpop.f32.mrb[0].mxu0
        %v5147 = vadd.f32 %v5073, %v5146
        %v5148 = vpop.f32.mrb[0].mxu0
        %5149 = vdwg.mxu0
        %5150 = vmatprep.subr.mxu0 0.0
        %v5151 = vand.u32 %v4922, 4294901760
        %5152 = vmatpush1.xpose.msra.mxu0 %v5151
        %5153 = vmatprep.subr.mxu0 0.0
        %5154 = vmatpush1.xpose.msra.mxu0 0.0
        %5155 = vmatprep.subr.mxu0 0.0
        %5156 = vmatpush1.xpose.msra.mxu0 0.0
        %5157 = vmatprep.subr.mxu0 0.0
        %5158 = vmatpush1.xpose.msra.mxu0 0.0
        %5159 = vmatprep.subr.mxu0 0.0
        %5160 = vmatpush1.xpose.msra.mxu0 0.0
        %5161 = vmatprep.subr.mxu0 0.0
        %5162 = vmatpush1.xpose.msra.mxu0 0.0
        %5163 = vmatprep.subr.mxu0 0.0
        %5164 = vmatpush1.xpose.msra.mxu0 0.0
        %5165 = vmatprep.subr.mxu0 0.0
        %5166 = vmatpush1.xpose.msra.mxu0 0.0
        %5167 = vmatprep.subr.mxu0 0.0
        %5168 = vmatpush1.xpose.msra.mxu0 0.0
        %5169 = vmatprep.subr.mxu0 0.0
        %5170 = vmatpush1.xpose.msra.mxu0 0.0
        %5171 = vmatprep.subr.mxu0 0.0
        %5172 = vmatpush1.xpose.msra.mxu0 0.0
        %5173 = vmatprep.subr.mxu0 0.0
        %5174 = vmatpush1.xpose.msra.mxu0 0.0
        %5175 = vmatprep.subr.mxu0 0.0
        %5176 = vmatpush1.xpose.msra.mxu0 0.0
        %5177 = vmatprep.subr.mxu0 0.0
        %5178 = vmatpush1.xpose.msra.mxu0 0.0
        %5179 = vmatprep.subr.mxu0 0.0
        %5180 = vmatpush1.xpose.msra.mxu0 0.0
        %5181 = vmatprep.subr.mxu0 0.0
        %5182 = vmatpush1.xpose.msra.mxu0 0.0
        %5183 = vmatprep.subr.mxu0 0.0
        %5184 = vmatpush1.xpose.msra.mxu0 0.0
        %5185 = vmatprep.subr.mxu0 0.0
        %5186 = vmatpush1.xpose.msra.mxu0 0.0
        %5187 = vmatprep.subr.mxu0 0.0
        %5188 = vmatpush1.xpose.msra.mxu0 0.0
        %5189 = vmatprep.subr.mxu0 0.0
        %5190 = vmatpush1.xpose.msra.mxu0 0.0
        %5191 = vmatprep.subr.mxu0 0.0
        %5192 = vmatpush1.xpose.msra.mxu0 0.0
        %5193 = vmatprep.subr.mxu0 0.0
        %5194 = vmatpush1.xpose.msra.mxu0 0.0
        %5195 = vmatprep.subr.mxu0 0.0
        %5196 = vmatpush1.xpose.msra.mxu0 0.0
        %5197 = vmatprep.subr.mxu0 0.0
        %5198 = vmatpush1.xpose.msra.mxu0 0.0
        %5199 = vmatprep.subr.mxu0 0.0
        %5200 = vmatpush1.xpose.msra.mxu0 0.0
        %5201 = vmatprep.subr.mxu0 0.0
        %5202 = vmatpush1.xpose.msra.mxu0 0.0
        %5203 = vmatprep.subr.mxu0 0.0
        %5204 = vmatpush1.xpose.msra.mxu0 0.0
        %5205 = vmatprep.subr.mxu0 0.0
        %5206 = vmatpush1.xpose.msra.mxu0 0.0
        %5207 = vmatprep.subr.mxu0 0.0
        %5208 = vmatpush1.xpose.msra.mxu0 0.0
        %5209 = vmatprep.subr.mxu0 0.0
        %5210 = vmatpush1.xpose.msra.mxu0 0.0
        %5211 = vmatprep.subr.mxu0 0.0
        %5212 = vmatpush1.xpose.msra.mxu0 0.0
        %5213 = vmatprep.subr.mxu0 0.0
        %5214 = vmatpush1.xpose.msra.mxu0 0.0
        %5215 = vmatprep.mubr.f32.mxu0 0.0
        %v5216 = vand.u32 %v4920, 4294901760
        %v5217 = vsub.f32 %v4920, %v5216
        %v5218 = vand.u32 %v5217, 4294901760
        %5219 = vmatmul.mubr.f32.gmra.mrb[0].mxu0 %v5218
        %v5220 = vpop.f32.mrb[0].mxu0
        %v5221 = vadd.f32 %v5147, %v5220
        %v5222 = vpop.f32.mrb[0].mxu0
        %5223 = vdwg.mxu0
        %5224 = vmatprep.subr.mxu0 0.0
        %v5225 = vand.u32 %v4922, 4294901760
        %v5226 = vsub.f32 %v4922, %v5225
        %v5227 = vand.u32 %v5226, 4294901760
        %5228 = vmatpush1.xpose.msra.mxu0 %v5227
        %5229 = vmatprep.subr.mxu0 0.0
        %5230 = vmatpush1.xpose.msra.mxu0 0.0
        %5231 = vmatprep.subr.mxu0 0.0
        %5232 = vmatpush1.xpose.msra.mxu0 0.0
        %5233 = vmatprep.subr.mxu0 0.0
        %5234 = vmatpush1.xpose.msra.mxu0 0.0
        %5235 = vmatprep.subr.mxu0 0.0
        %5236 = vmatpush1.xpose.msra.mxu0 0.0
        %5237 = vmatprep.subr.mxu0 0.0
        %5238 = vmatpush1.xpose.msra.mxu0 0.0
        %5239 = vmatprep.subr.mxu0 0.0
        %5240 = vmatpush1.xpose.msra.mxu0 0.0
        %5241 = vmatprep.subr.mxu0 0.0
        %5242 = vmatpush1.xpose.msra.mxu0 0.0
        %5243 = vmatprep.subr.mxu0 0.0
        %5244 = vmatpush1.xpose.msra.mxu0 0.0
        %5245 = vmatprep.subr.mxu0 0.0
        %5246 = vmatpush1.xpose.msra.mxu0 0.0
        %5247 = vmatprep.subr.mxu0 0.0
        %5248 = vmatpush1.xpose.msra.mxu0 0.0
        %5249 = vmatprep.subr.mxu0 0.0
        %5250 = vmatpush1.xpose.msra.mxu0 0.0
        %5251 = vmatprep.subr.mxu0 0.0
        %5252 = vmatpush1.xpose.msra.mxu0 0.0
        %5253 = vmatprep.subr.mxu0 0.0
        %5254 = vmatpush1.xpose.msra.mxu0 0.0
        %5255 = vmatprep.subr.mxu0 0.0
        %5256 = vmatpush1.xpose.msra.mxu0 0.0
        %5257 = vmatprep.subr.mxu0 0.0
        %5258 = vmatpush1.xpose.msra.mxu0 0.0
        %5259 = vmatprep.subr.mxu0 0.0
        %5260 = vmatpush1.xpose.msra.mxu0 0.0
        %5261 = vmatprep.subr.mxu0 0.0
        %5262 = vmatpush1.xpose.msra.mxu0 0.0
        %5263 = vmatprep.subr.mxu0 0.0
        %5264 = vmatpush1.xpose.msra.mxu0 0.0
        %5265 = vmatprep.subr.mxu0 0.0
        %5266 = vmatpush1.xpose.msra.mxu0 0.0
        %5267 = vmatprep.subr.mxu0 0.0
        %5268 = vmatpush1.xpose.msra.mxu0 0.0
        %5269 = vmatprep.subr.mxu0 0.0
        %5270 = vmatpush1.xpose.msra.mxu0 0.0
        %5271 = vmatprep.subr.mxu0 0.0
        %5272 = vmatpush1.xpose.msra.mxu0 0.0
        %5273 = vmatprep.subr.mxu0 0.0
        %5274 = vmatpush1.xpose.msra.mxu0 0.0
        %5275 = vmatprep.subr.mxu0 0.0
        %5276 = vmatpush1.xpose.msra.mxu0 0.0
        %5277 = vmatprep.subr.mxu0 0.0
        %5278 = vmatpush1.xpose.msra.mxu0 0.0
        %5279 = vmatprep.subr.mxu0 0.0
        %5280 = vmatpush1.xpose.msra.mxu0 0.0
        %5281 = vmatprep.subr.mxu0 0.0
        %5282 = vmatpush1.xpose.msra.mxu0 0.0
        %5283 = vmatprep.subr.mxu0 0.0
        %5284 = vmatpush1.xpose.msra.mxu0 0.0
        %5285 = vmatprep.subr.mxu0 0.0
        %5286 = vmatpush1.xpose.msra.mxu0 0.0
        %5287 = vmatprep.subr.mxu0 0.0
        %5288 = vmatpush1.xpose.msra.mxu0 0.0
        %5289 = vmatprep.subr.mxu0 0.0
        %5290 = vmatpush1.xpose.msra.mxu0 0.0
        %5291 = vmatprep.mubr.f32.mxu0 0.0
        %v5292 = vand.u32 %v4920, 4294901760
        %5293 = vmatmul.mubr.f32.gmra.mrb[0].mxu0 %v5292
        %v5294 = vpop.f32.mrb[0].mxu0
        %v5295 = vadd.f32 %v5221, %v5294
        %v5296 = vpop.f32.mrb[0].mxu0
        %5297 = vdwg.mxu0
        %5298 = vmatprep.subr.mxu0 0.0
        %v5299 = vand.u32 %v4922, 4294901760
        %5300 = vmatpush1.xpose.msra.mxu0 %v5299
        %5301 = vmatprep.subr.mxu0 0.0
        %5302 = vmatpush1.xpose.msra.mxu0 0.0
        %5303 = vmatprep.subr.mxu0 0.0
        %5304 = vmatpush1.xpose.msra.mxu0 0.0
        %5305 = vmatprep.subr.mxu0 0.0
        %5306 = vmatpush1.xpose.msra.mxu0 0.0
        %5307 = vmatprep.subr.mxu0 0.0
        %5308 = vmatpush1.xpose.msra.mxu0 0.0
        %5309 = vmatprep.subr.mxu0 0.0
        %5310 = vmatpush1.xpose.msra.mxu0 0.0
        %5311 = vmatprep.subr.mxu0 0.0
        %5312 = vmatpush1.xpose.msra.mxu0 0.0
        %5313 = vmatprep.subr.mxu0 0.0
        %5314 = vmatpush1.xpose.msra.mxu0 0.0
        %5315 = vmatprep.subr.mxu0 0.0
        %5316 = vmatpush1.xpose.msra.mxu0 0.0
        %5317 = vmatprep.subr.mxu0 0.0
        %5318 = vmatpush1.xpose.msra.mxu0 0.0
        %5319 = vmatprep.subr.mxu0 0.0
        %5320 = vmatpush1.xpose.msra.mxu0 0.0
        %5321 = vmatprep.subr.mxu0 0.0
        %5322 = vmatpush1.xpose.msra.mxu0 0.0
        %5323 = vmatprep.subr.mxu0 0.0
        %5324 = vmatpush1.xpose.msra.mxu0 0.0
        %5325 = vmatprep.subr.mxu0 0.0
        %5326 = vmatpush1.xpose.msra.mxu0 0.0
        %5327 = vmatprep.subr.mxu0 0.0
        %5328 = vmatpush1.xpose.msra.mxu0 0.0
        %5329 = vmatprep.subr.mxu0 0.0
        %5330 = vmatpush1.xpose.msra.mxu0 0.0
        %5331 = vmatprep.subr.mxu0 0.0
        %5332 = vmatpush1.xpose.msra.mxu0 0.0
        %5333 = vmatprep.subr.mxu0 0.0
        %5334 = vmatpush1.xpose.msra.mxu0 0.0
        %5335 = vmatprep.subr.mxu0 0.0
        %5336 = vmatpush1.xpose.msra.mxu0 0.0
        %5337 = vmatprep.subr.mxu0 0.0
        %5338 = vmatpush1.xpose.msra.mxu0 0.0
        %5339 = vmatprep.subr.mxu0 0.0
        %5340 = vmatpush1.xpose.msra.mxu0 0.0
        %5341 = vmatprep.subr.mxu0 0.0
        %5342 = vmatpush1.xpose.msra.mxu0 0.0
        %5343 = vmatprep.subr.mxu0 0.0
        %5344 = vmatpush1.xpose.msra.mxu0 0.0
        %5345 = vmatprep.subr.mxu0 0.0
        %5346 = vmatpush1.xpose.msra.mxu0 0.0
        %5347 = vmatprep.subr.mxu0 0.0
        %5348 = vmatpush1.xpose.msra.mxu0 0.0
        %5349 = vmatprep.subr.mxu0 0.0
        %5350 = vmatpush1.xpose.msra.mxu0 0.0
        %5351 = vmatprep.subr.mxu0 0.0
        %5352 = vmatpush1.xpose.msra.mxu0 0.0
        %5353 = vmatprep.subr.mxu0 0.0
        %5354 = vmatpush1.xpose.msra.mxu0 0.0
        %5355 = vmatprep.subr.mxu0 0.0
        %5356 = vmatpush1.xpose.msra.mxu0 0.0
        %5357 = vmatprep.subr.mxu0 0.0
        %5358 = vmatpush1.xpose.msra.mxu0 0.0
        %5359 = vmatprep.subr.mxu0 0.0
        %5360 = vmatpush1.xpose.msra.mxu0 0.0
        %5361 = vmatprep.subr.mxu0 0.0
        %5362 = vmatpush1.xpose.msra.mxu0 0.0
        %5363 = vmatprep.mubr.f32.mxu0 0.0
        %v5364 = vand.u32 %v4920, 4294901760
        %5365 = vmatmul.mubr.f32.gmra.mrb[0].mxu0 %v5364
        %v5366 = vpop.f32.mrb[0].mxu0
        %v5367 = vadd.f32 %v5295, %v5366
        %v5368 = vpop.f32.mrb[0].mxu0
        %5369 = vdwg.mxu0
        %v5370 = vsel %vm2185, %v5367, -inf
        %5371 = vmax.xlane.f32.xlu0 %v5370
        %v5372 = vpop.xlane.xlu0 %5371
        %v5373 = vsub.f32 %v5367, %v5372
        %v5374 = vmul.f32 %v5373, 1.442695
        %v5375 = vpow.pop %v5374
        %v5376 = vsel %vm2185, %v5375, 0.0
        %5377 = vadd.xlane.f32.xlu0 %v5376
        %v5378 = vpop.xlane.xlu0 %5377
        %v5379 = vrcp.pop %v5378
        %v5380 = vmul.f32 1.0, %v5379
        %v5381 = vmul.f32 %v5375, %v5380
        %5382 = vrot.lane.b32.xlu0 %v2173, 112
        %v5383 = vpop.permute.xlu0 %5382
        %v5386 = vsel %vm2185, %v5381, 0
        %5388 = vmatprep.subr.mxu0 0.0
        %v5389 = vand.u32 %v5383, 4294901760
        %5390 = vmatpush1.msra.mxu0 %v5389
        %5391 = vmatprep.subr.mxu0 0.0
        %5392 = vmatpush1.msra.mxu0 0.0
        %5393 = vmatprep.subr.mxu0 0.0
        %5394 = vmatpush1.msra.mxu0 0.0
        %5395 = vmatprep.subr.mxu0 0.0
        %5396 = vmatpush1.msra.mxu0 0.0
        %5397 = vmatprep.subr.mxu0 0.0
        %5398 = vmatpush1.msra.mxu0 0.0
        %5399 = vmatprep.subr.mxu0 0.0
        %5400 = vmatpush1.msra.mxu0 0.0
        %5401 = vmatprep.subr.mxu0 0.0
        %5402 = vmatpush1.msra.mxu0 0.0
        %5403 = vmatprep.subr.mxu0 0.0
        %5404 = vmatpush1.msra.mxu0 0.0
        %5405 = vmatprep.subr.mxu0 0.0
        %5406 = vmatpush1.msra.mxu0 0.0
        %5407 = vmatprep.subr.mxu0 0.0
        %5408 = vmatpush1.msra.mxu0 0.0
        %5409 = vmatprep.subr.mxu0 0.0
        %5410 = vmatpush1.msra.mxu0 0.0
        %5411 = vmatprep.subr.mxu0 0.0
        %5412 = vmatpush1.msra.mxu0 0.0
        %5413 = vmatprep.subr.mxu0 0.0
        %5414 = vmatpush1.msra.mxu0 0.0
        %5415 = vmatprep.subr.mxu0 0.0
        %5416 = vmatpush1.msra.mxu0 0.0
        %5417 = vmatprep.subr.mxu0 0.0
        %5418 = vmatpush1.msra.mxu0 0.0
        %5419 = vmatprep.subr.mxu0 0.0
        %5420 = vmatpush1.msra.mxu0 0.0
        %5421 = vmatprep.subr.mxu0 0.0
        %5422 = vmatpush1.msra.mxu0 0.0
        %5423 = vmatprep.subr.mxu0 0.0
        %5424 = vmatpush1.msra.mxu0 0.0
        %5425 = vmatprep.subr.mxu0 0.0
        %5426 = vmatpush1.msra.mxu0 0.0
        %5427 = vmatprep.subr.mxu0 0.0
        %5428 = vmatpush1.msra.mxu0 0.0
        %5429 = vmatprep.subr.mxu0 0.0
        %5430 = vmatpush1.msra.mxu0 0.0
        %5431 = vmatprep.subr.mxu0 0.0
        %5432 = vmatpush1.msra.mxu0 0.0
        %5433 = vmatprep.subr.mxu0 0.0
        %5434 = vmatpush1.msra.mxu0 0.0
        %5435 = vmatprep.subr.mxu0 0.0
        %5436 = vmatpush1.msra.mxu0 0.0
        %5437 = vmatprep.subr.mxu0 0.0
        %5438 = vmatpush1.msra.mxu0 0.0
        %5439 = vmatprep.subr.mxu0 0.0
        %5440 = vmatpush1.msra.mxu0 0.0
        %5441 = vmatprep.subr.mxu0 0.0
        %5442 = vmatpush1.msra.mxu0 0.0
        %5443 = vmatprep.subr.mxu0 0.0
        %5444 = vmatpush1.msra.mxu0 0.0
        %5445 = vmatprep.subr.mxu0 0.0
        %5446 = vmatpush1.msra.mxu0 0.0
        %5447 = vmatprep.subr.mxu0 0.0
        %5448 = vmatpush1.msra.mxu0 0.0
        %5449 = vmatprep.subr.mxu0 0.0
        %5450 = vmatpush1.msra.mxu0 0.0
        %5451 = vmatprep.subr.mxu0 0.0
        %5452 = vmatpush1.msra.mxu0 0.0
        %5453 = vmatprep.mubr.f32.mxu0 0.0
        %v5454 = vand.u32 %v5386, 4294901760
        %v5455 = vsub.f32 %v5386, %v5454
        %v5456 = vand.u32 %v5455, 4294901760
        %v5457 = vsub.f32 %v5455, %v5456
        %v5458 = vand.u32 %v5457, 4294901760
        %5459 = vmatmul.mubr.f32.gmra.mrb[0].mxu0 %v5458
        %v5460 = vpop.f32.mrb[0].mxu0
        %v5461 = vadd.f32 0.0, %v5460
        %v5462 = vpop.f32.mrb[0].mxu0
        %5463 = vdwg.mxu0
        %5464 = vmatprep.subr.mxu0 0.0
        %v5465 = vand.u32 %v5383, 4294901760
        %v5466 = vsub.f32 %v5383, %v5465
        %v5467 = vand.u32 %v5466, 4294901760
        %v5468 = vsub.f32 %v5466, %v5467
        %v5469 = vand.u32 %v5468, 4294901760
        %5470 = vmatpush1.msra.mxu0 %v5469
        %5471 = vmatprep.subr.mxu0 0.0
        %5472 = vmatpush1.msra.mxu0 0.0
        %5473 = vmatprep.subr.mxu0 0.0
        %5474 = vmatpush1.msra.mxu0 0.0
        %5475 = vmatprep.subr.mxu0 0.0
        %5476 = vmatpush1.msra.mxu0 0.0
        %5477 = vmatprep.subr.mxu0 0.0
        %5478 = vmatpush1.msra.mxu0 0.0
        %5479 = vmatprep.subr.mxu0 0.0
        %5480 = vmatpush1.msra.mxu0 0.0
        %5481 = vmatprep.subr.mxu0 0.0
        %5482 = vmatpush1.msra.mxu0 0.0
        %5483 = vmatprep.subr.mxu0 0.0
        %5484 = vmatpush1.msra.mxu0 0.0
        %5485 = vmatprep.subr.mxu0 0.0
        %5486 = vmatpush1.msra.mxu0 0.0
        %5487 = vmatprep.subr.mxu0 0.0
        %5488 = vmatpush1.msra.mxu0 0.0
        %5489 = vmatprep.subr.mxu0 0.0
        %5490 = vmatpush1.msra.mxu0 0.0
        %5491 = vmatprep.subr.mxu0 0.0
        %5492 = vmatpush1.msra.mxu0 0.0
        %5493 = vmatprep.subr.mxu0 0.0
        %5494 = vmatpush1.msra.mxu0 0.0
        %5495 = vmatprep.subr.mxu0 0.0
        %5496 = vmatpush1.msra.mxu0 0.0
        %5497 = vmatprep.subr.mxu0 0.0
        %5498 = vmatpush1.msra.mxu0 0.0
        %5499 = vmatprep.subr.mxu0 0.0
        %5500 = vmatpush1.msra.mxu0 0.0
        %5501 = vmatprep.subr.mxu0 0.0
        %5502 = vmatpush1.msra.mxu0 0.0
        %5503 = vmatprep.subr.mxu0 0.0
        %5504 = vmatpush1.msra.mxu0 0.0
        %5505 = vmatprep.subr.mxu0 0.0
        %5506 = vmatpush1.msra.mxu0 0.0
        %5507 = vmatprep.subr.mxu0 0.0
        %5508 = vmatpush1.msra.mxu0 0.0
        %5509 = vmatprep.subr.mxu0 0.0
        %5510 = vmatpush1.msra.mxu0 0.0
        %5511 = vmatprep.subr.mxu0 0.0
        %5512 = vmatpush1.msra.mxu0 0.0
        %5513 = vmatprep.subr.mxu0 0.0
        %5514 = vmatpush1.msra.mxu0 0.0
        %5515 = vmatprep.subr.mxu0 0.0
        %5516 = vmatpush1.msra.mxu0 0.0
        %5517 = vmatprep.subr.mxu0 0.0
        %5518 = vmatpush1.msra.mxu0 0.0
        %5519 = vmatprep.subr.mxu0 0.0
        %5520 = vmatpush1.msra.mxu0 0.0
        %5521 = vmatprep.subr.mxu0 0.0
        %5522 = vmatpush1.msra.mxu0 0.0
        %5523 = vmatprep.subr.mxu0 0.0
        %5524 = vmatpush1.msra.mxu0 0.0
        %5525 = vmatprep.subr.mxu0 0.0
        %5526 = vmatpush1.msra.mxu0 0.0
        %5527 = vmatprep.subr.mxu0 0.0
        %5528 = vmatpush1.msra.mxu0 0.0
        %5529 = vmatprep.subr.mxu0 0.0
        %5530 = vmatpush1.msra.mxu0 0.0
        %5531 = vmatprep.subr.mxu0 0.0
        %5532 = vmatpush1.msra.mxu0 0.0
        %5533 = vmatprep.mubr.f32.mxu0 0.0
        %v5534 = vand.u32 %v5386, 4294901760
        %5535 = vmatmul.mubr.f32.gmra.mrb[0].mxu0 %v5534
        %v5536 = vpop.f32.mrb[0].mxu0
        %v5537 = vadd.f32 %v5461, %v5536
        %v5538 = vpop.f32.mrb[0].mxu0
        %5539 = vdwg.mxu0
        %5540 = vmatprep.subr.mxu0 0.0
        %v5541 = vand.u32 %v5383, 4294901760
        %v5542 = vsub.f32 %v5383, %v5541
        %5543 = vmatpush1.msra.mxu0 %v5542
        %5544 = vmatprep.subr.mxu0 0.0
        %5545 = vmatpush1.msra.mxu0 0.0
        %5546 = vmatprep.subr.mxu0 0.0
        %5547 = vmatpush1.msra.mxu0 0.0
        %5548 = vmatprep.subr.mxu0 0.0
        %5549 = vmatpush1.msra.mxu0 0.0
        %5550 = vmatprep.subr.mxu0 0.0
        %5551 = vmatpush1.msra.mxu0 0.0
        %5552 = vmatprep.subr.mxu0 0.0
        %5553 = vmatpush1.msra.mxu0 0.0
        %5554 = vmatprep.subr.mxu0 0.0
        %5555 = vmatpush1.msra.mxu0 0.0
        %5556 = vmatprep.subr.mxu0 0.0
        %5557 = vmatpush1.msra.mxu0 0.0
        %5558 = vmatprep.subr.mxu0 0.0
        %5559 = vmatpush1.msra.mxu0 0.0
        %5560 = vmatprep.subr.mxu0 0.0
        %5561 = vmatpush1.msra.mxu0 0.0
        %5562 = vmatprep.subr.mxu0 0.0
        %5563 = vmatpush1.msra.mxu0 0.0
        %5564 = vmatprep.subr.mxu0 0.0
        %5565 = vmatpush1.msra.mxu0 0.0
        %5566 = vmatprep.subr.mxu0 0.0
        %5567 = vmatpush1.msra.mxu0 0.0
        %5568 = vmatprep.subr.mxu0 0.0
        %5569 = vmatpush1.msra.mxu0 0.0
        %5570 = vmatprep.subr.mxu0 0.0
        %5571 = vmatpush1.msra.mxu0 0.0
        %5572 = vmatprep.subr.mxu0 0.0
        %5573 = vmatpush1.msra.mxu0 0.0
        %5574 = vmatprep.subr.mxu0 0.0
        %5575 = vmatpush1.msra.mxu0 0.0
        %5576 = vmatprep.subr.mxu0 0.0
        %5577 = vmatpush1.msra.mxu0 0.0
        %5578 = vmatprep.subr.mxu0 0.0
        %5579 = vmatpush1.msra.mxu0 0.0
        %5580 = vmatprep.subr.mxu0 0.0
        %5581 = vmatpush1.msra.mxu0 0.0
        %5582 = vmatprep.subr.mxu0 0.0
        %5583 = vmatpush1.msra.mxu0 0.0
        %5584 = vmatprep.subr.mxu0 0.0
        %5585 = vmatpush1.msra.mxu0 0.0
        %5586 = vmatprep.subr.mxu0 0.0
        %5587 = vmatpush1.msra.mxu0 0.0
        %5588 = vmatprep.subr.mxu0 0.0
        %5589 = vmatpush1.msra.mxu0 0.0
        %5590 = vmatprep.subr.mxu0 0.0
        %5591 = vmatpush1.msra.mxu0 0.0
        %5592 = vmatprep.subr.mxu0 0.0
        %5593 = vmatpush1.msra.mxu0 0.0
        %5594 = vmatprep.subr.mxu0 0.0
        %5595 = vmatpush1.msra.mxu0 0.0
        %5596 = vmatprep.subr.mxu0 0.0
        %5597 = vmatpush1.msra.mxu0 0.0
        %5598 = vmatprep.subr.mxu0 0.0
        %5599 = vmatpush1.msra.mxu0 0.0
        %5600 = vmatprep.subr.mxu0 0.0
        %5601 = vmatpush1.msra.mxu0 0.0
        %5602 = vmatprep.subr.mxu0 0.0
        %5603 = vmatpush1.msra.mxu0 0.0
        %5604 = vmatprep.subr.mxu0 0.0
        %5605 = vmatpush1.msra.mxu0 0.0
        %5606 = vmatprep.mubr.f32.mxu0 0.0
        %v5607 = vand.u32 %v5386, 4294901760
        %v5608 = vsub.f32 %v5386, %v5607
        %5609 = vmatmul.mubr.f32.gmra.mrb[0].mxu0 %v5608
        %v5610 = vpop.f32.mrb[0].mxu0
        %v5611 = vadd.f32 %v5537, %v5610
        %v5612 = vpop.f32.mrb[0].mxu0
        %5613 = vdwg.mxu0
        %5614 = vmatprep.subr.mxu0 0.0
        %v5615 = vand.u32 %v5383, 4294901760
        %5616 = vmatpush1.msra.mxu0 %v5615
        %5617 = vmatprep.subr.mxu0 0.0
        %5618 = vmatpush1.msra.mxu0 0.0
        %5619 = vmatprep.subr.mxu0 0.0
        %5620 = vmatpush1.msra.mxu0 0.0
        %5621 = vmatprep.subr.mxu0 0.0
        %5622 = vmatpush1.msra.mxu0 0.0
        %5623 = vmatprep.subr.mxu0 0.0
        %5624 = vmatpush1.msra.mxu0 0.0
        %5625 = vmatprep.subr.mxu0 0.0
        %5626 = vmatpush1.msra.mxu0 0.0
        %5627 = vmatprep.subr.mxu0 0.0
        %5628 = vmatpush1.msra.mxu0 0.0
        %5629 = vmatprep.subr.mxu0 0.0
        %5630 = vmatpush1.msra.mxu0 0.0
        %5631 = vmatprep.subr.mxu0 0.0
        %5632 = vmatpush1.msra.mxu0 0.0
        %5633 = vmatprep.subr.mxu0 0.0
        %5634 = vmatpush1.msra.mxu0 0.0
        %5635 = vmatprep.subr.mxu0 0.0
        %5636 = vmatpush1.msra.mxu0 0.0
        %5637 = vmatprep.subr.mxu0 0.0
        %5638 = vmatpush1.msra.mxu0 0.0
        %5639 = vmatprep.subr.mxu0 0.0
        %5640 = vmatpush1.msra.mxu0 0.0
        %5641 = vmatprep.subr.mxu0 0.0
        %5642 = vmatpush1.msra.mxu0 0.0
        %5643 = vmatprep.subr.mxu0 0.0
        %5644 = vmatpush1.msra.mxu0 0.0
        %5645 = vmatprep.subr.mxu0 0.0
        %5646 = vmatpush1.msra.mxu0 0.0
        %5647 = vmatprep.subr.mxu0 0.0
        %5648 = vmatpush1.msra.mxu0 0.0
        %5649 = vmatprep.subr.mxu0 0.0
        %5650 = vmatpush1.msra.mxu0 0.0
        %5651 = vmatprep.subr.mxu0 0.0
        %5652 = vmatpush1.msra.mxu0 0.0
        %5653 = vmatprep.subr.mxu0 0.0
        %5654 = vmatpush1.msra.mxu0 0.0
        %5655 = vmatprep.subr.mxu0 0.0
        %5656 = vmatpush1.msra.mxu0 0.0
        %5657 = vmatprep.subr.mxu0 0.0
        %5658 = vmatpush1.msra.mxu0 0.0
        %5659 = vmatprep.subr.mxu0 0.0
        %5660 = vmatpush1.msra.mxu0 0.0
        %5661 = vmatprep.subr.mxu0 0.0
        %5662 = vmatpush1.msra.mxu0 0.0
        %5663 = vmatprep.subr.mxu0 0.0
        %5664 = vmatpush1.msra.mxu0 0.0
        %5665 = vmatprep.subr.mxu0 0.0
        %5666 = vmatpush1.msra.mxu0 0.0
        %5667 = vmatprep.subr.mxu0 0.0
        %5668 = vmatpush1.msra.mxu0 0.0
        %5669 = vmatprep.subr.mxu0 0.0
        %5670 = vmatpush1.msra.mxu0 0.0
        %5671 = vmatprep.subr.mxu0 0.0
        %5672 = vmatpush1.msra.mxu0 0.0
        %5673 = vmatprep.subr.mxu0 0.0
        %5674 = vmatpush1.msra.mxu0 0.0
        %5675 = vmatprep.subr.mxu0 0.0
        %5676 = vmatpush1.msra.mxu0 0.0
        %5677 = vmatprep.subr.mxu0 0.0
        %5678 = vmatpush1.msra.mxu0 0.0
        %5679 = vmatprep.mubr.f32.mxu0 0.0
        %v5680 = vand.u32 %v5386, 4294901760
        %v5681 = vsub.f32 %v5386, %v5680
        %v5682 = vand.u32 %v5681, 4294901760
        %5683 = vmatmul.mubr.f32.gmra.mrb[0].mxu0 %v5682
        %v5684 = vpop.f32.mrb[0].mxu0
        %v5685 = vadd.f32 %v5611, %v5684
        %v5686 = vpop.f32.mrb[0].mxu0
        %5687 = vdwg.mxu0
        %5688 = vmatprep.subr.mxu0 0.0
        %v5689 = vand.u32 %v5383, 4294901760
        %v5690 = vsub.f32 %v5383, %v5689
        %v5691 = vand.u32 %v5690, 4294901760
        %5692 = vmatpush1.msra.mxu0 %v5691
        %5693 = vmatprep.subr.mxu0 0.0
        %5694 = vmatpush1.msra.mxu0 0.0
        %5695 = vmatprep.subr.mxu0 0.0
        %5696 = vmatpush1.msra.mxu0 0.0
        %5697 = vmatprep.subr.mxu0 0.0
        %5698 = vmatpush1.msra.mxu0 0.0
        %5699 = vmatprep.subr.mxu0 0.0
        %5700 = vmatpush1.msra.mxu0 0.0
        %5701 = vmatprep.subr.mxu0 0.0
        %5702 = vmatpush1.msra.mxu0 0.0
        %5703 = vmatprep.subr.mxu0 0.0
        %5704 = vmatpush1.msra.mxu0 0.0
        %5705 = vmatprep.subr.mxu0 0.0
        %5706 = vmatpush1.msra.mxu0 0.0
        %5707 = vmatprep.subr.mxu0 0.0
        %5708 = vmatpush1.msra.mxu0 0.0
        %5709 = vmatprep.subr.mxu0 0.0
        %5710 = vmatpush1.msra.mxu0 0.0
        %5711 = vmatprep.subr.mxu0 0.0
        %5712 = vmatpush1.msra.mxu0 0.0
        %5713 = vmatprep.subr.mxu0 0.0
        %5714 = vmatpush1.msra.mxu0 0.0
        %5715 = vmatprep.subr.mxu0 0.0
        %5716 = vmatpush1.msra.mxu0 0.0
        %5717 = vmatprep.subr.mxu0 0.0
        %5718 = vmatpush1.msra.mxu0 0.0
        %5719 = vmatprep.subr.mxu0 0.0
        %5720 = vmatpush1.msra.mxu0 0.0
        %5721 = vmatprep.subr.mxu0 0.0
        %5722 = vmatpush1.msra.mxu0 0.0
        %5723 = vmatprep.subr.mxu0 0.0
        %5724 = vmatpush1.msra.mxu0 0.0
        %5725 = vmatprep.subr.mxu0 0.0
        %5726 = vmatpush1.msra.mxu0 0.0
        %5727 = vmatprep.subr.mxu0 0.0
        %5728 = vmatpush1.msra.mxu0 0.0
        %5729 = vmatprep.subr.mxu0 0.0
        %5730 = vmatpush1.msra.mxu0 0.0
        %5731 = vmatprep.subr.mxu0 0.0
        %5732 = vmatpush1.msra.mxu0 0.0
        %5733 = vmatprep.subr.mxu0 0.0
        %5734 = vmatpush1.msra.mxu0 0.0
        %5735 = vmatprep.subr.mxu0 0.0
        %5736 = vmatpush1.msra.mxu0 0.0
        %5737 = vmatprep.subr.mxu0 0.0
        %5738 = vmatpush1.msra.mxu0 0.0
        %5739 = vmatprep.subr.mxu0 0.0
        %5740 = vmatpush1.msra.mxu0 0.0
        %5741 = vmatprep.subr.mxu0 0.0
        %5742 = vmatpush1.msra.mxu0 0.0
        %5743 = vmatprep.subr.mxu0 0.0
        %5744 = vmatpush1.msra.mxu0 0.0
        %5745 = vmatprep.subr.mxu0 0.0
        %5746 = vmatpush1.msra.mxu0 0.0
        %5747 = vmatprep.subr.mxu0 0.0
        %5748 = vmatpush1.msra.mxu0 0.0
        %5749 = vmatprep.subr.mxu0 0.0
        %5750 = vmatpush1.msra.mxu0 0.0
        %5751 = vmatprep.subr.mxu0 0.0
        %5752 = vmatpush1.msra.mxu0 0.0
        %5753 = vmatprep.subr.mxu0 0.0
        %5754 = vmatpush1.msra.mxu0 0.0
        %5755 = vmatprep.mubr.f32.mxu0 0.0
        %v5756 = vand.u32 %v5386, 4294901760
        %5757 = vmatmul.mubr.f32.gmra.mrb[0].mxu0 %v5756
        %v5758 = vpop.f32.mrb[0].mxu0
        %v5759 = vadd.f32 %v5685, %v5758
        %v5760 = vpop.f32.mrb[0].mxu0
        %5761 = vdwg.mxu0
        %5762 = vmatprep.subr.mxu0 0.0
        %v5763 = vand.u32 %v5383, 4294901760
        %5764 = vmatpush1.msra.mxu0 %v5763
        %5765 = vmatprep.subr.mxu0 0.0
        %5766 = vmatpush1.msra.mxu0 0.0
        %5767 = vmatprep.subr.mxu0 0.0
        %5768 = vmatpush1.msra.mxu0 0.0
        %5769 = vmatprep.subr.mxu0 0.0
        %5770 = vmatpush1.msra.mxu0 0.0
        %5771 = vmatprep.subr.mxu0 0.0
        %5772 = vmatpush1.msra.mxu0 0.0
        %5773 = vmatprep.subr.mxu0 0.0
        %5774 = vmatpush1.msra.mxu0 0.0
        %5775 = vmatprep.subr.mxu0 0.0
        %5776 = vmatpush1.msra.mxu0 0.0
        %5777 = vmatprep.subr.mxu0 0.0
        %5778 = vmatpush1.msra.mxu0 0.0
        %5779 = vmatprep.subr.mxu0 0.0
        %5780 = vmatpush1.msra.mxu0 0.0
        %5781 = vmatprep.subr.mxu0 0.0
        %5782 = vmatpush1.msra.mxu0 0.0
        %5783 = vmatprep.subr.mxu0 0.0
        %5784 = vmatpush1.msra.mxu0 0.0
        %5785 = vmatprep.subr.mxu0 0.0
        %5786 = vmatpush1.msra.mxu0 0.0
        %5787 = vmatprep.subr.mxu0 0.0
        %5788 = vmatpush1.msra.mxu0 0.0
        %5789 = vmatprep.subr.mxu0 0.0
        %5790 = vmatpush1.msra.mxu0 0.0
        %5791 = vmatprep.subr.mxu0 0.0
        %5792 = vmatpush1.msra.mxu0 0.0
        %5793 = vmatprep.subr.mxu0 0.0
        %5794 = vmatpush1.msra.mxu0 0.0
        %5795 = vmatprep.subr.mxu0 0.0
        %5796 = vmatpush1.msra.mxu0 0.0
        %5797 = vmatprep.subr.mxu0 0.0
        %5798 = vmatpush1.msra.mxu0 0.0
        %5799 = vmatprep.subr.mxu0 0.0
        %5800 = vmatpush1.msra.mxu0 0.0
        %5801 = vmatprep.subr.mxu0 0.0
        %5802 = vmatpush1.msra.mxu0 0.0
        %5803 = vmatprep.subr.mxu0 0.0
        %5804 = vmatpush1.msra.mxu0 0.0
        %5805 = vmatprep.subr.mxu0 0.0
        %5806 = vmatpush1.msra.mxu0 0.0
        %5807 = vmatprep.subr.mxu0 0.0
        %5808 = vmatpush1.msra.mxu0 0.0
        %5809 = vmatprep.subr.mxu0 0.0
        %5810 = vmatpush1.msra.mxu0 0.0
        %5811 = vmatprep.subr.mxu0 0.0
        %5812 = vmatpush1.msra.mxu0 0.0
        %5813 = vmatprep.subr.mxu0 0.0
        %5814 = vmatpush1.msra.mxu0 0.0
        %5815 = vmatprep.subr.mxu0 0.0
        %5816 = vmatpush1.msra.mxu0 0.0
        %5817 = vmatprep.subr.mxu0 0.0
        %5818 = vmatpush1.msra.mxu0 0.0
        %5819 = vmatprep.subr.mxu0 0.0
        %5820 = vmatpush1.msra.mxu0 0.0
        %5821 = vmatprep.subr.mxu0 0.0
        %5822 = vmatpush1.msra.mxu0 0.0
        %5823 = vmatprep.subr.mxu0 0.0
        %5824 = vmatpush1.msra.mxu0 0.0
        %5825 = vmatprep.subr.mxu0 0.0
        %5826 = vmatpush1.msra.mxu0 0.0
        %5827 = vmatprep.mubr.f32.mxu0 0.0
        %v5828 = vand.u32 %v5386, 4294901760
        %5829 = vmatmul.mubr.f32.gmra.mrb[0].mxu0 %v5828
        %v5830 = vpop.f32.mrb[0].mxu0
        %v5831 = vadd.f32 %v5759, %v5830
        %v5832 = vpop.f32.mrb[0].mxu0
        %5833 = vdwg.mxu0
        %v5835 = vsel %vm2185, %v5831, 0
        %5837 = vmatprep.subr.mxu0 0.0
        %v5838 = vand.u32 %v2178, 4294901760
        %5839 = vmatpush1.msra.mxu0 %v5838
        %5840 = vmatprep.subr.mxu0 0.0
        %5841 = vmatpush1.msra.mxu0 0.0
        %5842 = vmatprep.subr.mxu0 0.0
        %5843 = vmatpush1.msra.mxu0 0.0
        %5844 = vmatprep.subr.mxu0 0.0
        %5845 = vmatpush1.msra.mxu0 0.0
        %5846 = vmatprep.subr.mxu0 0.0
        %5847 = vmatpush1.msra.mxu0 0.0
        %5848 = vmatprep.subr.mxu0 0.0
        %5849 = vmatpush1.msra.mxu0 0.0
        %5850 = vmatprep.subr.mxu0 0.0
        %5851 = vmatpush1.msra.mxu0 0.0
        %5852 = vmatprep.subr.mxu0 0.0
        %5853 = vmatpush1.msra.mxu0 0.0
        %5854 = vmatprep.subr.mxu0 0.0
        %5855 = vmatpush1.msra.mxu0 0.0
        %5856 = vmatprep.subr.mxu0 0.0
        %5857 = vmatpush1.msra.mxu0 0.0
        %5858 = vmatprep.subr.mxu0 0.0
        %5859 = vmatpush1.msra.mxu0 0.0
        %5860 = vmatprep.subr.mxu0 0.0
        %5861 = vmatpush1.msra.mxu0 0.0
        %5862 = vmatprep.subr.mxu0 0.0
        %5863 = vmatpush1.msra.mxu0 0.0
        %5864 = vmatprep.subr.mxu0 0.0
        %5865 = vmatpush1.msra.mxu0 0.0
        %5866 = vmatprep.subr.mxu0 0.0
        %5867 = vmatpush1.msra.mxu0 0.0
        %5868 = vmatprep.subr.mxu0 0.0
        %5869 = vmatpush1.msra.mxu0 0.0
        %5870 = vmatprep.subr.mxu0 0.0
        %5871 = vmatpush1.msra.mxu0 0.0
        %5872 = vmatprep.subr.mxu0 0.0
        %5873 = vmatpush1.msra.mxu0 0.0
        %5874 = vmatprep.subr.mxu0 0.0
        %5875 = vmatpush1.msra.mxu0 0.0
        %5876 = vmatprep.subr.mxu0 0.0
        %5877 = vmatpush1.msra.mxu0 0.0
        %5878 = vmatprep.subr.mxu0 0.0
        %5879 = vmatpush1.msra.mxu0 0.0
        %5880 = vmatprep.subr.mxu0 0.0
        %5881 = vmatpush1.msra.mxu0 0.0
        %5882 = vmatprep.subr.mxu0 0.0
        %5883 = vmatpush1.msra.mxu0 0.0
        %5884 = vmatprep.subr.mxu0 0.0
        %5885 = vmatpush1.msra.mxu0 0.0
        %5886 = vmatprep.subr.mxu0 0.0
        %5887 = vmatpush1.msra.mxu0 0.0
        %5888 = vmatprep.subr.mxu0 0.0
        %5889 = vmatpush1.msra.mxu0 0.0
        %5890 = vmatprep.subr.mxu0 0.0
        %5891 = vmatpush1.msra.mxu0 0.0
        %5892 = vmatprep.subr.mxu0 0.0
        %5893 = vmatpush1.msra.mxu0 0.0
        %5894 = vmatprep.subr.mxu0 0.0
        %5895 = vmatpush1.msra.mxu0 0.0
        %5896 = vmatprep.subr.mxu0 0.0
        %5897 = vmatpush1.msra.mxu0 0.0
        %5898 = vmatprep.subr.mxu0 0.0
        %5899 = vmatpush1.msra.mxu0 0.0
        %5900 = vmatprep.subr.mxu0 0.0
        %5901 = vmatpush1.msra.mxu0 0.0
        %5902 = vmatprep.mubr.f32.mxu0 0.0
        %v5903 = vand.u32 %v5835, 4294901760
        %v5904 = vsub.f32 %v5835, %v5903
        %v5905 = vand.u32 %v5904, 4294901760
        %v5906 = vsub.f32 %v5904, %v5905
        %v5907 = vand.u32 %v5906, 4294901760
        %5908 = vmatmul.mubr.f32.gmra.mrb[0].mxu0 %v5907
        %v5909 = vpop.f32.mrb[0].mxu0
        %v5910 = vadd.f32 0.0, %v5909
        %v5911 = vpop.f32.mrb[0].mxu0
        %5912 = vdwg.mxu0
        %5913 = vmatprep.subr.mxu0 0.0
        %v5914 = vand.u32 %v2178, 4294901760
        %v5915 = vsub.f32 %v2178, %v5914
        %v5916 = vand.u32 %v5915, 4294901760
        %v5917 = vsub.f32 %v5915, %v5916
        %v5918 = vand.u32 %v5917, 4294901760
        %5919 = vmatpush1.msra.mxu0 %v5918
        %5920 = vmatprep.subr.mxu0 0.0
        %5921 = vmatpush1.msra.mxu0 0.0
        %5922 = vmatprep.subr.mxu0 0.0
        %5923 = vmatpush1.msra.mxu0 0.0
        %5924 = vmatprep.subr.mxu0 0.0
        %5925 = vmatpush1.msra.mxu0 0.0
        %5926 = vmatprep.subr.mxu0 0.0
        %5927 = vmatpush1.msra.mxu0 0.0
        %5928 = vmatprep.subr.mxu0 0.0
        %5929 = vmatpush1.msra.mxu0 0.0
        %5930 = vmatprep.subr.mxu0 0.0
        %5931 = vmatpush1.msra.mxu0 0.0
        %5932 = vmatprep.subr.mxu0 0.0
        %5933 = vmatpush1.msra.mxu0 0.0
        %5934 = vmatprep.subr.mxu0 0.0
        %5935 = vmatpush1.msra.mxu0 0.0
        %5936 = vmatprep.subr.mxu0 0.0
        %5937 = vmatpush1.msra.mxu0 0.0
        %5938 = vmatprep.subr.mxu0 0.0
        %5939 = vmatpush1.msra.mxu0 0.0
        %5940 = vmatprep.subr.mxu0 0.0
        %5941 = vmatpush1.msra.mxu0 0.0
        %5942 = vmatprep.subr.mxu0 0.0
        %5943 = vmatpush1.msra.mxu0 0.0
        %5944 = vmatprep.subr.mxu0 0.0
        %5945 = vmatpush1.msra.mxu0 0.0
        %5946 = vmatprep.subr.mxu0 0.0
        %5947 = vmatpush1.msra.mxu0 0.0
        %5948 = vmatprep.subr.mxu0 0.0
        %5949 = vmatpush1.msra.mxu0 0.0
        %5950 = vmatprep.subr.mxu0 0.0
        %5951 = vmatpush1.msra.mxu0 0.0
        %5952 = vmatprep.subr.mxu0 0.0
        %5953 = vmatpush1.msra.mxu0 0.0
        %5954 = vmatprep.subr.mxu0 0.0
        %5955 = vmatpush1.msra.mxu0 0.0
        %5956 = vmatprep.subr.mxu0 0.0
        %5957 = vmatpush1.msra.mxu0 0.0
        %5958 = vmatprep.subr.mxu0 0.0
        %5959 = vmatpush1.msra.mxu0 0.0
        %5960 = vmatprep.subr.mxu0 0.0
        %5961 = vmatpush1.msra.mxu0 0.0
        %5962 = vmatprep.subr.mxu0 0.0
        %5963 = vmatpush1.msra.mxu0 0.0
        %5964 = vmatprep.subr.mxu0 0.0
        %5965 = vmatpush1.msra.mxu0 0.0
        %5966 = vmatprep.subr.mxu0 0.0
        %5967 = vmatpush1.msra.mxu0 0.0
        %5968 = vmatprep.subr.mxu0 0.0
        %5969 = vmatpush1.msra.mxu0 0.0
        %5970 = vmatprep.subr.mxu0 0.0
        %5971 = vmatpush1.msra.mxu0 0.0
        %5972 = vmatprep.subr.mxu0 0.0
        %5973 = vmatpush1.msra.mxu0 0.0
        %5974 = vmatprep.subr.mxu0 0.0
        %5975 = vmatpush1.msra.mxu0 0.0
        %5976 = vmatprep.subr.mxu0 0.0
        %5977 = vmatpush1.msra.mxu0 0.0
        %5978 = vmatprep.subr.mxu0 0.0
        %5979 = vmatpush1.msra.mxu0 0.0
        %5980 = vmatprep.subr.mxu0 0.0
        %5981 = vmatpush1.msra.mxu0 0.0
        %5982 = vmatprep.mubr.f32.mxu0 0.0
        %v5983 = vand.u32 %v5835, 4294901760
        %5984 = vmatmul.mubr.f32.gmra.mrb[0].mxu0 %v5983
        %v5985 = vpop.f32.mrb[0].mxu0
        %v5986 = vadd.f32 %v5910, %v5985
        %v5987 = vpop.f32.mrb[0].mxu0
        %5988 = vdwg.mxu0
        %5989 = vmatprep.subr.mxu0 0.0
        %v5990 = vand.u32 %v2178, 4294901760
        %v5991 = vsub.f32 %v2178, %v5990
        %5992 = vmatpush1.msra.mxu0 %v5991
        %5993 = vmatprep.subr.mxu0 0.0
        %5994 = vmatpush1.msra.mxu0 0.0
        %5995 = vmatprep.subr.mxu0 0.0
        %5996 = vmatpush1.msra.mxu0 0.0
        %5997 = vmatprep.subr.mxu0 0.0
        %5998 = vmatpush1.msra.mxu0 0.0
        %5999 = vmatprep.subr.mxu0 0.0
        %6000 = vmatpush1.msra.mxu0 0.0
        %6001 = vmatprep.subr.mxu0 0.0
        %6002 = vmatpush1.msra.mxu0 0.0
        %6003 = vmatprep.subr.mxu0 0.0
        %6004 = vmatpush1.msra.mxu0 0.0
        %6005 = vmatprep.subr.mxu0 0.0
        %6006 = vmatpush1.msra.mxu0 0.0
        %6007 = vmatprep.subr.mxu0 0.0
        %6008 = vmatpush1.msra.mxu0 0.0
        %6009 = vmatprep.subr.mxu0 0.0
        %6010 = vmatpush1.msra.mxu0 0.0
        %6011 = vmatprep.subr.mxu0 0.0
        %6012 = vmatpush1.msra.mxu0 0.0
        %6013 = vmatprep.subr.mxu0 0.0
        %6014 = vmatpush1.msra.mxu0 0.0
        %6015 = vmatprep.subr.mxu0 0.0
        %6016 = vmatpush1.msra.mxu0 0.0
        %6017 = vmatprep.subr.mxu0 0.0
        %6018 = vmatpush1.msra.mxu0 0.0
        %6019 = vmatprep.subr.mxu0 0.0
        %6020 = vmatpush1.msra.mxu0 0.0
        %6021 = vmatprep.subr.mxu0 0.0
        %6022 = vmatpush1.msra.mxu0 0.0
        %6023 = vmatprep.subr.mxu0 0.0
        %6024 = vmatpush1.msra.mxu0 0.0
        %6025 = vmatprep.subr.mxu0 0.0
        %6026 = vmatpush1.msra.mxu0 0.0
        %6027 = vmatprep.subr.mxu0 0.0
        %6028 = vmatpush1.msra.mxu0 0.0
        %6029 = vmatprep.subr.mxu0 0.0
        %6030 = vmatpush1.msra.mxu0 0.0
        %6031 = vmatprep.subr.mxu0 0.0
        %6032 = vmatpush1.msra.mxu0 0.0
        %6033 = vmatprep.subr.mxu0 0.0
        %6034 = vmatpush1.msra.mxu0 0.0
        %6035 = vmatprep.subr.mxu0 0.0
        %6036 = vmatpush1.msra.mxu0 0.0
        %6037 = vmatprep.subr.mxu0 0.0
        %6038 = vmatpush1.msra.mxu0 0.0
        %6039 = vmatprep.subr.mxu0 0.0
        %6040 = vmatpush1.msra.mxu0 0.0
        %6041 = vmatprep.subr.mxu0 0.0
        %6042 = vmatpush1.msra.mxu0 0.0
        %6043 = vmatprep.subr.mxu0 0.0
        %6044 = vmatpush1.msra.mxu0 0.0
        %6045 = vmatprep.subr.mxu0 0.0
        %6046 = vmatpush1.msra.mxu0 0.0
        %6047 = vmatprep.subr.mxu0 0.0
        %6048 = vmatpush1.msra.mxu0 0.0
        %6049 = vmatprep.subr.mxu0 0.0
        %6050 = vmatpush1.msra.mxu0 0.0
        %6051 = vmatprep.subr.mxu0 0.0
        %6052 = vmatpush1.msra.mxu0 0.0
        %6053 = vmatprep.subr.mxu0 0.0
        %6054 = vmatpush1.msra.mxu0 0.0
        %6055 = vmatprep.mubr.f32.mxu0 0.0
        %v6056 = vand.u32 %v5835, 4294901760
        %v6057 = vsub.f32 %v5835, %v6056
        %6058 = vmatmul.mubr.f32.gmra.mrb[0].mxu0 %v6057
        %v6059 = vpop.f32.mrb[0].mxu0
        %v6060 = vadd.f32 %v5986, %v6059
        %v6061 = vpop.f32.mrb[0].mxu0
        %6062 = vdwg.mxu0
        %6063 = vmatprep.subr.mxu0 0.0
        %v6064 = vand.u32 %v2178, 4294901760
        %6065 = vmatpush1.msra.mxu0 %v6064
        %6066 = vmatprep.subr.mxu0 0.0
        %6067 = vmatpush1.msra.mxu0 0.0
        %6068 = vmatprep.subr.mxu0 0.0
        %6069 = vmatpush1.msra.mxu0 0.0
        %6070 = vmatprep.subr.mxu0 0.0
        %6071 = vmatpush1.msra.mxu0 0.0
        %6072 = vmatprep.subr.mxu0 0.0
        %6073 = vmatpush1.msra.mxu0 0.0
        %6074 = vmatprep.subr.mxu0 0.0
        %6075 = vmatpush1.msra.mxu0 0.0
        %6076 = vmatprep.subr.mxu0 0.0
        %6077 = vmatpush1.msra.mxu0 0.0
        %6078 = vmatprep.subr.mxu0 0.0
        %6079 = vmatpush1.msra.mxu0 0.0
        %6080 = vmatprep.subr.mxu0 0.0
        %6081 = vmatpush1.msra.mxu0 0.0
        %6082 = vmatprep.subr.mxu0 0.0
        %6083 = vmatpush1.msra.mxu0 0.0
        %6084 = vmatprep.subr.mxu0 0.0
        %6085 = vmatpush1.msra.mxu0 0.0
        %6086 = vmatprep.subr.mxu0 0.0
        %6087 = vmatpush1.msra.mxu0 0.0
        %6088 = vmatprep.subr.mxu0 0.0
        %6089 = vmatpush1.msra.mxu0 0.0
        %6090 = vmatprep.subr.mxu0 0.0
        %6091 = vmatpush1.msra.mxu0 0.0
        %6092 = vmatprep.subr.mxu0 0.0
        %6093 = vmatpush1.msra.mxu0 0.0
        %6094 = vmatprep.subr.mxu0 0.0
        %6095 = vmatpush1.msra.mxu0 0.0
        %6096 = vmatprep.subr.mxu0 0.0
        %6097 = vmatpush1.msra.mxu0 0.0
        %6098 = vmatprep.subr.mxu0 0.0
        %6099 = vmatpush1.msra.mxu0 0.0
        %6100 = vmatprep.subr.mxu0 0.0
        %6101 = vmatpush1.msra.mxu0 0.0
        %6102 = vmatprep.subr.mxu0 0.0
        %6103 = vmatpush1.msra.mxu0 0.0
        %6104 = vmatprep.subr.mxu0 0.0
        %6105 = vmatpush1.msra.mxu0 0.0
        %6106 = vmatprep.subr.mxu0 0.0
        %6107 = vmatpush1.msra.mxu0 0.0
        %6108 = vmatprep.subr.mxu0 0.0
        %6109 = vmatpush1.msra.mxu0 0.0
        %6110 = vmatprep.subr.mxu0 0.0
        %6111 = vmatpush1.msra.mxu0 0.0
        %6112 = vmatprep.subr.mxu0 0.0
        %6113 = vmatpush1.msra.mxu0 0.0
        %6114 = vmatprep.subr.mxu0 0.0
        %6115 = vmatpush1.msra.mxu0 0.0
        %6116 = vmatprep.subr.mxu0 0.0
        %6117 = vmatpush1.msra.mxu0 0.0
        %6118 = vmatprep.subr.mxu0 0.0
        %6119 = vmatpush1.msra.mxu0 0.0
        %6120 = vmatprep.subr.mxu0 0.0
        %6121 = vmatpush1.msra.mxu0 0.0
        %6122 = vmatprep.subr.mxu0 0.0
        %6123 = vmatpush1.msra.mxu0 0.0
        %6124 = vmatprep.subr.mxu0 0.0
        %6125 = vmatpush1.msra.mxu0 0.0
        %6126 = vmatprep.subr.mxu0 0.0
        %6127 = vmatpush1.msra.mxu0 0.0
        %6128 = vmatprep.mubr.f32.mxu0 0.0
        %v6129 = vand.u32 %v5835, 4294901760
        %v6130 = vsub.f32 %v5835, %v6129
        %v6131 = vand.u32 %v6130, 4294901760
        %6132 = vmatmul.mubr.f32.gmra.mrb[0].mxu0 %v6131
        %v6133 = vpop.f32.mrb[0].mxu0
        %v6134 = vadd.f32 %v6060, %v6133
        %v6135 = vpop.f32.mrb[0].mxu0
        %6136 = vdwg.mxu0
        %6137 = vmatprep.subr.mxu0 0.0
        %v6138 = vand.u32 %v2178, 4294901760
        %v6139 = vsub.f32 %v2178, %v6138
        %v6140 = vand.u32 %v6139, 4294901760
        %6141 = vmatpush1.msra.mxu0 %v6140
        %6142 = vmatprep.subr.mxu0 0.0
        %6143 = vmatpush1.msra.mxu0 0.0
        %6144 = vmatprep.subr.mxu0 0.0
        %6145 = vmatpush1.msra.mxu0 0.0
        %6146 = vmatprep.subr.mxu0 0.0
        %6147 = vmatpush1.msra.mxu0 0.0
        %6148 = vmatprep.subr.mxu0 0.0
        %6149 = vmatpush1.msra.mxu0 0.0
        %6150 = vmatprep.subr.mxu0 0.0
        %6151 = vmatpush1.msra.mxu0 0.0
        %6152 = vmatprep.subr.mxu0 0.0
        %6153 = vmatpush1.msra.mxu0 0.0
        %6154 = vmatprep.subr.mxu0 0.0
        %6155 = vmatpush1.msra.mxu0 0.0
        %6156 = vmatprep.subr.mxu0 0.0
        %6157 = vmatpush1.msra.mxu0 0.0
        %6158 = vmatprep.subr.mxu0 0.0
        %6159 = vmatpush1.msra.mxu0 0.0
        %6160 = vmatprep.subr.mxu0 0.0
        %6161 = vmatpush1.msra.mxu0 0.0
        %6162 = vmatprep.subr.mxu0 0.0
        %6163 = vmatpush1.msra.mxu0 0.0
        %6164 = vmatprep.subr.mxu0 0.0
        %6165 = vmatpush1.msra.mxu0 0.0
        %6166 = vmatprep.subr.mxu0 0.0
        %6167 = vmatpush1.msra.mxu0 0.0
        %6168 = vmatprep.subr.mxu0 0.0
        %6169 = vmatpush1.msra.mxu0 0.0
        %6170 = vmatprep.subr.mxu0 0.0
        %6171 = vmatpush1.msra.mxu0 0.0
        %6172 = vmatprep.subr.mxu0 0.0
        %6173 = vmatpush1.msra.mxu0 0.0
        %6174 = vmatprep.subr.mxu0 0.0
        %6175 = vmatpush1.msra.mxu0 0.0
        %6176 = vmatprep.subr.mxu0 0.0
        %6177 = vmatpush1.msra.mxu0 0.0
        %6178 = vmatprep.subr.mxu0 0.0
        %6179 = vmatpush1.msra.mxu0 0.0
        %6180 = vmatprep.subr.mxu0 0.0
        %6181 = vmatpush1.msra.mxu0 0.0
        %6182 = vmatprep.subr.mxu0 0.0
        %6183 = vmatpush1.msra.mxu0 0.0
        %6184 = vmatprep.subr.mxu0 0.0
        %6185 = vmatpush1.msra.mxu0 0.0
        %6186 = vmatprep.subr.mxu0 0.0
        %6187 = vmatpush1.msra.mxu0 0.0
        %6188 = vmatprep.subr.mxu0 0.0
        %6189 = vmatpush1.msra.mxu0 0.0
        %6190 = vmatprep.subr.mxu0 0.0
        %6191 = vmatpush1.msra.mxu0 0.0
        %6192 = vmatprep.subr.mxu0 0.0
        %6193 = vmatpush1.msra.mxu0 0.0
        %6194 = vmatprep.subr.mxu0 0.0
        %6195 = vmatpush1.msra.mxu0 0.0
        %6196 = vmatprep.subr.mxu0 0.0
        %6197 = vmatpush1.msra.mxu0 0.0
        %6198 = vmatprep.subr.mxu0 0.0
        %6199 = vmatpush1.msra.mxu0 0.0
        %6200 = vmatprep.subr.mxu0 0.0
        %6201 = vmatpush1.msra.mxu0 0.0
        %6202 = vmatprep.subr.mxu0 0.0
        %6203 = vmatpush1.msra.mxu0 0.0
        %6204 = vmatprep.mubr.f32.mxu0 0.0
        %v6205 = vand.u32 %v5835, 4294901760
        %6206 = vmatmul.mubr.f32.gmra.mrb[0].mxu0 %v6205
        %v6207 = vpop.f32.mrb[0].mxu0
        %v6208 = vadd.f32 %v6134, %v6207
        %v6209 = vpop.f32.mrb[0].mxu0
        %6210 = vdwg.mxu0
        %6211 = vmatprep.subr.mxu0 0.0
        %v6212 = vand.u32 %v2178, 4294901760
        %6213 = vmatpush1.msra.mxu0 %v6212
        %6214 = vmatprep.subr.mxu0 0.0
        %6215 = vmatpush1.msra.mxu0 0.0
        %6216 = vmatprep.subr.mxu0 0.0
        %6217 = vmatpush1.msra.mxu0 0.0
        %6218 = vmatprep.subr.mxu0 0.0
        %6219 = vmatpush1.msra.mxu0 0.0
        %6220 = vmatprep.subr.mxu0 0.0
        %6221 = vmatpush1.msra.mxu0 0.0
        %6222 = vmatprep.subr.mxu0 0.0
        %6223 = vmatpush1.msra.mxu0 0.0
        %6224 = vmatprep.subr.mxu0 0.0
        %6225 = vmatpush1.msra.mxu0 0.0
        %6226 = vmatprep.subr.mxu0 0.0
        %6227 = vmatpush1.msra.mxu0 0.0
        %6228 = vmatprep.subr.mxu0 0.0
        %6229 = vmatpush1.msra.mxu0 0.0
        %6230 = vmatprep.subr.mxu0 0.0
        %6231 = vmatpush1.msra.mxu0 0.0
        %6232 = vmatprep.subr.mxu0 0.0
        %6233 = vmatpush1.msra.mxu0 0.0
        %6234 = vmatprep.subr.mxu0 0.0
        %6235 = vmatpush1.msra.mxu0 0.0
        %6236 = vmatprep.subr.mxu0 0.0
        %6237 = vmatpush1.msra.mxu0 0.0
        %6238 = vmatprep.subr.mxu0 0.0
        %6239 = vmatpush1.msra.mxu0 0.0
        %6240 = vmatprep.subr.mxu0 0.0
        %6241 = vmatpush1.msra.mxu0 0.0
        %6242 = vmatprep.subr.mxu0 0.0
        %6243 = vmatpush1.msra.mxu0 0.0
        %6244 = vmatprep.subr.mxu0 0.0
        %6245 = vmatpush1.msra.mxu0 0.0
        %6246 = vmatprep.subr.mxu0 0.0
        %6247 = vmatpush1.msra.mxu0 0.0
        %6248 = vmatprep.subr.mxu0 0.0
        %6249 = vmatpush1.msra.mxu0 0.0
        %6250 = vmatprep.subr.mxu0 0.0
        %6251 = vmatpush1.msra.mxu0 0.0
        %6252 = vmatprep.subr.mxu0 0.0
        %6253 = vmatpush1.msra.mxu0 0.0
        %6254 = vmatprep.subr.mxu0 0.0
        %6255 = vmatpush1.msra.mxu0 0.0
        %6256 = vmatprep.subr.mxu0 0.0
        %6257 = vmatpush1.msra.mxu0 0.0
        %6258 = vmatprep.subr.mxu0 0.0
        %6259 = vmatpush1.msra.mxu0 0.0
        %6260 = vmatprep.subr.mxu0 0.0
        %6261 = vmatpush1.msra.mxu0 0.0
        %6262 = vmatprep.subr.mxu0 0.0
        %6263 = vmatpush1.msra.mxu0 0.0
        %6264 = vmatprep.subr.mxu0 0.0
        %6265 = vmatpush1.msra.mxu0 0.0
        %6266 = vmatprep.subr.mxu0 0.0
        %6267 = vmatpush1.msra.mxu0 0.0
        %6268 = vmatprep.subr.mxu0 0.0
        %6269 = vmatpush1.msra.mxu0 0.0
        %6270 = vmatprep.subr.mxu0 0.0
        %6271 = vmatpush1.msra.mxu0 0.0
        %6272 = vmatprep.subr.mxu0 0.0
        %6273 = vmatpush1.msra.mxu0 0.0
        %6274 = vmatprep.subr.mxu0 0.0
        %6275 = vmatpush1.msra.mxu0 0.0
        %6276 = vmatprep.mubr.f32.mxu0 0.0
        %v6277 = vand.u32 %v5835, 4294901760
        %6278 = vmatmul.mubr.f32.gmra.mrb[0].mxu0 %v6277
        %v6279 = vpop.f32.mrb[0].mxu0
        %v6280 = vadd.f32 %v6208, %v6279
        %v6281 = vpop.f32.mrb[0].mxu0
        %6282 = vdwg.mxu0
        %v6283 = vadd.f32 %v4913, %v6280
        %6284 = vrot.lane.b32.xlu0 %v2184, 104
        %v6285 = vpop.permute.xlu0 %6284
        %6286 = vrot.lane.b32.xlu0 %v1533, 104
        %v6287 = vpop.permute.xlu0 %6286
        %v6288 = vsel %vm2185, %v6285, 0
        %v6290 = vsel %vm2185, %v6287, 0
        %6292 = vmatprep.subr.mxu0 0.0
        %v6293 = vand.u32 %v6290, 4294901760
        %6294 = vmatpush1.xpose.msra.mxu0 %v6293
        %6295 = vmatprep.subr.mxu0 0.0
        %6296 = vmatpush1.xpose.msra.mxu0 0.0
        %6297 = vmatprep.subr.mxu0 0.0
        %6298 = vmatpush1.xpose.msra.mxu0 0.0
        %6299 = vmatprep.subr.mxu0 0.0
        %6300 = vmatpush1.xpose.msra.mxu0 0.0
        %6301 = vmatprep.subr.mxu0 0.0
        %6302 = vmatpush1.xpose.msra.mxu0 0.0
        %6303 = vmatprep.subr.mxu0 0.0
        %6304 = vmatpush1.xpose.msra.mxu0 0.0
        %6305 = vmatprep.subr.mxu0 0.0
        %6306 = vmatpush1.xpose.msra.mxu0 0.0
        %6307 = vmatprep.subr.mxu0 0.0
        %6308 = vmatpush1.xpose.msra.mxu0 0.0
        %6309 = vmatprep.subr.mxu0 0.0
        %6310 = vmatpush1.xpose.msra.mxu0 0.0
        %6311 = vmatprep.subr.mxu0 0.0
        %6312 = vmatpush1.xpose.msra.mxu0 0.0
        %6313 = vmatprep.subr.mxu0 0.0
        %6314 = vmatpush1.xpose.msra.mxu0 0.0
        %6315 = vmatprep.subr.mxu0 0.0
        %6316 = vmatpush1.xpose.msra.mxu0 0.0
        %6317 = vmatprep.subr.mxu0 0.0
        %6318 = vmatpush1.xpose.msra.mxu0 0.0
        %6319 = vmatprep.subr.mxu0 0.0
        %6320 = vmatpush1.xpose.msra.mxu0 0.0
        %6321 = vmatprep.subr.mxu0 0.0
        %6322 = vmatpush1.xpose.msra.mxu0 0.0
        %6323 = vmatprep.subr.mxu0 0.0
        %6324 = vmatpush1.xpose.msra.mxu0 0.0
        %6325 = vmatprep.subr.mxu0 0.0
        %6326 = vmatpush1.xpose.msra.mxu0 0.0
        %6327 = vmatprep.subr.mxu0 0.0
        %6328 = vmatpush1.xpose.msra.mxu0 0.0
        %6329 = vmatprep.subr.mxu0 0.0
        %6330 = vmatpush1.xpose.msra.mxu0 0.0
        %6331 = vmatprep.subr.mxu0 0.0
        %6332 = vmatpush1.xpose.msra.mxu0 0.0
        %6333 = vmatprep.subr.mxu0 0.0
        %6334 = vmatpush1.xpose.msra.mxu0 0.0
        %6335 = vmatprep.subr.mxu0 0.0
        %6336 = vmatpush1.xpose.msra.mxu0 0.0
        %6337 = vmatprep.subr.mxu0 0.0
        %6338 = vmatpush1.xpose.msra.mxu0 0.0
        %6339 = vmatprep.subr.mxu0 0.0
        %6340 = vmatpush1.xpose.msra.mxu0 0.0
        %6341 = vmatprep.subr.mxu0 0.0
        %6342 = vmatpush1.xpose.msra.mxu0 0.0
        %6343 = vmatprep.subr.mxu0 0.0
        %6344 = vmatpush1.xpose.msra.mxu0 0.0
        %6345 = vmatprep.subr.mxu0 0.0
        %6346 = vmatpush1.xpose.msra.mxu0 0.0
        %6347 = vmatprep.subr.mxu0 0.0
        %6348 = vmatpush1.xpose.msra.mxu0 0.0
        %6349 = vmatprep.subr.mxu0 0.0
        %6350 = vmatpush1.xpose.msra.mxu0 0.0
        %6351 = vmatprep.subr.mxu0 0.0
        %6352 = vmatpush1.xpose.msra.mxu0 0.0
        %6353 = vmatprep.subr.mxu0 0.0
        %6354 = vmatpush1.xpose.msra.mxu0 0.0
        %6355 = vmatprep.subr.mxu0 0.0
        %6356 = vmatpush1.xpose.msra.mxu0 0.0
        %6357 = vmatprep.mubr.f32.mxu0 0.0
        %v6358 = vand.u32 %v6288, 4294901760
        %v6359 = vsub.f32 %v6288, %v6358
        %v6360 = vand.u32 %v6359, 4294901760
        %v6361 = vsub.f32 %v6359, %v6360
        %v6362 = vand.u32 %v6361, 4294901760
        %6363 = vmatmul.mubr.f32.gmra.mrb[0].mxu0 %v6362
        %v6364 = vpop.f32.mrb[0].mxu0
        %v6365 = vadd.f32 %v2183, %v6364
        %v6366 = vpop.f32.mrb[0].mxu0
        %6367 = vdwg.mxu0
        %6368 = vmatprep.subr.mxu0 0.0
        %v6369 = vand.u32 %v6290, 4294901760
        %v6370 = vsub.f32 %v6290, %v6369
        %v6371 = vand.u32 %v6370, 4294901760
        %v6372 = vsub.f32 %v6370, %v6371
        %v6373 = vand.u32 %v6372, 4294901760
        %6374 = vmatpush1.xpose.msra.mxu0 %v6373
        %6375 = vmatprep.subr.mxu0 0.0
        %6376 = vmatpush1.xpose.msra.mxu0 0.0
        %6377 = vmatprep.subr.mxu0 0.0
        %6378 = vmatpush1.xpose.msra.mxu0 0.0
        %6379 = vmatprep.subr.mxu0 0.0
        %6380 = vmatpush1.xpose.msra.mxu0 0.0
        %6381 = vmatprep.subr.mxu0 0.0
        %6382 = vmatpush1.xpose.msra.mxu0 0.0
        %6383 = vmatprep.subr.mxu0 0.0
        %6384 = vmatpush1.xpose.msra.mxu0 0.0
        %6385 = vmatprep.subr.mxu0 0.0
        %6386 = vmatpush1.xpose.msra.mxu0 0.0
        %6387 = vmatprep.subr.mxu0 0.0
        %6388 = vmatpush1.xpose.msra.mxu0 0.0
        %6389 = vmatprep.subr.mxu0 0.0
        %6390 = vmatpush1.xpose.msra.mxu0 0.0
        %6391 = vmatprep.subr.mxu0 0.0
        %6392 = vmatpush1.xpose.msra.mxu0 0.0
        %6393 = vmatprep.subr.mxu0 0.0
        %6394 = vmatpush1.xpose.msra.mxu0 0.0
        %6395 = vmatprep.subr.mxu0 0.0
        %6396 = vmatpush1.xpose.msra.mxu0 0.0
        %6397 = vmatprep.subr.mxu0 0.0
        %6398 = vmatpush1.xpose.msra.mxu0 0.0
        %6399 = vmatprep.subr.mxu0 0.0
        %6400 = vmatpush1.xpose.msra.mxu0 0.0
        %6401 = vmatprep.subr.mxu0 0.0
        %6402 = vmatpush1.xpose.msra.mxu0 0.0
        %6403 = vmatprep.subr.mxu0 0.0
        %6404 = vmatpush1.xpose.msra.mxu0 0.0
        %6405 = vmatprep.subr.mxu0 0.0
        %6406 = vmatpush1.xpose.msra.mxu0 0.0
        %6407 = vmatprep.subr.mxu0 0.0
        %6408 = vmatpush1.xpose.msra.mxu0 0.0
        %6409 = vmatprep.subr.mxu0 0.0
        %6410 = vmatpush1.xpose.msra.mxu0 0.0
        %6411 = vmatprep.subr.mxu0 0.0
        %6412 = vmatpush1.xpose.msra.mxu0 0.0
        %6413 = vmatprep.subr.mxu0 0.0
        %6414 = vmatpush1.xpose.msra.mxu0 0.0
        %6415 = vmatprep.subr.mxu0 0.0
        %6416 = vmatpush1.xpose.msra.mxu0 0.0
        %6417 = vmatprep.subr.mxu0 0.0
        %6418 = vmatpush1.xpose.msra.mxu0 0.0
        %6419 = vmatprep.subr.mxu0 0.0
        %6420 = vmatpush1.xpose.msra.mxu0 0.0
        %6421 = vmatprep.subr.mxu0 0.0
        %6422 = vmatpush1.xpose.msra.mxu0 0.0
        %6423 = vmatprep.subr.mxu0 0.0
        %6424 = vmatpush1.xpose.msra.mxu0 0.0
        %6425 = vmatprep.subr.mxu0 0.0
        %6426 = vmatpush1.xpose.msra.mxu0 0.0
        %6427 = vmatprep.subr.mxu0 0.0
        %6428 = vmatpush1.xpose.msra.mxu0 0.0
        %6429 = vmatprep.subr.mxu0 0.0
        %6430 = vmatpush1.xpose.msra.mxu0 0.0
        %6431 = vmatprep.subr.mxu0 0.0
        %6432 = vmatpush1.xpose.msra.mxu0 0.0
        %6433 = vmatprep.subr.mxu0 0.0
        %6434 = vmatpush1.xpose.msra.mxu0 0.0
        %6435 = vmatprep.subr.mxu0 0.0
        %6436 = vmatpush1.xpose.msra.mxu0 0.0
        %6437 = vmatprep.mubr.f32.mxu0 0.0
        %v6438 = vand.u32 %v6288, 4294901760
        %6439 = vmatmul.mubr.f32.gmra.mrb[0].mxu0 %v6438
        %v6440 = vpop.f32.mrb[0].mxu0
        %v6441 = vadd.f32 %v6365, %v6440
        %v6442 = vpop.f32.mrb[0].mxu0
        %6443 = vdwg.mxu0
        %6444 = vmatprep.subr.mxu0 0.0
        %v6445 = vand.u32 %v6290, 4294901760
        %v6446 = vsub.f32 %v6290, %v6445
        %6447 = vmatpush1.xpose.msra.mxu0 %v6446
        %6448 = vmatprep.subr.mxu0 0.0
        %6449 = vmatpush1.xpose.msra.mxu0 0.0
        %6450 = vmatprep.subr.mxu0 0.0
        %6451 = vmatpush1.xpose.msra.mxu0 0.0
        %6452 = vmatprep.subr.mxu0 0.0
        %6453 = vmatpush1.xpose.msra.mxu0 0.0
        %6454 = vmatprep.subr.mxu0 0.0
        %6455 = vmatpush1.xpose.msra.mxu0 0.0
        %6456 = vmatprep.subr.mxu0 0.0
        %6457 = vmatpush1.xpose.msra.mxu0 0.0
        %6458 = vmatprep.subr.mxu0 0.0
        %6459 = vmatpush1.xpose.msra.mxu0 0.0
        %6460 = vmatprep.subr.mxu0 0.0
        %6461 = vmatpush1.xpose.msra.mxu0 0.0
        %6462 = vmatprep.subr.mxu0 0.0
        %6463 = vmatpush1.xpose.msra.mxu0 0.0
        %6464 = vmatprep.subr.mxu0 0.0
        %6465 = vmatpush1.xpose.msra.mxu0 0.0
        %6466 = vmatprep.subr.mxu0 0.0
        %6467 = vmatpush1.xpose.msra.mxu0 0.0
        %6468 = vmatprep.subr.mxu0 0.0
        %6469 = vmatpush1.xpose.msra.mxu0 0.0
        %6470 = vmatprep.subr.mxu0 0.0
        %6471 = vmatpush1.xpose.msra.mxu0 0.0
        %6472 = vmatprep.subr.mxu0 0.0
        %6473 = vmatpush1.xpose.msra.mxu0 0.0
        %6474 = vmatprep.subr.mxu0 0.0
        %6475 = vmatpush1.xpose.msra.mxu0 0.0
        %6476 = vmatprep.subr.mxu0 0.0
        %6477 = vmatpush1.xpose.msra.mxu0 0.0
        %6478 = vmatprep.subr.mxu0 0.0
        %6479 = vmatpush1.xpose.msra.mxu0 0.0
        %6480 = vmatprep.subr.mxu0 0.0
        %6481 = vmatpush1.xpose.msra.mxu0 0.0
        %6482 = vmatprep.subr.mxu0 0.0
        %6483 = vmatpush1.xpose.msra.mxu0 0.0
        %6484 = vmatprep.subr.mxu0 0.0
        %6485 = vmatpush1.xpose.msra.mxu0 0.0
        %6486 = vmatprep.subr.mxu0 0.0
        %6487 = vmatpush1.xpose.msra.mxu0 0.0
        %6488 = vmatprep.subr.mxu0 0.0
        %6489 = vmatpush1.xpose.msra.mxu0 0.0
        %6490 = vmatprep.subr.mxu0 0.0
        %6491 = vmatpush1.xpose.msra.mxu0 0.0
        %6492 = vmatprep.subr.mxu0 0.0
        %6493 = vmatpush1.xpose.msra.mxu0 0.0
        %6494 = vmatprep.subr.mxu0 0.0
        %6495 = vmatpush1.xpose.msra.mxu0 0.0
        %6496 = vmatprep.subr.mxu0 0.0
        %6497 = vmatpush1.xpose.msra.mxu0 0.0
        %6498 = vmatprep.subr.mxu0 0.0
        %6499 = vmatpush1.xpose.msra.mxu0 0.0
        %6500 = vmatprep.subr.mxu0 0.0
        %6501 = vmatpush1.xpose.msra.mxu0 0.0
        %6502 = vmatprep.subr.mxu0 0.0
        %6503 = vmatpush1.xpose.msra.mxu0 0.0
        %6504 = vmatprep.subr.mxu0 0.0
        %6505 = vmatpush1.xpose.msra.mxu0 0.0
        %6506 = vmatprep.subr.mxu0 0.0
        %6507 = vmatpush1.xpose.msra.mxu0 0.0
        %6508 = vmatprep.subr.mxu0 0.0
        %6509 = vmatpush1.xpose.msra.mxu0 0.0
        %6510 = vmatprep.mubr.f32.mxu0 0.0
        %v6511 = vand.u32 %v6288, 4294901760
        %v6512 = vsub.f32 %v6288, %v6511
        %6513 = vmatmul.mubr.f32.gmra.mrb[0].mxu0 %v6512
        %v6514 = vpop.f32.mrb[0].mxu0
        %v6515 = vadd.f32 %v6441, %v6514
        %v6516 = vpop.f32.mrb[0].mxu0
        %6517 = vdwg.mxu0
        %6518 = vmatprep.subr.mxu0 0.0
        %v6519 = vand.u32 %v6290, 4294901760
        %6520 = vmatpush1.xpose.msra.mxu0 %v6519
        %6521 = vmatprep.subr.mxu0 0.0
        %6522 = vmatpush1.xpose.msra.mxu0 0.0
        %6523 = vmatprep.subr.mxu0 0.0
        %6524 = vmatpush1.xpose.msra.mxu0 0.0
        %6525 = vmatprep.subr.mxu0 0.0
        %6526 = vmatpush1.xpose.msra.mxu0 0.0
        %6527 = vmatprep.subr.mxu0 0.0
        %6528 = vmatpush1.xpose.msra.mxu0 0.0
        %6529 = vmatprep.subr.mxu0 0.0
        %6530 = vmatpush1.xpose.msra.mxu0 0.0
        %6531 = vmatprep.subr.mxu0 0.0
        %6532 = vmatpush1.xpose.msra.mxu0 0.0
        %6533 = vmatprep.subr.mxu0 0.0
        %6534 = vmatpush1.xpose.msra.mxu0 0.0
        %6535 = vmatprep.subr.mxu0 0.0
        %6536 = vmatpush1.xpose.msra.mxu0 0.0
        %6537 = vmatprep.subr.mxu0 0.0
        %6538 = vmatpush1.xpose.msra.mxu0 0.0
        %6539 = vmatprep.subr.mxu0 0.0
        %6540 = vmatpush1.xpose.msra.mxu0 0.0
        %6541 = vmatprep.subr.mxu0 0.0
        %6542 = vmatpush1.xpose.msra.mxu0 0.0
        %6543 = vmatprep.subr.mxu0 0.0
        %6544 = vmatpush1.xpose.msra.mxu0 0.0
        %6545 = vmatprep.subr.mxu0 0.0
        %6546 = vmatpush1.xpose.msra.mxu0 0.0
        %6547 = vmatprep.subr.mxu0 0.0
        %6548 = vmatpush1.xpose.msra.mxu0 0.0
        %6549 = vmatprep.subr.mxu0 0.0
        %6550 = vmatpush1.xpose.msra.mxu0 0.0
        %6551 = vmatprep.subr.mxu0 0.0
        %6552 = vmatpush1.xpose.msra.mxu0 0.0
        %6553 = vmatprep.subr.mxu0 0.0
        %6554 = vmatpush1.xpose.msra.mxu0 0.0
        %6555 = vmatprep.subr.mxu0 0.0
        %6556 = vmatpush1.xpose.msra.mxu0 0.0
        %6557 = vmatprep.subr.mxu0 0.0
        %6558 = vmatpush1.xpose.msra.mxu0 0.0
        %6559 = vmatprep.subr.mxu0 0.0
        %6560 = vmatpush1.xpose.msra.mxu0 0.0
        %6561 = vmatprep.subr.mxu0 0.0
        %6562 = vmatpush1.xpose.msra.mxu0 0.0
        %6563 = vmatprep.subr.mxu0 0.0
        %6564 = vmatpush1.xpose.msra.mxu0 0.0
        %6565 = vmatprep.subr.mxu0 0.0
        %6566 = vmatpush1.xpose.msra.mxu0 0.0
        %6567 = vmatprep.subr.mxu0 0.0
        %6568 = vmatpush1.xpose.msra.mxu0 0.0
        %6569 = vmatprep.subr.mxu0 0.0
        %6570 = vmatpush1.xpose.msra.mxu0 0.0
        %6571 = vmatprep.subr.mxu0 0.0
        %6572 = vmatpush1.xpose.msra.mxu0 0.0
        %6573 = vmatprep.subr.mxu0 0.0
        %6574 = vmatpush1.xpose.msra.mxu0 0.0
        %6575 = vmatprep.subr.mxu0 0.0
        %6576 = vmatpush1.xpose.msra.mxu0 0.0
        %6577 = vmatprep.subr.mxu0 0.0
        %6578 = vmatpush1.xpose.msra.mxu0 0.0
        %6579 = vmatprep.subr.mxu0 0.0
        %6580 = vmatpush1.xpose.msra.mxu0 0.0
        %6581 = vmatprep.subr.mxu0 0.0
        %6582 = vmatpush1.xpose.msra.mxu0 0.0
        %6583 = vmatprep.mubr.f32.mxu0 0.0
        %v6584 = vand.u32 %v6288, 4294901760
        %v6585 = vsub.f32 %v6288, %v6584
        %v6586 = vand.u32 %v6585, 4294901760
        %6587 = vmatmul.mubr.f32.gmra.mrb[0].mxu0 %v6586
        %v6588 = vpop.f32.mrb[0].mxu0
        %v6589 = vadd.f32 %v6515, %v6588
        %v6590 = vpop.f32.mrb[0].mxu0
        %6591 = vdwg.mxu0
        %6592 = vmatprep.subr.mxu0 0.0
        %v6593 = vand.u32 %v6290, 4294901760
        %v6594 = vsub.f32 %v6290, %v6593
        %v6595 = vand.u32 %v6594, 4294901760
        %6596 = vmatpush1.xpose.msra.mxu0 %v6595
        %6597 = vmatprep.subr.mxu0 0.0
        %6598 = vmatpush1.xpose.msra.mxu0 0.0
        %6599 = vmatprep.subr.mxu0 0.0
        %6600 = vmatpush1.xpose.msra.mxu0 0.0
        %6601 = vmatprep.subr.mxu0 0.0
        %6602 = vmatpush1.xpose.msra.mxu0 0.0
        %6603 = vmatprep.subr.mxu0 0.0
        %6604 = vmatpush1.xpose.msra.mxu0 0.0
        %6605 = vmatprep.subr.mxu0 0.0
        %6606 = vmatpush1.xpose.msra.mxu0 0.0
        %6607 = vmatprep.subr.mxu0 0.0
        %6608 = vmatpush1.xpose.msra.mxu0 0.0
        %6609 = vmatprep.subr.mxu0 0.0
        %6610 = vmatpush1.xpose.msra.mxu0 0.0
        %6611 = vmatprep.subr.mxu0 0.0
        %6612 = vmatpush1.xpose.msra.mxu0 0.0
        %6613 = vmatprep.subr.mxu0 0.0
        %6614 = vmatpush1.xpose.msra.mxu0 0.0
        %6615 = vmatprep.subr.mxu0 0.0
        %6616 = vmatpush1.xpose.msra.mxu0 0.0
        %6617 = vmatprep.subr.mxu0 0.0
        %6618 = vmatpush1.xpose.msra.mxu0 0.0
        %6619 = vmatprep.subr.mxu0 0.0
        %6620 = vmatpush1.xpose.msra.mxu0 0.0
        %6621 = vmatprep.subr.mxu0 0.0
        %6622 = vmatpush1.xpose.msra.mxu0 0.0
        %6623 = vmatprep.subr.mxu0 0.0
        %6624 = vmatpush1.xpose.msra.mxu0 0.0
        %6625 = vmatprep.subr.mxu0 0.0
        %6626 = vmatpush1.xpose.msra.mxu0 0.0
        %6627 = vmatprep.subr.mxu0 0.0
        %6628 = vmatpush1.xpose.msra.mxu0 0.0
        %6629 = vmatprep.subr.mxu0 0.0
        %6630 = vmatpush1.xpose.msra.mxu0 0.0
        %6631 = vmatprep.subr.mxu0 0.0
        %6632 = vmatpush1.xpose.msra.mxu0 0.0
        %6633 = vmatprep.subr.mxu0 0.0
        %6634 = vmatpush1.xpose.msra.mxu0 0.0
        %6635 = vmatprep.subr.mxu0 0.0
        %6636 = vmatpush1.xpose.msra.mxu0 0.0
        %6637 = vmatprep.subr.mxu0 0.0
        %6638 = vmatpush1.xpose.msra.mxu0 0.0
        %6639 = vmatprep.subr.mxu0 0.0
        %6640 = vmatpush1.xpose.msra.mxu0 0.0
        %6641 = vmatprep.subr.mxu0 0.0
        %6642 = vmatpush1.xpose.msra.mxu0 0.0
        %6643 = vmatprep.subr.mxu0 0.0
        %6644 = vmatpush1.xpose.msra.mxu0 0.0
        %6645 = vmatprep.subr.mxu0 0.0
        %6646 = vmatpush1.xpose.msra.mxu0 0.0
        %6647 = vmatprep.subr.mxu0 0.0
        %6648 = vmatpush1.xpose.msra.mxu0 0.0
        %6649 = vmatprep.subr.mxu0 0.0
        %6650 = vmatpush1.xpose.msra.mxu0 0.0
        %6651 = vmatprep.subr.mxu0 0.0
        %6652 = vmatpush1.xpose.msra.mxu0 0.0
        %6653 = vmatprep.subr.mxu0 0.0
        %6654 = vmatpush1.xpose.msra.mxu0 0.0
        %6655 = vmatprep.subr.mxu0 0.0
        %6656 = vmatpush1.xpose.msra.mxu0 0.0
        %6657 = vmatprep.subr.mxu0 0.0
        %6658 = vmatpush1.xpose.msra.mxu0 0.0
        %6659 = vmatprep.mubr.f32.mxu0 0.0
        %v6660 = vand.u32 %v6288, 4294901760
        %6661 = vmatmul.mubr.f32.gmra.mrb[0].mxu0 %v6660
        %v6662 = vpop.f32.mrb[0].mxu0
        %v6663 = vadd.f32 %v6589, %v6662
        %v6664 = vpop.f32.mrb[0].mxu0
        %6665 = vdwg.mxu0
        %6666 = vmatprep.subr.mxu0 0.0
        %v6667 = vand.u32 %v6290, 4294901760
        %6668 = vmatpush1.xpose.msra.mxu0 %v6667
        %6669 = vmatprep.subr.mxu0 0.0
        %6670 = vmatpush1.xpose.msra.mxu0 0.0
        %6671 = vmatprep.subr.mxu0 0.0
        %6672 = vmatpush1.xpose.msra.mxu0 0.0
        %6673 = vmatprep.subr.mxu0 0.0
        %6674 = vmatpush1.xpose.msra.mxu0 0.0
        %6675 = vmatprep.subr.mxu0 0.0
        %6676 = vmatpush1.xpose.msra.mxu0 0.0
        %6677 = vmatprep.subr.mxu0 0.0
        %6678 = vmatpush1.xpose.msra.mxu0 0.0
        %6679 = vmatprep.subr.mxu0 0.0
        %6680 = vmatpush1.xpose.msra.mxu0 0.0
        %6681 = vmatprep.subr.mxu0 0.0
        %6682 = vmatpush1.xpose.msra.mxu0 0.0
        %6683 = vmatprep.subr.mxu0 0.0
        %6684 = vmatpush1.xpose.msra.mxu0 0.0
        %6685 = vmatprep.subr.mxu0 0.0
        %6686 = vmatpush1.xpose.msra.mxu0 0.0
        %6687 = vmatprep.subr.mxu0 0.0
        %6688 = vmatpush1.xpose.msra.mxu0 0.0
        %6689 = vmatprep.subr.mxu0 0.0
        %6690 = vmatpush1.xpose.msra.mxu0 0.0
        %6691 = vmatprep.subr.mxu0 0.0
        %6692 = vmatpush1.xpose.msra.mxu0 0.0
        %6693 = vmatprep.subr.mxu0 0.0
        %6694 = vmatpush1.xpose.msra.mxu0 0.0
        %6695 = vmatprep.subr.mxu0 0.0
        %6696 = vmatpush1.xpose.msra.mxu0 0.0
        %6697 = vmatprep.subr.mxu0 0.0
        %6698 = vmatpush1.xpose.msra.mxu0 0.0
        %6699 = vmatprep.subr.mxu0 0.0
        %6700 = vmatpush1.xpose.msra.mxu0 0.0
        %6701 = vmatprep.subr.mxu0 0.0
        %6702 = vmatpush1.xpose.msra.mxu0 0.0
        %6703 = vmatprep.subr.mxu0 0.0
        %6704 = vmatpush1.xpose.msra.mxu0 0.0
        %6705 = vmatprep.subr.mxu0 0.0
        %6706 = vmatpush1.xpose.msra.mxu0 0.0
        %6707 = vmatprep.subr.mxu0 0.0
        %6708 = vmatpush1.xpose.msra.mxu0 0.0
        %6709 = vmatprep.subr.mxu0 0.0
        %6710 = vmatpush1.xpose.msra.mxu0 0.0
        %6711 = vmatprep.subr.mxu0 0.0
        %6712 = vmatpush1.xpose.msra.mxu0 0.0
        %6713 = vmatprep.subr.mxu0 0.0
        %6714 = vmatpush1.xpose.msra.mxu0 0.0
        %6715 = vmatprep.subr.mxu0 0.0
        %6716 = vmatpush1.xpose.msra.mxu0 0.0
        %6717 = vmatprep.subr.mxu0 0.0
        %6718 = vmatpush1.xpose.msra.mxu0 0.0
        %6719 = vmatprep.subr.mxu0 0.0
        %6720 = vmatpush1.xpose.msra.mxu0 0.0
        %6721 = vmatprep.subr.mxu0 0.0
        %6722 = vmatpush1.xpose.msra.mxu0 0.0
        %6723 = vmatprep.subr.mxu0 0.0
        %6724 = vmatpush1.xpose.msra.mxu0 0.0
        %6725 = vmatprep.subr.mxu0 0.0
        %6726 = vmatpush1.xpose.msra.mxu0 0.0
        %6727 = vmatprep.subr.mxu0 0.0
        %6728 = vmatpush1.xpose.msra.mxu0 0.0
        %6729 = vmatprep.subr.mxu0 0.0
        %6730 = vmatpush1.xpose.msra.mxu0 0.0
        %6731 = vmatprep.mubr.f32.mxu0 0.0
        %v6732 = vand.u32 %v6288, 4294901760
        %6733 = vmatmul.mubr.f32.gmra.mrb[0].mxu0 %v6732
        %v6734 = vpop.f32.mrb[0].mxu0
        %v6735 = vadd.f32 %v6663, %v6734
        %v6736 = vpop.f32.mrb[0].mxu0
        %6737 = vdwg.mxu0
        %v6738 = vsel %vm2185, %v6735, -inf
        %6739 = vmax.xlane.f32.xlu0 %v6738
        %v6740 = vpop.xlane.xlu0 %6739
        %v6741 = vsub.f32 %v6735, %v6740
        %v6742 = vmul.f32 %v6741, 1.442695
        %v6743 = vpow.pop %v6742
        %v6744 = vsel %vm2185, %v6743, 0.0
        %6745 = vadd.xlane.f32.xlu0 %v6744
        %v6746 = vpop.xlane.xlu0 %6745
        %v6747 = vrcp.pop %v6746
        %v6748 = vmul.f32 1.0, %v6747
        %v6749 = vmul.f32 %v6743, %v6748
        %6750 = vrot.lane.b32.xlu0 %v2173, 104
        %v6751 = vpop.permute.xlu0 %6750
        %v6754 = vsel %vm2185, %v6749, 0
        %6756 = vmatprep.subr.mxu0 0.0
        %v6757 = vand.u32 %v6751, 4294901760
        %6758 = vmatpush1.msra.mxu0 %v6757
        %6759 = vmatprep.subr.mxu0 0.0
        %6760 = vmatpush1.msra.mxu0 0.0
        %6761 = vmatprep.subr.mxu0 0.0
        %6762 = vmatpush1.msra.mxu0 0.0
        %6763 = vmatprep.subr.mxu0 0.0
        %6764 = vmatpush1.msra.mxu0 0.0
        %6765 = vmatprep.subr.mxu0 0.0
        %6766 = vmatpush1.msra.mxu0 0.0
        %6767 = vmatprep.subr.mxu0 0.0
        %6768 = vmatpush1.msra.mxu0 0.0
        %6769 = vmatprep.subr.mxu0 0.0
        %6770 = vmatpush1.msra.mxu0 0.0
        %6771 = vmatprep.subr.mxu0 0.0
        %6772 = vmatpush1.msra.mxu0 0.0
        %6773 = vmatprep.subr.mxu0 0.0
        %6774 = vmatpush1.msra.mxu0 0.0
        %6775 = vmatprep.subr.mxu0 0.0
        %6776 = vmatpush1.msra.mxu0 0.0
        %6777 = vmatprep.subr.mxu0 0.0
        %6778 = vmatpush1.msra.mxu0 0.0
        %6779 = vmatprep.subr.mxu0 0.0
        %6780 = vmatpush1.msra.mxu0 0.0
        %6781 = vmatprep.subr.mxu0 0.0
        %6782 = vmatpush1.msra.mxu0 0.0
        %6783 = vmatprep.subr.mxu0 0.0
        %6784 = vmatpush1.msra.mxu0 0.0
        %6785 = vmatprep.subr.mxu0 0.0
        %6786 = vmatpush1.msra.mxu0 0.0
        %6787 = vmatprep.subr.mxu0 0.0
        %6788 = vmatpush1.msra.mxu0 0.0
        %6789 = vmatprep.subr.mxu0 0.0
        %6790 = vmatpush1.msra.mxu0 0.0
        %6791 = vmatprep.subr.mxu0 0.0
        %6792 = vmatpush1.msra.mxu0 0.0
        %6793 = vmatprep.subr.mxu0 0.0
        %6794 = vmatpush1.msra.mxu0 0.0
        %6795 = vmatprep.subr.mxu0 0.0
        %6796 = vmatpush1.msra.mxu0 0.0
        %6797 = vmatprep.subr.mxu0 0.0
        %6798 = vmatpush1.msra.mxu0 0.0
        %6799 = vmatprep.subr.mxu0 0.0
        %6800 = vmatpush1.msra.mxu0 0.0
        %6801 = vmatprep.subr.mxu0 0.0
        %6802 = vmatpush1.msra.mxu0 0.0
        %6803 = vmatprep.subr.mxu0 0.0
        %6804 = vmatpush1.msra.mxu0 0.0
        %6805 = vmatprep.subr.mxu0 0.0
        %6806 = vmatpush1.msra.mxu0 0.0
        %6807 = vmatprep.subr.mxu0 0.0
        %6808 = vmatpush1.msra.mxu0 0.0
        %6809 = vmatprep.subr.mxu0 0.0
        %6810 = vmatpush1.msra.mxu0 0.0
        %6811 = vmatprep.subr.mxu0 0.0
        %6812 = vmatpush1.msra.mxu0 0.0
        %6813 = vmatprep.subr.mxu0 0.0
        %6814 = vmatpush1.msra.mxu0 0.0
        %6815 = vmatprep.subr.mxu0 0.0
        %6816 = vmatpush1.msra.mxu0 0.0
        %6817 = vmatprep.subr.mxu0 0.0
        %6818 = vmatpush1.msra.mxu0 0.0
        %6819 = vmatprep.subr.mxu0 0.0
        %6820 = vmatpush1.msra.mxu0 0.0
        %6821 = vmatprep.mubr.f32.mxu0 0.0
        %v6822 = vand.u32 %v6754, 4294901760
        %v6823 = vsub.f32 %v6754, %v6822
        %v6824 = vand.u32 %v6823, 4294901760
        %v6825 = vsub.f32 %v6823, %v6824
        %v6826 = vand.u32 %v6825, 4294901760
        %6827 = vmatmul.mubr.f32.gmra.mrb[0].mxu0 %v6826
        %v6828 = vpop.f32.mrb[0].mxu0
        %v6829 = vadd.f32 0.0, %v6828
        %v6830 = vpop.f32.mrb[0].mxu0
        %6831 = vdwg.mxu0
        %6832 = vmatprep.subr.mxu0 0.0
        %v6833 = vand.u32 %v6751, 4294901760
        %v6834 = vsub.f32 %v6751, %v6833
        %v6835 = vand.u32 %v6834, 4294901760
        %v6836 = vsub.f32 %v6834, %v6835
        %v6837 = vand.u32 %v6836, 4294901760
        %6838 = vmatpush1.msra.mxu0 %v6837
        %6839 = vmatprep.subr.mxu0 0.0
        %6840 = vmatpush1.msra.mxu0 0.0
        %6841 = vmatprep.subr.mxu0 0.0
        %6842 = vmatpush1.msra.mxu0 0.0
        %6843 = vmatprep.subr.mxu0 0.0
        %6844 = vmatpush1.msra.mxu0 0.0
        %6845 = vmatprep.subr.mxu0 0.0
        %6846 = vmatpush1.msra.mxu0 0.0
        %6847 = vmatprep.subr.mxu0 0.0
        %6848 = vmatpush1.msra.mxu0 0.0
        %6849 = vmatprep.subr.mxu0 0.0
        %6850 = vmatpush1.msra.mxu0 0.0
        %6851 = vmatprep.subr.mxu0 0.0
        %6852 = vmatpush1.msra.mxu0 0.0
        %6853 = vmatprep.subr.mxu0 0.0
        %6854 = vmatpush1.msra.mxu0 0.0
        %6855 = vmatprep.subr.mxu0 0.0
        %6856 = vmatpush1.msra.mxu0 0.0
        %6857 = vmatprep.subr.mxu0 0.0
        %6858 = vmatpush1.msra.mxu0 0.0
        %6859 = vmatprep.subr.mxu0 0.0
        %6860 = vmatpush1.msra.mxu0 0.0
        %6861 = vmatprep.subr.mxu0 0.0
        %6862 = vmatpush1.msra.mxu0 0.0
        %6863 = vmatprep.subr.mxu0 0.0
        %6864 = vmatpush1.msra.mxu0 0.0
        %6865 = vmatprep.subr.mxu0 0.0
        %6866 = vmatpush1.msra.mxu0 0.0
        %6867 = vmatprep.subr.mxu0 0.0
        %6868 = vmatpush1.msra.mxu0 0.0
        %6869 = vmatprep.subr.mxu0 0.0
        %6870 = vmatpush1.msra.mxu0 0.0
        %6871 = vmatprep.subr.mxu0 0.0
        %6872 = vmatpush1.msra.mxu0 0.0
        %6873 = vmatprep.subr.mxu0 0.0
        %6874 = vmatpush1.msra.mxu0 0.0
        %6875 = vmatprep.subr.mxu0 0.0
        %6876 = vmatpush1.msra.mxu0 0.0
        %6877 = vmatprep.subr.mxu0 0.0
        %6878 = vmatpush1.msra.mxu0 0.0
        %6879 = vmatprep.subr.mxu0 0.0
        %6880 = vmatpush1.msra.mxu0 0.0
        %6881 = vmatprep.subr.mxu0 0.0
        %6882 = vmatpush1.msra.mxu0 0.0
        %6883 = vmatprep.subr.mxu0 0.0
        %6884 = vmatpush1.msra.mxu0 0.0
        %6885 = vmatprep.subr.mxu0 0.0
        %6886 = vmatpush1.msra.mxu0 0.0
        %6887 = vmatprep.subr.mxu0 0.0
        %6888 = vmatpush1.msra.mxu0 0.0
        %6889 = vmatprep.subr.mxu0 0.0
        %6890 = vmatpush1.msra.mxu0 0.0
        %6891 = vmatprep.subr.mxu0 0.0
        %6892 = vmatpush1.msra.mxu0 0.0
        %6893 = vmatprep.subr.mxu0 0.0
        %6894 = vmatpush1.msra.mxu0 0.0
        %6895 = vmatprep.subr.mxu0 0.0
        %6896 = vmatpush1.msra.mxu0 0.0
        %6897 = vmatprep.subr.mxu0 0.0
        %6898 = vmatpush1.msra.mxu0 0.0
        %6899 = vmatprep.subr.mxu0 0.0
        %6900 = vmatpush1.msra.mxu0 0.0
        %6901 = vmatprep.mubr.f32.mxu0 0.0
        %v6902 = vand.u32 %v6754, 4294901760
        %6903 = vmatmul.mubr.f32.gmra.mrb[0].mxu0 %v6902
        %v6904 = vpop.f32.mrb[0].mxu0
        %v6905 = vadd.f32 %v6829, %v6904
        %v6906 = vpop.f32.mrb[0].mxu0
        %6907 = vdwg.mxu0
        %6908 = vmatprep.subr.mxu0 0.0
        %v6909 = vand.u32 %v6751, 4294901760
        %v6910 = vsub.f32 %v6751, %v6909
        %6911 = vmatpush1.msra.mxu0 %v6910
        %6912 = vmatprep.subr.mxu0 0.0
        %6913 = vmatpush1.msra.mxu0 0.0
        %6914 = vmatprep.subr.mxu0 0.0
        %6915 = vmatpush1.msra.mxu0 0.0
        %6916 = vmatprep.subr.mxu0 0.0
        %6917 = vmatpush1.msra.mxu0 0.0
        %6918 = vmatprep.subr.mxu0 0.0
        %6919 = vmatpush1.msra.mxu0 0.0
        %6920 = vmatprep.subr.mxu0 0.0
        %6921 = vmatpush1.msra.mxu0 0.0
        %6922 = vmatprep.subr.mxu0 0.0
        %6923 = vmatpush1.msra.mxu0 0.0
        %6924 = vmatprep.subr.mxu0 0.0
        %6925 = vmatpush1.msra.mxu0 0.0
        %6926 = vmatprep.subr.mxu0 0.0
        %6927 = vmatpush1.msra.mxu0 0.0
        %6928 = vmatprep.subr.mxu0 0.0
        %6929 = vmatpush1.msra.mxu0 0.0
        %6930 = vmatprep.subr.mxu0 0.0
        %6931 = vmatpush1.msra.mxu0 0.0
        %6932 = vmatprep.subr.mxu0 0.0
        %6933 = vmatpush1.msra.mxu0 0.0
        %6934 = vmatprep.subr.mxu0 0.0
        %6935 = vmatpush1.msra.mxu0 0.0
        %6936 = vmatprep.subr.mxu0 0.0
        %6937 = vmatpush1.msra.mxu0 0.0
        %6938 = vmatprep.subr.mxu0 0.0
        %6939 = vmatpush1.msra.mxu0 0.0
        %6940 = vmatprep.subr.mxu0 0.0
        %6941 = vmatpush1.msra.mxu0 0.0
        %6942 = vmatprep.subr.mxu0 0.0
        %6943 = vmatpush1.msra.mxu0 0.0
        %6944 = vmatprep.subr.mxu0 0.0
        %6945 = vmatpush1.msra.mxu0 0.0
        %6946 = vmatprep.subr.mxu0 0.0
        %6947 = vmatpush1.msra.mxu0 0.0
        %6948 = vmatprep.subr.mxu0 0.0
        %6949 = vmatpush1.msra.mxu0 0.0
        %6950 = vmatprep.subr.mxu0 0.0
        %6951 = vmatpush1.msra.mxu0 0.0
        %6952 = vmatprep.subr.mxu0 0.0
        %6953 = vmatpush1.msra.mxu0 0.0
        %6954 = vmatprep.subr.mxu0 0.0
        %6955 = vmatpush1.msra.mxu0 0.0
        %6956 = vmatprep.subr.mxu0 0.0
        %6957 = vmatpush1.msra.mxu0 0.0
        %6958 = vmatprep.subr.mxu0 0.0
        %6959 = vmatpush1.msra.mxu0 0.0
        %6960 = vmatprep.subr.mxu0 0.0
        %6961 = vmatpush1.msra.mxu0 0.0
        %6962 = vmatprep.subr.mxu0 0.0
        %6963 = vmatpush1.msra.mxu0 0.0
        %6964 = vmatprep.subr.mxu0 0.0
        %6965 = vmatpush1.msra.mxu0 0.0
        %6966 = vmatprep.subr.mxu0 0.0
        %6967 = vmatpush1.msra.mxu0 0.0
        %6968 = vmatprep.subr.mxu0 0.0
        %6969 = vmatpush1.msra.mxu0 0.0
        %6970 = vmatprep.subr.mxu0 0.0
        %6971 = vmatpush1.msra.mxu0 0.0
        %6972 = vmatprep.subr.mxu0 0.0
        %6973 = vmatpush1.msra.mxu0 0.0
        %6974 = vmatprep.mubr.f32.mxu0 0.0
        %v6975 = vand.u32 %v6754, 4294901760
        %v6976 = vsub.f32 %v6754, %v6975
        %6977 = vmatmul.mubr.f32.gmra.mrb[0].mxu0 %v6976
        %v6978 = vpop.f32.mrb[0].mxu0
        %v6979 = vadd.f32 %v6905, %v6978
        %v6980 = vpop.f32.mrb[0].mxu0
        %6981 = vdwg.mxu0
        %6982 = vmatprep.subr.mxu0 0.0
        %v6983 = vand.u32 %v6751, 4294901760
        %6984 = vmatpush1.msra.mxu0 %v6983
        %6985 = vmatprep.subr.mxu0 0.0
        %6986 = vmatpush1.msra.mxu0 0.0
        %6987 = vmatprep.subr.mxu0 0.0
        %6988 = vmatpush1.msra.mxu0 0.0
        %6989 = vmatprep.subr.mxu0 0.0
        %6990 = vmatpush1.msra.mxu0 0.0
        %6991 = vmatprep.subr.mxu0 0.0
        %6992 = vmatpush1.msra.mxu0 0.0
        %6993 = vmatprep.subr.mxu0 0.0
        %6994 = vmatpush1.msra.mxu0 0.0
        %6995 = vmatprep.subr.mxu0 0.0
        %6996 = vmatpush1.msra.mxu0 0.0
        %6997 = vmatprep.subr.mxu0 0.0
        %6998 = vmatpush1.msra.mxu0 0.0
        %6999 = vmatprep.subr.mxu0 0.0
        %7000 = vmatpush1.msra.mxu0 0.0
        %7001 = vmatprep.subr.mxu0 0.0
        %7002 = vmatpush1.msra.mxu0 0.0
        %7003 = vmatprep.subr.mxu0 0.0
        %7004 = vmatpush1.msra.mxu0 0.0
        %7005 = vmatprep.subr.mxu0 0.0
        %7006 = vmatpush1.msra.mxu0 0.0
        %7007 = vmatprep.subr.mxu0 0.0
        %7008 = vmatpush1.msra.mxu0 0.0
        %7009 = vmatprep.subr.mxu0 0.0
        %7010 = vmatpush1.msra.mxu0 0.0
        %7011 = vmatprep.subr.mxu0 0.0
        %7012 = vmatpush1.msra.mxu0 0.0
        %7013 = vmatprep.subr.mxu0 0.0
        %7014 = vmatpush1.msra.mxu0 0.0
        %7015 = vmatprep.subr.mxu0 0.0
        %7016 = vmatpush1.msra.mxu0 0.0
        %7017 = vmatprep.subr.mxu0 0.0
        %7018 = vmatpush1.msra.mxu0 0.0
        %7019 = vmatprep.subr.mxu0 0.0
        %7020 = vmatpush1.msra.mxu0 0.0
        %7021 = vmatprep.subr.mxu0 0.0
        %7022 = vmatpush1.msra.mxu0 0.0
        %7023 = vmatprep.subr.mxu0 0.0
        %7024 = vmatpush1.msra.mxu0 0.0
        %7025 = vmatprep.subr.mxu0 0.0
        %7026 = vmatpush1.msra.mxu0 0.0
        %7027 = vmatprep.subr.mxu0 0.0
        %7028 = vmatpush1.msra.mxu0 0.0
        %7029 = vmatprep.subr.mxu0 0.0
        %7030 = vmatpush1.msra.mxu0 0.0
        %7031 = vmatprep.subr.mxu0 0.0
        %7032 = vmatpush1.msra.mxu0 0.0
        %7033 = vmatprep.subr.mxu0 0.0
        %7034 = vmatpush1.msra.mxu0 0.0
        %7035 = vmatprep.subr.mxu0 0.0
        %7036 = vmatpush1.msra.mxu0 0.0
        %7037 = vmatprep.subr.mxu0 0.0
        %7038 = vmatpush1.msra.mxu0 0.0
        %7039 = vmatprep.subr.mxu0 0.0
        %7040 = vmatpush1.msra.mxu0 0.0
        %7041 = vmatprep.subr.mxu0 0.0
        %7042 = vmatpush1.msra.mxu0 0.0
        %7043 = vmatprep.subr.mxu0 0.0
        %7044 = vmatpush1.msra.mxu0 0.0
        %7045 = vmatprep.subr.mxu0 0.0
        %7046 = vmatpush1.msra.mxu0 0.0
        %7047 = vmatprep.mubr.f32.mxu0 0.0
        %v7048 = vand.u32 %v6754, 4294901760
        %v7049 = vsub.f32 %v6754, %v7048
        %v7050 = vand.u32 %v7049, 4294901760
        %7051 = vmatmul.mubr.f32.gmra.mrb[0].mxu0 %v7050
        %v7052 = vpop.f32.mrb[0].mxu0
        %v7053 = vadd.f32 %v6979, %v7052
        %v7054 = vpop.f32.mrb[0].mxu0
        %7055 = vdwg.mxu0
        %7056 = vmatprep.subr.mxu0 0.0
        %v7057 = vand.u32 %v6751, 4294901760
        %v7058 = vsub.f32 %v6751, %v7057
        %v7059 = vand.u32 %v7058, 4294901760
        %7060 = vmatpush1.msra.mxu0 %v7059
        %7061 = vmatprep.subr.mxu0 0.0
        %7062 = vmatpush1.msra.mxu0 0.0
        %7063 = vmatprep.subr.mxu0 0.0
        %7064 = vmatpush1.msra.mxu0 0.0
        %7065 = vmatprep.subr.mxu0 0.0
        %7066 = vmatpush1.msra.mxu0 0.0
        %7067 = vmatprep.subr.mxu0 0.0
        %7068 = vmatpush1.msra.mxu0 0.0
        %7069 = vmatprep.subr.mxu0 0.0
        %7070 = vmatpush1.msra.mxu0 0.0
        %7071 = vmatprep.subr.mxu0 0.0
        %7072 = vmatpush1.msra.mxu0 0.0
        %7073 = vmatprep.subr.mxu0 0.0
        %7074 = vmatpush1.msra.mxu0 0.0
        %7075 = vmatprep.subr.mxu0 0.0
        %7076 = vmatpush1.msra.mxu0 0.0
        %7077 = vmatprep.subr.mxu0 0.0
        %7078 = vmatpush1.msra.mxu0 0.0
        %7079 = vmatprep.subr.mxu0 0.0
        %7080 = vmatpush1.msra.mxu0 0.0
        %7081 = vmatprep.subr.mxu0 0.0
        %7082 = vmatpush1.msra.mxu0 0.0
        %7083 = vmatprep.subr.mxu0 0.0
        %7084 = vmatpush1.msra.mxu0 0.0
        %7085 = vmatprep.subr.mxu0 0.0
        %7086 = vmatpush1.msra.mxu0 0.0
        %7087 = vmatprep.subr.mxu0 0.0
        %7088 = vmatpush1.msra.mxu0 0.0
        %7089 = vmatprep.subr.mxu0 0.0
        %7090 = vmatpush1.msra.mxu0 0.0
        %7091 = vmatprep.subr.mxu0 0.0
        %7092 = vmatpush1.msra.mxu0 0.0
        %7093 = vmatprep.subr.mxu0 0.0
        %7094 = vmatpush1.msra.mxu0 0.0
        %7095 = vmatprep.subr.mxu0 0.0
        %7096 = vmatpush1.msra.mxu0 0.0
        %7097 = vmatprep.subr.mxu0 0.0
        %7098 = vmatpush1.msra.mxu0 0.0
        %7099 = vmatprep.subr.mxu0 0.0
        %7100 = vmatpush1.msra.mxu0 0.0
        %7101 = vmatprep.subr.mxu0 0.0
        %7102 = vmatpush1.msra.mxu0 0.0
        %7103 = vmatprep.subr.mxu0 0.0
        %7104 = vmatpush1.msra.mxu0 0.0
        %7105 = vmatprep.subr.mxu0 0.0
        %7106 = vmatpush1.msra.mxu0 0.0
        %7107 = vmatprep.subr.mxu0 0.0
        %7108 = vmatpush1.msra.mxu0 0.0
        %7109 = vmatprep.subr.mxu0 0.0
        %7110 = vmatpush1.msra.mxu0 0.0
        %7111 = vmatprep.subr.mxu0 0.0
        %7112 = vmatpush1.msra.mxu0 0.0
        %7113 = vmatprep.subr.mxu0 0.0
        %7114 = vmatpush1.msra.mxu0 0.0
        %7115 = vmatprep.subr.mxu0 0.0
        %7116 = vmatpush1.msra.mxu0 0.0
        %7117 = vmatprep.subr.mxu0 0.0
        %7118 = vmatpush1.msra.mxu0 0.0
        %7119 = vmatprep.subr.mxu0 0.0
        %7120 = vmatpush1.msra.mxu0 0.0
        %7121 = vmatprep.subr.mxu0 0.0
        %7122 = vmatpush1.msra.mxu0 0.0
        %7123 = vmatprep.mubr.f32.mxu0 0.0
        %v7124 = vand.u32 %v6754, 4294901760
        %7125 = vmatmul.mubr.f32.gmra.mrb[0].mxu0 %v7124
        %v7126 = vpop.f32.mrb[0].mxu0
        %v7127 = vadd.f32 %v7053, %v7126
        %v7128 = vpop.f32.mrb[0].mxu0
        %7129 = vdwg.mxu0
        %7130 = vmatprep.subr.mxu0 0.0
        %v7131 = vand.u32 %v6751, 4294901760
        %7132 = vmatpush1.msra.mxu0 %v7131
        %7133 = vmatprep.subr.mxu0 0.0
        %7134 = vmatpush1.msra.mxu0 0.0
        %7135 = vmatprep.subr.mxu0 0.0
        %7136 = vmatpush1.msra.mxu0 0.0
        %7137 = vmatprep.subr.mxu0 0.0
        %7138 = vmatpush1.msra.mxu0 0.0
        %7139 = vmatprep.subr.mxu0 0.0
        %7140 = vmatpush1.msra.mxu0 0.0
        %7141 = vmatprep.subr.mxu0 0.0
        %7142 = vmatpush1.msra.mxu0 0.0
        %7143 = vmatprep.subr.mxu0 0.0
        %7144 = vmatpush1.msra.mxu0 0.0
        %7145 = vmatprep.subr.mxu0 0.0
        %7146 = vmatpush1.msra.mxu0 0.0
        %7147 = vmatprep.subr.mxu0 0.0
        %7148 = vmatpush1.msra.mxu0 0.0
        %7149 = vmatprep.subr.mxu0 0.0
        %7150 = vmatpush1.msra.mxu0 0.0
        %7151 = vmatprep.subr.mxu0 0.0
        %7152 = vmatpush1.msra.mxu0 0.0
        %7153 = vmatprep.subr.mxu0 0.0
        %7154 = vmatpush1.msra.mxu0 0.0
        %7155 = vmatprep.subr.mxu0 0.0
        %7156 = vmatpush1.msra.mxu0 0.0
        %7157 = vmatprep.subr.mxu0 0.0
        %7158 = vmatpush1.msra.mxu0 0.0
        %7159 = vmatprep.subr.mxu0 0.0
        %7160 = vmatpush1.msra.mxu0 0.0
        %7161 = vmatprep.subr.mxu0 0.0
        %7162 = vmatpush1.msra.mxu0 0.0
        %7163 = vmatprep.subr.mxu0 0.0
        %7164 = vmatpush1.msra.mxu0 0.0
        %7165 = vmatprep.subr.mxu0 0.0
        %7166 = vmatpush1.msra.mxu0 0.0
        %7167 = vmatprep.subr.mxu0 0.0
        %7168 = vmatpush1.msra.mxu0 0.0
        %7169 = vmatprep.subr.mxu0 0.0
        %7170 = vmatpush1.msra.mxu0 0.0
        %7171 = vmatprep.subr.mxu0 0.0
        %7172 = vmatpush1.msra.mxu0 0.0
        %7173 = vmatprep.subr.mxu0 0.0
        %7174 = vmatpush1.msra.mxu0 0.0
        %7175 = vmatprep.subr.mxu0 0.0
        %7176 = vmatpush1.msra.mxu0 0.0
        %7177 = vmatprep.subr.mxu0 0.0
        %7178 = vmatpush1.msra.mxu0 0.0
        %7179 = vmatprep.subr.mxu0 0.0
        %7180 = vmatpush1.msra.mxu0 0.0
        %7181 = vmatprep.subr.mxu0 0.0
        %7182 = vmatpush1.msra.mxu0 0.0
        %7183 = vmatprep.subr.mxu0 0.0
        %7184 = vmatpush1.msra.mxu0 0.0
        %7185 = vmatprep.subr.mxu0 0.0
        %7186 = vmatpush1.msra.mxu0 0.0
        %7187 = vmatprep.subr.mxu0 0.0
        %7188 = vmatpush1.msra.mxu0 0.0
        %7189 = vmatprep.subr.mxu0 0.0
        %7190 = vmatpush1.msra.mxu0 0.0
        %7191 = vmatprep.subr.mxu0 0.0
        %7192 = vmatpush1.msra.mxu0 0.0
        %7193 = vmatprep.subr.mxu0 0.0
        %7194 = vmatpush1.msra.mxu0 0.0
        %7195 = vmatprep.mubr.f32.mxu0 0.0
        %v7196 = vand.u32 %v6754, 4294901760
        %7197 = vmatmul.mubr.f32.gmra.mrb[0].mxu0 %v7196
        %v7198 = vpop.f32.mrb[0].mxu0
        %v7199 = vadd.f32 %v7127, %v7198
        %v7200 = vpop.f32.mrb[0].mxu0
        %7201 = vdwg.mxu0
        %v7203 = vsel %vm2185, %v7199, 0
        %7205 = vmatprep.subr.mxu0 0.0
        %v7206 = vand.u32 %v2179, 4294901760
        %7207 = vmatpush1.msra.mxu0 %v7206
        %7208 = vmatprep.subr.mxu0 0.0
        %7209 = vmatpush1.msra.mxu0 0.0
        %7210 = vmatprep.subr.mxu0 0.0
        %7211 = vmatpush1.msra.mxu0 0.0
        %7212 = vmatprep.subr.mxu0 0.0
        %7213 = vmatpush1.msra.mxu0 0.0
        %7214 = vmatprep.subr.mxu0 0.0
        %7215 = vmatpush1.msra.mxu0 0.0
        %7216 = vmatprep.subr.mxu0 0.0
        %7217 = vmatpush1.msra.mxu0 0.0
        %7218 = vmatprep.subr.mxu0 0.0
        %7219 = vmatpush1.msra.mxu0 0.0
        %7220 = vmatprep.subr.mxu0 0.0
        %7221 = vmatpush1.msra.mxu0 0.0
        %7222 = vmatprep.subr.mxu0 0.0
        %7223 = vmatpush1.msra.mxu0 0.0
        %7224 = vmatprep.subr.mxu0 0.0
        %7225 = vmatpush1.msra.mxu0 0.0
        %7226 = vmatprep.subr.mxu0 0.0
        %7227 = vmatpush1.msra.mxu0 0.0
        %7228 = vmatprep.subr.mxu0 0.0
        %7229 = vmatpush1.msra.mxu0 0.0
        %7230 = vmatprep.subr.mxu0 0.0
        %7231 = vmatpush1.msra.mxu0 0.0
        %7232 = vmatprep.subr.mxu0 0.0
        %7233 = vmatpush1.msra.mxu0 0.0
        %7234 = vmatprep.subr.mxu0 0.0
        %7235 = vmatpush1.msra.mxu0 0.0
        %7236 = vmatprep.subr.mxu0 0.0
        %7237 = vmatpush1.msra.mxu0 0.0
        %7238 = vmatprep.subr.mxu0 0.0
        %7239 = vmatpush1.msra.mxu0 0.0
        %7240 = vmatprep.subr.mxu0 0.0
        %7241 = vmatpush1.msra.mxu0 0.0
        %7242 = vmatprep.subr.mxu0 0.0
        %7243 = vmatpush1.msra.mxu0 0.0
        %7244 = vmatprep.subr.mxu0 0.0
        %7245 = vmatpush1.msra.mxu0 0.0
        %7246 = vmatprep.subr.mxu0 0.0
        %7247 = vmatpush1.msra.mxu0 0.0
        %7248 = vmatprep.subr.mxu0 0.0
        %7249 = vmatpush1.msra.mxu0 0.0
        %7250 = vmatprep.subr.mxu0 0.0
        %7251 = vmatpush1.msra.mxu0 0.0
        %7252 = vmatprep.subr.mxu0 0.0
        %7253 = vmatpush1.msra.mxu0 0.0
        %7254 = vmatprep.subr.mxu0 0.0
        %7255 = vmatpush1.msra.mxu0 0.0
        %7256 = vmatprep.subr.mxu0 0.0
        %7257 = vmatpush1.msra.mxu0 0.0
        %7258 = vmatprep.subr.mxu0 0.0
        %7259 = vmatpush1.msra.mxu0 0.0
        %7260 = vmatprep.subr.mxu0 0.0
        %7261 = vmatpush1.msra.mxu0 0.0
        %7262 = vmatprep.subr.mxu0 0.0
        %7263 = vmatpush1.msra.mxu0 0.0
        %7264 = vmatprep.subr.mxu0 0.0
        %7265 = vmatpush1.msra.mxu0 0.0
        %7266 = vmatprep.subr.mxu0 0.0
        %7267 = vmatpush1.msra.mxu0 0.0
        %7268 = vmatprep.subr.mxu0 0.0
        %7269 = vmatpush1.msra.mxu0 0.0
        %7270 = vmatprep.mubr.f32.mxu0 0.0
        %v7271 = vand.u32 %v7203, 4294901760
        %v7272 = vsub.f32 %v7203, %v7271
        %v7273 = vand.u32 %v7272, 4294901760
        %v7274 = vsub.f32 %v7272, %v7273
        %v7275 = vand.u32 %v7274, 4294901760
        %7276 = vmatmul.mubr.f32.gmra.mrb[0].mxu0 %v7275
        %v7277 = vpop.f32.mrb[0].mxu0
        %v7278 = vadd.f32 0.0, %v7277
        %v7279 = vpop.f32.mrb[0].mxu0
        %7280 = vdwg.mxu0
        %7281 = vmatprep.subr.mxu0 0.0
        %v7282 = vand.u32 %v2179, 4294901760
        %v7283 = vsub.f32 %v2179, %v7282
        %v7284 = vand.u32 %v7283, 4294901760
        %v7285 = vsub.f32 %v7283, %v7284
        %v7286 = vand.u32 %v7285, 4294901760
        %7287 = vmatpush1.msra.mxu0 %v7286
        %7288 = vmatprep.subr.mxu0 0.0
        %7289 = vmatpush1.msra.mxu0 0.0
        %7290 = vmatprep.subr.mxu0 0.0
        %7291 = vmatpush1.msra.mxu0 0.0
        %7292 = vmatprep.subr.mxu0 0.0
        %7293 = vmatpush1.msra.mxu0 0.0
        %7294 = vmatprep.subr.mxu0 0.0
        %7295 = vmatpush1.msra.mxu0 0.0
        %7296 = vmatprep.subr.mxu0 0.0
        %7297 = vmatpush1.msra.mxu0 0.0
        %7298 = vmatprep.subr.mxu0 0.0
        %7299 = vmatpush1.msra.mxu0 0.0
        %7300 = vmatprep.subr.mxu0 0.0
        %7301 = vmatpush1.msra.mxu0 0.0
        %7302 = vmatprep.subr.mxu0 0.0
        %7303 = vmatpush1.msra.mxu0 0.0
        %7304 = vmatprep.subr.mxu0 0.0
        %7305 = vmatpush1.msra.mxu0 0.0
        %7306 = vmatprep.subr.mxu0 0.0
        %7307 = vmatpush1.msra.mxu0 0.0
        %7308 = vmatprep.subr.mxu0 0.0
        %7309 = vmatpush1.msra.mxu0 0.0
        %7310 = vmatprep.subr.mxu0 0.0
        %7311 = vmatpush1.msra.mxu0 0.0
        %7312 = vmatprep.subr.mxu0 0.0
        %7313 = vmatpush1.msra.mxu0 0.0
        %7314 = vmatprep.subr.mxu0 0.0
        %7315 = vmatpush1.msra.mxu0 0.0
        %7316 = vmatprep.subr.mxu0 0.0
        %7317 = vmatpush1.msra.mxu0 0.0
        %7318 = vmatprep.subr.mxu0 0.0
        %7319 = vmatpush1.msra.mxu0 0.0
        %7320 = vmatprep.subr.mxu0 0.0
        %7321 = vmatpush1.msra.mxu0 0.0
        %7322 = vmatprep.subr.mxu0 0.0
        %7323 = vmatpush1.msra.mxu0 0.0
        %7324 = vmatprep.subr.mxu0 0.0
        %7325 = vmatpush1.msra.mxu0 0.0
        %7326 = vmatprep.subr.mxu0 0.0
        %7327 = vmatpush1.msra.mxu0 0.0
        %7328 = vmatprep.subr.mxu0 0.0
        %7329 = vmatpush1.msra.mxu0 0.0
        %7330 = vmatprep.subr.mxu0 0.0
        %7331 = vmatpush1.msra.mxu0 0.0
        %7332 = vmatprep.subr.mxu0 0.0
        %7333 = vmatpush1.msra.mxu0 0.0
        %7334 = vmatprep.subr.mxu0 0.0
        %7335 = vmatpush1.msra.mxu0 0.0
        %7336 = vmatprep.subr.mxu0 0.0
        %7337 = vmatpush1.msra.mxu0 0.0
        %7338 = vmatprep.subr.mxu0 0.0
        %7339 = vmatpush1.msra.mxu0 0.0
        %7340 = vmatprep.subr.mxu0 0.0
        %7341 = vmatpush1.msra.mxu0 0.0
        %7342 = vmatprep.subr.mxu0 0.0
        %7343 = vmatpush1.msra.mxu0 0.0
        %7344 = vmatprep.subr.mxu0 0.0
        %7345 = vmatpush1.msra.mxu0 0.0
        %7346 = vmatprep.subr.mxu0 0.0
        %7347 = vmatpush1.msra.mxu0 0.0
        %7348 = vmatprep.subr.mxu0 0.0
        %7349 = vmatpush1.msra.mxu0 0.0
        %7350 = vmatprep.mubr.f32.mxu0 0.0
        %v7351 = vand.u32 %v7203, 4294901760
        %7352 = vmatmul.mubr.f32.gmra.mrb[0].mxu0 %v7351
        %v7353 = vpop.f32.mrb[0].mxu0
        %v7354 = vadd.f32 %v7278, %v7353
        %v7355 = vpop.f32.mrb[0].mxu0
        %7356 = vdwg.mxu0
        %7357 = vmatprep.subr.mxu0 0.0
        %v7358 = vand.u32 %v2179, 4294901760
        %v7359 = vsub.f32 %v2179, %v7358
        %7360 = vmatpush1.msra.mxu0 %v7359
        %7361 = vmatprep.subr.mxu0 0.0
        %7362 = vmatpush1.msra.mxu0 0.0
        %7363 = vmatprep.subr.mxu0 0.0
        %7364 = vmatpush1.msra.mxu0 0.0
        %7365 = vmatprep.subr.mxu0 0.0
        %7366 = vmatpush1.msra.mxu0 0.0
        %7367 = vmatprep.subr.mxu0 0.0
        %7368 = vmatpush1.msra.mxu0 0.0
        %7369 = vmatprep.subr.mxu0 0.0
        %7370 = vmatpush1.msra.mxu0 0.0
        %7371 = vmatprep.subr.mxu0 0.0
        %7372 = vmatpush1.msra.mxu0 0.0
        %7373 = vmatprep.subr.mxu0 0.0
        %7374 = vmatpush1.msra.mxu0 0.0
        %7375 = vmatprep.subr.mxu0 0.0
        %7376 = vmatpush1.msra.mxu0 0.0
        %7377 = vmatprep.subr.mxu0 0.0
        %7378 = vmatpush1.msra.mxu0 0.0
        %7379 = vmatprep.subr.mxu0 0.0
        %7380 = vmatpush1.msra.mxu0 0.0
        %7381 = vmatprep.subr.mxu0 0.0
        %7382 = vmatpush1.msra.mxu0 0.0
        %7383 = vmatprep.subr.mxu0 0.0
        %7384 = vmatpush1.msra.mxu0 0.0
        %7385 = vmatprep.subr.mxu0 0.0
        %7386 = vmatpush1.msra.mxu0 0.0
        %7387 = vmatprep.subr.mxu0 0.0
        %7388 = vmatpush1.msra.mxu0 0.0
        %7389 = vmatprep.subr.mxu0 0.0
        %7390 = vmatpush1.msra.mxu0 0.0
        %7391 = vmatprep.subr.mxu0 0.0
        %7392 = vmatpush1.msra.mxu0 0.0
        %7393 = vmatprep.subr.mxu0 0.0
        %7394 = vmatpush1.msra.mxu0 0.0
        %7395 = vmatprep.subr.mxu0 0.0
        %7396 = vmatpush1.msra.mxu0 0.0
        %7397 = vmatprep.subr.mxu0 0.0
        %7398 = vmatpush1.msra.mxu0 0.0
        %7399 = vmatprep.subr.mxu0 0.0
        %7400 = vmatpush1.msra.mxu0 0.0
        %7401 = vmatprep.subr.mxu0 0.0
        %7402 = vmatpush1.msra.mxu0 0.0
        %7403 = vmatprep.subr.mxu0 0.0
        %7404 = vmatpush1.msra.mxu0 0.0
        %7405 = vmatprep.subr.mxu0 0.0
        %7406 = vmatpush1.msra.mxu0 0.0
        %7407 = vmatprep.subr.mxu0 0.0
        %7408 = vmatpush1.msra.mxu0 0.0
        %7409 = vmatprep.subr.mxu0 0.0
        %7410 = vmatpush1.msra.mxu0 0.0
        %7411 = vmatprep.subr.mxu0 0.0
        %7412 = vmatpush1.msra.mxu0 0.0
        %7413 = vmatprep.subr.mxu0 0.0
        %7414 = vmatpush1.msra.mxu0 0.0
        %7415 = vmatprep.subr.mxu0 0.0
        %7416 = vmatpush1.msra.mxu0 0.0
        %7417 = vmatprep.subr.mxu0 0.0
        %7418 = vmatpush1.msra.mxu0 0.0
        %7419 = vmatprep.subr.mxu0 0.0
        %7420 = vmatpush1.msra.mxu0 0.0
        %7421 = vmatprep.subr.mxu0 0.0
        %7422 = vmatpush1.msra.mxu0 0.0
        %7423 = vmatprep.mubr.f32.mxu0 0.0
        %v7424 = vand.u32 %v7203, 4294901760
        %v7425 = vsub.f32 %v7203, %v7424
        %7426 = vmatmul.mubr.f32.gmra.mrb[0].mxu0 %v7425
        %v7427 = vpop.f32.mrb[0].mxu0
        %v7428 = vadd.f32 %v7354, %v7427
        %v7429 = vpop.f32.mrb[0].mxu0
        %7430 = vdwg.mxu0
        %7431 = vmatprep.subr.mxu0 0.0
        %v7432 = vand.u32 %v2179, 4294901760
        %7433 = vmatpush1.msra.mxu0 %v7432
        %7434 = vmatprep.subr.mxu0 0.0
        %7435 = vmatpush1.msra.mxu0 0.0
        %7436 = vmatprep.subr.mxu0 0.0
        %7437 = vmatpush1.msra.mxu0 0.0
        %7438 = vmatprep.subr.mxu0 0.0
        %7439 = vmatpush1.msra.mxu0 0.0
        %7440 = vmatprep.subr.mxu0 0.0
        %7441 = vmatpush1.msra.mxu0 0.0
        %7442 = vmatprep.subr.mxu0 0.0
        %7443 = vmatpush1.msra.mxu0 0.0
        %7444 = vmatprep.subr.mxu0 0.0
        %7445 = vmatpush1.msra.mxu0 0.0
        %7446 = vmatprep.subr.mxu0 0.0
        %7447 = vmatpush1.msra.mxu0 0.0
        %7448 = vmatprep.subr.mxu0 0.0
        %7449 = vmatpush1.msra.mxu0 0.0
        %7450 = vmatprep.subr.mxu0 0.0
        %7451 = vmatpush1.msra.mxu0 0.0
        %7452 = vmatprep.subr.mxu0 0.0
        %7453 = vmatpush1.msra.mxu0 0.0
        %7454 = vmatprep.subr.mxu0 0.0
        %7455 = vmatpush1.msra.mxu0 0.0
        %7456 = vmatprep.subr.mxu0 0.0
        %7457 = vmatpush1.msra.mxu0 0.0
        %7458 = vmatprep.subr.mxu0 0.0
        %7459 = vmatpush1.msra.mxu0 0.0
        %7460 = vmatprep.subr.mxu0 0.0
        %7461 = vmatpush1.msra.mxu0 0.0
        %7462 = vmatprep.subr.mxu0 0.0
        %7463 = vmatpush1.msra.mxu0 0.0
        %7464 = vmatprep.subr.mxu0 0.0
        %7465 = vmatpush1.msra.mxu0 0.0
        %7466 = vmatprep.subr.mxu0 0.0
        %7467 = vmatpush1.msra.mxu0 0.0
        %7468 = vmatprep.subr.mxu0 0.0
        %7469 = vmatpush1.msra.mxu0 0.0
        %7470 = vmatprep.subr.mxu0 0.0
        %7471 = vmatpush1.msra.mxu0 0.0
        %7472 = vmatprep.subr.mxu0 0.0
        %7473 = vmatpush1.msra.mxu0 0.0
        %7474 = vmatprep.subr.mxu0 0.0
        %7475 = vmatpush1.msra.mxu0 0.0
        %7476 = vmatprep.subr.mxu0 0.0
        %7477 = vmatpush1.msra.mxu0 0.0
        %7478 = vmatprep.subr.mxu0 0.0
        %7479 = vmatpush1.msra.mxu0 0.0
        %7480 = vmatprep.subr.mxu0 0.0
        %7481 = vmatpush1.msra.mxu0 0.0
        %7482 = vmatprep.subr.mxu0 0.0
        %7483 = vmatpush1.msra.mxu0 0.0
        %7484 = vmatprep.subr.mxu0 0.0
        %7485 = vmatpush1.msra.mxu0 0.0
        %7486 = vmatprep.subr.mxu0 0.0
        %7487 = vmatpush1.msra.mxu0 0.0
        %7488 = vmatprep.subr.mxu0 0.0
        %7489 = vmatpush1.msra.mxu0 0.0
        %7490 = vmatprep.subr.mxu0 0.0
        %7491 = vmatpush1.msra.mxu0 0.0
        %7492 = vmatprep.subr.mxu0 0.0
        %7493 = vmatpush1.msra.mxu0 0.0
        %7494 = vmatprep.subr.mxu0 0.0
        %7495 = vmatpush1.msra.mxu0 0.0
        %7496 = vmatprep.mubr.f32.mxu0 0.0
        %v7497 = vand.u32 %v7203, 4294901760
        %v7498 = vsub.f32 %v7203, %v7497
        %v7499 = vand.u32 %v7498, 4294901760
        %7500 = vmatmul.mubr.f32.gmra.mrb[0].mxu0 %v7499
        %v7501 = vpop.f32.mrb[0].mxu0
        %v7502 = vadd.f32 %v7428, %v7501
        %v7503 = vpop.f32.mrb[0].mxu0
        %7504 = vdwg.mxu0
        %7505 = vmatprep.subr.mxu0 0.0
        %v7506 = vand.u32 %v2179, 4294901760
        %v7507 = vsub.f32 %v2179, %v7506
        %v7508 = vand.u32 %v7507, 4294901760
        %7509 = vmatpush1.msra.mxu0 %v7508
        %7510 = vmatprep.subr.mxu0 0.0
        %7511 = vmatpush1.msra.mxu0 0.0
        %7512 = vmatprep.subr.mxu0 0.0
        %7513 = vmatpush1.msra.mxu0 0.0
        %7514 = vmatprep.subr.mxu0 0.0
        %7515 = vmatpush1.msra.mxu0 0.0
        %7516 = vmatprep.subr.mxu0 0.0
        %7517 = vmatpush1.msra.mxu0 0.0
        %7518 = vmatprep.subr.mxu0 0.0
        %7519 = vmatpush1.msra.mxu0 0.0
        %7520 = vmatprep.subr.mxu0 0.0
        %7521 = vmatpush1.msra.mxu0 0.0
        %7522 = vmatprep.subr.mxu0 0.0
        %7523 = vmatpush1.msra.mxu0 0.0
        %7524 = vmatprep.subr.mxu0 0.0
        %7525 = vmatpush1.msra.mxu0 0.0
        %7526 = vmatprep.subr.mxu0 0.0
        %7527 = vmatpush1.msra.mxu0 0.0
        %7528 = vmatprep.subr.mxu0 0.0
        %7529 = vmatpush1.msra.mxu0 0.0
        %7530 = vmatprep.subr.mxu0 0.0
        %7531 = vmatpush1.msra.mxu0 0.0
        %7532 = vmatprep.subr.mxu0 0.0
        %7533 = vmatpush1.msra.mxu0 0.0
        %7534 = vmatprep.subr.mxu0 0.0
        %7535 = vmatpush1.msra.mxu0 0.0
        %7536 = vmatprep.subr.mxu0 0.0
        %7537 = vmatpush1.msra.mxu0 0.0
        %7538 = vmatprep.subr.mxu0 0.0
        %7539 = vmatpush1.msra.mxu0 0.0
        %7540 = vmatprep.subr.mxu0 0.0
        %7541 = vmatpush1.msra.mxu0 0.0
        %7542 = vmatprep.subr.mxu0 0.0
        %7543 = vmatpush1.msra.mxu0 0.0
        %7544 = vmatprep.subr.mxu0 0.0
        %7545 = vmatpush1.msra.mxu0 0.0
        %7546 = vmatprep.subr.mxu0 0.0
        %7547 = vmatpush1.msra.mxu0 0.0
        %7548 = vmatprep.subr.mxu0 0.0
        %7549 = vmatpush1.msra.mxu0 0.0
        %7550 = vmatprep.subr.mxu0 0.0
        %7551 = vmatpush1.msra.mxu0 0.0
        %7552 = vmatprep.subr.mxu0 0.0
        %7553 = vmatpush1.msra.mxu0 0.0
        %7554 = vmatprep.subr.mxu0 0.0
        %7555 = vmatpush1.msra.mxu0 0.0
        %7556 = vmatprep.subr.mxu0 0.0
        %7557 = vmatpush1.msra.mxu0 0.0
        %7558 = vmatprep.subr.mxu0 0.0
        %7559 = vmatpush1.msra.mxu0 0.0
        %7560 = vmatprep.subr.mxu0 0.0
        %7561 = vmatpush1.msra.mxu0 0.0
        %7562 = vmatprep.subr.mxu0 0.0
        %7563 = vmatpush1.msra.mxu0 0.0
        %7564 = vmatprep.subr.mxu0 0.0
        %7565 = vmatpush1.msra.mxu0 0.0
        %7566 = vmatprep.subr.mxu0 0.0
        %7567 = vmatpush1.msra.mxu0 0.0
        %7568 = vmatprep.subr.mxu0 0.0
        %7569 = vmatpush1.msra.mxu0 0.0
        %7570 = vmatprep.subr.mxu0 0.0
        %7571 = vmatpush1.msra.mxu0 0.0
        %7572 = vmatprep.mubr.f32.mxu0 0.0
        %v7573 = vand.u32 %v7203, 4294901760
        %7574 = vmatmul.mubr.f32.gmra.mrb[0].mxu0 %v7573
        %v7575 = vpop.f32.mrb[0].mxu0
        %v7576 = vadd.f32 %v7502, %v7575
        %v7577 = vpop.f32.mrb[0].mxu0
        %7578 = vdwg.mxu0
        %7579 = vmatprep.subr.mxu0 0.0
        %v7580 = vand.u32 %v2179, 4294901760
        %7581 = vmatpush1.msra.mxu0 %v7580
        %7582 = vmatprep.subr.mxu0 0.0
        %7583 = vmatpush1.msra.mxu0 0.0
        %7584 = vmatprep.subr.mxu0 0.0
        %7585 = vmatpush1.msra.mxu0 0.0
        %7586 = vmatprep.subr.mxu0 0.0
        %7587 = vmatpush1.msra.mxu0 0.0
        %7588 = vmatprep.subr.mxu0 0.0
        %7589 = vmatpush1.msra.mxu0 0.0
        %7590 = vmatprep.subr.mxu0 0.0
        %7591 = vmatpush1.msra.mxu0 0.0
        %7592 = vmatprep.subr.mxu0 0.0
        %7593 = vmatpush1.msra.mxu0 0.0
        %7594 = vmatprep.subr.mxu0 0.0
        %7595 = vmatpush1.msra.mxu0 0.0
        %7596 = vmatprep.subr.mxu0 0.0
        %7597 = vmatpush1.msra.mxu0 0.0
        %7598 = vmatprep.subr.mxu0 0.0
        %7599 = vmatpush1.msra.mxu0 0.0
        %7600 = vmatprep.subr.mxu0 0.0
        %7601 = vmatpush1.msra.mxu0 0.0
        %7602 = vmatprep.subr.mxu0 0.0
        %7603 = vmatpush1.msra.mxu0 0.0
        %7604 = vmatprep.subr.mxu0 0.0
        %7605 = vmatpush1.msra.mxu0 0.0
        %7606 = vmatprep.subr.mxu0 0.0
        %7607 = vmatpush1.msra.mxu0 0.0
        %7608 = vmatprep.subr.mxu0 0.0
        %7609 = vmatpush1.msra.mxu0 0.0
        %7610 = vmatprep.subr.mxu0 0.0
        %7611 = vmatpush1.msra.mxu0 0.0
        %7612 = vmatprep.subr.mxu0 0.0
        %7613 = vmatpush1.msra.mxu0 0.0
        %7614 = vmatprep.subr.mxu0 0.0
        %7615 = vmatpush1.msra.mxu0 0.0
        %7616 = vmatprep.subr.mxu0 0.0
        %7617 = vmatpush1.msra.mxu0 0.0
        %7618 = vmatprep.subr.mxu0 0.0
        %7619 = vmatpush1.msra.mxu0 0.0
        %7620 = vmatprep.subr.mxu0 0.0
        %7621 = vmatpush1.msra.mxu0 0.0
        %7622 = vmatprep.subr.mxu0 0.0
        %7623 = vmatpush1.msra.mxu0 0.0
        %7624 = vmatprep.subr.mxu0 0.0
        %7625 = vmatpush1.msra.mxu0 0.0
        %7626 = vmatprep.subr.mxu0 0.0
        %7627 = vmatpush1.msra.mxu0 0.0
        %7628 = vmatprep.subr.mxu0 0.0
        %7629 = vmatpush1.msra.mxu0 0.0
        %7630 = vmatprep.subr.mxu0 0.0
        %7631 = vmatpush1.msra.mxu0 0.0
        %7632 = vmatprep.subr.mxu0 0.0
        %7633 = vmatpush1.msra.mxu0 0.0
        %7634 = vmatprep.subr.mxu0 0.0
        %7635 = vmatpush1.msra.mxu0 0.0
        %7636 = vmatprep.subr.mxu0 0.0
        %7637 = vmatpush1.msra.mxu0 0.0
        %7638 = vmatprep.subr.mxu0 0.0
        %7639 = vmatpush1.msra.mxu0 0.0
        %7640 = vmatprep.subr.mxu0 0.0
        %7641 = vmatpush1.msra.mxu0 0.0
        %7642 = vmatprep.subr.mxu0 0.0
        %7643 = vmatpush1.msra.mxu0 0.0
        %7644 = vmatprep.mubr.f32.mxu0 0.0
        %v7645 = vand.u32 %v7203, 4294901760
        %7646 = vmatmul.mubr.f32.gmra.mrb[0].mxu0 %v7645
        %v7647 = vpop.f32.mrb[0].mxu0
        %v7648 = vadd.f32 %v7576, %v7647
        %v7649 = vpop.f32.mrb[0].mxu0
        %7650 = vdwg.mxu0
        %v7651 = vadd.f32 %v6283, %v7648
        %v7652 = vadd.f32 %v586, %v7651
        %v7653 = vld [vmem:[%s6] sm:$0x1]
        %v7655 = vlaneseq
        %v7656 = vshrl.u32 %v7655, 7
        %v7657 = vsub.s32 0, %v7656
        %v7658 = vrot.slane %v7653, %v7657
        %v7660 = vadd.f32 %v7652, %v7658
        %v7661 = vld [vmem:[%s7] sm:$0x1]
        %v7662 = vld [vmem:[%s8] sm:$0x1]
        %7663 = vadd.xlane.f32.xlu0 %v7660
        %v7664 = vpop.xlane.xlu0 %7663
        %v7665 = vmul.f32 %v7664, 0.03125
        %v7666 = vsub.f32 %v7660, %v7665
        %v7667 = vmul.f32 %v7666, %v585
        %v7668 = vmul.f32 %v7667, %v7667
        %7669 = vadd.xlane.f32.xlu0 %v7668
        %v7670 = vpop.xlane.xlu0 %7669
        %v7671 = vmul.f32 %v7670, 0.03125
        %v7672 = vadd.f32 %v7671, 1e-05
        %v7673 = vrsqrt.pop %v7672
        %v7674 = vmul.f32 %v7666, %v7673
        %v7676 = vlaneseq
        %v7677 = vshrl.u32 %v7676, 7
        %v7678 = vsub.s32 0, %v7677
        %v7679 = vrot.slane %v7661, %v7678
        %v7681 = vmul.f32 %v7674, %v7679
        %v7683 = vlaneseq
        %v7684 = vshrl.u32 %v7683, 7
        %v7685 = vsub.s32 0, %v7684
        %v7686 = vrot.slane %v7662, %v7685
        %v7688 = vadd.f32 %v7681, %v7686
        %v7689 = vld [vmem:[#allocation8] sm:$0xff]
        %v7690 = vld [vmem:[#allocation8 + $0x8] sm:$0xff]
        %v7691 = vld [vmem:[#allocation8 + $0x10] sm:$0xff]
        %v7692 = vld [vmem:[#allocation8 + $0x18] sm:$0xff]
        %v7693 = vld [vmem:[#allocation8 + $0x20] sm:$0xff]
        %v7694 = vld [vmem:[#allocation8 + $0x28] sm:$0xff]
        %v7695 = vld [vmem:[#allocation8 + $0x30] sm:$0xff]
        %v7696 = vld [vmem:[#allocation8 + $0x38] sm:$0xff]
        %v7697 = vld [vmem:[#allocation8 + $0x40] sm:$0xff]
        %v7698 = vld [vmem:[#allocation8 + $0x48] sm:$0xff]
        %v7699 = vld [vmem:[#allocation8 + $0x50] sm:$0xff]
        %v7700 = vld [vmem:[#allocation8 + $0x58] sm:$0xff]
        %v7701 = vld [vmem:[#allocation8 + $0x60] sm:$0xff]
        %v7702 = vld [vmem:[#allocation8 + $0x68] sm:$0xff]
        %v7703 = vld [vmem:[#allocation8 + $0x70] sm:$0xff]
        %v7704 = vld [vmem:[#allocation8 + $0x78] sm:$0xff]
        %v7705 = vld [vmem:[%s10] sm:$0x1]
        %v7707 = vlaneseq
        %v7708 = vshrl.u32 %v7707, 7
        %v7709 = vsub.s32 0, %v7708
        %v7710 = vrot.slane %v7705, %v7709
        %7712 = vmatprep.subr.mxu0 0.0
        %v7713 = vand.u32 %v7689, 4294901760
        %7714 = vmatpush1.msra.mxu0 %v7713
        %7715 = vmatprep.subr.mxu0 0.0
        %v7716 = vand.u32 %v7690, 4294901760
        %7717 = vmatpush1.msra.mxu0 %v7716
        %7718 = vmatprep.subr.mxu0 0.0
        %v7719 = vand.u32 %v7691, 4294901760
        %7720 = vmatpush1.msra.mxu0 %v7719
        %7721 = vmatprep.subr.mxu0 0.0
        %v7722 = vand.u32 %v7692, 4294901760
        %7723 = vmatpush1.msra.mxu0 %v7722
        %7724 = vmatprep.subr.mxu0 0.0
        %v7725 = vand.u32 %v7693, 4294901760
        %7726 = vmatpush1.msra.mxu0 %v7725
        %7727 = vmatprep.subr.mxu0 0.0
        %v7728 = vand.u32 %v7694, 4294901760
        %7729 = vmatpush1.msra.mxu0 %v7728
        %7730 = vmatprep.subr.mxu0 0.0
        %v7731 = vand.u32 %v7695, 4294901760
        %7732 = vmatpush1.msra.mxu0 %v7731
        %7733 = vmatprep.subr.mxu0 0.0
        %v7734 = vand.u32 %v7696, 4294901760
        %7735 = vmatpush1.msra.mxu0 %v7734
        %7736 = vmatprep.subr.mxu0 0.0
        %v7737 = vand.u32 %v7697, 4294901760
        %7738 = vmatpush1.msra.mxu0 %v7737
        %7739 = vmatprep.subr.mxu0 0.0
        %v7740 = vand.u32 %v7698, 4294901760
        %7741 = vmatpush1.msra.mxu0 %v7740
        %7742 = vmatprep.subr.mxu0 0.0
        %v7743 = vand.u32 %v7699, 4294901760
        %7744 = vmatpush1.msra.mxu0 %v7743
        %7745 = vmatprep.subr.mxu0 0.0
        %v7746 = vand.u32 %v7700, 4294901760
        %7747 = vmatpush1.msra.mxu0 %v7746
        %7748 = vmatprep.subr.mxu0 0.0
        %v7749 = vand.u32 %v7701, 4294901760
        %7750 = vmatpush1.msra.mxu0 %v7749
        %7751 = vmatprep.subr.mxu0 0.0
        %v7752 = vand.u32 %v7702, 4294901760
        %7753 = vmatpush1.msra.mxu0 %v7752
        %7754 = vmatprep.subr.mxu0 0.0
        %v7755 = vand.u32 %v7703, 4294901760
        %7756 = vmatpush1.msra.mxu0 %v7755
        %7757 = vmatprep.subr.mxu0 0.0
        %v7758 = vand.u32 %v7704, 4294901760
        %7759 = vmatpush1.msra.mxu0 %v7758
        %7760 = vmatprep.subr.mxu0 0.0
        %7761 = vmatpush1.msra.mxu0 0.0
        %7762 = vmatprep.subr.mxu0 0.0
        %7763 = vmatpush1.msra.mxu0 0.0
        %7764 = vmatprep.subr.mxu0 0.0
        %7765 = vmatpush1.msra.mxu0 0.0
        %7766 = vmatprep.subr.mxu0 0.0
        %7767 = vmatpush1.msra.mxu0 0.0
        %7768 = vmatprep.subr.mxu0 0.0
        %7769 = vmatpush1.msra.mxu0 0.0
        %7770 = vmatprep.subr.mxu0 0.0
        %7771 = vmatpush1.msra.mxu0 0.0
        %7772 = vmatprep.subr.mxu0 0.0
        %7773 = vmatpush1.msra.mxu0 0.0
        %7774 = vmatprep.subr.mxu0 0.0
        %7775 = vmatpush1.msra.mxu0 0.0
        %7776 = vmatprep.subr.mxu0 0.0
        %7777 = vmatpush1.msra.mxu0 0.0
        %7778 = vmatprep.subr.mxu0 0.0
        %7779 = vmatpush1.msra.mxu0 0.0
        %7780 = vmatprep.subr.mxu0 0.0
        %7781 = vmatpush1.msra.mxu0 0.0
        %7782 = vmatprep.subr.mxu0 0.0
        %7783 = vmatpush1.msra.mxu0 0.0
        %7784 = vmatprep.subr.mxu0 0.0
        %7785 = vmatpush1.msra.mxu0 0.0
        %7786 = vmatprep.subr.mxu0 0.0
        %7787 = vmatpush1.msra.mxu0 0.0
        %7788 = vmatprep.subr.mxu0 0.0
        %7789 = vmatpush1.msra.mxu0 0.0
        %7790 = vmatprep.subr.mxu0 0.0
        %7791 = vmatpush1.msra.mxu0 0.0
        %7792 = vmatprep.mubr.f32.mxu0 0.0
        %v7793 = vand.u32 %v7688, 4294901760
        %v7794 = vsub.f32 %v7688, %v7793
        %v7795 = vand.u32 %v7794, 4294901760
        %v7796 = vsub.f32 %v7794, %v7795
        %v7797 = vand.u32 %v7796, 4294901760
        %7798 = vmatmul.mubr.f32.gmra.mrb[0].mxu0 %v7797
        %v7799 = vpop.f32.mrb[0].mxu0
        %v7800 = vadd.f32 %v7710, %v7799
        %v7801 = vpop.f32.mrb[0].mxu0
        %7802 = vdwg.mxu0
        %7803 = vmatprep.subr.mxu0 0.0
        %v7804 = vand.u32 %v7689, 4294901760
        %v7805 = vsub.f32 %v7689, %v7804
        %v7806 = vand.u32 %v7805, 4294901760
        %v7807 = vsub.f32 %v7805, %v7806
        %v7808 = vand.u32 %v7807, 4294901760
        %7809 = vmatpush1.msra.mxu0 %v7808
        %7810 = vmatprep.subr.mxu0 0.0
        %v7811 = vand.u32 %v7690, 4294901760
        %v7812 = vsub.f32 %v7690, %v7811
        %v7813 = vand.u32 %v7812, 4294901760
        %v7814 = vsub.f32 %v7812, %v7813
        %v7815 = vand.u32 %v7814, 4294901760
        %7816 = vmatpush1.msra.mxu0 %v7815
        %7817 = vmatprep.subr.mxu0 0.0
        %v7818 = vand.u32 %v7691, 4294901760
        %v7819 = vsub.f32 %v7691, %v7818
        %v7820 = vand.u32 %v7819, 4294901760
        %v7821 = vsub.f32 %v7819, %v7820
        %v7822 = vand.u32 %v7821, 4294901760
        %7823 = vmatpush1.msra.mxu0 %v7822
        %7824 = vmatprep.subr.mxu0 0.0
        %v7825 = vand.u32 %v7692, 4294901760
        %v7826 = vsub.f32 %v7692, %v7825
        %v7827 = vand.u32 %v7826, 4294901760
        %v7828 = vsub.f32 %v7826, %v7827
        %v7829 = vand.u32 %v7828, 4294901760
        %7830 = vmatpush1.msra.mxu0 %v7829
        %7831 = vmatprep.subr.mxu0 0.0
        %v7832 = vand.u32 %v7693, 4294901760
        %v7833 = vsub.f32 %v7693, %v7832
        %v7834 = vand.u32 %v7833, 4294901760
        %v7835 = vsub.f32 %v7833, %v7834
        %v7836 = vand.u32 %v7835, 4294901760
        %7837 = vmatpush1.msra.mxu0 %v7836
        %7838 = vmatprep.subr.mxu0 0.0
        %v7839 = vand.u32 %v7694, 4294901760
        %v7840 = vsub.f32 %v7694, %v7839
        %v7841 = vand.u32 %v7840, 4294901760
        %v7842 = vsub.f32 %v7840, %v7841
        %v7843 = vand.u32 %v7842, 4294901760
        %7844 = vmatpush1.msra.mxu0 %v7843
        %7845 = vmatprep.subr.mxu0 0.0
        %v7846 = vand.u32 %v7695, 4294901760
        %v7847 = vsub.f32 %v7695, %v7846
        %v7848 = vand.u32 %v7847, 4294901760
        %v7849 = vsub.f32 %v7847, %v7848
        %v7850 = vand.u32 %v7849, 4294901760
        %7851 = vmatpush1.msra.mxu0 %v7850
        %7852 = vmatprep.subr.mxu0 0.0
        %v7853 = vand.u32 %v7696, 4294901760
        %v7854 = vsub.f32 %v7696, %v7853
        %v7855 = vand.u32 %v7854, 4294901760
        %v7856 = vsub.f32 %v7854, %v7855
        %v7857 = vand.u32 %v7856, 4294901760
        %7858 = vmatpush1.msra.mxu0 %v7857
        %7859 = vmatprep.subr.mxu0 0.0
        %v7860 = vand.u32 %v7697, 4294901760
        %v7861 = vsub.f32 %v7697, %v7860
        %v7862 = vand.u32 %v7861, 4294901760
        %v7863 = vsub.f32 %v7861, %v7862
        %v7864 = vand.u32 %v7863, 4294901760
        %7865 = vmatpush1.msra.mxu0 %v7864
        %7866 = vmatprep.subr.mxu0 0.0
        %v7867 = vand.u32 %v7698, 4294901760
        %v7868 = vsub.f32 %v7698, %v7867
        %v7869 = vand.u32 %v7868, 4294901760
        %v7870 = vsub.f32 %v7868, %v7869
        %v7871 = vand.u32 %v7870, 4294901760
        %7872 = vmatpush1.msra.mxu0 %v7871
        %7873 = vmatprep.subr.mxu0 0.0
        %v7874 = vand.u32 %v7699, 4294901760
        %v7875 = vsub.f32 %v7699, %v7874
        %v7876 = vand.u32 %v7875, 4294901760
        %v7877 = vsub.f32 %v7875, %v7876
        %v7878 = vand.u32 %v7877, 4294901760
        %7879 = vmatpush1.msra.mxu0 %v7878
        %7880 = vmatprep.subr.mxu0 0.0
        %v7881 = vand.u32 %v7700, 4294901760
        %v7882 = vsub.f32 %v7700, %v7881
        %v7883 = vand.u32 %v7882, 4294901760
        %v7884 = vsub.f32 %v7882, %v7883
        %v7885 = vand.u32 %v7884, 4294901760
        %7886 = vmatpush1.msra.mxu0 %v7885
        %7887 = vmatprep.subr.mxu0 0.0
        %v7888 = vand.u32 %v7701, 4294901760
        %v7889 = vsub.f32 %v7701, %v7888
        %v7890 = vand.u32 %v7889, 4294901760
        %v7891 = vsub.f32 %v7889, %v7890
        %v7892 = vand.u32 %v7891, 4294901760
        %7893 = vmatpush1.msra.mxu0 %v7892
        %7894 = vmatprep.subr.mxu0 0.0
        %v7895 = vand.u32 %v7702, 4294901760
        %v7896 = vsub.f32 %v7702, %v7895
        %v7897 = vand.u32 %v7896, 4294901760
        %v7898 = vsub.f32 %v7896, %v7897
        %v7899 = vand.u32 %v7898, 4294901760
        %7900 = vmatpush1.msra.mxu0 %v7899
        %7901 = vmatprep.subr.mxu0 0.0
        %v7902 = vand.u32 %v7703, 4294901760
        %v7903 = vsub.f32 %v7703, %v7902
        %v7904 = vand.u32 %v7903, 4294901760
        %v7905 = vsub.f32 %v7903, %v7904
        %v7906 = vand.u32 %v7905, 4294901760
        %7907 = vmatpush1.msra.mxu0 %v7906
        %7908 = vmatprep.subr.mxu0 0.0
        %v7909 = vand.u32 %v7704, 4294901760
        %v7910 = vsub.f32 %v7704, %v7909
        %v7911 = vand.u32 %v7910, 4294901760
        %v7912 = vsub.f32 %v7910, %v7911
        %v7913 = vand.u32 %v7912, 4294901760
        %7914 = vmatpush1.msra.mxu0 %v7913
        %7915 = vmatprep.subr.mxu0 0.0
        %7916 = vmatpush1.msra.mxu0 0.0
        %7917 = vmatprep.subr.mxu0 0.0
        %7918 = vmatpush1.msra.mxu0 0.0
        %7919 = vmatprep.subr.mxu0 0.0
        %7920 = vmatpush1.msra.mxu0 0.0
        %7921 = vmatprep.subr.mxu0 0.0
        %7922 = vmatpush1.msra.mxu0 0.0
        %7923 = vmatprep.subr.mxu0 0.0
        %7924 = vmatpush1.msra.mxu0 0.0
        %7925 = vmatprep.subr.mxu0 0.0
        %7926 = vmatpush1.msra.mxu0 0.0
        %7927 = vmatprep.subr.mxu0 0.0
        %7928 = vmatpush1.msra.mxu0 0.0
        %7929 = vmatprep.subr.mxu0 0.0
        %7930 = vmatpush1.msra.mxu0 0.0
        %7931 = vmatprep.subr.mxu0 0.0
        %7932 = vmatpush1.msra.mxu0 0.0
        %7933 = vmatprep.subr.mxu0 0.0
        %7934 = vmatpush1.msra.mxu0 0.0
        %7935 = vmatprep.subr.mxu0 0.0
        %7936 = vmatpush1.msra.mxu0 0.0
        %7937 = vmatprep.subr.mxu0 0.0
        %7938 = vmatpush1.msra.mxu0 0.0
        %7939 = vmatprep.subr.mxu0 0.0
        %7940 = vmatpush1.msra.mxu0 0.0
        %7941 = vmatprep.subr.mxu0 0.0
        %7942 = vmatpush1.msra.mxu0 0.0
        %7943 = vmatprep.subr.mxu0 0.0
        %7944 = vmatpush1.msra.mxu0 0.0
        %7945 = vmatprep.subr.mxu0 0.0
        %7946 = vmatpush1.msra.mxu0 0.0
        %7947 = vmatprep.mubr.f32.mxu0 0.0
        %v7948 = vand.u32 %v7688, 4294901760
        %7949 = vmatmul.mubr.f32.gmra.mrb[0].mxu0 %v7948
        %v7950 = vpop.f32.mrb[0].mxu0
        %v7951 = vadd.f32 %v7800, %v7950
        %v7952 = vpop.f32.mrb[0].mxu0
        %7953 = vdwg.mxu0
        %7954 = vmatprep.subr.mxu0 0.0
        %v7955 = vand.u32 %v7689, 4294901760
        %v7956 = vsub.f32 %v7689, %v7955
        %7957 = vmatpush1.msra.mxu0 %v7956
        %7958 = vmatprep.subr.mxu0 0.0
        %v7959 = vand.u32 %v7690, 4294901760
        %v7960 = vsub.f32 %v7690, %v7959
        %7961 = vmatpush1.msra.mxu0 %v7960
        %7962 = vmatprep.subr.mxu0 0.0
        %v7963 = vand.u32 %v7691, 4294901760
        %v7964 = vsub.f32 %v7691, %v7963
        %7965 = vmatpush1.msra.mxu0 %v7964
        %7966 = vmatprep.subr.mxu0 0.0
        %v7967 = vand.u32 %v7692, 4294901760
        %v7968 = vsub.f32 %v7692, %v7967
        %7969 = vmatpush1.msra.mxu0 %v7968
        %7970 = vmatprep.subr.mxu0 0.0
        %v7971 = vand.u32 %v7693, 4294901760
        %v7972 = vsub.f32 %v7693, %v7971
        %7973 = vmatpush1.msra.mxu0 %v7972
        %7974 = vmatprep.subr.mxu0 0.0
        %v7975 = vand.u32 %v7694, 4294901760
        %v7976 = vsub.f32 %v7694, %v7975
        %7977 = vmatpush1.msra.mxu0 %v7976
        %7978 = vmatprep.subr.mxu0 0.0
        %v7979 = vand.u32 %v7695, 4294901760
        %v7980 = vsub.f32 %v7695, %v7979
        %7981 = vmatpush1.msra.mxu0 %v7980
        %7982 = vmatprep.subr.mxu0 0.0
        %v7983 = vand.u32 %v7696, 4294901760
        %v7984 = vsub.f32 %v7696, %v7983
        %7985 = vmatpush1.msra.mxu0 %v7984
        %7986 = vmatprep.subr.mxu0 0.0
        %v7987 = vand.u32 %v7697, 4294901760
        %v7988 = vsub.f32 %v7697, %v7987
        %7989 = vmatpush1.msra.mxu0 %v7988
        %7990 = vmatprep.subr.mxu0 0.0
        %v7991 = vand.u32 %v7698, 4294901760
        %v7992 = vsub.f32 %v7698, %v7991
        %7993 = vmatpush1.msra.mxu0 %v7992
        %7994 = vmatprep.subr.mxu0 0.0
        %v7995 = vand.u32 %v7699, 4294901760
        %v7996 = vsub.f32 %v7699, %v7995
        %7997 = vmatpush1.msra.mxu0 %v7996
        %7998 = vmatprep.subr.mxu0 0.0
        %v7999 = vand.u32 %v7700, 4294901760
        %v8000 = vsub.f32 %v7700, %v7999
        %8001 = vmatpush1.msra.mxu0 %v8000
        %8002 = vmatprep.subr.mxu0 0.0
        %v8003 = vand.u32 %v7701, 4294901760
        %v8004 = vsub.f32 %v7701, %v8003
        %8005 = vmatpush1.msra.mxu0 %v8004
        %8006 = vmatprep.subr.mxu0 0.0
        %v8007 = vand.u32 %v7702, 4294901760
        %v8008 = vsub.f32 %v7702, %v8007
        %8009 = vmatpush1.msra.mxu0 %v8008
        %8010 = vmatprep.subr.mxu0 0.0
        %v8011 = vand.u32 %v7703, 4294901760
        %v8012 = vsub.f32 %v7703, %v8011
        %8013 = vmatpush1.msra.mxu0 %v8012
        %8014 = vmatprep.subr.mxu0 0.0
        %v8015 = vand.u32 %v7704, 4294901760
        %v8016 = vsub.f32 %v7704, %v8015
        %8017 = vmatpush1.msra.mxu0 %v8016
        %8018 = vmatprep.subr.mxu0 0.0
        %8019 = vmatpush1.msra.mxu0 0.0
        %8020 = vmatprep.subr.mxu0 0.0
        %8021 = vmatpush1.msra.mxu0 0.0
        %8022 = vmatprep.subr.mxu0 0.0
        %8023 = vmatpush1.msra.mxu0 0.0
        %8024 = vmatprep.subr.mxu0 0.0
        %8025 = vmatpush1.msra.mxu0 0.0
        %8026 = vmatprep.subr.mxu0 0.0
        %8027 = vmatpush1.msra.mxu0 0.0
        %8028 = vmatprep.subr.mxu0 0.0
        %8029 = vmatpush1.msra.mxu0 0.0
        %8030 = vmatprep.subr.mxu0 0.0
        %8031 = vmatpush1.msra.mxu0 0.0
        %8032 = vmatprep.subr.mxu0 0.0
        %8033 = vmatpush1.msra.mxu0 0.0
        %8034 = vmatprep.subr.mxu0 0.0
        %8035 = vmatpush1.msra.mxu0 0.0
        %8036 = vmatprep.subr.mxu0 0.0
        %8037 = vmatpush1.msra.mxu0 0.0
        %8038 = vmatprep.subr.mxu0 0.0
        %8039 = vmatpush1.msra.mxu0 0.0
        %8040 = vmatprep.subr.mxu0 0.0
        %8041 = vmatpush1.msra.mxu0 0.0
        %8042 = vmatprep.subr.mxu0 0.0
        %8043 = vmatpush1.msra.mxu0 0.0
        %8044 = vmatprep.subr.mxu0 0.0
        %8045 = vmatpush1.msra.mxu0 0.0
        %8046 = vmatprep.subr.mxu0 0.0
        %8047 = vmatpush1.msra.mxu0 0.0
        %8048 = vmatprep.subr.mxu0 0.0
        %8049 = vmatpush1.msra.mxu0 0.0
        %8050 = vmatprep.mubr.f32.mxu0 0.0
        %v8051 = vand.u32 %v7688, 4294901760
        %v8052 = vsub.f32 %v7688, %v8051
        %8053 = vmatmul.mubr.f32.gmra.mrb[0].mxu0 %v8052
        %v8054 = vpop.f32.mrb[0].mxu0
        %v8055 = vadd.f32 %v7951, %v8054
        %v8056 = vpop.f32.mrb[0].mxu0
        %8057 = vdwg.mxu0
        %8058 = vmatprep.subr.mxu0 0.0
        %v8059 = vand.u32 %v7689, 4294901760
        %8060 = vmatpush1.msra.mxu0 %v8059
        %8061 = vmatprep.subr.mxu0 0.0
        %v8062 = vand.u32 %v7690, 4294901760
        %8063 = vmatpush1.msra.mxu0 %v8062
        %8064 = vmatprep.subr.mxu0 0.0
        %v8065 = vand.u32 %v7691, 4294901760
        %8066 = vmatpush1.msra.mxu0 %v8065
        %8067 = vmatprep.subr.mxu0 0.0
        %v8068 = vand.u32 %v7692, 4294901760
        %8069 = vmatpush1.msra.mxu0 %v8068
        %8070 = vmatprep.subr.mxu0 0.0
        %v8071 = vand.u32 %v7693, 4294901760
        %8072 = vmatpush1.msra.mxu0 %v8071
        %8073 = vmatprep.subr.mxu0 0.0
        %v8074 = vand.u32 %v7694, 4294901760
        %8075 = vmatpush1.msra.mxu0 %v8074
        %8076 = vmatprep.subr.mxu0 0.0
        %v8077 = vand.u32 %v7695, 4294901760
        %8078 = vmatpush1.msra.mxu0 %v8077
        %8079 = vmatprep.subr.mxu0 0.0
        %v8080 = vand.u32 %v7696, 4294901760
        %8081 = vmatpush1.msra.mxu0 %v8080
        %8082 = vmatprep.subr.mxu0 0.0
        %v8083 = vand.u32 %v7697, 4294901760
        %8084 = vmatpush1.msra.mxu0 %v8083
        %8085 = vmatprep.subr.mxu0 0.0
        %v8086 = vand.u32 %v7698, 4294901760
        %8087 = vmatpush1.msra.mxu0 %v8086
        %8088 = vmatprep.subr.mxu0 0.0
        %v8089 = vand.u32 %v7699, 4294901760
        %8090 = vmatpush1.msra.mxu0 %v8089
        %8091 = vmatprep.subr.mxu0 0.0
        %v8092 = vand.u32 %v7700, 4294901760
        %8093 = vmatpush1.msra.mxu0 %v8092
        %8094 = vmatprep.subr.mxu0 0.0
        %v8095 = vand.u32 %v7701, 4294901760
        %8096 = vmatpush1.msra.mxu0 %v8095
        %8097 = vmatprep.subr.mxu0 0.0
        %v8098 = vand.u32 %v7702, 4294901760
        %8099 = vmatpush1.msra.mxu0 %v8098
        %8100 = vmatprep.subr.mxu0 0.0
        %v8101 = vand.u32 %v7703, 4294901760
        %8102 = vmatpush1.msra.mxu0 %v8101
        %8103 = vmatprep.subr.mxu0 0.0
        %v8104 = vand.u32 %v7704, 4294901760
        %8105 = vmatpush1.msra.mxu0 %v8104
        %8106 = vmatprep.subr.mxu0 0.0
        %8107 = vmatpush1.msra.mxu0 0.0
        %8108 = vmatprep.subr.mxu0 0.0
        %8109 = vmatpush1.msra.mxu0 0.0
        %8110 = vmatprep.subr.mxu0 0.0
        %8111 = vmatpush1.msra.mxu0 0.0
        %8112 = vmatprep.subr.mxu0 0.0
        %8113 = vmatpush1.msra.mxu0 0.0
        %8114 = vmatprep.subr.mxu0 0.0
        %8115 = vmatpush1.msra.mxu0 0.0
        %8116 = vmatprep.subr.mxu0 0.0
        %8117 = vmatpush1.msra.mxu0 0.0
        %8118 = vmatprep.subr.mxu0 0.0
        %8119 = vmatpush1.msra.mxu0 0.0
        %8120 = vmatprep.subr.mxu0 0.0
        %8121 = vmatpush1.msra.mxu0 0.0
        %8122 = vmatprep.subr.mxu0 0.0
        %8123 = vmatpush1.msra.mxu0 0.0
        %8124 = vmatprep.subr.mxu0 0.0
        %8125 = vmatpush1.msra.mxu0 0.0
        %8126 = vmatprep.subr.mxu0 0.0
        %8127 = vmatpush1.msra.mxu0 0.0
        %8128 = vmatprep.subr.mxu0 0.0
        %8129 = vmatpush1.msra.mxu0 0.0
        %8130 = vmatprep.subr.mxu0 0.0
        %8131 = vmatpush1.msra.mxu0 0.0
        %8132 = vmatprep.subr.mxu0 0.0
        %8133 = vmatpush1.msra.mxu0 0.0
        %8134 = vmatprep.subr.mxu0 0.0
        %8135 = vmatpush1.msra.mxu0 0.0
        %8136 = vmatprep.subr.mxu0 0.0
        %8137 = vmatpush1.msra.mxu0 0.0
        %8138 = vmatprep.mubr.f32.mxu0 0.0
        %v8139 = vand.u32 %v7688, 4294901760
        %v8140 = vsub.f32 %v7688, %v8139
        %v8141 = vand.u32 %v8140, 4294901760
        %8142 = vmatmul.mubr.f32.gmra.mrb[0].mxu0 %v8141
        %v8143 = vpop.f32.mrb[0].mxu0
        %v8144 = vadd.f32 %v8055, %v8143
        %v8145 = vpop.f32.mrb[0].mxu0
        %8146 = vdwg.mxu0
        %8147 = vmatprep.subr.mxu0 0.0
        %v8148 = vand.u32 %v7689, 4294901760
        %v8149 = vsub.f32 %v7689, %v8148
        %v8150 = vand.u32 %v8149, 4294901760
        %8151 = vmatpush1.msra.mxu0 %v8150
        %8152 = vmatprep.subr.mxu0 0.0
        %v8153 = vand.u32 %v7690, 4294901760
        %v8154 = vsub.f32 %v7690, %v8153
        %v8155 = vand.u32 %v8154, 4294901760
        %8156 = vmatpush1.msra.mxu0 %v8155
        %8157 = vmatprep.subr.mxu0 0.0
        %v8158 = vand.u32 %v7691, 4294901760
        %v8159 = vsub.f32 %v7691, %v8158
        %v8160 = vand.u32 %v8159, 4294901760
        %8161 = vmatpush1.msra.mxu0 %v8160
        %8162 = vmatprep.subr.mxu0 0.0
        %v8163 = vand.u32 %v7692, 4294901760
        %v8164 = vsub.f32 %v7692, %v8163
        %v8165 = vand.u32 %v8164, 4294901760
        %8166 = vmatpush1.msra.mxu0 %v8165
        %8167 = vmatprep.subr.mxu0 0.0
        %v8168 = vand.u32 %v7693, 4294901760
        %v8169 = vsub.f32 %v7693, %v8168
        %v8170 = vand.u32 %v8169, 4294901760
        %8171 = vmatpush1.msra.mxu0 %v8170
        %8172 = vmatprep.subr.mxu0 0.0
        %v8173 = vand.u32 %v7694, 4294901760
        %v8174 = vsub.f32 %v7694, %v8173
        %v8175 = vand.u32 %v8174, 4294901760
        %8176 = vmatpush1.msra.mxu0 %v8175
        %8177 = vmatprep.subr.mxu0 0.0
        %v8178 = vand.u32 %v7695, 4294901760
        %v8179 = vsub.f32 %v7695, %v8178
        %v8180 = vand.u32 %v8179, 4294901760
        %8181 = vmatpush1.msra.mxu0 %v8180
        %8182 = vmatprep.subr.mxu0 0.0
        %v8183 = vand.u32 %v7696, 4294901760
        %v8184 = vsub.f32 %v7696, %v8183
        %v8185 = vand.u32 %v8184, 4294901760
        %8186 = vmatpush1.msra.mxu0 %v8185
        %8187 = vmatprep.subr.mxu0 0.0
        %v8188 = vand.u32 %v7697, 4294901760
        %v8189 = vsub.f32 %v7697, %v8188
        %v8190 = vand.u32 %v8189, 4294901760
        %8191 = vmatpush1.msra.mxu0 %v8190
        %8192 = vmatprep.subr.mxu0 0.0
        %v8193 = vand.u32 %v7698, 4294901760
        %v8194 = vsub.f32 %v7698, %v8193
        %v8195 = vand.u32 %v8194, 4294901760
        %8196 = vmatpush1.msra.mxu0 %v8195
        %8197 = vmatprep.subr.mxu0 0.0
        %v8198 = vand.u32 %v7699, 4294901760
        %v8199 = vsub.f32 %v7699, %v8198
        %v8200 = vand.u32 %v8199, 4294901760
        %8201 = vmatpush1.msra.mxu0 %v8200
        %8202 = vmatprep.subr.mxu0 0.0
        %v8203 = vand.u32 %v7700, 4294901760
        %v8204 = vsub.f32 %v7700, %v8203
        %v8205 = vand.u32 %v8204, 4294901760
        %8206 = vmatpush1.msra.mxu0 %v8205
        %8207 = vmatprep.subr.mxu0 0.0
        %v8208 = vand.u32 %v7701, 4294901760
        %v8209 = vsub.f32 %v7701, %v8208
        %v8210 = vand.u32 %v8209, 4294901760
        %8211 = vmatpush1.msra.mxu0 %v8210
        %8212 = vmatprep.subr.mxu0 0.0
        %v8213 = vand.u32 %v7702, 4294901760
        %v8214 = vsub.f32 %v7702, %v8213
        %v8215 = vand.u32 %v8214, 4294901760
        %8216 = vmatpush1.msra.mxu0 %v8215
        %8217 = vmatprep.subr.mxu0 0.0
        %v8218 = vand.u32 %v7703, 4294901760
        %v8219 = vsub.f32 %v7703, %v8218
        %v8220 = vand.u32 %v8219, 4294901760
        %8221 = vmatpush1.msra.mxu0 %v8220
        %8222 = vmatprep.subr.mxu0 0.0
        %v8223 = vand.u32 %v7704, 4294901760
        %v8224 = vsub.f32 %v7704, %v8223
        %v8225 = vand.u32 %v8224, 4294901760
        %8226 = vmatpush1.msra.mxu0 %v8225
        %8227 = vmatprep.subr.mxu0 0.0
        %8228 = vmatpush1.msra.mxu0 0.0
        %8229 = vmatprep.subr.mxu0 0.0
        %8230 = vmatpush1.msra.mxu0 0.0
        %8231 = vmatprep.subr.mxu0 0.0
        %8232 = vmatpush1.msra.mxu0 0.0
        %8233 = vmatprep.subr.mxu0 0.0
        %8234 = vmatpush1.msra.mxu0 0.0
        %8235 = vmatprep.subr.mxu0 0.0
        %8236 = vmatpush1.msra.mxu0 0.0
        %8237 = vmatprep.subr.mxu0 0.0
        %8238 = vmatpush1.msra.mxu0 0.0
        %8239 = vmatprep.subr.mxu0 0.0
        %8240 = vmatpush1.msra.mxu0 0.0
        %8241 = vmatprep.subr.mxu0 0.0
        %8242 = vmatpush1.msra.mxu0 0.0
        %8243 = vmatprep.subr.mxu0 0.0
        %8244 = vmatpush1.msra.mxu0 0.0
        %8245 = vmatprep.subr.mxu0 0.0
        %8246 = vmatpush1.msra.mxu0 0.0
        %8247 = vmatprep.subr.mxu0 0.0
        %8248 = vmatpush1.msra.mxu0 0.0
        %8249 = vmatprep.subr.mxu0 0.0
        %8250 = vmatpush1.msra.mxu0 0.0
        %8251 = vmatprep.subr.mxu0 0.0
        %8252 = vmatpush1.msra.mxu0 0.0
        %8253 = vmatprep.subr.mxu0 0.0
        %8254 = vmatpush1.msra.mxu0 0.0
        %8255 = vmatprep.subr.mxu0 0.0
        %8256 = vmatpush1.msra.mxu0 0.0
        %8257 = vmatprep.subr.mxu0 0.0
        %8258 = vmatpush1.msra.mxu0 0.0
        %8259 = vmatprep.mubr.f32.mxu0 0.0
        %v8260 = vand.u32 %v7688, 4294901760
        %8261 = vmatmul.mubr.f32.gmra.mrb[0].mxu0 %v8260
        %v8262 = vpop.f32.mrb[0].mxu0
        %v8263 = vadd.f32 %v8144, %v8262
        %v8264 = vpop.f32.mrb[0].mxu0
        %8265 = vdwg.mxu0
        %8266 = vmatprep.subr.mxu0 0.0
        %v8267 = vand.u32 %v7689, 4294901760
        %8268 = vmatpush1.msra.mxu0 %v8267
        %8269 = vmatprep.subr.mxu0 0.0
        %v8270 = vand.u32 %v7690, 4294901760
        %8271 = vmatpush1.msra.mxu0 %v8270
        %8272 = vmatprep.subr.mxu0 0.0
        %v8273 = vand.u32 %v7691, 4294901760
        %8274 = vmatpush1.msra.mxu0 %v8273
        %8275 = vmatprep.subr.mxu0 0.0
        %v8276 = vand.u32 %v7692, 4294901760
        %8277 = vmatpush1.msra.mxu0 %v8276
        %8278 = vmatprep.subr.mxu0 0.0
        %v8279 = vand.u32 %v7693, 4294901760
        %8280 = vmatpush1.msra.mxu0 %v8279
        %8281 = vmatprep.subr.mxu0 0.0
        %v8282 = vand.u32 %v7694, 4294901760
        %8283 = vmatpush1.msra.mxu0 %v8282
        %8284 = vmatprep.subr.mxu0 0.0
        %v8285 = vand.u32 %v7695, 4294901760
        %8286 = vmatpush1.msra.mxu0 %v8285
        %8287 = vmatprep.subr.mxu0 0.0
        %v8288 = vand.u32 %v7696, 4294901760
        %8289 = vmatpush1.msra.mxu0 %v8288
        %8290 = vmatprep.subr.mxu0 0.0
        %v8291 = vand.u32 %v7697, 4294901760
        %8292 = vmatpush1.msra.mxu0 %v8291
        %8293 = vmatprep.subr.mxu0 0.0
        %v8294 = vand.u32 %v7698, 4294901760
        %8295 = vmatpush1.msra.mxu0 %v8294
        %8296 = vmatprep.subr.mxu0 0.0
        %v8297 = vand.u32 %v7699, 4294901760
        %8298 = vmatpush1.msra.mxu0 %v8297
        %8299 = vmatprep.subr.mxu0 0.0
        %v8300 = vand.u32 %v7700, 4294901760
        %8301 = vmatpush1.msra.mxu0 %v8300
        %8302 = vmatprep.subr.mxu0 0.0
        %v8303 = vand.u32 %v7701, 4294901760
        %8304 = vmatpush1.msra.mxu0 %v8303
        %8305 = vmatprep.subr.mxu0 0.0
        %v8306 = vand.u32 %v7702, 4294901760
        %8307 = vmatpush1.msra.mxu0 %v8306
        %8308 = vmatprep.subr.mxu0 0.0
        %v8309 = vand.u32 %v7703, 4294901760
        %8310 = vmatpush1.msra.mxu0 %v8309
        %8311 = vmatprep.subr.mxu0 0.0
        %v8312 = vand.u32 %v7704, 4294901760
        %8313 = vmatpush1.msra.mxu0 %v8312
        %8314 = vmatprep.subr.mxu0 0.0
        %8315 = vmatpush1.msra.mxu0 0.0
        %8316 = vmatprep.subr.mxu0 0.0
        %8317 = vmatpush1.msra.mxu0 0.0
        %8318 = vmatprep.subr.mxu0 0.0
        %8319 = vmatpush1.msra.mxu0 0.0
        %8320 = vmatprep.subr.mxu0 0.0
        %8321 = vmatpush1.msra.mxu0 0.0
        %8322 = vmatprep.subr.mxu0 0.0
        %8323 = vmatpush1.msra.mxu0 0.0
        %8324 = vmatprep.subr.mxu0 0.0
        %8325 = vmatpush1.msra.mxu0 0.0
        %8326 = vmatprep.subr.mxu0 0.0
        %8327 = vmatpush1.msra.mxu0 0.0
        %8328 = vmatprep.subr.mxu0 0.0
        %8329 = vmatpush1.msra.mxu0 0.0
        %8330 = vmatprep.subr.mxu0 0.0
        %8331 = vmatpush1.msra.mxu0 0.0
        %8332 = vmatprep.subr.mxu0 0.0
        %8333 = vmatpush1.msra.mxu0 0.0
        %8334 = vmatprep.subr.mxu0 0.0
        %8335 = vmatpush1.msra.mxu0 0.0
        %8336 = vmatprep.subr.mxu0 0.0
        %8337 = vmatpush1.msra.mxu0 0.0
        %8338 = vmatprep.subr.mxu0 0.0
        %8339 = vmatpush1.msra.mxu0 0.0
        %8340 = vmatprep.subr.mxu0 0.0
        %8341 = vmatpush1.msra.mxu0 0.0
        %8342 = vmatprep.subr.mxu0 0.0
        %8343 = vmatpush1.msra.mxu0 0.0
        %8344 = vmatprep.subr.mxu0 0.0
        %8345 = vmatpush1.msra.mxu0 0.0
        %8346 = vmatprep.mubr.f32.mxu0 0.0
        %v8347 = vand.u32 %v7688, 4294901760
        %8348 = vmatmul.mubr.f32.gmra.mrb[0].mxu0 %v8347
        %v8349 = vpop.f32.mrb[0].mxu0
        %v8350 = vadd.f32 %v8263, %v8349
        %v8351 = vpop.f32.mrb[0].mxu0
        %8352 = vdwg.mxu0
        %v8353 = vmul.f32 %v8350, 0.5
        %v8354 = vmul.f32 %v8350, 0.70710677
        %v8355 = verf.f32.pop %v8354
        %v8356 = vadd.f32 %v8355, 1.0
        %v8357 = vmul.f32 %v8353, %v8356
        %v8358 = vld [vmem:[#allocation10] sm:$0xff]
        %v8359 = vld [vmem:[#allocation10 + $0x8] sm:$0xff]
        %v8360 = vld [vmem:[#allocation10 + $0x10] sm:$0xff]
        %v8361 = vld [vmem:[#allocation10 + $0x18] sm:$0xff]
        %v8362 = vld [vmem:[#allocation10 + $0x20] sm:$0xff]
        %v8363 = vld [vmem:[#allocation10 + $0x28] sm:$0xff]
        %v8364 = vld [vmem:[#allocation10 + $0x30] sm:$0xff]
        %v8365 = vld [vmem:[#allocation10 + $0x38] sm:$0xff]
        %v8366 = vld [vmem:[#allocation10 + $0x40] sm:$0xff]
        %v8367 = vld [vmem:[#allocation10 + $0x48] sm:$0xff]
        %v8368 = vld [vmem:[#allocation10 + $0x50] sm:$0xff]
        %v8369 = vld [vmem:[#allocation10 + $0x58] sm:$0xff]
        %v8370 = vld [vmem:[#allocation10 + $0x60] sm:$0xff]
        %v8371 = vld [vmem:[#allocation10 + $0x68] sm:$0xff]
        %v8372 = vld [vmem:[#allocation10 + $0x70] sm:$0xff]
        %v8373 = vld [vmem:[#allocation10 + $0x78] sm:$0xff]
        %v8374 = vld [vmem:[%s12] sm:$0x1]
        %v8376 = vlaneseq
        %v8377 = vshrl.u32 %v8376, 7
        %v8378 = vsub.s32 0, %v8377
        %v8379 = vrot.slane %v8374, %v8378
        %8381 = vmatprep.subr.mxu0 0.0
        %v8382 = vand.u32 %v8358, 4294901760
        %8383 = vmatpush1.msra.mxu0 %v8382
        %8384 = vmatprep.subr.mxu0 0.0
        %v8385 = vand.u32 %v8359, 4294901760
        %8386 = vmatpush1.msra.mxu0 %v8385
        %8387 = vmatprep.subr.mxu0 0.0
        %v8388 = vand.u32 %v8360, 4294901760
        %8389 = vmatpush1.msra.mxu0 %v8388
        %8390 = vmatprep.subr.mxu0 0.0
        %v8391 = vand.u32 %v8361, 4294901760
        %8392 = vmatpush1.msra.mxu0 %v8391
        %8393 = vmatprep.subr.mxu0 0.0
        %v8394 = vand.u32 %v8362, 4294901760
        %8395 = vmatpush1.msra.mxu0 %v8394
        %8396 = vmatprep.subr.mxu0 0.0
        %v8397 = vand.u32 %v8363, 4294901760
        %8398 = vmatpush1.msra.mxu0 %v8397
        %8399 = vmatprep.subr.mxu0 0.0
        %v8400 = vand.u32 %v8364, 4294901760
        %8401 = vmatpush1.msra.mxu0 %v8400
        %8402 = vmatprep.subr.mxu0 0.0
        %v8403 = vand.u32 %v8365, 4294901760
        %8404 = vmatpush1.msra.mxu0 %v8403
        %8405 = vmatprep.subr.mxu0 0.0
        %v8406 = vand.u32 %v8366, 4294901760
        %8407 = vmatpush1.msra.mxu0 %v8406
        %8408 = vmatprep.subr.mxu0 0.0
        %v8409 = vand.u32 %v8367, 4294901760
        %8410 = vmatpush1.msra.mxu0 %v8409
        %8411 = vmatprep.subr.mxu0 0.0
        %v8412 = vand.u32 %v8368, 4294901760
        %8413 = vmatpush1.msra.mxu0 %v8412
        %8414 = vmatprep.subr.mxu0 0.0
        %v8415 = vand.u32 %v8369, 4294901760
        %8416 = vmatpush1.msra.mxu0 %v8415
        %8417 = vmatprep.subr.mxu0 0.0
        %v8418 = vand.u32 %v8370, 4294901760
        %8419 = vmatpush1.msra.mxu0 %v8418
        %8420 = vmatprep.subr.mxu0 0.0
        %v8421 = vand.u32 %v8371, 4294901760
        %8422 = vmatpush1.msra.mxu0 %v8421
        %8423 = vmatprep.subr.mxu0 0.0
        %v8424 = vand.u32 %v8372, 4294901760
        %8425 = vmatpush1.msra.mxu0 %v8424
        %8426 = vmatprep.subr.mxu0 0.0
        %v8427 = vand.u32 %v8373, 4294901760
        %8428 = vmatpush1.msra.mxu0 %v8427
        %8429 = vmatprep.subr.mxu0 0.0
        %8430 = vmatpush1.msra.mxu0 0.0
        %8431 = vmatprep.subr.mxu0 0.0
        %8432 = vmatpush1.msra.mxu0 0.0
        %8433 = vmatprep.subr.mxu0 0.0
        %8434 = vmatpush1.msra.mxu0 0.0
        %8435 = vmatprep.subr.mxu0 0.0
        %8436 = vmatpush1.msra.mxu0 0.0
        %8437 = vmatprep.subr.mxu0 0.0
        %8438 = vmatpush1.msra.mxu0 0.0
        %8439 = vmatprep.subr.mxu0 0.0
        %8440 = vmatpush1.msra.mxu0 0.0
        %8441 = vmatprep.subr.mxu0 0.0
        %8442 = vmatpush1.msra.mxu0 0.0
        %8443 = vmatprep.subr.mxu0 0.0
        %8444 = vmatpush1.msra.mxu0 0.0
        %8445 = vmatprep.subr.mxu0 0.0
        %8446 = vmatpush1.msra.mxu0 0.0
        %8447 = vmatprep.subr.mxu0 0.0
        %8448 = vmatpush1.msra.mxu0 0.0
        %8449 = vmatprep.subr.mxu0 0.0
        %8450 = vmatpush1.msra.mxu0 0.0
        %8451 = vmatprep.subr.mxu0 0.0
        %8452 = vmatpush1.msra.mxu0 0.0
        %8453 = vmatprep.subr.mxu0 0.0
        %8454 = vmatpush1.msra.mxu0 0.0
        %8455 = vmatprep.subr.mxu0 0.0
        %8456 = vmatpush1.msra.mxu0 0.0
        %8457 = vmatprep.subr.mxu0 0.0
        %8458 = vmatpush1.msra.mxu0 0.0
        %8459 = vmatprep.subr.mxu0 0.0
        %8460 = vmatpush1.msra.mxu0 0.0
        %8461 = vmatprep.mubr.f32.mxu0 0.0
        %v8462 = vand.u32 %v8357, 4294901760
        %v8463 = vsub.f32 %v8357, %v8462
        %v8464 = vand.u32 %v8463, 4294901760
        %v8465 = vsub.f32 %v8463, %v8464
        %v8466 = vand.u32 %v8465, 4294901760
        %8467 = vmatmul.mubr.f32.gmra.mrb[0].mxu0 %v8466
        %v8468 = vpop.f32.mrb[0].mxu0
        %v8469 = vadd.f32 %v8379, %v8468
        %v8470 = vpop.f32.mrb[0].mxu0
        %8471 = vdwg.mxu0
        %8472 = vmatprep.subr.mxu0 0.0
        %v8473 = vand.u32 %v8358, 4294901760
        %v8474 = vsub.f32 %v8358, %v8473
        %v8475 = vand.u32 %v8474, 4294901760
        %v8476 = vsub.f32 %v8474, %v8475
        %v8477 = vand.u32 %v8476, 4294901760
        %8478 = vmatpush1.msra.mxu0 %v8477
        %8479 = vmatprep.subr.mxu0 0.0
        %v8480 = vand.u32 %v8359, 4294901760
        %v8481 = vsub.f32 %v8359, %v8480
        %v8482 = vand.u32 %v8481, 4294901760
        %v8483 = vsub.f32 %v8481, %v8482
        %v8484 = vand.u32 %v8483, 4294901760
        %8485 = vmatpush1.msra.mxu0 %v8484
        %8486 = vmatprep.subr.mxu0 0.0
        %v8487 = vand.u32 %v8360, 4294901760
        %v8488 = vsub.f32 %v8360, %v8487
        %v8489 = vand.u32 %v8488, 4294901760
        %v8490 = vsub.f32 %v8488, %v8489
        %v8491 = vand.u32 %v8490, 4294901760
        %8492 = vmatpush1.msra.mxu0 %v8491
        %8493 = vmatprep.subr.mxu0 0.0
        %v8494 = vand.u32 %v8361, 4294901760
        %v8495 = vsub.f32 %v8361, %v8494
        %v8496 = vand.u32 %v8495, 4294901760
        %v8497 = vsub.f32 %v8495, %v8496
        %v8498 = vand.u32 %v8497, 4294901760
        %8499 = vmatpush1.msra.mxu0 %v8498
        %8500 = vmatprep.subr.mxu0 0.0
        %v8501 = vand.u32 %v8362, 4294901760
        %v8502 = vsub.f32 %v8362, %v8501
        %v8503 = vand.u32 %v8502, 4294901760
        %v8504 = vsub.f32 %v8502, %v8503
        %v8505 = vand.u32 %v8504, 4294901760
        %8506 = vmatpush1.msra.mxu0 %v8505
        %8507 = vmatprep.subr.mxu0 0.0
        %v8508 = vand.u32 %v8363, 4294901760
        %v8509 = vsub.f32 %v8363, %v8508
        %v8510 = vand.u32 %v8509, 4294901760
        %v8511 = vsub.f32 %v8509, %v8510
        %v8512 = vand.u32 %v8511, 4294901760
        %8513 = vmatpush1.msra.mxu0 %v8512
        %8514 = vmatprep.subr.mxu0 0.0
        %v8515 = vand.u32 %v8364, 4294901760
        %v8516 = vsub.f32 %v8364, %v8515
        %v8517 = vand.u32 %v8516, 4294901760
        %v8518 = vsub.f32 %v8516, %v8517
        %v8519 = vand.u32 %v8518, 4294901760
        %8520 = vmatpush1.msra.mxu0 %v8519
        %8521 = vmatprep.subr.mxu0 0.0
        %v8522 = vand.u32 %v8365, 4294901760
        %v8523 = vsub.f32 %v8365, %v8522
        %v8524 = vand.u32 %v8523, 4294901760
        %v8525 = vsub.f32 %v8523, %v8524
        %v8526 = vand.u32 %v8525, 4294901760
        %8527 = vmatpush1.msra.mxu0 %v8526
        %8528 = vmatprep.subr.mxu0 0.0
        %v8529 = vand.u32 %v8366, 4294901760
        %v8530 = vsub.f32 %v8366, %v8529
        %v8531 = vand.u32 %v8530, 4294901760
        %v8532 = vsub.f32 %v8530, %v8531
        %v8533 = vand.u32 %v8532, 4294901760
        %8534 = vmatpush1.msra.mxu0 %v8533
        %8535 = vmatprep.subr.mxu0 0.0
        %v8536 = vand.u32 %v8367, 4294901760
        %v8537 = vsub.f32 %v8367, %v8536
        %v8538 = vand.u32 %v8537, 4294901760
        %v8539 = vsub.f32 %v8537, %v8538
        %v8540 = vand.u32 %v8539, 4294901760
        %8541 = vmatpush1.msra.mxu0 %v8540
        %8542 = vmatprep.subr.mxu0 0.0
        %v8543 = vand.u32 %v8368, 4294901760
        %v8544 = vsub.f32 %v8368, %v8543
        %v8545 = vand.u32 %v8544, 4294901760
        %v8546 = vsub.f32 %v8544, %v8545
        %v8547 = vand.u32 %v8546, 4294901760
        %8548 = vmatpush1.msra.mxu0 %v8547
        %8549 = vmatprep.subr.mxu0 0.0
        %v8550 = vand.u32 %v8369, 4294901760
        %v8551 = vsub.f32 %v8369, %v8550
        %v8552 = vand.u32 %v8551, 4294901760
        %v8553 = vsub.f32 %v8551, %v8552
        %v8554 = vand.u32 %v8553, 4294901760
        %8555 = vmatpush1.msra.mxu0 %v8554
        %8556 = vmatprep.subr.mxu0 0.0
        %v8557 = vand.u32 %v8370, 4294901760
        %v8558 = vsub.f32 %v8370, %v8557
        %v8559 = vand.u32 %v8558, 4294901760
        %v8560 = vsub.f32 %v8558, %v8559
        %v8561 = vand.u32 %v8560, 4294901760
        %8562 = vmatpush1.msra.mxu0 %v8561
        %8563 = vmatprep.subr.mxu0 0.0
        %v8564 = vand.u32 %v8371, 4294901760
        %v8565 = vsub.f32 %v8371, %v8564
        %v8566 = vand.u32 %v8565, 4294901760
        %v8567 = vsub.f32 %v8565, %v8566
        %v8568 = vand.u32 %v8567, 4294901760
        %8569 = vmatpush1.msra.mxu0 %v8568
        %8570 = vmatprep.subr.mxu0 0.0
        %v8571 = vand.u32 %v8372, 4294901760
        %v8572 = vsub.f32 %v8372, %v8571
        %v8573 = vand.u32 %v8572, 4294901760
        %v8574 = vsub.f32 %v8572, %v8573
        %v8575 = vand.u32 %v8574, 4294901760
        %8576 = vmatpush1.msra.mxu0 %v8575
        %8577 = vmatprep.subr.mxu0 0.0
        %v8578 = vand.u32 %v8373, 4294901760
        %v8579 = vsub.f32 %v8373, %v8578
        %v8580 = vand.u32 %v8579, 4294901760
        %v8581 = vsub.f32 %v8579, %v8580
        %v8582 = vand.u32 %v8581, 4294901760
        %8583 = vmatpush1.msra.mxu0 %v8582
        %8584 = vmatprep.subr.mxu0 0.0
        %8585 = vmatpush1.msra.mxu0 0.0
        %8586 = vmatprep.subr.mxu0 0.0
        %8587 = vmatpush1.msra.mxu0 0.0
        %8588 = vmatprep.subr.mxu0 0.0
        %8589 = vmatpush1.msra.mxu0 0.0
        %8590 = vmatprep.subr.mxu0 0.0
        %8591 = vmatpush1.msra.mxu0 0.0
        %8592 = vmatprep.subr.mxu0 0.0
        %8593 = vmatpush1.msra.mxu0 0.0
        %8594 = vmatprep.subr.mxu0 0.0
        %8595 = vmatpush1.msra.mxu0 0.0
        %8596 = vmatprep.subr.mxu0 0.0
        %8597 = vmatpush1.msra.mxu0 0.0
        %8598 = vmatprep.subr.mxu0 0.0
        %8599 = vmatpush1.msra.mxu0 0.0
        %8600 = vmatprep.subr.mxu0 0.0
        %8601 = vmatpush1.msra.mxu0 0.0
        %8602 = vmatprep.subr.mxu0 0.0
        %8603 = vmatpush1.msra.mxu0 0.0
        %8604 = vmatprep.subr.mxu0 0.0
        %8605 = vmatpush1.msra.mxu0 0.0
        %8606 = vmatprep.subr.mxu0 0.0
        %8607 = vmatpush1.msra.mxu0 0.0
        %8608 = vmatprep.subr.mxu0 0.0
        %8609 = vmatpush1.msra.mxu0 0.0
        %8610 = vmatprep.subr.mxu0 0.0
        %8611 = vmatpush1.msra.mxu0 0.0
        %8612 = vmatprep.subr.mxu0 0.0
        %8613 = vmatpush1.msra.mxu0 0.0
        %8614 = vmatprep.subr.mxu0 0.0
        %8615 = vmatpush1.msra.mxu0 0.0
        %8616 = vmatprep.mubr.f32.mxu0 0.0
        %v8617 = vand.u32 %v8357, 4294901760
        %8618 = vmatmul.mubr.f32.gmra.mrb[0].mxu0 %v8617
        %v8619 = vpop.f32.mrb[0].mxu0
        %v8620 = vadd.f32 %v8469, %v8619
        %v8621 = vpop.f32.mrb[0].mxu0
        %8622 = vdwg.mxu0
        %8623 = vmatprep.subr.mxu0 0.0
        %v8624 = vand.u32 %v8358, 4294901760
        %v8625 = vsub.f32 %v8358, %v8624
        %8626 = vmatpush1.msra.mxu0 %v8625
        %8627 = vmatprep.subr.mxu0 0.0
        %v8628 = vand.u32 %v8359, 4294901760
        %v8629 = vsub.f32 %v8359, %v8628
        %8630 = vmatpush1.msra.mxu0 %v8629
        %8631 = vmatprep.subr.mxu0 0.0
        %v8632 = vand.u32 %v8360, 4294901760
        %v8633 = vsub.f32 %v8360, %v8632
        %8634 = vmatpush1.msra.mxu0 %v8633
        %8635 = vmatprep.subr.mxu0 0.0
        %v8636 = vand.u32 %v8361, 4294901760
        %v8637 = vsub.f32 %v8361, %v8636
        %8638 = vmatpush1.msra.mxu0 %v8637
        %8639 = vmatprep.subr.mxu0 0.0
        %v8640 = vand.u32 %v8362, 4294901760
        %v8641 = vsub.f32 %v8362, %v8640
        %8642 = vmatpush1.msra.mxu0 %v8641
        %8643 = vmatprep.subr.mxu0 0.0
        %v8644 = vand.u32 %v8363, 4294901760
        %v8645 = vsub.f32 %v8363, %v8644
        %8646 = vmatpush1.msra.mxu0 %v8645
        %8647 = vmatprep.subr.mxu0 0.0
        %v8648 = vand.u32 %v8364, 4294901760
        %v8649 = vsub.f32 %v8364, %v8648
        %8650 = vmatpush1.msra.mxu0 %v8649
        %8651 = vmatprep.subr.mxu0 0.0
        %v8652 = vand.u32 %v8365, 4294901760
        %v8653 = vsub.f32 %v8365, %v8652
        %8654 = vmatpush1.msra.mxu0 %v8653
        %8655 = vmatprep.subr.mxu0 0.0
        %v8656 = vand.u32 %v8366, 4294901760
        %v8657 = vsub.f32 %v8366, %v8656
        %8658 = vmatpush1.msra.mxu0 %v8657
        %8659 = vmatprep.subr.mxu0 0.0
        %v8660 = vand.u32 %v8367, 4294901760
        %v8661 = vsub.f32 %v8367, %v8660
        %8662 = vmatpush1.msra.mxu0 %v8661
        %8663 = vmatprep.subr.mxu0 0.0
        %v8664 = vand.u32 %v8368, 4294901760
        %v8665 = vsub.f32 %v8368, %v8664
        %8666 = vmatpush1.msra.mxu0 %v8665
        %8667 = vmatprep.subr.mxu0 0.0
        %v8668 = vand.u32 %v8369, 4294901760
        %v8669 = vsub.f32 %v8369, %v8668
        %8670 = vmatpush1.msra.mxu0 %v8669
        %8671 = vmatprep.subr.mxu0 0.0
        %v8672 = vand.u32 %v8370, 4294901760
        %v8673 = vsub.f32 %v8370, %v8672
        %8674 = vmatpush1.msra.mxu0 %v8673
        %8675 = vmatprep.subr.mxu0 0.0
        %v8676 = vand.u32 %v8371, 4294901760
        %v8677 = vsub.f32 %v8371, %v8676
        %8678 = vmatpush1.msra.mxu0 %v8677
        %8679 = vmatprep.subr.mxu0 0.0
        %v8680 = vand.u32 %v8372, 4294901760
        %v8681 = vsub.f32 %v8372, %v8680
        %8682 = vmatpush1.msra.mxu0 %v8681
        %8683 = vmatprep.subr.mxu0 0.0
        %v8684 = vand.u32 %v8373, 4294901760
        %v8685 = vsub.f32 %v8373, %v8684
        %8686 = vmatpush1.msra.mxu0 %v8685
        %8687 = vmatprep.subr.mxu0 0.0
        %8688 = vmatpush1.msra.mxu0 0.0
        %8689 = vmatprep.subr.mxu0 0.0
        %8690 = vmatpush1.msra.mxu0 0.0
        %8691 = vmatprep.subr.mxu0 0.0
        %8692 = vmatpush1.msra.mxu0 0.0
        %8693 = vmatprep.subr.mxu0 0.0
        %8694 = vmatpush1.msra.mxu0 0.0
        %8695 = vmatprep.subr.mxu0 0.0
        %8696 = vmatpush1.msra.mxu0 0.0
        %8697 = vmatprep.subr.mxu0 0.0
        %8698 = vmatpush1.msra.mxu0 0.0
        %8699 = vmatprep.subr.mxu0 0.0
        %8700 = vmatpush1.msra.mxu0 0.0
        %8701 = vmatprep.subr.mxu0 0.0
        %8702 = vmatpush1.msra.mxu0 0.0
        %8703 = vmatprep.subr.mxu0 0.0
        %8704 = vmatpush1.msra.mxu0 0.0
        %8705 = vmatprep.subr.mxu0 0.0
        %8706 = vmatpush1.msra.mxu0 0.0
        %8707 = vmatprep.subr.mxu0 0.0
        %8708 = vmatpush1.msra.mxu0 0.0
        %8709 = vmatprep.subr.mxu0 0.0
        %8710 = vmatpush1.msra.mxu0 0.0
        %8711 = vmatprep.subr.mxu0 0.0
        %8712 = vmatpush1.msra.mxu0 0.0
        %8713 = vmatprep.subr.mxu0 0.0
        %8714 = vmatpush1.msra.mxu0 0.0
        %8715 = vmatprep.subr.mxu0 0.0
        %8716 = vmatpush1.msra.mxu0 0.0
        %8717 = vmatprep.subr.mxu0 0.0
        %8718 = vmatpush1.msra.mxu0 0.0
        %8719 = vmatprep.mubr.f32.mxu0 0.0
        %v8720 = vand.u32 %v8357, 4294901760
        %v8721 = vsub.f32 %v8357, %v8720
        %8722 = vmatmul.mubr.f32.gmra.mrb[0].mxu0 %v8721
        %v8723 = vpop.f32.mrb[0].mxu0
        %v8724 = vadd.f32 %v8620, %v8723
        %v8725 = vpop.f32.mrb[0].mxu0
        %8726 = vdwg.mxu0
        %8727 = vmatprep.subr.mxu0 0.0
        %v8728 = vand.u32 %v8358, 4294901760
        %8729 = vmatpush1.msra.mxu0 %v8728
        %8730 = vmatprep.subr.mxu0 0.0
        %v8731 = vand.u32 %v8359, 4294901760
        %8732 = vmatpush1.msra.mxu0 %v8731
        %8733 = vmatprep.subr.mxu0 0.0
        %v8734 = vand.u32 %v8360, 4294901760
        %8735 = vmatpush1.msra.mxu0 %v8734
        %8736 = vmatprep.subr.mxu0 0.0
        %v8737 = vand.u32 %v8361, 4294901760
        %8738 = vmatpush1.msra.mxu0 %v8737
        %8739 = vmatprep.subr.mxu0 0.0
        %v8740 = vand.u32 %v8362, 4294901760
        %8741 = vmatpush1.msra.mxu0 %v8740
        %8742 = vmatprep.subr.mxu0 0.0
        %v8743 = vand.u32 %v8363, 4294901760
        %8744 = vmatpush1.msra.mxu0 %v8743
        %8745 = vmatprep.subr.mxu0 0.0
        %v8746 = vand.u32 %v8364, 4294901760
        %8747 = vmatpush1.msra.mxu0 %v8746
        %8748 = vmatprep.subr.mxu0 0.0
        %v8749 = vand.u32 %v8365, 4294901760
        %8750 = vmatpush1.msra.mxu0 %v8749
        %8751 = vmatprep.subr.mxu0 0.0
        %v8752 = vand.u32 %v8366, 4294901760
        %8753 = vmatpush1.msra.mxu0 %v8752
        %8754 = vmatprep.subr.mxu0 0.0
        %v8755 = vand.u32 %v8367, 4294901760
        %8756 = vmatpush1.msra.mxu0 %v8755
        %8757 = vmatprep.subr.mxu0 0.0
        %v8758 = vand.u32 %v8368, 4294901760
        %8759 = vmatpush1.msra.mxu0 %v8758
        %8760 = vmatprep.subr.mxu0 0.0
        %v8761 = vand.u32 %v8369, 4294901760
        %8762 = vmatpush1.msra.mxu0 %v8761
        %8763 = vmatprep.subr.mxu0 0.0
        %v8764 = vand.u32 %v8370, 4294901760
        %8765 = vmatpush1.msra.mxu0 %v8764
        %8766 = vmatprep.subr.mxu0 0.0
        %v8767 = vand.u32 %v8371, 4294901760
        %8768 = vmatpush1.msra.mxu0 %v8767
        %8769 = vmatprep.subr.mxu0 0.0
        %v8770 = vand.u32 %v8372, 4294901760
        %8771 = vmatpush1.msra.mxu0 %v8770
        %8772 = vmatprep.subr.mxu0 0.0
        %v8773 = vand.u32 %v8373, 4294901760
        %8774 = vmatpush1.msra.mxu0 %v8773
        %8775 = vmatprep.subr.mxu0 0.0
        %8776 = vmatpush1.msra.mxu0 0.0
        %8777 = vmatprep.subr.mxu0 0.0
        %8778 = vmatpush1.msra.mxu0 0.0
        %8779 = vmatprep.subr.mxu0 0.0
        %8780 = vmatpush1.msra.mxu0 0.0
        %8781 = vmatprep.subr.mxu0 0.0
        %8782 = vmatpush1.msra.mxu0 0.0
        %8783 = vmatprep.subr.mxu0 0.0
        %8784 = vmatpush1.msra.mxu0 0.0
        %8785 = vmatprep.subr.mxu0 0.0
        %8786 = vmatpush1.msra.mxu0 0.0
        %8787 = vmatprep.subr.mxu0 0.0
        %8788 = vmatpush1.msra.mxu0 0.0
        %8789 = vmatprep.subr.mxu0 0.0
        %8790 = vmatpush1.msra.mxu0 0.0
        %8791 = vmatprep.subr.mxu0 0.0
        %8792 = vmatpush1.msra.mxu0 0.0
        %8793 = vmatprep.subr.mxu0 0.0
        %8794 = vmatpush1.msra.mxu0 0.0
        %8795 = vmatprep.subr.mxu0 0.0
        %8796 = vmatpush1.msra.mxu0 0.0
        %8797 = vmatprep.subr.mxu0 0.0
        %8798 = vmatpush1.msra.mxu0 0.0
        %8799 = vmatprep.subr.mxu0 0.0
        %8800 = vmatpush1.msra.mxu0 0.0
        %8801 = vmatprep.subr.mxu0 0.0
        %8802 = vmatpush1.msra.mxu0 0.0
        %8803 = vmatprep.subr.mxu0 0.0
        %8804 = vmatpush1.msra.mxu0 0.0
        %8805 = vmatprep.subr.mxu0 0.0
        %8806 = vmatpush1.msra.mxu0 0.0
        %8807 = vmatprep.mubr.f32.mxu0 0.0
        %v8808 = vand.u32 %v8357, 4294901760
        %v8809 = vsub.f32 %v8357, %v8808
        %v8810 = vand.u32 %v8809, 4294901760
        %8811 = vmatmul.mubr.f32.gmra.mrb[0].mxu0 %v8810
        %v8812 = vpop.f32.mrb[0].mxu0
        %v8813 = vadd.f32 %v8724, %v8812
        %v8814 = vpop.f32.mrb[0].mxu0
        %8815 = vdwg.mxu0
        %8816 = vmatprep.subr.mxu0 0.0
        %v8817 = vand.u32 %v8358, 4294901760
        %v8818 = vsub.f32 %v8358, %v8817
        %v8819 = vand.u32 %v8818, 4294901760
        %8820 = vmatpush1.msra.mxu0 %v8819
        %8821 = vmatprep.subr.mxu0 0.0
        %v8822 = vand.u32 %v8359, 4294901760
        %v8823 = vsub.f32 %v8359, %v8822
        %v8824 = vand.u32 %v8823, 4294901760
        %8825 = vmatpush1.msra.mxu0 %v8824
        %8826 = vmatprep.subr.mxu0 0.0
        %v8827 = vand.u32 %v8360, 4294901760
        %v8828 = vsub.f32 %v8360, %v8827
        %v8829 = vand.u32 %v8828, 4294901760
        %8830 = vmatpush1.msra.mxu0 %v8829
        %8831 = vmatprep.subr.mxu0 0.0
        %v8832 = vand.u32 %v8361, 4294901760
        %v8833 = vsub.f32 %v8361, %v8832
        %v8834 = vand.u32 %v8833, 4294901760
        %8835 = vmatpush1.msra.mxu0 %v8834
        %8836 = vmatprep.subr.mxu0 0.0
        %v8837 = vand.u32 %v8362, 4294901760
        %v8838 = vsub.f32 %v8362, %v8837
        %v8839 = vand.u32 %v8838, 4294901760
        %8840 = vmatpush1.msra.mxu0 %v8839
        %8841 = vmatprep.subr.mxu0 0.0
        %v8842 = vand.u32 %v8363, 4294901760
        %v8843 = vsub.f32 %v8363, %v8842
        %v8844 = vand.u32 %v8843, 4294901760
        %8845 = vmatpush1.msra.mxu0 %v8844
        %8846 = vmatprep.subr.mxu0 0.0
        %v8847 = vand.u32 %v8364, 4294901760
        %v8848 = vsub.f32 %v8364, %v8847
        %v8849 = vand.u32 %v8848, 4294901760
        %8850 = vmatpush1.msra.mxu0 %v8849
        %8851 = vmatprep.subr.mxu0 0.0
        %v8852 = vand.u32 %v8365, 4294901760
        %v8853 = vsub.f32 %v8365, %v8852
        %v8854 = vand.u32 %v8853, 4294901760
        %8855 = vmatpush1.msra.mxu0 %v8854
        %8856 = vmatprep.subr.mxu0 0.0
        %v8857 = vand.u32 %v8366, 4294901760
        %v8858 = vsub.f32 %v8366, %v8857
        %v8859 = vand.u32 %v8858, 4294901760
        %8860 = vmatpush1.msra.mxu0 %v8859
        %8861 = vmatprep.subr.mxu0 0.0
        %v8862 = vand.u32 %v8367, 4294901760
        %v8863 = vsub.f32 %v8367, %v8862
        %v8864 = vand.u32 %v8863, 4294901760
        %8865 = vmatpush1.msra.mxu0 %v8864
        %8866 = vmatprep.subr.mxu0 0.0
        %v8867 = vand.u32 %v8368, 4294901760
        %v8868 = vsub.f32 %v8368, %v8867
        %v8869 = vand.u32 %v8868, 4294901760
        %8870 = vmatpush1.msra.mxu0 %v8869
        %8871 = vmatprep.subr.mxu0 0.0
        %v8872 = vand.u32 %v8369, 4294901760
        %v8873 = vsub.f32 %v8369, %v8872
        %v8874 = vand.u32 %v8873, 4294901760
        %8875 = vmatpush1.msra.mxu0 %v8874
        %8876 = vmatprep.subr.mxu0 0.0
        %v8877 = vand.u32 %v8370, 4294901760
        %v8878 = vsub.f32 %v8370, %v8877
        %v8879 = vand.u32 %v8878, 4294901760
        %8880 = vmatpush1.msra.mxu0 %v8879
        %8881 = vmatprep.subr.mxu0 0.0
        %v8882 = vand.u32 %v8371, 4294901760
        %v8883 = vsub.f32 %v8371, %v8882
        %v8884 = vand.u32 %v8883, 4294901760
        %8885 = vmatpush1.msra.mxu0 %v8884
        %8886 = vmatprep.subr.mxu0 0.0
        %v8887 = vand.u32 %v8372, 4294901760
        %v8888 = vsub.f32 %v8372, %v8887
        %v8889 = vand.u32 %v8888, 4294901760
        %8890 = vmatpush1.msra.mxu0 %v8889
        %8891 = vmatprep.subr.mxu0 0.0
        %v8892 = vand.u32 %v8373, 4294901760
        %v8893 = vsub.f32 %v8373, %v8892
        %v8894 = vand.u32 %v8893, 4294901760
        %8895 = vmatpush1.msra.mxu0 %v8894
        %8896 = vmatprep.subr.mxu0 0.0
        %8897 = vmatpush1.msra.mxu0 0.0
        %8898 = vmatprep.subr.mxu0 0.0
        %8899 = vmatpush1.msra.mxu0 0.0
        %8900 = vmatprep.subr.mxu0 0.0
        %8901 = vmatpush1.msra.mxu0 0.0
        %8902 = vmatprep.subr.mxu0 0.0
        %8903 = vmatpush1.msra.mxu0 0.0
        %8904 = vmatprep.subr.mxu0 0.0
        %8905 = vmatpush1.msra.mxu0 0.0
        %8906 = vmatprep.subr.mxu0 0.0
        %8907 = vmatpush1.msra.mxu0 0.0
        %8908 = vmatprep.subr.mxu0 0.0
        %8909 = vmatpush1.msra.mxu0 0.0
        %8910 = vmatprep.subr.mxu0 0.0
        %8911 = vmatpush1.msra.mxu0 0.0
        %8912 = vmatprep.subr.mxu0 0.0
        %8913 = vmatpush1.msra.mxu0 0.0
        %8914 = vmatprep.subr.mxu0 0.0
        %8915 = vmatpush1.msra.mxu0 0.0
        %8916 = vmatprep.subr.mxu0 0.0
        %8917 = vmatpush1.msra.mxu0 0.0
        %8918 = vmatprep.subr.mxu0 0.0
        %8919 = vmatpush1.msra.mxu0 0.0
        %8920 = vmatprep.subr.mxu0 0.0
        %8921 = vmatpush1.msra.mxu0 0.0
        %8922 = vmatprep.subr.mxu0 0.0
        %8923 = vmatpush1.msra.mxu0 0.0
        %8924 = vmatprep.subr.mxu0 0.0
        %8925 = vmatpush1.msra.mxu0 0.0
        %8926 = vmatprep.subr.mxu0 0.0
        %8927 = vmatpush1.msra.mxu0 0.0
        %8928 = vmatprep.mubr.f32.mxu0 0.0
        %v8929 = vand.u32 %v8357, 4294901760
        %8930 = vmatmul.mubr.f32.gmra.mrb[0].mxu0 %v8929
        %v8931 = vpop.f32.mrb[0].mxu0
        %v8932 = vadd.f32 %v8813, %v8931
        %v8933 = vpop.f32.mrb[0].mxu0
        %8934 = vdwg.mxu0
        %8935 = vmatprep.subr.mxu0 0.0
        %v8936 = vand.u32 %v8358, 4294901760
        %8937 = vmatpush1.msra.mxu0 %v8936
        %8938 = vmatprep.subr.mxu0 0.0
        %v8939 = vand.u32 %v8359, 4294901760
        %8940 = vmatpush1.msra.mxu0 %v8939
        %8941 = vmatprep.subr.mxu0 0.0
        %v8942 = vand.u32 %v8360, 4294901760
        %8943 = vmatpush1.msra.mxu0 %v8942
        %8944 = vmatprep.subr.mxu0 0.0
        %v8945 = vand.u32 %v8361, 4294901760
        %8946 = vmatpush1.msra.mxu0 %v8945
        %8947 = vmatprep.subr.mxu0 0.0
        %v8948 = vand.u32 %v8362, 4294901760
        %8949 = vmatpush1.msra.mxu0 %v8948
        %8950 = vmatprep.subr.mxu0 0.0
        %v8951 = vand.u32 %v8363, 4294901760
        %8952 = vmatpush1.msra.mxu0 %v8951
        %8953 = vmatprep.subr.mxu0 0.0
        %v8954 = vand.u32 %v8364, 4294901760
        %8955 = vmatpush1.msra.mxu0 %v8954
        %8956 = vmatprep.subr.mxu0 0.0
        %v8957 = vand.u32 %v8365, 4294901760
        %8958 = vmatpush1.msra.mxu0 %v8957
        %8959 = vmatprep.subr.mxu0 0.0
        %v8960 = vand.u32 %v8366, 4294901760
        %8961 = vmatpush1.msra.mxu0 %v8960
        %8962 = vmatprep.subr.mxu0 0.0
        %v8963 = vand.u32 %v8367, 4294901760
        %8964 = vmatpush1.msra.mxu0 %v8963
        %8965 = vmatprep.subr.mxu0 0.0
        %v8966 = vand.u32 %v8368, 4294901760
        %8967 = vmatpush1.msra.mxu0 %v8966
        %8968 = vmatprep.subr.mxu0 0.0
        %v8969 = vand.u32 %v8369, 4294901760
        %8970 = vmatpush1.msra.mxu0 %v8969
        %8971 = vmatprep.subr.mxu0 0.0
        %v8972 = vand.u32 %v8370, 4294901760
        %8973 = vmatpush1.msra.mxu0 %v8972
        %8974 = vmatprep.subr.mxu0 0.0
        %v8975 = vand.u32 %v8371, 4294901760
        %8976 = vmatpush1.msra.mxu0 %v8975
        %8977 = vmatprep.subr.mxu0 0.0
        %v8978 = vand.u32 %v8372, 4294901760
        %8979 = vmatpush1.msra.mxu0 %v8978
        %8980 = vmatprep.subr.mxu0 0.0
        %v8981 = vand.u32 %v8373, 4294901760
        %8982 = vmatpush1.msra.mxu0 %v8981
        %8983 = vmatprep.subr.mxu0 0.0
        %8984 = vmatpush1.msra.mxu0 0.0
        %8985 = vmatprep.subr.mxu0 0.0
        %8986 = vmatpush1.msra.mxu0 0.0
        %8987 = vmatprep.subr.mxu0 0.0
        %8988 = vmatpush1.msra.mxu0 0.0
        %8989 = vmatprep.subr.mxu0 0.0
        %8990 = vmatpush1.msra.mxu0 0.0
        %8991 = vmatprep.subr.mxu0 0.0
        %8992 = vmatpush1.msra.mxu0 0.0
        %8993 = vmatprep.subr.mxu0 0.0
        %8994 = vmatpush1.msra.mxu0 0.0
        %8995 = vmatprep.subr.mxu0 0.0
        %8996 = vmatpush1.msra.mxu0 0.0
        %8997 = vmatprep.subr.mxu0 0.0
        %8998 = vmatpush1.msra.mxu0 0.0
        %8999 = vmatprep.subr.mxu0 0.0
        %9000 = vmatpush1.msra.mxu0 0.0
        %9001 = vmatprep.subr.mxu0 0.0
        %9002 = vmatpush1.msra.mxu0 0.0
        %9003 = vmatprep.subr.mxu0 0.0
        %9004 = vmatpush1.msra.mxu0 0.0
        %9005 = vmatprep.subr.mxu0 0.0
        %9006 = vmatpush1.msra.mxu0 0.0
        %9007 = vmatprep.subr.mxu0 0.0
        %9008 = vmatpush1.msra.mxu0 0.0
        %9009 = vmatprep.subr.mxu0 0.0
        %9010 = vmatpush1.msra.mxu0 0.0
        %9011 = vmatprep.subr.mxu0 0.0
        %9012 = vmatpush1.msra.mxu0 0.0
        %9013 = vmatprep.subr.mxu0 0.0
        %9014 = vmatpush1.msra.mxu0 0.0
        %9015 = vmatprep.mubr.f32.mxu0 0.0
        %v9016 = vand.u32 %v8357, 4294901760
        %9017 = vmatmul.mubr.f32.gmra.mrb[0].mxu0 %v9016
        %v9018 = vpop.f32.mrb[0].mxu0
        %v9019 = vadd.f32 %v8932, %v9018
        %v9020 = vpop.f32.mrb[0].mxu0
        %9021 = vdwg.mxu0
        %v9022 = vadd.f32 %v7660, %v9019
        %9023 = vst [vmem:[%s580] sm:$0xff] %v9022
        %s9024 = sand.u32 %s348, 1
        %s9025 = scalar_lea.sflag [#allocation4], %s9024
        %s9026 = sand.u32 %s348, 1
        %s9027 = smul.addr %s9026, 8
        %s9028 = scalar_lea.vmem [#allocation13], %s9027
        // Predicated region
        $region101: #{tpu_custom_call.1} parent=75 // pred_check
          %p9029 = pneg %p358
        $region102: #{tpu_custom_call.1} parent=75 // pred_check_branch
          %9031 = sbr.rel (%p9029) target = $region104
        $region103: #{tpu_custom_call.1} parent=75 // pred_region
          %s9033 = ssub.s32 128, 128
          %9034 = vsyncadd %s9025, %s9033
          %s9035 = smul.addr %s36, 128
          %s9036 = scalar_lea.hbm %s14, %s9035
          %s9038 = sshll.u32 %s9028, 4
          %s9039 = int_to_ptr.vmem [resolvable:$true] %s9038
          %9041 = dma.vmem_to_hbm [thread:$0]  %s9039, 128, %s9036, %s9025
        $region104: #{tpu_custom_call.1} parent=75 // pred_fallthru
          _
      $region76: #{tpu_custom_call.1} parent=5 // pred_fallthru
        _
      %p9042 = scmp.le.s32.totalorder 2, %s31
      // Predicated region
      $region105: #{tpu_custom_call.1} parent=5 // pred_check
        %p9043 = pneg %p9042
      $region106: #{tpu_custom_call.1} parent=5 // pred_check_branch
        %9045 = sbr.rel (%p9043) target = $region108
      $region107: #{tpu_custom_call.1} parent=5 // pred_region
        %s9046 = ssub.s32 %s31, 2
        // Predicated region
        $region109: #{tpu_custom_call.1} parent=107 // pred_check
          %p9047 = pneg %p364
        $region110: #{tpu_custom_call.1} parent=107 // pred_check_branch
          %9049 = sbr.rel (%p9047) target = $region112
        $region111: #{tpu_custom_call.1} parent=107 // pred_region
          %s9050 = sand.u32 %s349, 1
          %s9051 = scalar_lea.sflag [#allocation4], %s9050
          %s9052 = sand.u32 %s349, 1
          %s9053 = smul.addr %s9052, 8
          %s9054 = scalar_lea.vmem [#allocation13], %s9053
          %9055 = dma.done %s9051, 128
        $region112: #{tpu_custom_call.1} parent=107 // pred_fallthru
          _
      $region108: #{tpu_custom_call.1} parent=5 // pred_fallthru
        _
    $region6: #{tpu_custom_call.1} parent=1 // loop_footer
      %s35 = sadd.s32 1, %s31
    $region7: #{tpu_custom_call.1} parent=1 // loop_footer_branch
      %30 = sbr.rel target = $region3
    $region8: #{tpu_custom_call.1} parent=1 // loop_exit
      _
    %9056 = vsyncpa [#allocation3], 1
    %s9057 = scalar_lea.sflag [#allocation3], 1
    %9058 = vsyncpa %s9057, 1
    %9059 = vsyncpa [#allocation6], 1
    %9060 = vsyncpa [#allocation9], 1
    %9061 = vsyncpa [#allocation12], 1
    %s9062 = scalar_lea.sflag [#allocation12], 1
    %9063 = vsyncpa %s9062, 1
    %9064 = vsyncpa [#allocation4], 1
    %s9065 = scalar_lea.sflag [#allocation4], 1
    %9066 = vsyncpa %s9065, 1

</llo_original>
